<compile_context>
chip_gen: v7x
topology: tpu7x:2x2x1
jax: 0.10.0
libtpu: 0.0.40
codegen_flags: <defaults>
</compile_context>

<pallas_src>
import functools

import jax
import jax.numpy as jnp
from jax.experimental import pallas as pl
from jax.experimental.pallas import tpu as pltpu

HP = dict(hidden_dim=32, embed_dim=32, n_layers=2, pad_idx=0, sos_idx=1, eos_idx=2)


def _const_spec(shape):
    nd = len(shape)
    return pl.BlockSpec(tuple(shape), lambda i, _nd=nd: (0,) * _nd)


# ----------------------------------------------------------------------------
# Fully-fused Seq2Seq forward kernel
# ----------------------------------------------------------------------------
def _make_seq2seq_kernel(n_layers, S, H, E, V, maxLen, sos_idx):
    f32 = jnp.float32

    def gru_cell(gi, gh, h):
        # gi, gh: (1, 3H) with PyTorch gate order (r | z | n); h: (1, H).
        rz = jax.nn.sigmoid(gi[:, :2 * H] + gh[:, :2 * H])     # one sigmoid on r|z slab
        r, z = rz[:, :H], rz[:, H:]
        n = jnp.tanh(gi[:, 2 * H:] + r * gh[:, 2 * H:])
        return (1.0 - z) * n + z * h

    def kernel(*refs):
        i = 0
        x_ref = refs[i]; i += 1                                  # (S, E) src embeddings
        enc_w = []
        for _ in range(n_layers):
            enc_w.append(refs[i:i + 4]); i += 4                  # wih(2,In,3H) whh(2,H,3H) bih/bhh(2,1,3H)
        emb_tgt_ref, wenc_ref, wdec_ref, vatt_ref = refs[i:i + 4]; i += 4
        dec_w = []
        for _ in range(n_layers):
            dec_w.append(refs[i:i + 4]); i += 4                  # wih(In,3H) whh(H,3H) bih/bhh(1,3H)
        outw_ref, outb_ref = refs[i:i + 2]; i += 2
        logits_ref, alphas_ref = refs[i:i + 2]                   # (maxLen, V), (S, maxLen)

        # ------------------- encoder: n_layers x bidirectional GRU -------------------
        layer_in = x_ref[...]                                    # (S, In)
        finals = []                                              # [l0_fwd, l0_bwd, l1_fwd, ...]
        hs_fwd = hs_bwd = None
        for l in range(n_layers):
            wih_ref, whh_ref, bih_ref, bhh_ref = enc_w[l]
            per_dir = []
            for d in range(2):                                   # 0 = forward, 1 = backward
                wih, whh = wih_ref[d], whh_ref[d]                # (In,3H), (H,3H)
                bih, bhh = bih_ref[d], bhh_ref[d]                # (1,3H)
                # Hoisted input projection for the whole sequence.
                gi_all = jnp.dot(layer_in, wih, preferred_element_type=f32) + bih   # (S, 3H)
                h = jnp.zeros((1, H), f32)
                outs = [None] * S
                ts = range(S) if d == 0 else range(S - 1, -1, -1)
                for t in ts:                                     # fully unrolled recurrence
                    gh = jnp.dot(h, whh, preferred_element_type=f32) + bhh          # (1, 3H)
                    h = gru_cell(gi_all[t:t + 1, :], gh, h)
                    outs[t] = h                                  # natural time order
                per_dir.append(jnp.concatenate(outs, axis=0))    # (S, H)
                finals.append(h)                                 # final hidden of (layer, dir)
            hs_fwd, hs_bwd = per_dir
            layer_in = jnp.concatenate([hs_fwd, hs_bwd], axis=-1)    # (S, 2H) next-layer input

        encoder_final = hs_fwd + hs_bwd                          # (S, H)  h_fwd + h_bwd
        dec_h = list(finals[-n_layers:])                         # decoder h0 (= encoder_hidden[-L:])

        # ------------------------ decoder: greedy, maxLen steps ----------------------
        emb_tgt = emb_tgt_ref[...]                               # (V, E)
        # NOTE: like the reference AttentionModule, no masking of padded positions.
        enc_p = jnp.dot(encoder_final, wenc_ref[...],
                        preferred_element_type=f32)              # (S, H) loop-invariant, hoisted
        vatt = vatt_ref[...]                                     # (1, H)
        outw, outb = outw_ref[...], outb_ref[...]

        emb = emb_tgt[sos_idx:sos_idx + 1, :]                    # (1, E) <sos> embedding
        logit_rows, alpha_cols = [], []
        for _t in range(maxLen):                                 # fully unrolled decode loop
            # ---- attention (top decoder hidden vs. encoder outputs) ----
            dec_p = jnp.dot(dec_h[-1], wdec_ref[...], preferred_element_type=f32)   # (1, H)
            u = jnp.tanh(enc_p + dec_p)                          # (S, H)
            scores = jnp.sum(u * vatt, axis=-1, keepdims=True)   # (S, 1) VPU mul + lane reduce
            m = jnp.max(scores, axis=0, keepdims=True)
            e = jnp.exp(scores - m)
            denom = jnp.sum(e, axis=0, keepdims=True)
            alpha = e * pl.reciprocal(denom, approx=True)        # (S, 1)
            context = jnp.sum(alpha * encoder_final, axis=0, keepdims=True)         # (1, H)
            alpha_cols.append(alpha)

            # ---- decoder GRU stack on [embed ; context] ----
            xd = jnp.concatenate([emb, context], axis=-1)        # (1, E + H)
            for l in range(n_layers):
                dwih, dwhh, dbih, dbhh = dec_w[l]
                gi = jnp.dot(xd, dwih[...], preferred_element_type=f32) + dbih[...]
                gh = jnp.dot(dec_h[l], dwhh[...], preferred_element_type=f32) + dbhh[...]
                h_new = gru_cell(gi, gh, dec_h[l])
                dec_h[l] = h_new
                xd = h_new

            # ---- output projection on [rnn_output ; context] ----
            out_in = jnp.concatenate([xd, context], axis=-1)     # (1, 2H)
            logits = jnp.dot(out_in, outw, preferred_element_type=f32) + outb       # (1, V)
            logit_rows.append(logits)

            # ---- greedy argmax (first max, torch-style) -> next-token embedding ----
            idx = jax.lax.broadcasted_iota(jnp.int32, (1, V), 1)
            mx = jnp.max(logits, axis=-1, keepdims=True)
            first = jnp.min(jnp.where(logits >= mx, idx, V), axis=-1, keepdims=True)
            onehot = (idx == first).astype(f32)                  # (1, V)
            emb = jnp.dot(onehot, emb_tgt, preferred_element_type=f32)              # (1, E)

        # Single dense stores for both outputs.
        logits_ref[...] = jnp.concatenate(logit_rows, axis=0)    # (maxLen, V)
        alphas_ref[...] = jnp.concatenate(alpha_cols, axis=1)    # (S, maxLen)

    return kernel


def seq2seq_fused(params, x_emb, maxLen, n_layers):
    """x_emb: (S, E) source embeddings.  Returns logits (maxLen, V), alphas (S, maxLen)."""
    S, E = x_emb.shape
    H = params['att_wenc'].shape[0]
    V = params['embed_tgt'].shape[0]

    in_arrays = [x_emb]
    for l in range(n_layers):
        in_arrays += [params[f'enc_wih_l{l}'], params[f'enc_whh_l{l}'],
                      params[f'enc_bih_l{l}'], params[f'enc_bhh_l{l}']]
    in_arrays += [params['embed_tgt'], params['att_wenc'],
                  params['att_wdec'], params['att_v']]
    for l in range(n_layers):
        in_arrays += [params[f'dec_wih_l{l}'], params[f'dec_whh_l{l}'],
                      params[f'dec_bih_l{l}'], params[f'dec_bhh_l{l}']]
    in_arrays += [params['out_w'], params['out_b']]

    kernel = _make_seq2seq_kernel(n_layers, S, H, E, V, maxLen, HP['sos_idx'])
    logits, alphas = pl.pallas_call(
        kernel,
        out_shape=(jax.ShapeDtypeStruct((maxLen, V), jnp.float32),
                   jax.ShapeDtypeStruct((S, maxLen), jnp.float32)),
        grid=(1,),
        in_specs=[_const_spec(a.shape) for a in in_arrays],
        out_specs=(_const_spec((maxLen, V)), _const_spec((S, maxLen))),
        compiler_params=pltpu.CompilerParams(dimension_semantics=("arbitrary",)),
    )(*in_arrays)
    return logits, alphas


# ----------------------------------------------------------------------------
# Model glue (source embedding gather + batch-dim plumbing) in plain JAX
# ----------------------------------------------------------------------------
def seq2seq_forward(params, source, maxLen, n_layers):
    """source: (S, B) int32 with B == 1.  Returns (outputs (maxLen, B, V),
    alphas (B, S, maxLen)), matching the PyTorch greedyDecoder."""
    S, B = source.shape
    assert B == 1, "reference semantics require batch_size == 1"
    x_emb = params['embed_src'][source[:, 0]]                    # (S, E)
    logits, alphas = seq2seq_fused(params, x_emb, maxLen, n_layers)
    outputs = logits[:, None, :]                                 # (maxLen, B, V)
    alphas_out = alphas[None]                                    # (B, S, maxLen)
    return outputs, alphas_out


# ----------------------------------------------------------------------------
# Deterministic synthetic parameter init.  Weights are stored transposed for
# right-multiplication with the 3 GRU gates (r|z|n) fused along the last axis
# (3H wide); encoder directions are stacked on a leading axis.
# ----------------------------------------------------------------------------
def init_params(key, src_vocab, tgt_vocab, E, H, L):
    keys = iter(jax.random.split(key, 64))

    def nrm(shape, scale=0.1):
        return scale * jax.random.normal(next(keys), shape, jnp.float32)

    p = {}
    p['embed_src'] = nrm((src_vocab, E)).at[HP['pad_idx']].set(0.0)
    p['embed_tgt'] = nrm((tgt_vocab, E)).at[HP['pad_idx']].set(0.0)
    # Encoder: bidirectional L-layer GRU
    for l in range(L):
        in_dim = E if l == 0 else 2 * H
        p[f'enc_wih_l{l}'] = nrm((2, in_dim, 3 * H))
        p[f'enc_whh_l{l}'] = nrm((2, H, 3 * H))
        p[f'enc_bih_l{l}'] = nrm((2, 1, 3 * H))
        p[f'enc_bhh_l{l}'] = nrm((2, 1, 3 * H))
    # Decoder: unidirectional L-layer GRU on [embed ; context]
    for l in range(L):
        in_dim = (E + H) if l == 0 else H
        p[f'dec_wih_l{l}'] = nrm((in_dim, 3 * H))
        p[f'dec_whh_l{l}'] = nrm((H, 3 * H))
        p[f'dec_bih_l{l}'] = nrm((1, 3 * H))
        p[f'dec_bhh_l{l}'] = nrm((1, 3 * H))
    # Attention (bias-free linears); V_att stored as a (1, H) row vector.
    p['att_wenc'] = nrm((H, H))
    p['att_wdec'] = nrm((H, H))
    p['att_v'] = nrm((1, H))
    # Output projection Linear(2H, tgt_vocab)
    p['out_w'] = nrm((2 * H, tgt_vocab))
    p['out_b'] = nrm((1, tgt_vocab))
    return p


# ----------------------------------------------------------------------------
if __name__ == "__main__":
    key = jax.random.PRNGKey(0)
    k_param, k_src = jax.random.split(key)

    SRC_V, TGT_V = 16, 12
    E, H, L = HP['embed_dim'], HP['hidden_dim'], HP['n_layers']
    S, B, MAXLEN = 8, 1, 5

    params = init_params(k_param, SRC_V, TGT_V, E, H, L)
    source = jax.random.randint(k_src, (S, B), 4, SRC_V, dtype=jnp.int32)

    fwd = jax.jit(functools.partial(seq2seq_forward, maxLen=MAXLEN, n_layers=L))
    outputs, alphas = fwd(params, source)
    jax.block_until_ready((outputs, alphas))

    assert outputs.shape == (MAXLEN, B, TGT_V), outputs.shape
    assert alphas.shape == (B, S, MAXLEN), alphas.shape
    assert bool(jnp.all(jnp.isfinite(outputs))) and bool(jnp.all(jnp.isfinite(alphas)))
    print("KERNEL_OK")
</pallas_src>

<mosaic_0001>
module attributes {stable_mosaic.version = 11 : i64} {
  func.func @kernel(%arg0: i32, %arg1: memref<8x32xf32, #tpu.memory_space<vmem>>, %arg2: memref<2x32x96xf32, #tpu.memory_space<vmem>>, %arg3: memref<2x32x96xf32, #tpu.memory_space<vmem>>, %arg4: memref<2x1x96xf32, #tpu.memory_space<vmem>>, %arg5: memref<2x1x96xf32, #tpu.memory_space<vmem>>, %arg6: memref<2x64x96xf32, #tpu.memory_space<vmem>>, %arg7: memref<2x32x96xf32, #tpu.memory_space<vmem>>, %arg8: memref<2x1x96xf32, #tpu.memory_space<vmem>>, %arg9: memref<2x1x96xf32, #tpu.memory_space<vmem>>, %arg10: memref<12x32xf32, #tpu.memory_space<vmem>>, %arg11: memref<32x32xf32, #tpu.memory_space<vmem>>, %arg12: memref<32x32xf32, #tpu.memory_space<vmem>>, %arg13: memref<1x32xf32, #tpu.memory_space<vmem>>, %arg14: memref<64x96xf32, #tpu.memory_space<vmem>>, %arg15: memref<32x96xf32, #tpu.memory_space<vmem>>, %arg16: memref<1x96xf32, #tpu.memory_space<vmem>>, %arg17: memref<1x96xf32, #tpu.memory_space<vmem>>, %arg18: memref<32x96xf32, #tpu.memory_space<vmem>>, %arg19: memref<32x96xf32, #tpu.memory_space<vmem>>, %arg20: memref<1x96xf32, #tpu.memory_space<vmem>>, %arg21: memref<1x96xf32, #tpu.memory_space<vmem>>, %arg22: memref<64x12xf32, #tpu.memory_space<vmem>>, %arg23: memref<1x12xf32, #tpu.memory_space<vmem>>, %arg24: memref<5x12xf32, #tpu.memory_space<vmem>>, %arg25: memref<8x5xf32, #tpu.memory_space<vmem>>) attributes {dimension_semantics = [#tpu.dimension_semantics<arbitrary>], iteration_bounds = array<i64: 1>, scalar_prefetch = 0 : i64, scratch_operands = 0 : i64, tpu.core_type = #tpu.core_type<tc>, window_params = [{pipeline_mode = #tpu.pipeline_mode<synchronous>, transform_indices = @transform_0, window_bounds = array<i64: 8, 32>}, {pipeline_mode = #tpu.pipeline_mode<synchronous>, transform_indices = @transform_1, window_bounds = array<i64: 2, 32, 96>}, {pipeline_mode = #tpu.pipeline_mode<synchronous>, transform_indices = @transform_2, window_bounds = array<i64: 2, 32, 96>}, {pipeline_mode = #tpu.pipeline_mode<synchronous>, transform_indices = @transform_3, window_bounds = array<i64: 2, 1, 96>}, {pipeline_mode = #tpu.pipeline_mode<synchronous>, transform_indices = @transform_4, window_bounds = array<i64: 2, 1, 96>}, {pipeline_mode = #tpu.pipeline_mode<synchronous>, transform_indices = @transform_5, window_bounds = array<i64: 2, 64, 96>}, {pipeline_mode = #tpu.pipeline_mode<synchronous>, transform_indices = @transform_6, window_bounds = array<i64: 2, 32, 96>}, {pipeline_mode = #tpu.pipeline_mode<synchronous>, transform_indices = @transform_7, window_bounds = array<i64: 2, 1, 96>}, {pipeline_mode = #tpu.pipeline_mode<synchronous>, transform_indices = @transform_8, window_bounds = array<i64: 2, 1, 96>}, {pipeline_mode = #tpu.pipeline_mode<synchronous>, transform_indices = @transform_9, window_bounds = array<i64: 12, 32>}, {pipeline_mode = #tpu.pipeline_mode<synchronous>, transform_indices = @transform_10, window_bounds = array<i64: 32, 32>}, {pipeline_mode = #tpu.pipeline_mode<synchronous>, transform_indices = @transform_11, window_bounds = array<i64: 32, 32>}, {pipeline_mode = #tpu.pipeline_mode<synchronous>, transform_indices = @transform_12, window_bounds = array<i64: 1, 32>}, {pipeline_mode = #tpu.pipeline_mode<synchronous>, transform_indices = @transform_13, window_bounds = array<i64: 64, 96>}, {pipeline_mode = #tpu.pipeline_mode<synchronous>, transform_indices = @transform_14, window_bounds = array<i64: 32, 96>}, {pipeline_mode = #tpu.pipeline_mode<synchronous>, transform_indices = @transform_15, window_bounds = array<i64: 1, 96>}, {pipeline_mode = #tpu.pipeline_mode<synchronous>, transform_indices = @transform_16, window_bounds = array<i64: 1, 96>}, {pipeline_mode = #tpu.pipeline_mode<synchronous>, transform_indices = @transform_17, window_bounds = array<i64: 32, 96>}, {pipeline_mode = #tpu.pipeline_mode<synchronous>, transform_indices = @transform_18, window_bounds = array<i64: 32, 96>}, {pipeline_mode = #tpu.pipeline_mode<synchronous>, transform_indices = @transform_19, window_bounds = array<i64: 1, 96>}, {pipeline_mode = #tpu.pipeline_mode<synchronous>, transform_indices = @transform_20, window_bounds = array<i64: 1, 96>}, {pipeline_mode = #tpu.pipeline_mode<synchronous>, transform_indices = @transform_21, window_bounds = array<i64: 64, 12>}, {pipeline_mode = #tpu.pipeline_mode<synchronous>, transform_indices = @transform_22, window_bounds = array<i64: 1, 12>}, {pipeline_mode = #tpu.pipeline_mode<synchronous>, transform_indices = @transform_23, window_bounds = array<i64: 5, 12>}, {pipeline_mode = #tpu.pipeline_mode<synchronous>, transform_indices = @transform_24, window_bounds = array<i64: 8, 5>}]} {
    %c0 = arith.constant 0 : index
    %c0_0 = arith.constant 0 : index
    %0 = vector.load %arg1[%c0, %c0_0] : memref<8x32xf32, #tpu.memory_space<vmem>>, vector<8x32xf32>
    %c0_1 = arith.constant 0 : index
    %c0_2 = arith.constant 0 : index
    %c0_3 = arith.constant 0 : index
    %1 = vector.load %arg2[%c0_1, %c0_2, %c0_3] : memref<2x32x96xf32, #tpu.memory_space<vmem>>, vector<1x32x96xf32>
    %2 = vector.shape_cast %1 : vector<1x32x96xf32> to vector<32x96xf32>
    %c0_4 = arith.constant 0 : index
    %c0_5 = arith.constant 0 : index
    %c0_6 = arith.constant 0 : index
    %3 = vector.load %arg3[%c0_4, %c0_5, %c0_6] : memref<2x32x96xf32, #tpu.memory_space<vmem>>, vector<1x32x96xf32>
    %4 = vector.shape_cast %3 : vector<1x32x96xf32> to vector<32x96xf32>
    %c0_7 = arith.constant 0 : index
    %c0_8 = arith.constant 0 : index
    %c0_9 = arith.constant 0 : index
    %5 = vector.load %arg4[%c0_7, %c0_8, %c0_9] : memref<2x1x96xf32, #tpu.memory_space<vmem>>, vector<1x1x96xf32>
    %6 = vector.shape_cast %5 : vector<1x1x96xf32> to vector<1x96xf32>
    %c0_10 = arith.constant 0 : index
    %c0_11 = arith.constant 0 : index
    %c0_12 = arith.constant 0 : index
    %7 = vector.load %arg5[%c0_10, %c0_11, %c0_12] : memref<2x1x96xf32, #tpu.memory_space<vmem>>, vector<1x1x96xf32>
    %8 = vector.shape_cast %7 : vector<1x1x96xf32> to vector<1x96xf32>
    %cst = arith.constant dense<0.000000e+00> : vector<8x96xf32>
    %9 = tpu.matmul %0, %2, %cst {dimension_numbers = #tpu.dot_dimension_numbers<[1], [0], [0], [1], [0, 0, 1, 1], [], []>} : vector<8x32xf32>, vector<32x96xf32>, vector<8x96xf32> -> vector<8x96xf32>
    %10 = vector.broadcast %6 : vector<1x96xf32> to vector<8x96xf32>
    %11 = arith.addf %9, %10 : vector<8x96xf32>
    %cst_13 = arith.constant 0.000000e+00 : f32
    %12 = vector.broadcast %cst_13 : f32 to vector<1x32xf32>
    %cst_14 = arith.constant dense<0.000000e+00> : vector<1x96xf32>
    %13 = tpu.matmul %12, %4, %cst_14 {dimension_numbers = #tpu.dot_dimension_numbers<[1], [0], [0], [1], [0, 0, 1, 1], [], []>} : vector<1x32xf32>, vector<32x96xf32>, vector<1x96xf32> -> vector<1x96xf32>
    %14 = arith.addf %13, %8 : vector<1x96xf32>
    %15 = vector.extract_strided_slice %11 {offsets = [0, 0], sizes = [1, 96], strides = [1, 1]} : vector<8x96xf32> to vector<1x96xf32>
    %16 = vector.extract_strided_slice %15 {offsets = [0, 0], sizes = [1, 64], strides = [1, 1]} : vector<1x96xf32> to vector<1x64xf32>
    %17 = vector.extract_strided_slice %14 {offsets = [0, 0], sizes = [1, 64], strides = [1, 1]} : vector<1x96xf32> to vector<1x64xf32>
    %18 = arith.addf %16, %17 : vector<1x64xf32>
    %19 = arith.negf %18 : vector<1x64xf32>
    %20 = math.exp %19 : vector<1x64xf32>
    %cst_15 = arith.constant 1.000000e+00 : f32
    %21 = vector.broadcast %cst_15 : f32 to vector<1x64xf32>
    %22 = arith.addf %21, %20 : vector<1x64xf32>
    %23 = arith.divf %21, %22 : vector<1x64xf32>
    %24 = vector.extract_strided_slice %23 {offsets = [0, 0], sizes = [1, 32], strides = [1, 1]} : vector<1x64xf32> to vector<1x32xf32>
    %25 = vector.extract_strided_slice %23 {offsets = [0, 32], sizes = [1, 32], strides = [1, 1]} : vector<1x64xf32> to vector<1x32xf32>
    %26 = vector.extract_strided_slice %15 {offsets = [0, 64], sizes = [1, 32], strides = [1, 1]} : vector<1x96xf32> to vector<1x32xf32>
    %27 = vector.extract_strided_slice %14 {offsets = [0, 64], sizes = [1, 32], strides = [1, 1]} : vector<1x96xf32> to vector<1x32xf32>
    %28 = arith.mulf %24, %27 : vector<1x32xf32>
    %29 = arith.addf %26, %28 : vector<1x32xf32>
    %30 = math.tanh %29 : vector<1x32xf32>
    %cst_16 = arith.constant 1.000000e+00 : f32
    %31 = vector.broadcast %cst_16 : f32 to vector<1x32xf32>
    %32 = arith.subf %31, %25 : vector<1x32xf32>
    %33 = arith.mulf %32, %30 : vector<1x32xf32>
    %34 = arith.mulf %25, %12 : vector<1x32xf32>
    %35 = arith.addf %33, %34 : vector<1x32xf32>
    %cst_17 = arith.constant dense<0.000000e+00> : vector<1x96xf32>
    %36 = tpu.matmul %35, %4, %cst_17 {dimension_numbers = #tpu.dot_dimension_numbers<[1], [0], [0], [1], [0, 0, 1, 1], [], []>} : vector<1x32xf32>, vector<32x96xf32>, vector<1x96xf32> -> vector<1x96xf32>
    %37 = arith.addf %36, %8 : vector<1x96xf32>
    %38 = vector.extract_strided_slice %11 {offsets = [1, 0], sizes = [1, 96], strides = [1, 1]} : vector<8x96xf32> to vector<1x96xf32>
    %39 = vector.extract_strided_slice %38 {offsets = [0, 0], sizes = [1, 64], strides = [1, 1]} : vector<1x96xf32> to vector<1x64xf32>
    %40 = vector.extract_strided_slice %37 {offsets = [0, 0], sizes = [1, 64], strides = [1, 1]} : vector<1x96xf32> to vector<1x64xf32>
    %41 = arith.addf %39, %40 : vector<1x64xf32>
    %42 = arith.negf %41 : vector<1x64xf32>
    %43 = math.exp %42 : vector<1x64xf32>
    %cst_18 = arith.constant 1.000000e+00 : f32
    %44 = vector.broadcast %cst_18 : f32 to vector<1x64xf32>
    %45 = arith.addf %44, %43 : vector<1x64xf32>
    %46 = arith.divf %44, %45 : vector<1x64xf32>
    %47 = vector.extract_strided_slice %46 {offsets = [0, 0], sizes = [1, 32], strides = [1, 1]} : vector<1x64xf32> to vector<1x32xf32>
    %48 = vector.extract_strided_slice %46 {offsets = [0, 32], sizes = [1, 32], strides = [1, 1]} : vector<1x64xf32> to vector<1x32xf32>
    %49 = vector.extract_strided_slice %38 {offsets = [0, 64], sizes = [1, 32], strides = [1, 1]} : vector<1x96xf32> to vector<1x32xf32>
    %50 = vector.extract_strided_slice %37 {offsets = [0, 64], sizes = [1, 32], strides = [1, 1]} : vector<1x96xf32> to vector<1x32xf32>
    %51 = arith.mulf %47, %50 : vector<1x32xf32>
    %52 = arith.addf %49, %51 : vector<1x32xf32>
    %53 = math.tanh %52 : vector<1x32xf32>
    %cst_19 = arith.constant 1.000000e+00 : f32
    %54 = vector.broadcast %cst_19 : f32 to vector<1x32xf32>
    %55 = arith.subf %54, %48 : vector<1x32xf32>
    %56 = arith.mulf %55, %53 : vector<1x32xf32>
    %57 = arith.mulf %48, %35 : vector<1x32xf32>
    %58 = arith.addf %56, %57 : vector<1x32xf32>
    %cst_20 = arith.constant dense<0.000000e+00> : vector<1x96xf32>
    %59 = tpu.matmul %58, %4, %cst_20 {dimension_numbers = #tpu.dot_dimension_numbers<[1], [0], [0], [1], [0, 0, 1, 1], [], []>} : vector<1x32xf32>, vector<32x96xf32>, vector<1x96xf32> -> vector<1x96xf32>
    %60 = arith.addf %59, %8 : vector<1x96xf32>
    %61 = vector.extract_strided_slice %11 {offsets = [2, 0], sizes = [1, 96], strides = [1, 1]} : vector<8x96xf32> to vector<1x96xf32>
    %62 = vector.extract_strided_slice %61 {offsets = [0, 0], sizes = [1, 64], strides = [1, 1]} : vector<1x96xf32> to vector<1x64xf32>
    %63 = vector.extract_strided_slice %60 {offsets = [0, 0], sizes = [1, 64], strides = [1, 1]} : vector<1x96xf32> to vector<1x64xf32>
    %64 = arith.addf %62, %63 : vector<1x64xf32>
    %65 = arith.negf %64 : vector<1x64xf32>
    %66 = math.exp %65 : vector<1x64xf32>
    %cst_21 = arith.constant 1.000000e+00 : f32
    %67 = vector.broadcast %cst_21 : f32 to vector<1x64xf32>
    %68 = arith.addf %67, %66 : vector<1x64xf32>
    %69 = arith.divf %67, %68 : vector<1x64xf32>
    %70 = vector.extract_strided_slice %69 {offsets = [0, 0], sizes = [1, 32], strides = [1, 1]} : vector<1x64xf32> to vector<1x32xf32>
    %71 = vector.extract_strided_slice %69 {offsets = [0, 32], sizes = [1, 32], strides = [1, 1]} : vector<1x64xf32> to vector<1x32xf32>
    %72 = vector.extract_strided_slice %61 {offsets = [0, 64], sizes = [1, 32], strides = [1, 1]} : vector<1x96xf32> to vector<1x32xf32>
    %73 = vector.extract_strided_slice %60 {offsets = [0, 64], sizes = [1, 32], strides = [1, 1]} : vector<1x96xf32> to vector<1x32xf32>
    %74 = arith.mulf %70, %73 : vector<1x32xf32>
    %75 = arith.addf %72, %74 : vector<1x32xf32>
    %76 = math.tanh %75 : vector<1x32xf32>
    %cst_22 = arith.constant 1.000000e+00 : f32
    %77 = vector.broadcast %cst_22 : f32 to vector<1x32xf32>
    %78 = arith.subf %77, %71 : vector<1x32xf32>
    %79 = arith.mulf %78, %76 : vector<1x32xf32>
    %80 = arith.mulf %71, %58 : vector<1x32xf32>
    %81 = arith.addf %79, %80 : vector<1x32xf32>
    %cst_23 = arith.constant dense<0.000000e+00> : vector<1x96xf32>
    %82 = tpu.matmul %81, %4, %cst_23 {dimension_numbers = #tpu.dot_dimension_numbers<[1], [0], [0], [1], [0, 0, 1, 1], [], []>} : vector<1x32xf32>, vector<32x96xf32>, vector<1x96xf32> -> vector<1x96xf32>
    %83 = arith.addf %82, %8 : vector<1x96xf32>
    %84 = vector.extract_strided_slice %11 {offsets = [3, 0], sizes = [1, 96], strides = [1, 1]} : vector<8x96xf32> to vector<1x96xf32>
    %85 = vector.extract_strided_slice %84 {offsets = [0, 0], sizes = [1, 64], strides = [1, 1]} : vector<1x96xf32> to vector<1x64xf32>
    %86 = vector.extract_strided_slice %83 {offsets = [0, 0], sizes = [1, 64], strides = [1, 1]} : vector<1x96xf32> to vector<1x64xf32>
    %87 = arith.addf %85, %86 : vector<1x64xf32>
    %88 = arith.negf %87 : vector<1x64xf32>
    %89 = math.exp %88 : vector<1x64xf32>
    %cst_24 = arith.constant 1.000000e+00 : f32
    %90 = vector.broadcast %cst_24 : f32 to vector<1x64xf32>
    %91 = arith.addf %90, %89 : vector<1x64xf32>
    %92 = arith.divf %90, %91 : vector<1x64xf32>
    %93 = vector.extract_strided_slice %92 {offsets = [0, 0], sizes = [1, 32], strides = [1, 1]} : vector<1x64xf32> to vector<1x32xf32>
    %94 = vector.extract_strided_slice %92 {offsets = [0, 32], sizes = [1, 32], strides = [1, 1]} : vector<1x64xf32> to vector<1x32xf32>
    %95 = vector.extract_strided_slice %84 {offsets = [0, 64], sizes = [1, 32], strides = [1, 1]} : vector<1x96xf32> to vector<1x32xf32>
    %96 = vector.extract_strided_slice %83 {offsets = [0, 64], sizes = [1, 32], strides = [1, 1]} : vector<1x96xf32> to vector<1x32xf32>
    %97 = arith.mulf %93, %96 : vector<1x32xf32>
    %98 = arith.addf %95, %97 : vector<1x32xf32>
    %99 = math.tanh %98 : vector<1x32xf32>
    %cst_25 = arith.constant 1.000000e+00 : f32
    %100 = vector.broadcast %cst_25 : f32 to vector<1x32xf32>
    %101 = arith.subf %100, %94 : vector<1x32xf32>
    %102 = arith.mulf %101, %99 : vector<1x32xf32>
    %103 = arith.mulf %94, %81 : vector<1x32xf32>
    %104 = arith.addf %102, %103 : vector<1x32xf32>
    %cst_26 = arith.constant dense<0.000000e+00> : vector<1x96xf32>
    %105 = tpu.matmul %104, %4, %cst_26 {dimension_numbers = #tpu.dot_dimension_numbers<[1], [0], [0], [1], [0, 0, 1, 1], [], []>} : vector<1x32xf32>, vector<32x96xf32>, vector<1x96xf32> -> vector<1x96xf32>
    %106 = arith.addf %105, %8 : vector<1x96xf32>
    %107 = vector.extract_strided_slice %11 {offsets = [4, 0], sizes = [1, 96], strides = [1, 1]} : vector<8x96xf32> to vector<1x96xf32>
    %108 = vector.extract_strided_slice %107 {offsets = [0, 0], sizes = [1, 64], strides = [1, 1]} : vector<1x96xf32> to vector<1x64xf32>
    %109 = vector.extract_strided_slice %106 {offsets = [0, 0], sizes = [1, 64], strides = [1, 1]} : vector<1x96xf32> to vector<1x64xf32>
    %110 = arith.addf %108, %109 : vector<1x64xf32>
    %111 = arith.negf %110 : vector<1x64xf32>
    %112 = math.exp %111 : vector<1x64xf32>
    %cst_27 = arith.constant 1.000000e+00 : f32
    %113 = vector.broadcast %cst_27 : f32 to vector<1x64xf32>
    %114 = arith.addf %113, %112 : vector<1x64xf32>
    %115 = arith.divf %113, %114 : vector<1x64xf32>
    %116 = vector.extract_strided_slice %115 {offsets = [0, 0], sizes = [1, 32], strides = [1, 1]} : vector<1x64xf32> to vector<1x32xf32>
    %117 = vector.extract_strided_slice %115 {offsets = [0, 32], sizes = [1, 32], strides = [1, 1]} : vector<1x64xf32> to vector<1x32xf32>
    %118 = vector.extract_strided_slice %107 {offsets = [0, 64], sizes = [1, 32], strides = [1, 1]} : vector<1x96xf32> to vector<1x32xf32>
    %119 = vector.extract_strided_slice %106 {offsets = [0, 64], sizes = [1, 32], strides = [1, 1]} : vector<1x96xf32> to vector<1x32xf32>
    %120 = arith.mulf %116, %119 : vector<1x32xf32>
    %121 = arith.addf %118, %120 : vector<1x32xf32>
    %122 = math.tanh %121 : vector<1x32xf32>
    %cst_28 = arith.constant 1.000000e+00 : f32
    %123 = vector.broadcast %cst_28 : f32 to vector<1x32xf32>
    %124 = arith.subf %123, %117 : vector<1x32xf32>
    %125 = arith.mulf %124, %122 : vector<1x32xf32>
    %126 = arith.mulf %117, %104 : vector<1x32xf32>
    %127 = arith.addf %125, %126 : vector<1x32xf32>
    %cst_29 = arith.constant dense<0.000000e+00> : vector<1x96xf32>
    %128 = tpu.matmul %127, %4, %cst_29 {dimension_numbers = #tpu.dot_dimension_numbers<[1], [0], [0], [1], [0, 0, 1, 1], [], []>} : vector<1x32xf32>, vector<32x96xf32>, vector<1x96xf32> -> vector<1x96xf32>
    %129 = arith.addf %128, %8 : vector<1x96xf32>
    %130 = vector.extract_strided_slice %11 {offsets = [5, 0], sizes = [1, 96], strides = [1, 1]} : vector<8x96xf32> to vector<1x96xf32>
    %131 = vector.extract_strided_slice %130 {offsets = [0, 0], sizes = [1, 64], strides = [1, 1]} : vector<1x96xf32> to vector<1x64xf32>
    %132 = vector.extract_strided_slice %129 {offsets = [0, 0], sizes = [1, 64], strides = [1, 1]} : vector<1x96xf32> to vector<1x64xf32>
    %133 = arith.addf %131, %132 : vector<1x64xf32>
    %134 = arith.negf %133 : vector<1x64xf32>
    %135 = math.exp %134 : vector<1x64xf32>
    %cst_30 = arith.constant 1.000000e+00 : f32
    %136 = vector.broadcast %cst_30 : f32 to vector<1x64xf32>
    %137 = arith.addf %136, %135 : vector<1x64xf32>
    %138 = arith.divf %136, %137 : vector<1x64xf32>
    %139 = vector.extract_strided_slice %138 {offsets = [0, 0], sizes = [1, 32], strides = [1, 1]} : vector<1x64xf32> to vector<1x32xf32>
    %140 = vector.extract_strided_slice %138 {offsets = [0, 32], sizes = [1, 32], strides = [1, 1]} : vector<1x64xf32> to vector<1x32xf32>
    %141 = vector.extract_strided_slice %130 {offsets = [0, 64], sizes = [1, 32], strides = [1, 1]} : vector<1x96xf32> to vector<1x32xf32>
    %142 = vector.extract_strided_slice %129 {offsets = [0, 64], sizes = [1, 32], strides = [1, 1]} : vector<1x96xf32> to vector<1x32xf32>
    %143 = arith.mulf %139, %142 : vector<1x32xf32>
    %144 = arith.addf %141, %143 : vector<1x32xf32>
    %145 = math.tanh %144 : vector<1x32xf32>
    %cst_31 = arith.constant 1.000000e+00 : f32
    %146 = vector.broadcast %cst_31 : f32 to vector<1x32xf32>
    %147 = arith.subf %146, %140 : vector<1x32xf32>
    %148 = arith.mulf %147, %145 : vector<1x32xf32>
    %149 = arith.mulf %140, %127 : vector<1x32xf32>
    %150 = arith.addf %148, %149 : vector<1x32xf32>
    %cst_32 = arith.constant dense<0.000000e+00> : vector<1x96xf32>
    %151 = tpu.matmul %150, %4, %cst_32 {dimension_numbers = #tpu.dot_dimension_numbers<[1], [0], [0], [1], [0, 0, 1, 1], [], []>} : vector<1x32xf32>, vector<32x96xf32>, vector<1x96xf32> -> vector<1x96xf32>
    %152 = arith.addf %151, %8 : vector<1x96xf32>
    %153 = vector.extract_strided_slice %11 {offsets = [6, 0], sizes = [1, 96], strides = [1, 1]} : vector<8x96xf32> to vector<1x96xf32>
    %154 = vector.extract_strided_slice %153 {offsets = [0, 0], sizes = [1, 64], strides = [1, 1]} : vector<1x96xf32> to vector<1x64xf32>
    %155 = vector.extract_strided_slice %152 {offsets = [0, 0], sizes = [1, 64], strides = [1, 1]} : vector<1x96xf32> to vector<1x64xf32>
    %156 = arith.addf %154, %155 : vector<1x64xf32>
    %157 = arith.negf %156 : vector<1x64xf32>
    %158 = math.exp %157 : vector<1x64xf32>
    %cst_33 = arith.constant 1.000000e+00 : f32
    %159 = vector.broadcast %cst_33 : f32 to vector<1x64xf32>
    %160 = arith.addf %159, %158 : vector<1x64xf32>
    %161 = arith.divf %159, %160 : vector<1x64xf32>
    %162 = vector.extract_strided_slice %161 {offsets = [0, 0], sizes = [1, 32], strides = [1, 1]} : vector<1x64xf32> to vector<1x32xf32>
    %163 = vector.extract_strided_slice %161 {offsets = [0, 32], sizes = [1, 32], strides = [1, 1]} : vector<1x64xf32> to vector<1x32xf32>
    %164 = vector.extract_strided_slice %153 {offsets = [0, 64], sizes = [1, 32], strides = [1, 1]} : vector<1x96xf32> to vector<1x32xf32>
    %165 = vector.extract_strided_slice %152 {offsets = [0, 64], sizes = [1, 32], strides = [1, 1]} : vector<1x96xf32> to vector<1x32xf32>
    %166 = arith.mulf %162, %165 : vector<1x32xf32>
    %167 = arith.addf %164, %166 : vector<1x32xf32>
    %168 = math.tanh %167 : vector<1x32xf32>
    %cst_34 = arith.constant 1.000000e+00 : f32
    %169 = vector.broadcast %cst_34 : f32 to vector<1x32xf32>
    %170 = arith.subf %169, %163 : vector<1x32xf32>
    %171 = arith.mulf %170, %168 : vector<1x32xf32>
    %172 = arith.mulf %163, %150 : vector<1x32xf32>
    %173 = arith.addf %171, %172 : vector<1x32xf32>
    %cst_35 = arith.constant dense<0.000000e+00> : vector<1x96xf32>
    %174 = tpu.matmul %173, %4, %cst_35 {dimension_numbers = #tpu.dot_dimension_numbers<[1], [0], [0], [1], [0, 0, 1, 1], [], []>} : vector<1x32xf32>, vector<32x96xf32>, vector<1x96xf32> -> vector<1x96xf32>
    %175 = arith.addf %174, %8 : vector<1x96xf32>
    %176 = vector.extract_strided_slice %11 {offsets = [7, 0], sizes = [1, 96], strides = [1, 1]} : vector<8x96xf32> to vector<1x96xf32>
    %177 = vector.extract_strided_slice %176 {offsets = [0, 0], sizes = [1, 64], strides = [1, 1]} : vector<1x96xf32> to vector<1x64xf32>
    %178 = vector.extract_strided_slice %175 {offsets = [0, 0], sizes = [1, 64], strides = [1, 1]} : vector<1x96xf32> to vector<1x64xf32>
    %179 = arith.addf %177, %178 : vector<1x64xf32>
    %180 = arith.negf %179 : vector<1x64xf32>
    %181 = math.exp %180 : vector<1x64xf32>
    %cst_36 = arith.constant 1.000000e+00 : f32
    %182 = vector.broadcast %cst_36 : f32 to vector<1x64xf32>
    %183 = arith.addf %182, %181 : vector<1x64xf32>
    %184 = arith.divf %182, %183 : vector<1x64xf32>
    %185 = vector.extract_strided_slice %184 {offsets = [0, 0], sizes = [1, 32], strides = [1, 1]} : vector<1x64xf32> to vector<1x32xf32>
    %186 = vector.extract_strided_slice %184 {offsets = [0, 32], sizes = [1, 32], strides = [1, 1]} : vector<1x64xf32> to vector<1x32xf32>
    %187 = vector.extract_strided_slice %176 {offsets = [0, 64], sizes = [1, 32], strides = [1, 1]} : vector<1x96xf32> to vector<1x32xf32>
    %188 = vector.extract_strided_slice %175 {offsets = [0, 64], sizes = [1, 32], strides = [1, 1]} : vector<1x96xf32> to vector<1x32xf32>
    %189 = arith.mulf %185, %188 : vector<1x32xf32>
    %190 = arith.addf %187, %189 : vector<1x32xf32>
    %191 = math.tanh %190 : vector<1x32xf32>
    %cst_37 = arith.constant 1.000000e+00 : f32
    %192 = vector.broadcast %cst_37 : f32 to vector<1x32xf32>
    %193 = arith.subf %192, %186 : vector<1x32xf32>
    %194 = arith.mulf %193, %191 : vector<1x32xf32>
    %195 = arith.mulf %186, %173 : vector<1x32xf32>
    %196 = arith.addf %194, %195 : vector<1x32xf32>
    %197 = tpu.concatenate %35, %58, %81, %104, %127, %150, %173, %196 in 0 : vector<1x32xf32>, vector<1x32xf32>, vector<1x32xf32>, vector<1x32xf32>, vector<1x32xf32>, vector<1x32xf32>, vector<1x32xf32>, vector<1x32xf32> -> vector<8x32xf32>
    %c1 = arith.constant 1 : index
    %c0_38 = arith.constant 0 : index
    %c0_39 = arith.constant 0 : index
    %198 = vector.load %arg2[%c1, %c0_38, %c0_39] : memref<2x32x96xf32, #tpu.memory_space<vmem>>, vector<1x32x96xf32>
    %199 = vector.shape_cast %198 : vector<1x32x96xf32> to vector<32x96xf32>
    %c1_40 = arith.constant 1 : index
    %c0_41 = arith.constant 0 : index
    %c0_42 = arith.constant 0 : index
    %200 = vector.load %arg3[%c1_40, %c0_41, %c0_42] : memref<2x32x96xf32, #tpu.memory_space<vmem>>, vector<1x32x96xf32>
    %201 = vector.shape_cast %200 : vector<1x32x96xf32> to vector<32x96xf32>
    %c1_43 = arith.constant 1 : index
    %c0_44 = arith.constant 0 : index
    %c0_45 = arith.constant 0 : index
    %202 = vector.load %arg4[%c1_43, %c0_44, %c0_45] : memref<2x1x96xf32, #tpu.memory_space<vmem>>, vector<1x1x96xf32>
    %203 = vector.shape_cast %202 : vector<1x1x96xf32> to vector<1x96xf32>
    %c1_46 = arith.constant 1 : index
    %c0_47 = arith.constant 0 : index
    %c0_48 = arith.constant 0 : index
    %204 = vector.load %arg5[%c1_46, %c0_47, %c0_48] : memref<2x1x96xf32, #tpu.memory_space<vmem>>, vector<1x1x96xf32>
    %205 = vector.shape_cast %204 : vector<1x1x96xf32> to vector<1x96xf32>
    %cst_49 = arith.constant dense<0.000000e+00> : vector<8x96xf32>
    %206 = tpu.matmul %0, %199, %cst_49 {dimension_numbers = #tpu.dot_dimension_numbers<[1], [0], [0], [1], [0, 0, 1, 1], [], []>} : vector<8x32xf32>, vector<32x96xf32>, vector<8x96xf32> -> vector<8x96xf32>
    %207 = vector.broadcast %203 : vector<1x96xf32> to vector<8x96xf32>
    %208 = arith.addf %206, %207 : vector<8x96xf32>
    %cst_50 = arith.constant 0.000000e+00 : f32
    %209 = vector.broadcast %cst_50 : f32 to vector<1x32xf32>
    %cst_51 = arith.constant dense<0.000000e+00> : vector<1x96xf32>
    %210 = tpu.matmul %209, %201, %cst_51 {dimension_numbers = #tpu.dot_dimension_numbers<[1], [0], [0], [1], [0, 0, 1, 1], [], []>} : vector<1x32xf32>, vector<32x96xf32>, vector<1x96xf32> -> vector<1x96xf32>
    %211 = arith.addf %210, %205 : vector<1x96xf32>
    %212 = vector.extract_strided_slice %208 {offsets = [7, 0], sizes = [1, 96], strides = [1, 1]} : vector<8x96xf32> to vector<1x96xf32>
    %213 = vector.extract_strided_slice %212 {offsets = [0, 0], sizes = [1, 64], strides = [1, 1]} : vector<1x96xf32> to vector<1x64xf32>
    %214 = vector.extract_strided_slice %211 {offsets = [0, 0], sizes = [1, 64], strides = [1, 1]} : vector<1x96xf32> to vector<1x64xf32>
    %215 = arith.addf %213, %214 : vector<1x64xf32>
    %216 = arith.negf %215 : vector<1x64xf32>
    %217 = math.exp %216 : vector<1x64xf32>
    %cst_52 = arith.constant 1.000000e+00 : f32
    %218 = vector.broadcast %cst_52 : f32 to vector<1x64xf32>
    %219 = arith.addf %218, %217 : vector<1x64xf32>
    %220 = arith.divf %218, %219 : vector<1x64xf32>
    %221 = vector.extract_strided_slice %220 {offsets = [0, 0], sizes = [1, 32], strides = [1, 1]} : vector<1x64xf32> to vector<1x32xf32>
    %222 = vector.extract_strided_slice %220 {offsets = [0, 32], sizes = [1, 32], strides = [1, 1]} : vector<1x64xf32> to vector<1x32xf32>
    %223 = vector.extract_strided_slice %212 {offsets = [0, 64], sizes = [1, 32], strides = [1, 1]} : vector<1x96xf32> to vector<1x32xf32>
    %224 = vector.extract_strided_slice %211 {offsets = [0, 64], sizes = [1, 32], strides = [1, 1]} : vector<1x96xf32> to vector<1x32xf32>
    %225 = arith.mulf %221, %224 : vector<1x32xf32>
    %226 = arith.addf %223, %225 : vector<1x32xf32>
    %227 = math.tanh %226 : vector<1x32xf32>
    %cst_53 = arith.constant 1.000000e+00 : f32
    %228 = vector.broadcast %cst_53 : f32 to vector<1x32xf32>
    %229 = arith.subf %228, %222 : vector<1x32xf32>
    %230 = arith.mulf %229, %227 : vector<1x32xf32>
    %231 = arith.mulf %222, %209 : vector<1x32xf32>
    %232 = arith.addf %230, %231 : vector<1x32xf32>
    %cst_54 = arith.constant dense<0.000000e+00> : vector<1x96xf32>
    %233 = tpu.matmul %232, %201, %cst_54 {dimension_numbers = #tpu.dot_dimension_numbers<[1], [0], [0], [1], [0, 0, 1, 1], [], []>} : vector<1x32xf32>, vector<32x96xf32>, vector<1x96xf32> -> vector<1x96xf32>
    %234 = arith.addf %233, %205 : vector<1x96xf32>
    %235 = vector.extract_strided_slice %208 {offsets = [6, 0], sizes = [1, 96], strides = [1, 1]} : vector<8x96xf32> to vector<1x96xf32>
    %236 = vector.extract_strided_slice %235 {offsets = [0, 0], sizes = [1, 64], strides = [1, 1]} : vector<1x96xf32> to vector<1x64xf32>
    %237 = vector.extract_strided_slice %234 {offsets = [0, 0], sizes = [1, 64], strides = [1, 1]} : vector<1x96xf32> to vector<1x64xf32>
    %238 = arith.addf %236, %237 : vector<1x64xf32>
    %239 = arith.negf %238 : vector<1x64xf32>
    %240 = math.exp %239 : vector<1x64xf32>
    %cst_55 = arith.constant 1.000000e+00 : f32
    %241 = vector.broadcast %cst_55 : f32 to vector<1x64xf32>
    %242 = arith.addf %241, %240 : vector<1x64xf32>
    %243 = arith.divf %241, %242 : vector<1x64xf32>
    %244 = vector.extract_strided_slice %243 {offsets = [0, 0], sizes = [1, 32], strides = [1, 1]} : vector<1x64xf32> to vector<1x32xf32>
    %245 = vector.extract_strided_slice %243 {offsets = [0, 32], sizes = [1, 32], strides = [1, 1]} : vector<1x64xf32> to vector<1x32xf32>
    %246 = vector.extract_strided_slice %235 {offsets = [0, 64], sizes = [1, 32], strides = [1, 1]} : vector<1x96xf32> to vector<1x32xf32>
    %247 = vector.extract_strided_slice %234 {offsets = [0, 64], sizes = [1, 32], strides = [1, 1]} : vector<1x96xf32> to vector<1x32xf32>
    %248 = arith.mulf %244, %247 : vector<1x32xf32>
    %249 = arith.addf %246, %248 : vector<1x32xf32>
    %250 = math.tanh %249 : vector<1x32xf32>
    %cst_56 = arith.constant 1.000000e+00 : f32
    %251 = vector.broadcast %cst_56 : f32 to vector<1x32xf32>
    %252 = arith.subf %251, %245 : vector<1x32xf32>
    %253 = arith.mulf %252, %250 : vector<1x32xf32>
    %254 = arith.mulf %245, %232 : vector<1x32xf32>
    %255 = arith.addf %253, %254 : vector<1x32xf32>
    %cst_57 = arith.constant dense<0.000000e+00> : vector<1x96xf32>
    %256 = tpu.matmul %255, %201, %cst_57 {dimension_numbers = #tpu.dot_dimension_numbers<[1], [0], [0], [1], [0, 0, 1, 1], [], []>} : vector<1x32xf32>, vector<32x96xf32>, vector<1x96xf32> -> vector<1x96xf32>
    %257 = arith.addf %256, %205 : vector<1x96xf32>
    %258 = vector.extract_strided_slice %208 {offsets = [5, 0], sizes = [1, 96], strides = [1, 1]} : vector<8x96xf32> to vector<1x96xf32>
    %259 = vector.extract_strided_slice %258 {offsets = [0, 0], sizes = [1, 64], strides = [1, 1]} : vector<1x96xf32> to vector<1x64xf32>
    %260 = vector.extract_strided_slice %257 {offsets = [0, 0], sizes = [1, 64], strides = [1, 1]} : vector<1x96xf32> to vector<1x64xf32>
    %261 = arith.addf %259, %260 : vector<1x64xf32>
    %262 = arith.negf %261 : vector<1x64xf32>
    %263 = math.exp %262 : vector<1x64xf32>
    %cst_58 = arith.constant 1.000000e+00 : f32
    %264 = vector.broadcast %cst_58 : f32 to vector<1x64xf32>
    %265 = arith.addf %264, %263 : vector<1x64xf32>
    %266 = arith.divf %264, %265 : vector<1x64xf32>
    %267 = vector.extract_strided_slice %266 {offsets = [0, 0], sizes = [1, 32], strides = [1, 1]} : vector<1x64xf32> to vector<1x32xf32>
    %268 = vector.extract_strided_slice %266 {offsets = [0, 32], sizes = [1, 32], strides = [1, 1]} : vector<1x64xf32> to vector<1x32xf32>
    %269 = vector.extract_strided_slice %258 {offsets = [0, 64], sizes = [1, 32], strides = [1, 1]} : vector<1x96xf32> to vector<1x32xf32>
    %270 = vector.extract_strided_slice %257 {offsets = [0, 64], sizes = [1, 32], strides = [1, 1]} : vector<1x96xf32> to vector<1x32xf32>
    %271 = arith.mulf %267, %270 : vector<1x32xf32>
    %272 = arith.addf %269, %271 : vector<1x32xf32>
    %273 = math.tanh %272 : vector<1x32xf32>
    %cst_59 = arith.constant 1.000000e+00 : f32
    %274 = vector.broadcast %cst_59 : f32 to vector<1x32xf32>
    %275 = arith.subf %274, %268 : vector<1x32xf32>
    %276 = arith.mulf %275, %273 : vector<1x32xf32>
    %277 = arith.mulf %268, %255 : vector<1x32xf32>
    %278 = arith.addf %276, %277 : vector<1x32xf32>
    %cst_60 = arith.constant dense<0.000000e+00> : vector<1x96xf32>
    %279 = tpu.matmul %278, %201, %cst_60 {dimension_numbers = #tpu.dot_dimension_numbers<[1], [0], [0], [1], [0, 0, 1, 1], [], []>} : vector<1x32xf32>, vector<32x96xf32>, vector<1x96xf32> -> vector<1x96xf32>
    %280 = arith.addf %279, %205 : vector<1x96xf32>
    %281 = vector.extract_strided_slice %208 {offsets = [4, 0], sizes = [1, 96], strides = [1, 1]} : vector<8x96xf32> to vector<1x96xf32>
    %282 = vector.extract_strided_slice %281 {offsets = [0, 0], sizes = [1, 64], strides = [1, 1]} : vector<1x96xf32> to vector<1x64xf32>
    %283 = vector.extract_strided_slice %280 {offsets = [0, 0], sizes = [1, 64], strides = [1, 1]} : vector<1x96xf32> to vector<1x64xf32>
    %284 = arith.addf %282, %283 : vector<1x64xf32>
    %285 = arith.negf %284 : vector<1x64xf32>
    %286 = math.exp %285 : vector<1x64xf32>
    %cst_61 = arith.constant 1.000000e+00 : f32
    %287 = vector.broadcast %cst_61 : f32 to vector<1x64xf32>
    %288 = arith.addf %287, %286 : vector<1x64xf32>
    %289 = arith.divf %287, %288 : vector<1x64xf32>
    %290 = vector.extract_strided_slice %289 {offsets = [0, 0], sizes = [1, 32], strides = [1, 1]} : vector<1x64xf32> to vector<1x32xf32>
    %291 = vector.extract_strided_slice %289 {offsets = [0, 32], sizes = [1, 32], strides = [1, 1]} : vector<1x64xf32> to vector<1x32xf32>
    %292 = vector.extract_strided_slice %281 {offsets = [0, 64], sizes = [1, 32], strides = [1, 1]} : vector<1x96xf32> to vector<1x32xf32>
    %293 = vector.extract_strided_slice %280 {offsets = [0, 64], sizes = [1, 32], strides = [1, 1]} : vector<1x96xf32> to vector<1x32xf32>
    %294 = arith.mulf %290, %293 : vector<1x32xf32>
    %295 = arith.addf %292, %294 : vector<1x32xf32>
    %296 = math.tanh %295 : vector<1x32xf32>
    %cst_62 = arith.constant 1.000000e+00 : f32
    %297 = vector.broadcast %cst_62 : f32 to vector<1x32xf32>
    %298 = arith.subf %297, %291 : vector<1x32xf32>
    %299 = arith.mulf %298, %296 : vector<1x32xf32>
    %300 = arith.mulf %291, %278 : vector<1x32xf32>
    %301 = arith.addf %299, %300 : vector<1x32xf32>
    %cst_63 = arith.constant dense<0.000000e+00> : vector<1x96xf32>
    %302 = tpu.matmul %301, %201, %cst_63 {dimension_numbers = #tpu.dot_dimension_numbers<[1], [0], [0], [1], [0, 0, 1, 1], [], []>} : vector<1x32xf32>, vector<32x96xf32>, vector<1x96xf32> -> vector<1x96xf32>
    %303 = arith.addf %302, %205 : vector<1x96xf32>
    %304 = vector.extract_strided_slice %208 {offsets = [3, 0], sizes = [1, 96], strides = [1, 1]} : vector<8x96xf32> to vector<1x96xf32>
    %305 = vector.extract_strided_slice %304 {offsets = [0, 0], sizes = [1, 64], strides = [1, 1]} : vector<1x96xf32> to vector<1x64xf32>
    %306 = vector.extract_strided_slice %303 {offsets = [0, 0], sizes = [1, 64], strides = [1, 1]} : vector<1x96xf32> to vector<1x64xf32>
    %307 = arith.addf %305, %306 : vector<1x64xf32>
    %308 = arith.negf %307 : vector<1x64xf32>
    %309 = math.exp %308 : vector<1x64xf32>
    %cst_64 = arith.constant 1.000000e+00 : f32
    %310 = vector.broadcast %cst_64 : f32 to vector<1x64xf32>
    %311 = arith.addf %310, %309 : vector<1x64xf32>
    %312 = arith.divf %310, %311 : vector<1x64xf32>
    %313 = vector.extract_strided_slice %312 {offsets = [0, 0], sizes = [1, 32], strides = [1, 1]} : vector<1x64xf32> to vector<1x32xf32>
    %314 = vector.extract_strided_slice %312 {offsets = [0, 32], sizes = [1, 32], strides = [1, 1]} : vector<1x64xf32> to vector<1x32xf32>
    %315 = vector.extract_strided_slice %304 {offsets = [0, 64], sizes = [1, 32], strides = [1, 1]} : vector<1x96xf32> to vector<1x32xf32>
    %316 = vector.extract_strided_slice %303 {offsets = [0, 64], sizes = [1, 32], strides = [1, 1]} : vector<1x96xf32> to vector<1x32xf32>
    %317 = arith.mulf %313, %316 : vector<1x32xf32>
    %318 = arith.addf %315, %317 : vector<1x32xf32>
    %319 = math.tanh %318 : vector<1x32xf32>
    %cst_65 = arith.constant 1.000000e+00 : f32
    %320 = vector.broadcast %cst_65 : f32 to vector<1x32xf32>
    %321 = arith.subf %320, %314 : vector<1x32xf32>
    %322 = arith.mulf %321, %319 : vector<1x32xf32>
    %323 = arith.mulf %314, %301 : vector<1x32xf32>
    %324 = arith.addf %322, %323 : vector<1x32xf32>
    %cst_66 = arith.constant dense<0.000000e+00> : vector<1x96xf32>
    %325 = tpu.matmul %324, %201, %cst_66 {dimension_numbers = #tpu.dot_dimension_numbers<[1], [0], [0], [1], [0, 0, 1, 1], [], []>} : vector<1x32xf32>, vector<32x96xf32>, vector<1x96xf32> -> vector<1x96xf32>
    %326 = arith.addf %325, %205 : vector<1x96xf32>
    %327 = vector.extract_strided_slice %208 {offsets = [2, 0], sizes = [1, 96], strides = [1, 1]} : vector<8x96xf32> to vector<1x96xf32>
    %328 = vector.extract_strided_slice %327 {offsets = [0, 0], sizes = [1, 64], strides = [1, 1]} : vector<1x96xf32> to vector<1x64xf32>
    %329 = vector.extract_strided_slice %326 {offsets = [0, 0], sizes = [1, 64], strides = [1, 1]} : vector<1x96xf32> to vector<1x64xf32>
    %330 = arith.addf %328, %329 : vector<1x64xf32>
    %331 = arith.negf %330 : vector<1x64xf32>
    %332 = math.exp %331 : vector<1x64xf32>
    %cst_67 = arith.constant 1.000000e+00 : f32
    %333 = vector.broadcast %cst_67 : f32 to vector<1x64xf32>
    %334 = arith.addf %333, %332 : vector<1x64xf32>
    %335 = arith.divf %333, %334 : vector<1x64xf32>
    %336 = vector.extract_strided_slice %335 {offsets = [0, 0], sizes = [1, 32], strides = [1, 1]} : vector<1x64xf32> to vector<1x32xf32>
    %337 = vector.extract_strided_slice %335 {offsets = [0, 32], sizes = [1, 32], strides = [1, 1]} : vector<1x64xf32> to vector<1x32xf32>
    %338 = vector.extract_strided_slice %327 {offsets = [0, 64], sizes = [1, 32], strides = [1, 1]} : vector<1x96xf32> to vector<1x32xf32>
    %339 = vector.extract_strided_slice %326 {offsets = [0, 64], sizes = [1, 32], strides = [1, 1]} : vector<1x96xf32> to vector<1x32xf32>
    %340 = arith.mulf %336, %339 : vector<1x32xf32>
    %341 = arith.addf %338, %340 : vector<1x32xf32>
    %342 = math.tanh %341 : vector<1x32xf32>
    %cst_68 = arith.constant 1.000000e+00 : f32
    %343 = vector.broadcast %cst_68 : f32 to vector<1x32xf32>
    %344 = arith.subf %343, %337 : vector<1x32xf32>
    %345 = arith.mulf %344, %342 : vector<1x32xf32>
    %346 = arith.mulf %337, %324 : vector<1x32xf32>
    %347 = arith.addf %345, %346 : vector<1x32xf32>
    %cst_69 = arith.constant dense<0.000000e+00> : vector<1x96xf32>
    %348 = tpu.matmul %347, %201, %cst_69 {dimension_numbers = #tpu.dot_dimension_numbers<[1], [0], [0], [1], [0, 0, 1, 1], [], []>} : vector<1x32xf32>, vector<32x96xf32>, vector<1x96xf32> -> vector<1x96xf32>
    %349 = arith.addf %348, %205 : vector<1x96xf32>
    %350 = vector.extract_strided_slice %208 {offsets = [1, 0], sizes = [1, 96], strides = [1, 1]} : vector<8x96xf32> to vector<1x96xf32>
    %351 = vector.extract_strided_slice %350 {offsets = [0, 0], sizes = [1, 64], strides = [1, 1]} : vector<1x96xf32> to vector<1x64xf32>
    %352 = vector.extract_strided_slice %349 {offsets = [0, 0], sizes = [1, 64], strides = [1, 1]} : vector<1x96xf32> to vector<1x64xf32>
    %353 = arith.addf %351, %352 : vector<1x64xf32>
    %354 = arith.negf %353 : vector<1x64xf32>
    %355 = math.exp %354 : vector<1x64xf32>
    %cst_70 = arith.constant 1.000000e+00 : f32
    %356 = vector.broadcast %cst_70 : f32 to vector<1x64xf32>
    %357 = arith.addf %356, %355 : vector<1x64xf32>
    %358 = arith.divf %356, %357 : vector<1x64xf32>
    %359 = vector.extract_strided_slice %358 {offsets = [0, 0], sizes = [1, 32], strides = [1, 1]} : vector<1x64xf32> to vector<1x32xf32>
    %360 = vector.extract_strided_slice %358 {offsets = [0, 32], sizes = [1, 32], strides = [1, 1]} : vector<1x64xf32> to vector<1x32xf32>
    %361 = vector.extract_strided_slice %350 {offsets = [0, 64], sizes = [1, 32], strides = [1, 1]} : vector<1x96xf32> to vector<1x32xf32>
    %362 = vector.extract_strided_slice %349 {offsets = [0, 64], sizes = [1, 32], strides = [1, 1]} : vector<1x96xf32> to vector<1x32xf32>
    %363 = arith.mulf %359, %362 : vector<1x32xf32>
    %364 = arith.addf %361, %363 : vector<1x32xf32>
    %365 = math.tanh %364 : vector<1x32xf32>
    %cst_71 = arith.constant 1.000000e+00 : f32
    %366 = vector.broadcast %cst_71 : f32 to vector<1x32xf32>
    %367 = arith.subf %366, %360 : vector<1x32xf32>
    %368 = arith.mulf %367, %365 : vector<1x32xf32>
    %369 = arith.mulf %360, %347 : vector<1x32xf32>
    %370 = arith.addf %368, %369 : vector<1x32xf32>
    %cst_72 = arith.constant dense<0.000000e+00> : vector<1x96xf32>
    %371 = tpu.matmul %370, %201, %cst_72 {dimension_numbers = #tpu.dot_dimension_numbers<[1], [0], [0], [1], [0, 0, 1, 1], [], []>} : vector<1x32xf32>, vector<32x96xf32>, vector<1x96xf32> -> vector<1x96xf32>
    %372 = arith.addf %371, %205 : vector<1x96xf32>
    %373 = vector.extract_strided_slice %208 {offsets = [0, 0], sizes = [1, 96], strides = [1, 1]} : vector<8x96xf32> to vector<1x96xf32>
    %374 = vector.extract_strided_slice %373 {offsets = [0, 0], sizes = [1, 64], strides = [1, 1]} : vector<1x96xf32> to vector<1x64xf32>
    %375 = vector.extract_strided_slice %372 {offsets = [0, 0], sizes = [1, 64], strides = [1, 1]} : vector<1x96xf32> to vector<1x64xf32>
    %376 = arith.addf %374, %375 : vector<1x64xf32>
    %377 = arith.negf %376 : vector<1x64xf32>
    %378 = math.exp %377 : vector<1x64xf32>
    %cst_73 = arith.constant 1.000000e+00 : f32
    %379 = vector.broadcast %cst_73 : f32 to vector<1x64xf32>
    %380 = arith.addf %379, %378 : vector<1x64xf32>
    %381 = arith.divf %379, %380 : vector<1x64xf32>
    %382 = vector.extract_strided_slice %381 {offsets = [0, 0], sizes = [1, 32], strides = [1, 1]} : vector<1x64xf32> to vector<1x32xf32>
    %383 = vector.extract_strided_slice %381 {offsets = [0, 32], sizes = [1, 32], strides = [1, 1]} : vector<1x64xf32> to vector<1x32xf32>
    %384 = vector.extract_strided_slice %373 {offsets = [0, 64], sizes = [1, 32], strides = [1, 1]} : vector<1x96xf32> to vector<1x32xf32>
    %385 = vector.extract_strided_slice %372 {offsets = [0, 64], sizes = [1, 32], strides = [1, 1]} : vector<1x96xf32> to vector<1x32xf32>
    %386 = arith.mulf %382, %385 : vector<1x32xf32>
    %387 = arith.addf %384, %386 : vector<1x32xf32>
    %388 = math.tanh %387 : vector<1x32xf32>
    %cst_74 = arith.constant 1.000000e+00 : f32
    %389 = vector.broadcast %cst_74 : f32 to vector<1x32xf32>
    %390 = arith.subf %389, %383 : vector<1x32xf32>
    %391 = arith.mulf %390, %388 : vector<1x32xf32>
    %392 = arith.mulf %383, %370 : vector<1x32xf32>
    %393 = arith.addf %391, %392 : vector<1x32xf32>
    %394 = tpu.concatenate %393, %370, %347, %324, %301, %278, %255, %232 in 0 : vector<1x32xf32>, vector<1x32xf32>, vector<1x32xf32>, vector<1x32xf32>, vector<1x32xf32>, vector<1x32xf32>, vector<1x32xf32>, vector<1x32xf32> -> vector<8x32xf32>
    %395 = tpu.concatenate %197, %394 in 1 : vector<8x32xf32>, vector<8x32xf32> -> vector<8x64xf32>
    %c0_75 = arith.constant 0 : index
    %c0_76 = arith.constant 0 : index
    %c0_77 = arith.constant 0 : index
    %396 = vector.load %arg6[%c0_75, %c0_76, %c0_77] : memref<2x64x96xf32, #tpu.memory_space<vmem>>, vector<1x64x96xf32>
    %397 = vector.shape_cast %396 : vector<1x64x96xf32> to vector<64x96xf32>
    %c0_78 = arith.constant 0 : index
    %c0_79 = arith.constant 0 : index
    %c0_80 = arith.constant 0 : index
    %398 = vector.load %arg7[%c0_78, %c0_79, %c0_80] : memref<2x32x96xf32, #tpu.memory_space<vmem>>, vector<1x32x96xf32>
    %399 = vector.shape_cast %398 : vector<1x32x96xf32> to vector<32x96xf32>
    %c0_81 = arith.constant 0 : index
    %c0_82 = arith.constant 0 : index
    %c0_83 = arith.constant 0 : index
    %400 = vector.load %arg8[%c0_81, %c0_82, %c0_83] : memref<2x1x96xf32, #tpu.memory_space<vmem>>, vector<1x1x96xf32>
    %401 = vector.shape_cast %400 : vector<1x1x96xf32> to vector<1x96xf32>
    %c0_84 = arith.constant 0 : index
    %c0_85 = arith.constant 0 : index
    %c0_86 = arith.constant 0 : index
    %402 = vector.load %arg9[%c0_84, %c0_85, %c0_86] : memref<2x1x96xf32, #tpu.memory_space<vmem>>, vector<1x1x96xf32>
    %403 = vector.shape_cast %402 : vector<1x1x96xf32> to vector<1x96xf32>
    %cst_87 = arith.constant dense<0.000000e+00> : vector<8x96xf32>
    %404 = tpu.matmul %395, %397, %cst_87 {dimension_numbers = #tpu.dot_dimension_numbers<[1], [0], [0], [1], [0, 0, 1, 1], [], []>} : vector<8x64xf32>, vector<64x96xf32>, vector<8x96xf32> -> vector<8x96xf32>
    %405 = vector.broadcast %401 : vector<1x96xf32> to vector<8x96xf32>
    %406 = arith.addf %404, %405 : vector<8x96xf32>
    %cst_88 = arith.constant 0.000000e+00 : f32
    %407 = vector.broadcast %cst_88 : f32 to vector<1x32xf32>
    %cst_89 = arith.constant dense<0.000000e+00> : vector<1x96xf32>
    %408 = tpu.matmul %407, %399, %cst_89 {dimension_numbers = #tpu.dot_dimension_numbers<[1], [0], [0], [1], [0, 0, 1, 1], [], []>} : vector<1x32xf32>, vector<32x96xf32>, vector<1x96xf32> -> vector<1x96xf32>
    %409 = arith.addf %408, %403 : vector<1x96xf32>
    %410 = vector.extract_strided_slice %406 {offsets = [0, 0], sizes = [1, 96], strides = [1, 1]} : vector<8x96xf32> to vector<1x96xf32>
    %411 = vector.extract_strided_slice %410 {offsets = [0, 0], sizes = [1, 64], strides = [1, 1]} : vector<1x96xf32> to vector<1x64xf32>
    %412 = vector.extract_strided_slice %409 {offsets = [0, 0], sizes = [1, 64], strides = [1, 1]} : vector<1x96xf32> to vector<1x64xf32>
    %413 = arith.addf %411, %412 : vector<1x64xf32>
    %414 = arith.negf %413 : vector<1x64xf32>
    %415 = math.exp %414 : vector<1x64xf32>
    %cst_90 = arith.constant 1.000000e+00 : f32
    %416 = vector.broadcast %cst_90 : f32 to vector<1x64xf32>
    %417 = arith.addf %416, %415 : vector<1x64xf32>
    %418 = arith.divf %416, %417 : vector<1x64xf32>
    %419 = vector.extract_strided_slice %418 {offsets = [0, 0], sizes = [1, 32], strides = [1, 1]} : vector<1x64xf32> to vector<1x32xf32>
    %420 = vector.extract_strided_slice %418 {offsets = [0, 32], sizes = [1, 32], strides = [1, 1]} : vector<1x64xf32> to vector<1x32xf32>
    %421 = vector.extract_strided_slice %410 {offsets = [0, 64], sizes = [1, 32], strides = [1, 1]} : vector<1x96xf32> to vector<1x32xf32>
    %422 = vector.extract_strided_slice %409 {offsets = [0, 64], sizes = [1, 32], strides = [1, 1]} : vector<1x96xf32> to vector<1x32xf32>
    %423 = arith.mulf %419, %422 : vector<1x32xf32>
    %424 = arith.addf %421, %423 : vector<1x32xf32>
    %425 = math.tanh %424 : vector<1x32xf32>
    %cst_91 = arith.constant 1.000000e+00 : f32
    %426 = vector.broadcast %cst_91 : f32 to vector<1x32xf32>
    %427 = arith.subf %426, %420 : vector<1x32xf32>
    %428 = arith.mulf %427, %425 : vector<1x32xf32>
    %429 = arith.mulf %420, %407 : vector<1x32xf32>
    %430 = arith.addf %428, %429 : vector<1x32xf32>
    %cst_92 = arith.constant dense<0.000000e+00> : vector<1x96xf32>
    %431 = tpu.matmul %430, %399, %cst_92 {dimension_numbers = #tpu.dot_dimension_numbers<[1], [0], [0], [1], [0, 0, 1, 1], [], []>} : vector<1x32xf32>, vector<32x96xf32>, vector<1x96xf32> -> vector<1x96xf32>
    %432 = arith.addf %431, %403 : vector<1x96xf32>
    %433 = vector.extract_strided_slice %406 {offsets = [1, 0], sizes = [1, 96], strides = [1, 1]} : vector<8x96xf32> to vector<1x96xf32>
    %434 = vector.extract_strided_slice %433 {offsets = [0, 0], sizes = [1, 64], strides = [1, 1]} : vector<1x96xf32> to vector<1x64xf32>
    %435 = vector.extract_strided_slice %432 {offsets = [0, 0], sizes = [1, 64], strides = [1, 1]} : vector<1x96xf32> to vector<1x64xf32>
    %436 = arith.addf %434, %435 : vector<1x64xf32>
    %437 = arith.negf %436 : vector<1x64xf32>
    %438 = math.exp %437 : vector<1x64xf32>
    %cst_93 = arith.constant 1.000000e+00 : f32
    %439 = vector.broadcast %cst_93 : f32 to vector<1x64xf32>
    %440 = arith.addf %439, %438 : vector<1x64xf32>
    %441 = arith.divf %439, %440 : vector<1x64xf32>
    %442 = vector.extract_strided_slice %441 {offsets = [0, 0], sizes = [1, 32], strides = [1, 1]} : vector<1x64xf32> to vector<1x32xf32>
    %443 = vector.extract_strided_slice %441 {offsets = [0, 32], sizes = [1, 32], strides = [1, 1]} : vector<1x64xf32> to vector<1x32xf32>
    %444 = vector.extract_strided_slice %433 {offsets = [0, 64], sizes = [1, 32], strides = [1, 1]} : vector<1x96xf32> to vector<1x32xf32>
    %445 = vector.extract_strided_slice %432 {offsets = [0, 64], sizes = [1, 32], strides = [1, 1]} : vector<1x96xf32> to vector<1x32xf32>
    %446 = arith.mulf %442, %445 : vector<1x32xf32>
    %447 = arith.addf %444, %446 : vector<1x32xf32>
    %448 = math.tanh %447 : vector<1x32xf32>
    %cst_94 = arith.constant 1.000000e+00 : f32
    %449 = vector.broadcast %cst_94 : f32 to vector<1x32xf32>
    %450 = arith.subf %449, %443 : vector<1x32xf32>
    %451 = arith.mulf %450, %448 : vector<1x32xf32>
    %452 = arith.mulf %443, %430 : vector<1x32xf32>
    %453 = arith.addf %451, %452 : vector<1x32xf32>
    %cst_95 = arith.constant dense<0.000000e+00> : vector<1x96xf32>
    %454 = tpu.matmul %453, %399, %cst_95 {dimension_numbers = #tpu.dot_dimension_numbers<[1], [0], [0], [1], [0, 0, 1, 1], [], []>} : vector<1x32xf32>, vector<32x96xf32>, vector<1x96xf32> -> vector<1x96xf32>
    %455 = arith.addf %454, %403 : vector<1x96xf32>
    %456 = vector.extract_strided_slice %406 {offsets = [2, 0], sizes = [1, 96], strides = [1, 1]} : vector<8x96xf32> to vector<1x96xf32>
    %457 = vector.extract_strided_slice %456 {offsets = [0, 0], sizes = [1, 64], strides = [1, 1]} : vector<1x96xf32> to vector<1x64xf32>
    %458 = vector.extract_strided_slice %455 {offsets = [0, 0], sizes = [1, 64], strides = [1, 1]} : vector<1x96xf32> to vector<1x64xf32>
    %459 = arith.addf %457, %458 : vector<1x64xf32>
    %460 = arith.negf %459 : vector<1x64xf32>
    %461 = math.exp %460 : vector<1x64xf32>
    %cst_96 = arith.constant 1.000000e+00 : f32
    %462 = vector.broadcast %cst_96 : f32 to vector<1x64xf32>
    %463 = arith.addf %462, %461 : vector<1x64xf32>
    %464 = arith.divf %462, %463 : vector<1x64xf32>
    %465 = vector.extract_strided_slice %464 {offsets = [0, 0], sizes = [1, 32], strides = [1, 1]} : vector<1x64xf32> to vector<1x32xf32>
    %466 = vector.extract_strided_slice %464 {offsets = [0, 32], sizes = [1, 32], strides = [1, 1]} : vector<1x64xf32> to vector<1x32xf32>
    %467 = vector.extract_strided_slice %456 {offsets = [0, 64], sizes = [1, 32], strides = [1, 1]} : vector<1x96xf32> to vector<1x32xf32>
    %468 = vector.extract_strided_slice %455 {offsets = [0, 64], sizes = [1, 32], strides = [1, 1]} : vector<1x96xf32> to vector<1x32xf32>
    %469 = arith.mulf %465, %468 : vector<1x32xf32>
    %470 = arith.addf %467, %469 : vector<1x32xf32>
    %471 = math.tanh %470 : vector<1x32xf32>
    %cst_97 = arith.constant 1.000000e+00 : f32
    %472 = vector.broadcast %cst_97 : f32 to vector<1x32xf32>
    %473 = arith.subf %472, %466 : vector<1x32xf32>
    %474 = arith.mulf %473, %471 : vector<1x32xf32>
    %475 = arith.mulf %466, %453 : vector<1x32xf32>
    %476 = arith.addf %474, %475 : vector<1x32xf32>
    %cst_98 = arith.constant dense<0.000000e+00> : vector<1x96xf32>
    %477 = tpu.matmul %476, %399, %cst_98 {dimension_numbers = #tpu.dot_dimension_numbers<[1], [0], [0], [1], [0, 0, 1, 1], [], []>} : vector<1x32xf32>, vector<32x96xf32>, vector<1x96xf32> -> vector<1x96xf32>
    %478 = arith.addf %477, %403 : vector<1x96xf32>
    %479 = vector.extract_strided_slice %406 {offsets = [3, 0], sizes = [1, 96], strides = [1, 1]} : vector<8x96xf32> to vector<1x96xf32>
    %480 = vector.extract_strided_slice %479 {offsets = [0, 0], sizes = [1, 64], strides = [1, 1]} : vector<1x96xf32> to vector<1x64xf32>
    %481 = vector.extract_strided_slice %478 {offsets = [0, 0], sizes = [1, 64], strides = [1, 1]} : vector<1x96xf32> to vector<1x64xf32>
    %482 = arith.addf %480, %481 : vector<1x64xf32>
    %483 = arith.negf %482 : vector<1x64xf32>
    %484 = math.exp %483 : vector<1x64xf32>
    %cst_99 = arith.constant 1.000000e+00 : f32
    %485 = vector.broadcast %cst_99 : f32 to vector<1x64xf32>
    %486 = arith.addf %485, %484 : vector<1x64xf32>
    %487 = arith.divf %485, %486 : vector<1x64xf32>
    %488 = vector.extract_strided_slice %487 {offsets = [0, 0], sizes = [1, 32], strides = [1, 1]} : vector<1x64xf32> to vector<1x32xf32>
    %489 = vector.extract_strided_slice %487 {offsets = [0, 32], sizes = [1, 32], strides = [1, 1]} : vector<1x64xf32> to vector<1x32xf32>
    %490 = vector.extract_strided_slice %479 {offsets = [0, 64], sizes = [1, 32], strides = [1, 1]} : vector<1x96xf32> to vector<1x32xf32>
    %491 = vector.extract_strided_slice %478 {offsets = [0, 64], sizes = [1, 32], strides = [1, 1]} : vector<1x96xf32> to vector<1x32xf32>
    %492 = arith.mulf %488, %491 : vector<1x32xf32>
    %493 = arith.addf %490, %492 : vector<1x32xf32>
    %494 = math.tanh %493 : vector<1x32xf32>
    %cst_100 = arith.constant 1.000000e+00 : f32
    %495 = vector.broadcast %cst_100 : f32 to vector<1x32xf32>
    %496 = arith.subf %495, %489 : vector<1x32xf32>
    %497 = arith.mulf %496, %494 : vector<1x32xf32>
    %498 = arith.mulf %489, %476 : vector<1x32xf32>
    %499 = arith.addf %497, %498 : vector<1x32xf32>
    %cst_101 = arith.constant dense<0.000000e+00> : vector<1x96xf32>
    %500 = tpu.matmul %499, %399, %cst_101 {dimension_numbers = #tpu.dot_dimension_numbers<[1], [0], [0], [1], [0, 0, 1, 1], [], []>} : vector<1x32xf32>, vector<32x96xf32>, vector<1x96xf32> -> vector<1x96xf32>
    %501 = arith.addf %500, %403 : vector<1x96xf32>
    %502 = vector.extract_strided_slice %406 {offsets = [4, 0], sizes = [1, 96], strides = [1, 1]} : vector<8x96xf32> to vector<1x96xf32>
    %503 = vector.extract_strided_slice %502 {offsets = [0, 0], sizes = [1, 64], strides = [1, 1]} : vector<1x96xf32> to vector<1x64xf32>
    %504 = vector.extract_strided_slice %501 {offsets = [0, 0], sizes = [1, 64], strides = [1, 1]} : vector<1x96xf32> to vector<1x64xf32>
    %505 = arith.addf %503, %504 : vector<1x64xf32>
    %506 = arith.negf %505 : vector<1x64xf32>
    %507 = math.exp %506 : vector<1x64xf32>
    %cst_102 = arith.constant 1.000000e+00 : f32
    %508 = vector.broadcast %cst_102 : f32 to vector<1x64xf32>
    %509 = arith.addf %508, %507 : vector<1x64xf32>
    %510 = arith.divf %508, %509 : vector<1x64xf32>
    %511 = vector.extract_strided_slice %510 {offsets = [0, 0], sizes = [1, 32], strides = [1, 1]} : vector<1x64xf32> to vector<1x32xf32>
    %512 = vector.extract_strided_slice %510 {offsets = [0, 32], sizes = [1, 32], strides = [1, 1]} : vector<1x64xf32> to vector<1x32xf32>
    %513 = vector.extract_strided_slice %502 {offsets = [0, 64], sizes = [1, 32], strides = [1, 1]} : vector<1x96xf32> to vector<1x32xf32>
    %514 = vector.extract_strided_slice %501 {offsets = [0, 64], sizes = [1, 32], strides = [1, 1]} : vector<1x96xf32> to vector<1x32xf32>
    %515 = arith.mulf %511, %514 : vector<1x32xf32>
    %516 = arith.addf %513, %515 : vector<1x32xf32>
    %517 = math.tanh %516 : vector<1x32xf32>
    %cst_103 = arith.constant 1.000000e+00 : f32
    %518 = vector.broadcast %cst_103 : f32 to vector<1x32xf32>
    %519 = arith.subf %518, %512 : vector<1x32xf32>
    %520 = arith.mulf %519, %517 : vector<1x32xf32>
    %521 = arith.mulf %512, %499 : vector<1x32xf32>
    %522 = arith.addf %520, %521 : vector<1x32xf32>
    %cst_104 = arith.constant dense<0.000000e+00> : vector<1x96xf32>
    %523 = tpu.matmul %522, %399, %cst_104 {dimension_numbers = #tpu.dot_dimension_numbers<[1], [0], [0], [1], [0, 0, 1, 1], [], []>} : vector<1x32xf32>, vector<32x96xf32>, vector<1x96xf32> -> vector<1x96xf32>
    %524 = arith.addf %523, %403 : vector<1x96xf32>
    %525 = vector.extract_strided_slice %406 {offsets = [5, 0], sizes = [1, 96], strides = [1, 1]} : vector<8x96xf32> to vector<1x96xf32>
    %526 = vector.extract_strided_slice %525 {offsets = [0, 0], sizes = [1, 64], strides = [1, 1]} : vector<1x96xf32> to vector<1x64xf32>
    %527 = vector.extract_strided_slice %524 {offsets = [0, 0], sizes = [1, 64], strides = [1, 1]} : vector<1x96xf32> to vector<1x64xf32>
    %528 = arith.addf %526, %527 : vector<1x64xf32>
    %529 = arith.negf %528 : vector<1x64xf32>
    %530 = math.exp %529 : vector<1x64xf32>
    %cst_105 = arith.constant 1.000000e+00 : f32
    %531 = vector.broadcast %cst_105 : f32 to vector<1x64xf32>
    %532 = arith.addf %531, %530 : vector<1x64xf32>
    %533 = arith.divf %531, %532 : vector<1x64xf32>
    %534 = vector.extract_strided_slice %533 {offsets = [0, 0], sizes = [1, 32], strides = [1, 1]} : vector<1x64xf32> to vector<1x32xf32>
    %535 = vector.extract_strided_slice %533 {offsets = [0, 32], sizes = [1, 32], strides = [1, 1]} : vector<1x64xf32> to vector<1x32xf32>
    %536 = vector.extract_strided_slice %525 {offsets = [0, 64], sizes = [1, 32], strides = [1, 1]} : vector<1x96xf32> to vector<1x32xf32>
    %537 = vector.extract_strided_slice %524 {offsets = [0, 64], sizes = [1, 32], strides = [1, 1]} : vector<1x96xf32> to vector<1x32xf32>
    %538 = arith.mulf %534, %537 : vector<1x32xf32>
    %539 = arith.addf %536, %538 : vector<1x32xf32>
    %540 = math.tanh %539 : vector<1x32xf32>
    %cst_106 = arith.constant 1.000000e+00 : f32
    %541 = vector.broadcast %cst_106 : f32 to vector<1x32xf32>
    %542 = arith.subf %541, %535 : vector<1x32xf32>
    %543 = arith.mulf %542, %540 : vector<1x32xf32>
    %544 = arith.mulf %535, %522 : vector<1x32xf32>
    %545 = arith.addf %543, %544 : vector<1x32xf32>
    %cst_107 = arith.constant dense<0.000000e+00> : vector<1x96xf32>
    %546 = tpu.matmul %545, %399, %cst_107 {dimension_numbers = #tpu.dot_dimension_numbers<[1], [0], [0], [1], [0, 0, 1, 1], [], []>} : vector<1x32xf32>, vector<32x96xf32>, vector<1x96xf32> -> vector<1x96xf32>
    %547 = arith.addf %546, %403 : vector<1x96xf32>
    %548 = vector.extract_strided_slice %406 {offsets = [6, 0], sizes = [1, 96], strides = [1, 1]} : vector<8x96xf32> to vector<1x96xf32>
    %549 = vector.extract_strided_slice %548 {offsets = [0, 0], sizes = [1, 64], strides = [1, 1]} : vector<1x96xf32> to vector<1x64xf32>
    %550 = vector.extract_strided_slice %547 {offsets = [0, 0], sizes = [1, 64], strides = [1, 1]} : vector<1x96xf32> to vector<1x64xf32>
    %551 = arith.addf %549, %550 : vector<1x64xf32>
    %552 = arith.negf %551 : vector<1x64xf32>
    %553 = math.exp %552 : vector<1x64xf32>
    %cst_108 = arith.constant 1.000000e+00 : f32
    %554 = vector.broadcast %cst_108 : f32 to vector<1x64xf32>
    %555 = arith.addf %554, %553 : vector<1x64xf32>
    %556 = arith.divf %554, %555 : vector<1x64xf32>
    %557 = vector.extract_strided_slice %556 {offsets = [0, 0], sizes = [1, 32], strides = [1, 1]} : vector<1x64xf32> to vector<1x32xf32>
    %558 = vector.extract_strided_slice %556 {offsets = [0, 32], sizes = [1, 32], strides = [1, 1]} : vector<1x64xf32> to vector<1x32xf32>
    %559 = vector.extract_strided_slice %548 {offsets = [0, 64], sizes = [1, 32], strides = [1, 1]} : vector<1x96xf32> to vector<1x32xf32>
    %560 = vector.extract_strided_slice %547 {offsets = [0, 64], sizes = [1, 32], strides = [1, 1]} : vector<1x96xf32> to vector<1x32xf32>
    %561 = arith.mulf %557, %560 : vector<1x32xf32>
    %562 = arith.addf %559, %561 : vector<1x32xf32>
    %563 = math.tanh %562 : vector<1x32xf32>
    %cst_109 = arith.constant 1.000000e+00 : f32
    %564 = vector.broadcast %cst_109 : f32 to vector<1x32xf32>
    %565 = arith.subf %564, %558 : vector<1x32xf32>
    %566 = arith.mulf %565, %563 : vector<1x32xf32>
    %567 = arith.mulf %558, %545 : vector<1x32xf32>
    %568 = arith.addf %566, %567 : vector<1x32xf32>
    %cst_110 = arith.constant dense<0.000000e+00> : vector<1x96xf32>
    %569 = tpu.matmul %568, %399, %cst_110 {dimension_numbers = #tpu.dot_dimension_numbers<[1], [0], [0], [1], [0, 0, 1, 1], [], []>} : vector<1x32xf32>, vector<32x96xf32>, vector<1x96xf32> -> vector<1x96xf32>
    %570 = arith.addf %569, %403 : vector<1x96xf32>
    %571 = vector.extract_strided_slice %406 {offsets = [7, 0], sizes = [1, 96], strides = [1, 1]} : vector<8x96xf32> to vector<1x96xf32>
    %572 = vector.extract_strided_slice %571 {offsets = [0, 0], sizes = [1, 64], strides = [1, 1]} : vector<1x96xf32> to vector<1x64xf32>
    %573 = vector.extract_strided_slice %570 {offsets = [0, 0], sizes = [1, 64], strides = [1, 1]} : vector<1x96xf32> to vector<1x64xf32>
    %574 = arith.addf %572, %573 : vector<1x64xf32>
    %575 = arith.negf %574 : vector<1x64xf32>
    %576 = math.exp %575 : vector<1x64xf32>
    %cst_111 = arith.constant 1.000000e+00 : f32
    %577 = vector.broadcast %cst_111 : f32 to vector<1x64xf32>
    %578 = arith.addf %577, %576 : vector<1x64xf32>
    %579 = arith.divf %577, %578 : vector<1x64xf32>
    %580 = vector.extract_strided_slice %579 {offsets = [0, 0], sizes = [1, 32], strides = [1, 1]} : vector<1x64xf32> to vector<1x32xf32>
    %581 = vector.extract_strided_slice %579 {offsets = [0, 32], sizes = [1, 32], strides = [1, 1]} : vector<1x64xf32> to vector<1x32xf32>
    %582 = vector.extract_strided_slice %571 {offsets = [0, 64], sizes = [1, 32], strides = [1, 1]} : vector<1x96xf32> to vector<1x32xf32>
    %583 = vector.extract_strided_slice %570 {offsets = [0, 64], sizes = [1, 32], strides = [1, 1]} : vector<1x96xf32> to vector<1x32xf32>
    %584 = arith.mulf %580, %583 : vector<1x32xf32>
    %585 = arith.addf %582, %584 : vector<1x32xf32>
    %586 = math.tanh %585 : vector<1x32xf32>
    %cst_112 = arith.constant 1.000000e+00 : f32
    %587 = vector.broadcast %cst_112 : f32 to vector<1x32xf32>
    %588 = arith.subf %587, %581 : vector<1x32xf32>
    %589 = arith.mulf %588, %586 : vector<1x32xf32>
    %590 = arith.mulf %581, %568 : vector<1x32xf32>
    %591 = arith.addf %589, %590 : vector<1x32xf32>
    %592 = tpu.concatenate %430, %453, %476, %499, %522, %545, %568, %591 in 0 : vector<1x32xf32>, vector<1x32xf32>, vector<1x32xf32>, vector<1x32xf32>, vector<1x32xf32>, vector<1x32xf32>, vector<1x32xf32>, vector<1x32xf32> -> vector<8x32xf32>
    %c1_113 = arith.constant 1 : index
    %c0_114 = arith.constant 0 : index
    %c0_115 = arith.constant 0 : index
    %593 = vector.load %arg6[%c1_113, %c0_114, %c0_115] : memref<2x64x96xf32, #tpu.memory_space<vmem>>, vector<1x64x96xf32>
    %594 = vector.shape_cast %593 : vector<1x64x96xf32> to vector<64x96xf32>
    %c1_116 = arith.constant 1 : index
    %c0_117 = arith.constant 0 : index
    %c0_118 = arith.constant 0 : index
    %595 = vector.load %arg7[%c1_116, %c0_117, %c0_118] : memref<2x32x96xf32, #tpu.memory_space<vmem>>, vector<1x32x96xf32>
    %596 = vector.shape_cast %595 : vector<1x32x96xf32> to vector<32x96xf32>
    %c1_119 = arith.constant 1 : index
    %c0_120 = arith.constant 0 : index
    %c0_121 = arith.constant 0 : index
    %597 = vector.load %arg8[%c1_119, %c0_120, %c0_121] : memref<2x1x96xf32, #tpu.memory_space<vmem>>, vector<1x1x96xf32>
    %598 = vector.shape_cast %597 : vector<1x1x96xf32> to vector<1x96xf32>
    %c1_122 = arith.constant 1 : index
    %c0_123 = arith.constant 0 : index
    %c0_124 = arith.constant 0 : index
    %599 = vector.load %arg9[%c1_122, %c0_123, %c0_124] : memref<2x1x96xf32, #tpu.memory_space<vmem>>, vector<1x1x96xf32>
    %600 = vector.shape_cast %599 : vector<1x1x96xf32> to vector<1x96xf32>
    %cst_125 = arith.constant dense<0.000000e+00> : vector<8x96xf32>
    %601 = tpu.matmul %395, %594, %cst_125 {dimension_numbers = #tpu.dot_dimension_numbers<[1], [0], [0], [1], [0, 0, 1, 1], [], []>} : vector<8x64xf32>, vector<64x96xf32>, vector<8x96xf32> -> vector<8x96xf32>
    %602 = vector.broadcast %598 : vector<1x96xf32> to vector<8x96xf32>
    %603 = arith.addf %601, %602 : vector<8x96xf32>
    %cst_126 = arith.constant 0.000000e+00 : f32
    %604 = vector.broadcast %cst_126 : f32 to vector<1x32xf32>
    %cst_127 = arith.constant dense<0.000000e+00> : vector<1x96xf32>
    %605 = tpu.matmul %604, %596, %cst_127 {dimension_numbers = #tpu.dot_dimension_numbers<[1], [0], [0], [1], [0, 0, 1, 1], [], []>} : vector<1x32xf32>, vector<32x96xf32>, vector<1x96xf32> -> vector<1x96xf32>
    %606 = arith.addf %605, %600 : vector<1x96xf32>
    %607 = vector.extract_strided_slice %603 {offsets = [7, 0], sizes = [1, 96], strides = [1, 1]} : vector<8x96xf32> to vector<1x96xf32>
    %608 = vector.extract_strided_slice %607 {offsets = [0, 0], sizes = [1, 64], strides = [1, 1]} : vector<1x96xf32> to vector<1x64xf32>
    %609 = vector.extract_strided_slice %606 {offsets = [0, 0], sizes = [1, 64], strides = [1, 1]} : vector<1x96xf32> to vector<1x64xf32>
    %610 = arith.addf %608, %609 : vector<1x64xf32>
    %611 = arith.negf %610 : vector<1x64xf32>
    %612 = math.exp %611 : vector<1x64xf32>
    %cst_128 = arith.constant 1.000000e+00 : f32
    %613 = vector.broadcast %cst_128 : f32 to vector<1x64xf32>
    %614 = arith.addf %613, %612 : vector<1x64xf32>
    %615 = arith.divf %613, %614 : vector<1x64xf32>
    %616 = vector.extract_strided_slice %615 {offsets = [0, 0], sizes = [1, 32], strides = [1, 1]} : vector<1x64xf32> to vector<1x32xf32>
    %617 = vector.extract_strided_slice %615 {offsets = [0, 32], sizes = [1, 32], strides = [1, 1]} : vector<1x64xf32> to vector<1x32xf32>
    %618 = vector.extract_strided_slice %607 {offsets = [0, 64], sizes = [1, 32], strides = [1, 1]} : vector<1x96xf32> to vector<1x32xf32>
    %619 = vector.extract_strided_slice %606 {offsets = [0, 64], sizes = [1, 32], strides = [1, 1]} : vector<1x96xf32> to vector<1x32xf32>
    %620 = arith.mulf %616, %619 : vector<1x32xf32>
    %621 = arith.addf %618, %620 : vector<1x32xf32>
    %622 = math.tanh %621 : vector<1x32xf32>
    %cst_129 = arith.constant 1.000000e+00 : f32
    %623 = vector.broadcast %cst_129 : f32 to vector<1x32xf32>
    %624 = arith.subf %623, %617 : vector<1x32xf32>
    %625 = arith.mulf %624, %622 : vector<1x32xf32>
    %626 = arith.mulf %617, %604 : vector<1x32xf32>
    %627 = arith.addf %625, %626 : vector<1x32xf32>
    %cst_130 = arith.constant dense<0.000000e+00> : vector<1x96xf32>
    %628 = tpu.matmul %627, %596, %cst_130 {dimension_numbers = #tpu.dot_dimension_numbers<[1], [0], [0], [1], [0, 0, 1, 1], [], []>} : vector<1x32xf32>, vector<32x96xf32>, vector<1x96xf32> -> vector<1x96xf32>
    %629 = arith.addf %628, %600 : vector<1x96xf32>
    %630 = vector.extract_strided_slice %603 {offsets = [6, 0], sizes = [1, 96], strides = [1, 1]} : vector<8x96xf32> to vector<1x96xf32>
    %631 = vector.extract_strided_slice %630 {offsets = [0, 0], sizes = [1, 64], strides = [1, 1]} : vector<1x96xf32> to vector<1x64xf32>
    %632 = vector.extract_strided_slice %629 {offsets = [0, 0], sizes = [1, 64], strides = [1, 1]} : vector<1x96xf32> to vector<1x64xf32>
    %633 = arith.addf %631, %632 : vector<1x64xf32>
    %634 = arith.negf %633 : vector<1x64xf32>
    %635 = math.exp %634 : vector<1x64xf32>
    %cst_131 = arith.constant 1.000000e+00 : f32
    %636 = vector.broadcast %cst_131 : f32 to vector<1x64xf32>
    %637 = arith.addf %636, %635 : vector<1x64xf32>
    %638 = arith.divf %636, %637 : vector<1x64xf32>
    %639 = vector.extract_strided_slice %638 {offsets = [0, 0], sizes = [1, 32], strides = [1, 1]} : vector<1x64xf32> to vector<1x32xf32>
    %640 = vector.extract_strided_slice %638 {offsets = [0, 32], sizes = [1, 32], strides = [1, 1]} : vector<1x64xf32> to vector<1x32xf32>
    %641 = vector.extract_strided_slice %630 {offsets = [0, 64], sizes = [1, 32], strides = [1, 1]} : vector<1x96xf32> to vector<1x32xf32>
    %642 = vector.extract_strided_slice %629 {offsets = [0, 64], sizes = [1, 32], strides = [1, 1]} : vector<1x96xf32> to vector<1x32xf32>
    %643 = arith.mulf %639, %642 : vector<1x32xf32>
    %644 = arith.addf %641, %643 : vector<1x32xf32>
    %645 = math.tanh %644 : vector<1x32xf32>
    %cst_132 = arith.constant 1.000000e+00 : f32
    %646 = vector.broadcast %cst_132 : f32 to vector<1x32xf32>
    %647 = arith.subf %646, %640 : vector<1x32xf32>
    %648 = arith.mulf %647, %645 : vector<1x32xf32>
    %649 = arith.mulf %640, %627 : vector<1x32xf32>
    %650 = arith.addf %648, %649 : vector<1x32xf32>
    %cst_133 = arith.constant dense<0.000000e+00> : vector<1x96xf32>
    %651 = tpu.matmul %650, %596, %cst_133 {dimension_numbers = #tpu.dot_dimension_numbers<[1], [0], [0], [1], [0, 0, 1, 1], [], []>} : vector<1x32xf32>, vector<32x96xf32>, vector<1x96xf32> -> vector<1x96xf32>
    %652 = arith.addf %651, %600 : vector<1x96xf32>
    %653 = vector.extract_strided_slice %603 {offsets = [5, 0], sizes = [1, 96], strides = [1, 1]} : vector<8x96xf32> to vector<1x96xf32>
    %654 = vector.extract_strided_slice %653 {offsets = [0, 0], sizes = [1, 64], strides = [1, 1]} : vector<1x96xf32> to vector<1x64xf32>
    %655 = vector.extract_strided_slice %652 {offsets = [0, 0], sizes = [1, 64], strides = [1, 1]} : vector<1x96xf32> to vector<1x64xf32>
    %656 = arith.addf %654, %655 : vector<1x64xf32>
    %657 = arith.negf %656 : vector<1x64xf32>
    %658 = math.exp %657 : vector<1x64xf32>
    %cst_134 = arith.constant 1.000000e+00 : f32
    %659 = vector.broadcast %cst_134 : f32 to vector<1x64xf32>
    %660 = arith.addf %659, %658 : vector<1x64xf32>
    %661 = arith.divf %659, %660 : vector<1x64xf32>
    %662 = vector.extract_strided_slice %661 {offsets = [0, 0], sizes = [1, 32], strides = [1, 1]} : vector<1x64xf32> to vector<1x32xf32>
    %663 = vector.extract_strided_slice %661 {offsets = [0, 32], sizes = [1, 32], strides = [1, 1]} : vector<1x64xf32> to vector<1x32xf32>
    %664 = vector.extract_strided_slice %653 {offsets = [0, 64], sizes = [1, 32], strides = [1, 1]} : vector<1x96xf32> to vector<1x32xf32>
    %665 = vector.extract_strided_slice %652 {offsets = [0, 64], sizes = [1, 32], strides = [1, 1]} : vector<1x96xf32> to vector<1x32xf32>
    %666 = arith.mulf %662, %665 : vector<1x32xf32>
    %667 = arith.addf %664, %666 : vector<1x32xf32>
    %668 = math.tanh %667 : vector<1x32xf32>
    %cst_135 = arith.constant 1.000000e+00 : f32
    %669 = vector.broadcast %cst_135 : f32 to vector<1x32xf32>
    %670 = arith.subf %669, %663 : vector<1x32xf32>
    %671 = arith.mulf %670, %668 : vector<1x32xf32>
    %672 = arith.mulf %663, %650 : vector<1x32xf32>
    %673 = arith.addf %671, %672 : vector<1x32xf32>
    %cst_136 = arith.constant dense<0.000000e+00> : vector<1x96xf32>
    %674 = tpu.matmul %673, %596, %cst_136 {dimension_numbers = #tpu.dot_dimension_numbers<[1], [0], [0], [1], [0, 0, 1, 1], [], []>} : vector<1x32xf32>, vector<32x96xf32>, vector<1x96xf32> -> vector<1x96xf32>
    %675 = arith.addf %674, %600 : vector<1x96xf32>
    %676 = vector.extract_strided_slice %603 {offsets = [4, 0], sizes = [1, 96], strides = [1, 1]} : vector<8x96xf32> to vector<1x96xf32>
    %677 = vector.extract_strided_slice %676 {offsets = [0, 0], sizes = [1, 64], strides = [1, 1]} : vector<1x96xf32> to vector<1x64xf32>
    %678 = vector.extract_strided_slice %675 {offsets = [0, 0], sizes = [1, 64], strides = [1, 1]} : vector<1x96xf32> to vector<1x64xf32>
    %679 = arith.addf %677, %678 : vector<1x64xf32>
    %680 = arith.negf %679 : vector<1x64xf32>
    %681 = math.exp %680 : vector<1x64xf32>
    %cst_137 = arith.constant 1.000000e+00 : f32
    %682 = vector.broadcast %cst_137 : f32 to vector<1x64xf32>
    %683 = arith.addf %682, %681 : vector<1x64xf32>
    %684 = arith.divf %682, %683 : vector<1x64xf32>
    %685 = vector.extract_strided_slice %684 {offsets = [0, 0], sizes = [1, 32], strides = [1, 1]} : vector<1x64xf32> to vector<1x32xf32>
    %686 = vector.extract_strided_slice %684 {offsets = [0, 32], sizes = [1, 32], strides = [1, 1]} : vector<1x64xf32> to vector<1x32xf32>
    %687 = vector.extract_strided_slice %676 {offsets = [0, 64], sizes = [1, 32], strides = [1, 1]} : vector<1x96xf32> to vector<1x32xf32>
    %688 = vector.extract_strided_slice %675 {offsets = [0, 64], sizes = [1, 32], strides = [1, 1]} : vector<1x96xf32> to vector<1x32xf32>
    %689 = arith.mulf %685, %688 : vector<1x32xf32>
    %690 = arith.addf %687, %689 : vector<1x32xf32>
    %691 = math.tanh %690 : vector<1x32xf32>
    %cst_138 = arith.constant 1.000000e+00 : f32
    %692 = vector.broadcast %cst_138 : f32 to vector<1x32xf32>
    %693 = arith.subf %692, %686 : vector<1x32xf32>
    %694 = arith.mulf %693, %691 : vector<1x32xf32>
    %695 = arith.mulf %686, %673 : vector<1x32xf32>
    %696 = arith.addf %694, %695 : vector<1x32xf32>
    %cst_139 = arith.constant dense<0.000000e+00> : vector<1x96xf32>
    %697 = tpu.matmul %696, %596, %cst_139 {dimension_numbers = #tpu.dot_dimension_numbers<[1], [0], [0], [1], [0, 0, 1, 1], [], []>} : vector<1x32xf32>, vector<32x96xf32>, vector<1x96xf32> -> vector<1x96xf32>
    %698 = arith.addf %697, %600 : vector<1x96xf32>
    %699 = vector.extract_strided_slice %603 {offsets = [3, 0], sizes = [1, 96], strides = [1, 1]} : vector<8x96xf32> to vector<1x96xf32>
    %700 = vector.extract_strided_slice %699 {offsets = [0, 0], sizes = [1, 64], strides = [1, 1]} : vector<1x96xf32> to vector<1x64xf32>
    %701 = vector.extract_strided_slice %698 {offsets = [0, 0], sizes = [1, 64], strides = [1, 1]} : vector<1x96xf32> to vector<1x64xf32>
    %702 = arith.addf %700, %701 : vector<1x64xf32>
    %703 = arith.negf %702 : vector<1x64xf32>
    %704 = math.exp %703 : vector<1x64xf32>
    %cst_140 = arith.constant 1.000000e+00 : f32
    %705 = vector.broadcast %cst_140 : f32 to vector<1x64xf32>
    %706 = arith.addf %705, %704 : vector<1x64xf32>
    %707 = arith.divf %705, %706 : vector<1x64xf32>
    %708 = vector.extract_strided_slice %707 {offsets = [0, 0], sizes = [1, 32], strides = [1, 1]} : vector<1x64xf32> to vector<1x32xf32>
    %709 = vector.extract_strided_slice %707 {offsets = [0, 32], sizes = [1, 32], strides = [1, 1]} : vector<1x64xf32> to vector<1x32xf32>
    %710 = vector.extract_strided_slice %699 {offsets = [0, 64], sizes = [1, 32], strides = [1, 1]} : vector<1x96xf32> to vector<1x32xf32>
    %711 = vector.extract_strided_slice %698 {offsets = [0, 64], sizes = [1, 32], strides = [1, 1]} : vector<1x96xf32> to vector<1x32xf32>
    %712 = arith.mulf %708, %711 : vector<1x32xf32>
    %713 = arith.addf %710, %712 : vector<1x32xf32>
    %714 = math.tanh %713 : vector<1x32xf32>
    %cst_141 = arith.constant 1.000000e+00 : f32
    %715 = vector.broadcast %cst_141 : f32 to vector<1x32xf32>
    %716 = arith.subf %715, %709 : vector<1x32xf32>
    %717 = arith.mulf %716, %714 : vector<1x32xf32>
    %718 = arith.mulf %709, %696 : vector<1x32xf32>
    %719 = arith.addf %717, %718 : vector<1x32xf32>
    %cst_142 = arith.constant dense<0.000000e+00> : vector<1x96xf32>
    %720 = tpu.matmul %719, %596, %cst_142 {dimension_numbers = #tpu.dot_dimension_numbers<[1], [0], [0], [1], [0, 0, 1, 1], [], []>} : vector<1x32xf32>, vector<32x96xf32>, vector<1x96xf32> -> vector<1x96xf32>
    %721 = arith.addf %720, %600 : vector<1x96xf32>
    %722 = vector.extract_strided_slice %603 {offsets = [2, 0], sizes = [1, 96], strides = [1, 1]} : vector<8x96xf32> to vector<1x96xf32>
    %723 = vector.extract_strided_slice %722 {offsets = [0, 0], sizes = [1, 64], strides = [1, 1]} : vector<1x96xf32> to vector<1x64xf32>
    %724 = vector.extract_strided_slice %721 {offsets = [0, 0], sizes = [1, 64], strides = [1, 1]} : vector<1x96xf32> to vector<1x64xf32>
    %725 = arith.addf %723, %724 : vector<1x64xf32>
    %726 = arith.negf %725 : vector<1x64xf32>
    %727 = math.exp %726 : vector<1x64xf32>
    %cst_143 = arith.constant 1.000000e+00 : f32
    %728 = vector.broadcast %cst_143 : f32 to vector<1x64xf32>
    %729 = arith.addf %728, %727 : vector<1x64xf32>
    %730 = arith.divf %728, %729 : vector<1x64xf32>
    %731 = vector.extract_strided_slice %730 {offsets = [0, 0], sizes = [1, 32], strides = [1, 1]} : vector<1x64xf32> to vector<1x32xf32>
    %732 = vector.extract_strided_slice %730 {offsets = [0, 32], sizes = [1, 32], strides = [1, 1]} : vector<1x64xf32> to vector<1x32xf32>
    %733 = vector.extract_strided_slice %722 {offsets = [0, 64], sizes = [1, 32], strides = [1, 1]} : vector<1x96xf32> to vector<1x32xf32>
    %734 = vector.extract_strided_slice %721 {offsets = [0, 64], sizes = [1, 32], strides = [1, 1]} : vector<1x96xf32> to vector<1x32xf32>
    %735 = arith.mulf %731, %734 : vector<1x32xf32>
    %736 = arith.addf %733, %735 : vector<1x32xf32>
    %737 = math.tanh %736 : vector<1x32xf32>
    %cst_144 = arith.constant 1.000000e+00 : f32
    %738 = vector.broadcast %cst_144 : f32 to vector<1x32xf32>
    %739 = arith.subf %738, %732 : vector<1x32xf32>
    %740 = arith.mulf %739, %737 : vector<1x32xf32>
    %741 = arith.mulf %732, %719 : vector<1x32xf32>
    %742 = arith.addf %740, %741 : vector<1x32xf32>
    %cst_145 = arith.constant dense<0.000000e+00> : vector<1x96xf32>
    %743 = tpu.matmul %742, %596, %cst_145 {dimension_numbers = #tpu.dot_dimension_numbers<[1], [0], [0], [1], [0, 0, 1, 1], [], []>} : vector<1x32xf32>, vector<32x96xf32>, vector<1x96xf32> -> vector<1x96xf32>
    %744 = arith.addf %743, %600 : vector<1x96xf32>
    %745 = vector.extract_strided_slice %603 {offsets = [1, 0], sizes = [1, 96], strides = [1, 1]} : vector<8x96xf32> to vector<1x96xf32>
    %746 = vector.extract_strided_slice %745 {offsets = [0, 0], sizes = [1, 64], strides = [1, 1]} : vector<1x96xf32> to vector<1x64xf32>
    %747 = vector.extract_strided_slice %744 {offsets = [0, 0], sizes = [1, 64], strides = [1, 1]} : vector<1x96xf32> to vector<1x64xf32>
    %748 = arith.addf %746, %747 : vector<1x64xf32>
    %749 = arith.negf %748 : vector<1x64xf32>
    %750 = math.exp %749 : vector<1x64xf32>
    %cst_146 = arith.constant 1.000000e+00 : f32
    %751 = vector.broadcast %cst_146 : f32 to vector<1x64xf32>
    %752 = arith.addf %751, %750 : vector<1x64xf32>
    %753 = arith.divf %751, %752 : vector<1x64xf32>
    %754 = vector.extract_strided_slice %753 {offsets = [0, 0], sizes = [1, 32], strides = [1, 1]} : vector<1x64xf32> to vector<1x32xf32>
    %755 = vector.extract_strided_slice %753 {offsets = [0, 32], sizes = [1, 32], strides = [1, 1]} : vector<1x64xf32> to vector<1x32xf32>
    %756 = vector.extract_strided_slice %745 {offsets = [0, 64], sizes = [1, 32], strides = [1, 1]} : vector<1x96xf32> to vector<1x32xf32>
    %757 = vector.extract_strided_slice %744 {offsets = [0, 64], sizes = [1, 32], strides = [1, 1]} : vector<1x96xf32> to vector<1x32xf32>
    %758 = arith.mulf %754, %757 : vector<1x32xf32>
    %759 = arith.addf %756, %758 : vector<1x32xf32>
    %760 = math.tanh %759 : vector<1x32xf32>
    %cst_147 = arith.constant 1.000000e+00 : f32
    %761 = vector.broadcast %cst_147 : f32 to vector<1x32xf32>
    %762 = arith.subf %761, %755 : vector<1x32xf32>
    %763 = arith.mulf %762, %760 : vector<1x32xf32>
    %764 = arith.mulf %755, %742 : vector<1x32xf32>
    %765 = arith.addf %763, %764 : vector<1x32xf32>
    %cst_148 = arith.constant dense<0.000000e+00> : vector<1x96xf32>
    %766 = tpu.matmul %765, %596, %cst_148 {dimension_numbers = #tpu.dot_dimension_numbers<[1], [0], [0], [1], [0, 0, 1, 1], [], []>} : vector<1x32xf32>, vector<32x96xf32>, vector<1x96xf32> -> vector<1x96xf32>
    %767 = arith.addf %766, %600 : vector<1x96xf32>
    %768 = vector.extract_strided_slice %603 {offsets = [0, 0], sizes = [1, 96], strides = [1, 1]} : vector<8x96xf32> to vector<1x96xf32>
    %769 = vector.extract_strided_slice %768 {offsets = [0, 0], sizes = [1, 64], strides = [1, 1]} : vector<1x96xf32> to vector<1x64xf32>
    %770 = vector.extract_strided_slice %767 {offsets = [0, 0], sizes = [1, 64], strides = [1, 1]} : vector<1x96xf32> to vector<1x64xf32>
    %771 = arith.addf %769, %770 : vector<1x64xf32>
    %772 = arith.negf %771 : vector<1x64xf32>
    %773 = math.exp %772 : vector<1x64xf32>
    %cst_149 = arith.constant 1.000000e+00 : f32
    %774 = vector.broadcast %cst_149 : f32 to vector<1x64xf32>
    %775 = arith.addf %774, %773 : vector<1x64xf32>
    %776 = arith.divf %774, %775 : vector<1x64xf32>
    %777 = vector.extract_strided_slice %776 {offsets = [0, 0], sizes = [1, 32], strides = [1, 1]} : vector<1x64xf32> to vector<1x32xf32>
    %778 = vector.extract_strided_slice %776 {offsets = [0, 32], sizes = [1, 32], strides = [1, 1]} : vector<1x64xf32> to vector<1x32xf32>
    %779 = vector.extract_strided_slice %768 {offsets = [0, 64], sizes = [1, 32], strides = [1, 1]} : vector<1x96xf32> to vector<1x32xf32>
    %780 = vector.extract_strided_slice %767 {offsets = [0, 64], sizes = [1, 32], strides = [1, 1]} : vector<1x96xf32> to vector<1x32xf32>
    %781 = arith.mulf %777, %780 : vector<1x32xf32>
    %782 = arith.addf %779, %781 : vector<1x32xf32>
    %783 = math.tanh %782 : vector<1x32xf32>
    %cst_150 = arith.constant 1.000000e+00 : f32
    %784 = vector.broadcast %cst_150 : f32 to vector<1x32xf32>
    %785 = arith.subf %784, %778 : vector<1x32xf32>
    %786 = arith.mulf %785, %783 : vector<1x32xf32>
    %787 = arith.mulf %778, %765 : vector<1x32xf32>
    %788 = arith.addf %786, %787 : vector<1x32xf32>
    %789 = tpu.concatenate %788, %765, %742, %719, %696, %673, %650, %627 in 0 : vector<1x32xf32>, vector<1x32xf32>, vector<1x32xf32>, vector<1x32xf32>, vector<1x32xf32>, vector<1x32xf32>, vector<1x32xf32>, vector<1x32xf32> -> vector<8x32xf32>
    %790 = arith.addf %592, %789 : vector<8x32xf32>
    %c0_151 = arith.constant 0 : index
    %c0_152 = arith.constant 0 : index
    %791 = vector.load %arg10[%c0_151, %c0_152] : memref<12x32xf32, #tpu.memory_space<vmem>>, vector<12x32xf32>
    %c0_153 = arith.constant 0 : index
    %c0_154 = arith.constant 0 : index
    %792 = vector.load %arg11[%c0_153, %c0_154] : memref<32x32xf32, #tpu.memory_space<vmem>>, vector<32x32xf32>
    %cst_155 = arith.constant dense<0.000000e+00> : vector<8x32xf32>
    %793 = tpu.matmul %790, %792, %cst_155 {dimension_numbers = #tpu.dot_dimension_numbers<[1], [0], [0], [1], [0, 0, 1, 1], [], []>} : vector<8x32xf32>, vector<32x32xf32>, vector<8x32xf32> -> vector<8x32xf32>
    %c0_156 = arith.constant 0 : index
    %c0_157 = arith.constant 0 : index
    %794 = vector.load %arg13[%c0_156, %c0_157] : memref<1x32xf32, #tpu.memory_space<vmem>>, vector<1x32xf32>
    %c0_158 = arith.constant 0 : index
    %c0_159 = arith.constant 0 : index
    %795 = vector.load %arg22[%c0_158, %c0_159] : memref<64x12xf32, #tpu.memory_space<vmem>>, vector<64x12xf32>
    %c0_160 = arith.constant 0 : index
    %c0_161 = arith.constant 0 : index
    %796 = vector.load %arg23[%c0_160, %c0_161] : memref<1x12xf32, #tpu.memory_space<vmem>>, vector<1x12xf32>
    %797 = vector.extract_strided_slice %791 {offsets = [1, 0], sizes = [1, 32], strides = [1, 1]} : vector<12x32xf32> to vector<1x32xf32>
    %c0_162 = arith.constant 0 : index
    %c0_163 = arith.constant 0 : index
    %798 = vector.load %arg12[%c0_162, %c0_163] : memref<32x32xf32, #tpu.memory_space<vmem>>, vector<32x32xf32>
    %cst_164 = arith.constant dense<0.000000e+00> : vector<1x32xf32>
    %799 = tpu.matmul %788, %798, %cst_164 {dimension_numbers = #tpu.dot_dimension_numbers<[1], [0], [0], [1], [0, 0, 1, 1], [], []>} : vector<1x32xf32>, vector<32x32xf32>, vector<1x32xf32> -> vector<1x32xf32>
    %800 = vector.broadcast %799 : vector<1x32xf32> to vector<8x32xf32>
    %801 = arith.addf %793, %800 : vector<8x32xf32>
    %802 = math.tanh %801 : vector<8x32xf32>
    %803 = vector.broadcast %794 : vector<1x32xf32> to vector<8x32xf32>
    %804 = arith.mulf %802, %803 : vector<8x32xf32>
    %cst_165 = arith.constant dense<0.000000e+00> : vector<8xf32>
    %805 = vector.multi_reduction <add>, %804, %cst_165 [1] : vector<8x32xf32> to vector<8xf32>
    %806 = vector.shape_cast %805 : vector<8xf32> to vector<8x1xf32>
    %cst_166 = arith.constant dense<0xFF800000> : vector<1xf32>
    %807 = vector.multi_reduction <maximumf>, %806, %cst_166 [0] : vector<8x1xf32> to vector<1xf32>
    %808 = vector.shape_cast %807 : vector<1xf32> to vector<1x1xf32>
    %809 = vector.broadcast %808 : vector<1x1xf32> to vector<8x1xf32>
    %810 = arith.subf %806, %809 : vector<8x1xf32>
    %811 = math.exp %810 : vector<8x1xf32>
    %cst_167 = arith.constant dense<0.000000e+00> : vector<1xf32>
    %812 = vector.multi_reduction <add>, %811, %cst_167 [0] : vector<8x1xf32> to vector<1xf32>
    %813 = vector.shape_cast %812 : vector<1xf32> to vector<1x1xf32>
    %814 = tpu.reciprocal %813 {approx = true} : vector<1x1xf32> -> vector<1x1xf32>
    %815 = vector.broadcast %814 : vector<1x1xf32> to vector<8x1xf32>
    %816 = arith.mulf %811, %815 : vector<8x1xf32>
    %817 = vector.broadcast %816 : vector<8x1xf32> to vector<8x32xf32>
    %818 = arith.mulf %817, %790 : vector<8x32xf32>
    %cst_168 = arith.constant dense<0.000000e+00> : vector<32xf32>
    %819 = vector.multi_reduction <add>, %818, %cst_168 [0] : vector<8x32xf32> to vector<32xf32>
    %820 = vector.shape_cast %819 : vector<32xf32> to vector<1x32xf32>
    %821 = tpu.concatenate %797, %820 in 1 : vector<1x32xf32>, vector<1x32xf32> -> vector<1x64xf32>
    %c0_169 = arith.constant 0 : index
    %c0_170 = arith.constant 0 : index
    %822 = vector.load %arg14[%c0_169, %c0_170] : memref<64x96xf32, #tpu.memory_space<vmem>>, vector<64x96xf32>
    %cst_171 = arith.constant dense<0.000000e+00> : vector<1x96xf32>
    %823 = tpu.matmul %821, %822, %cst_171 {dimension_numbers = #tpu.dot_dimension_numbers<[1], [0], [0], [1], [0, 0, 1, 1], [], []>} : vector<1x64xf32>, vector<64x96xf32>, vector<1x96xf32> -> vector<1x96xf32>
    %c0_172 = arith.constant 0 : index
    %c0_173 = arith.constant 0 : index
    %824 = vector.load %arg16[%c0_172, %c0_173] : memref<1x96xf32, #tpu.memory_space<vmem>>, vector<1x96xf32>
    %825 = arith.addf %823, %824 : vector<1x96xf32>
    %c0_174 = arith.constant 0 : index
    %c0_175 = arith.constant 0 : index
    %826 = vector.load %arg15[%c0_174, %c0_175] : memref<32x96xf32, #tpu.memory_space<vmem>>, vector<32x96xf32>
    %cst_176 = arith.constant dense<0.000000e+00> : vector<1x96xf32>
    %827 = tpu.matmul %591, %826, %cst_176 {dimension_numbers = #tpu.dot_dimension_numbers<[1], [0], [0], [1], [0, 0, 1, 1], [], []>} : vector<1x32xf32>, vector<32x96xf32>, vector<1x96xf32> -> vector<1x96xf32>
    %c0_177 = arith.constant 0 : index
    %c0_178 = arith.constant 0 : index
    %828 = vector.load %arg17[%c0_177, %c0_178] : memref<1x96xf32, #tpu.memory_space<vmem>>, vector<1x96xf32>
    %829 = arith.addf %827, %828 : vector<1x96xf32>
    %830 = vector.extract_strided_slice %825 {offsets = [0, 0], sizes = [1, 64], strides = [1, 1]} : vector<1x96xf32> to vector<1x64xf32>
    %831 = vector.extract_strided_slice %829 {offsets = [0, 0], sizes = [1, 64], strides = [1, 1]} : vector<1x96xf32> to vector<1x64xf32>
    %832 = arith.addf %830, %831 : vector<1x64xf32>
    %833 = arith.negf %832 : vector<1x64xf32>
    %834 = math.exp %833 : vector<1x64xf32>
    %cst_179 = arith.constant 1.000000e+00 : f32
    %835 = vector.broadcast %cst_179 : f32 to vector<1x64xf32>
    %836 = arith.addf %835, %834 : vector<1x64xf32>
    %837 = arith.divf %835, %836 : vector<1x64xf32>
    %838 = vector.extract_strided_slice %837 {offsets = [0, 0], sizes = [1, 32], strides = [1, 1]} : vector<1x64xf32> to vector<1x32xf32>
    %839 = vector.extract_strided_slice %837 {offsets = [0, 32], sizes = [1, 32], strides = [1, 1]} : vector<1x64xf32> to vector<1x32xf32>
    %840 = vector.extract_strided_slice %825 {offsets = [0, 64], sizes = [1, 32], strides = [1, 1]} : vector<1x96xf32> to vector<1x32xf32>
    %841 = vector.extract_strided_slice %829 {offsets = [0, 64], sizes = [1, 32], strides = [1, 1]} : vector<1x96xf32> to vector<1x32xf32>
    %842 = arith.mulf %838, %841 : vector<1x32xf32>
    %843 = arith.addf %840, %842 : vector<1x32xf32>
    %844 = math.tanh %843 : vector<1x32xf32>
    %cst_180 = arith.constant 1.000000e+00 : f32
    %845 = vector.broadcast %cst_180 : f32 to vector<1x32xf32>
    %846 = arith.subf %845, %839 : vector<1x32xf32>
    %847 = arith.mulf %846, %844 : vector<1x32xf32>
    %848 = arith.mulf %839, %591 : vector<1x32xf32>
    %849 = arith.addf %847, %848 : vector<1x32xf32>
    %c0_181 = arith.constant 0 : index
    %c0_182 = arith.constant 0 : index
    %850 = vector.load %arg18[%c0_181, %c0_182] : memref<32x96xf32, #tpu.memory_space<vmem>>, vector<32x96xf32>
    %cst_183 = arith.constant dense<0.000000e+00> : vector<1x96xf32>
    %851 = tpu.matmul %849, %850, %cst_183 {dimension_numbers = #tpu.dot_dimension_numbers<[1], [0], [0], [1], [0, 0, 1, 1], [], []>} : vector<1x32xf32>, vector<32x96xf32>, vector<1x96xf32> -> vector<1x96xf32>
    %c0_184 = arith.constant 0 : index
    %c0_185 = arith.constant 0 : index
    %852 = vector.load %arg20[%c0_184, %c0_185] : memref<1x96xf32, #tpu.memory_space<vmem>>, vector<1x96xf32>
    %853 = arith.addf %851, %852 : vector<1x96xf32>
    %c0_186 = arith.constant 0 : index
    %c0_187 = arith.constant 0 : index
    %854 = vector.load %arg19[%c0_186, %c0_187] : memref<32x96xf32, #tpu.memory_space<vmem>>, vector<32x96xf32>
    %cst_188 = arith.constant dense<0.000000e+00> : vector<1x96xf32>
    %855 = tpu.matmul %788, %854, %cst_188 {dimension_numbers = #tpu.dot_dimension_numbers<[1], [0], [0], [1], [0, 0, 1, 1], [], []>} : vector<1x32xf32>, vector<32x96xf32>, vector<1x96xf32> -> vector<1x96xf32>
    %c0_189 = arith.constant 0 : index
    %c0_190 = arith.constant 0 : index
    %856 = vector.load %arg21[%c0_189, %c0_190] : memref<1x96xf32, #tpu.memory_space<vmem>>, vector<1x96xf32>
    %857 = arith.addf %855, %856 : vector<1x96xf32>
    %858 = vector.extract_strided_slice %853 {offsets = [0, 0], sizes = [1, 64], strides = [1, 1]} : vector<1x96xf32> to vector<1x64xf32>
    %859 = vector.extract_strided_slice %857 {offsets = [0, 0], sizes = [1, 64], strides = [1, 1]} : vector<1x96xf32> to vector<1x64xf32>
    %860 = arith.addf %858, %859 : vector<1x64xf32>
    %861 = arith.negf %860 : vector<1x64xf32>
    %862 = math.exp %861 : vector<1x64xf32>
    %cst_191 = arith.constant 1.000000e+00 : f32
    %863 = vector.broadcast %cst_191 : f32 to vector<1x64xf32>
    %864 = arith.addf %863, %862 : vector<1x64xf32>
    %865 = arith.divf %863, %864 : vector<1x64xf32>
    %866 = vector.extract_strided_slice %865 {offsets = [0, 0], sizes = [1, 32], strides = [1, 1]} : vector<1x64xf32> to vector<1x32xf32>
    %867 = vector.extract_strided_slice %865 {offsets = [0, 32], sizes = [1, 32], strides = [1, 1]} : vector<1x64xf32> to vector<1x32xf32>
    %868 = vector.extract_strided_slice %853 {offsets = [0, 64], sizes = [1, 32], strides = [1, 1]} : vector<1x96xf32> to vector<1x32xf32>
    %869 = vector.extract_strided_slice %857 {offsets = [0, 64], sizes = [1, 32], strides = [1, 1]} : vector<1x96xf32> to vector<1x32xf32>
    %870 = arith.mulf %866, %869 : vector<1x32xf32>
    %871 = arith.addf %868, %870 : vector<1x32xf32>
    %872 = math.tanh %871 : vector<1x32xf32>
    %cst_192 = arith.constant 1.000000e+00 : f32
    %873 = vector.broadcast %cst_192 : f32 to vector<1x32xf32>
    %874 = arith.subf %873, %867 : vector<1x32xf32>
    %875 = arith.mulf %874, %872 : vector<1x32xf32>
    %876 = arith.mulf %867, %788 : vector<1x32xf32>
    %877 = arith.addf %875, %876 : vector<1x32xf32>
    %878 = tpu.concatenate %877, %820 in 1 : vector<1x32xf32>, vector<1x32xf32> -> vector<1x64xf32>
    %cst_193 = arith.constant dense<0.000000e+00> : vector<1x12xf32>
    %879 = tpu.matmul %878, %795, %cst_193 {dimension_numbers = #tpu.dot_dimension_numbers<[1], [0], [0], [1], [0, 0, 1, 1], [], []>} : vector<1x64xf32>, vector<64x12xf32>, vector<1x12xf32> -> vector<1x12xf32>
    %880 = arith.addf %879, %796 : vector<1x12xf32>
    %881 = tpu.iota {dimensions = array<i32: 1>} : vector<1x12xi32>
    %cst_194 = arith.constant dense<0xFF800000> : vector<1xf32>
    %882 = vector.multi_reduction <maximumf>, %880, %cst_194 [1] : vector<1x12xf32> to vector<1xf32>
    %883 = vector.shape_cast %882 : vector<1xf32> to vector<1x1xf32>
    %884 = vector.broadcast %883 : vector<1x1xf32> to vector<1x12xf32>
    %885 = arith.cmpf oge, %880, %884 : vector<1x12xf32>
    %c12_i32 = arith.constant 12 : i32
    %886 = vector.broadcast %c12_i32 : i32 to vector<1x12xi32>
    %887 = arith.select %885, %881, %886 : vector<1x12xi1>, vector<1x12xi32>
    %cst_195 = arith.constant dense<2147483647> : vector<1xi32>
    %888 = vector.multi_reduction <minsi>, %887, %cst_195 [1] : vector<1x12xi32> to vector<1xi32>
    %889 = vector.shape_cast %888 : vector<1xi32> to vector<1x1xi32>
    %890 = vector.broadcast %889 : vector<1x1xi32> to vector<1x12xi32>
    %891 = arith.cmpi eq, %881, %890 : vector<1x12xi32>
    %892 = arith.extui %891 : vector<1x12xi1> to vector<1x12xi32>
    %893 = arith.sitofp %892 : vector<1x12xi32> to vector<1x12xf32>
    %cst_196 = arith.constant dense<0.000000e+00> : vector<1x32xf32>
    %894 = tpu.matmul %893, %791, %cst_196 {dimension_numbers = #tpu.dot_dimension_numbers<[1], [0], [0], [1], [0, 0, 1, 1], [], []>} : vector<1x12xf32>, vector<12x32xf32>, vector<1x32xf32> -> vector<1x32xf32>
    %c0_197 = arith.constant 0 : index
    %c0_198 = arith.constant 0 : index
    %895 = vector.load %arg12[%c0_197, %c0_198] : memref<32x32xf32, #tpu.memory_space<vmem>>, vector<32x32xf32>
    %cst_199 = arith.constant dense<0.000000e+00> : vector<1x32xf32>
    %896 = tpu.matmul %877, %895, %cst_199 {dimension_numbers = #tpu.dot_dimension_numbers<[1], [0], [0], [1], [0, 0, 1, 1], [], []>} : vector<1x32xf32>, vector<32x32xf32>, vector<1x32xf32> -> vector<1x32xf32>
    %897 = vector.broadcast %896 : vector<1x32xf32> to vector<8x32xf32>
    %898 = arith.addf %793, %897 : vector<8x32xf32>
    %899 = math.tanh %898 : vector<8x32xf32>
    %900 = vector.broadcast %794 : vector<1x32xf32> to vector<8x32xf32>
    %901 = arith.mulf %899, %900 : vector<8x32xf32>
    %cst_200 = arith.constant dense<0.000000e+00> : vector<8xf32>
    %902 = vector.multi_reduction <add>, %901, %cst_200 [1] : vector<8x32xf32> to vector<8xf32>
    %903 = vector.shape_cast %902 : vector<8xf32> to vector<8x1xf32>
    %cst_201 = arith.constant dense<0xFF800000> : vector<1xf32>
    %904 = vector.multi_reduction <maximumf>, %903, %cst_201 [0] : vector<8x1xf32> to vector<1xf32>
    %905 = vector.shape_cast %904 : vector<1xf32> to vector<1x1xf32>
    %906 = vector.broadcast %905 : vector<1x1xf32> to vector<8x1xf32>
    %907 = arith.subf %903, %906 : vector<8x1xf32>
    %908 = math.exp %907 : vector<8x1xf32>
    %cst_202 = arith.constant dense<0.000000e+00> : vector<1xf32>
    %909 = vector.multi_reduction <add>, %908, %cst_202 [0] : vector<8x1xf32> to vector<1xf32>
    %910 = vector.shape_cast %909 : vector<1xf32> to vector<1x1xf32>
    %911 = tpu.reciprocal %910 {approx = true} : vector<1x1xf32> -> vector<1x1xf32>
    %912 = vector.broadcast %911 : vector<1x1xf32> to vector<8x1xf32>
    %913 = arith.mulf %908, %912 : vector<8x1xf32>
    %914 = vector.broadcast %913 : vector<8x1xf32> to vector<8x32xf32>
    %915 = arith.mulf %914, %790 : vector<8x32xf32>
    %cst_203 = arith.constant dense<0.000000e+00> : vector<32xf32>
    %916 = vector.multi_reduction <add>, %915, %cst_203 [0] : vector<8x32xf32> to vector<32xf32>
    %917 = vector.shape_cast %916 : vector<32xf32> to vector<1x32xf32>
    %918 = tpu.concatenate %894, %917 in 1 : vector<1x32xf32>, vector<1x32xf32> -> vector<1x64xf32>
    %c0_204 = arith.constant 0 : index
    %c0_205 = arith.constant 0 : index
    %919 = vector.load %arg14[%c0_204, %c0_205] : memref<64x96xf32, #tpu.memory_space<vmem>>, vector<64x96xf32>
    %cst_206 = arith.constant dense<0.000000e+00> : vector<1x96xf32>
    %920 = tpu.matmul %918, %919, %cst_206 {dimension_numbers = #tpu.dot_dimension_numbers<[1], [0], [0], [1], [0, 0, 1, 1], [], []>} : vector<1x64xf32>, vector<64x96xf32>, vector<1x96xf32> -> vector<1x96xf32>
    %c0_207 = arith.constant 0 : index
    %c0_208 = arith.constant 0 : index
    %921 = vector.load %arg16[%c0_207, %c0_208] : memref<1x96xf32, #tpu.memory_space<vmem>>, vector<1x96xf32>
    %922 = arith.addf %920, %921 : vector<1x96xf32>
    %c0_209 = arith.constant 0 : index
    %c0_210 = arith.constant 0 : index
    %923 = vector.load %arg15[%c0_209, %c0_210] : memref<32x96xf32, #tpu.memory_space<vmem>>, vector<32x96xf32>
    %cst_211 = arith.constant dense<0.000000e+00> : vector<1x96xf32>
    %924 = tpu.matmul %849, %923, %cst_211 {dimension_numbers = #tpu.dot_dimension_numbers<[1], [0], [0], [1], [0, 0, 1, 1], [], []>} : vector<1x32xf32>, vector<32x96xf32>, vector<1x96xf32> -> vector<1x96xf32>
    %c0_212 = arith.constant 0 : index
    %c0_213 = arith.constant 0 : index
    %925 = vector.load %arg17[%c0_212, %c0_213] : memref<1x96xf32, #tpu.memory_space<vmem>>, vector<1x96xf32>
    %926 = arith.addf %924, %925 : vector<1x96xf32>
    %927 = vector.extract_strided_slice %922 {offsets = [0, 0], sizes = [1, 64], strides = [1, 1]} : vector<1x96xf32> to vector<1x64xf32>
    %928 = vector.extract_strided_slice %926 {offsets = [0, 0], sizes = [1, 64], strides = [1, 1]} : vector<1x96xf32> to vector<1x64xf32>
    %929 = arith.addf %927, %928 : vector<1x64xf32>
    %930 = arith.negf %929 : vector<1x64xf32>
    %931 = math.exp %930 : vector<1x64xf32>
    %cst_214 = arith.constant 1.000000e+00 : f32
    %932 = vector.broadcast %cst_214 : f32 to vector<1x64xf32>
    %933 = arith.addf %932, %931 : vector<1x64xf32>
    %934 = arith.divf %932, %933 : vector<1x64xf32>
    %935 = vector.extract_strided_slice %934 {offsets = [0, 0], sizes = [1, 32], strides = [1, 1]} : vector<1x64xf32> to vector<1x32xf32>
    %936 = vector.extract_strided_slice %934 {offsets = [0, 32], sizes = [1, 32], strides = [1, 1]} : vector<1x64xf32> to vector<1x32xf32>
    %937 = vector.extract_strided_slice %922 {offsets = [0, 64], sizes = [1, 32], strides = [1, 1]} : vector<1x96xf32> to vector<1x32xf32>
    %938 = vector.extract_strided_slice %926 {offsets = [0, 64], sizes = [1, 32], strides = [1, 1]} : vector<1x96xf32> to vector<1x32xf32>
    %939 = arith.mulf %935, %938 : vector<1x32xf32>
    %940 = arith.addf %937, %939 : vector<1x32xf32>
    %941 = math.tanh %940 : vector<1x32xf32>
    %cst_215 = arith.constant 1.000000e+00 : f32
    %942 = vector.broadcast %cst_215 : f32 to vector<1x32xf32>
    %943 = arith.subf %942, %936 : vector<1x32xf32>
    %944 = arith.mulf %943, %941 : vector<1x32xf32>
    %945 = arith.mulf %936, %849 : vector<1x32xf32>
    %946 = arith.addf %944, %945 : vector<1x32xf32>
    %c0_216 = arith.constant 0 : index
    %c0_217 = arith.constant 0 : index
    %947 = vector.load %arg18[%c0_216, %c0_217] : memref<32x96xf32, #tpu.memory_space<vmem>>, vector<32x96xf32>
    %cst_218 = arith.constant dense<0.000000e+00> : vector<1x96xf32>
    %948 = tpu.matmul %946, %947, %cst_218 {dimension_numbers = #tpu.dot_dimension_numbers<[1], [0], [0], [1], [0, 0, 1, 1], [], []>} : vector<1x32xf32>, vector<32x96xf32>, vector<1x96xf32> -> vector<1x96xf32>
    %c0_219 = arith.constant 0 : index
    %c0_220 = arith.constant 0 : index
    %949 = vector.load %arg20[%c0_219, %c0_220] : memref<1x96xf32, #tpu.memory_space<vmem>>, vector<1x96xf32>
    %950 = arith.addf %948, %949 : vector<1x96xf32>
    %c0_221 = arith.constant 0 : index
    %c0_222 = arith.constant 0 : index
    %951 = vector.load %arg19[%c0_221, %c0_222] : memref<32x96xf32, #tpu.memory_space<vmem>>, vector<32x96xf32>
    %cst_223 = arith.constant dense<0.000000e+00> : vector<1x96xf32>
    %952 = tpu.matmul %877, %951, %cst_223 {dimension_numbers = #tpu.dot_dimension_numbers<[1], [0], [0], [1], [0, 0, 1, 1], [], []>} : vector<1x32xf32>, vector<32x96xf32>, vector<1x96xf32> -> vector<1x96xf32>
    %c0_224 = arith.constant 0 : index
    %c0_225 = arith.constant 0 : index
    %953 = vector.load %arg21[%c0_224, %c0_225] : memref<1x96xf32, #tpu.memory_space<vmem>>, vector<1x96xf32>
    %954 = arith.addf %952, %953 : vector<1x96xf32>
    %955 = vector.extract_strided_slice %950 {offsets = [0, 0], sizes = [1, 64], strides = [1, 1]} : vector<1x96xf32> to vector<1x64xf32>
    %956 = vector.extract_strided_slice %954 {offsets = [0, 0], sizes = [1, 64], strides = [1, 1]} : vector<1x96xf32> to vector<1x64xf32>
    %957 = arith.addf %955, %956 : vector<1x64xf32>
    %958 = arith.negf %957 : vector<1x64xf32>
    %959 = math.exp %958 : vector<1x64xf32>
    %cst_226 = arith.constant 1.000000e+00 : f32
    %960 = vector.broadcast %cst_226 : f32 to vector<1x64xf32>
    %961 = arith.addf %960, %959 : vector<1x64xf32>
    %962 = arith.divf %960, %961 : vector<1x64xf32>
    %963 = vector.extract_strided_slice %962 {offsets = [0, 0], sizes = [1, 32], strides = [1, 1]} : vector<1x64xf32> to vector<1x32xf32>
    %964 = vector.extract_strided_slice %962 {offsets = [0, 32], sizes = [1, 32], strides = [1, 1]} : vector<1x64xf32> to vector<1x32xf32>
    %965 = vector.extract_strided_slice %950 {offsets = [0, 64], sizes = [1, 32], strides = [1, 1]} : vector<1x96xf32> to vector<1x32xf32>
    %966 = vector.extract_strided_slice %954 {offsets = [0, 64], sizes = [1, 32], strides = [1, 1]} : vector<1x96xf32> to vector<1x32xf32>
    %967 = arith.mulf %963, %966 : vector<1x32xf32>
    %968 = arith.addf %965, %967 : vector<1x32xf32>
    %969 = math.tanh %968 : vector<1x32xf32>
    %cst_227 = arith.constant 1.000000e+00 : f32
    %970 = vector.broadcast %cst_227 : f32 to vector<1x32xf32>
    %971 = arith.subf %970, %964 : vector<1x32xf32>
    %972 = arith.mulf %971, %969 : vector<1x32xf32>
    %973 = arith.mulf %964, %877 : vector<1x32xf32>
    %974 = arith.addf %972, %973 : vector<1x32xf32>
    %975 = tpu.concatenate %974, %917 in 1 : vector<1x32xf32>, vector<1x32xf32> -> vector<1x64xf32>
    %cst_228 = arith.constant dense<0.000000e+00> : vector<1x12xf32>
    %976 = tpu.matmul %975, %795, %cst_228 {dimension_numbers = #tpu.dot_dimension_numbers<[1], [0], [0], [1], [0, 0, 1, 1], [], []>} : vector<1x64xf32>, vector<64x12xf32>, vector<1x12xf32> -> vector<1x12xf32>
    %977 = arith.addf %976, %796 : vector<1x12xf32>
    %978 = tpu.iota {dimensions = array<i32: 1>} : vector<1x12xi32>
    %cst_229 = arith.constant dense<0xFF800000> : vector<1xf32>
    %979 = vector.multi_reduction <maximumf>, %977, %cst_229 [1] : vector<1x12xf32> to vector<1xf32>
    %980 = vector.shape_cast %979 : vector<1xf32> to vector<1x1xf32>
    %981 = vector.broadcast %980 : vector<1x1xf32> to vector<1x12xf32>
    %982 = arith.cmpf oge, %977, %981 : vector<1x12xf32>
    %c12_i32_230 = arith.constant 12 : i32
    %983 = vector.broadcast %c12_i32_230 : i32 to vector<1x12xi32>
    %984 = arith.select %982, %978, %983 : vector<1x12xi1>, vector<1x12xi32>
    %cst_231 = arith.constant dense<2147483647> : vector<1xi32>
    %985 = vector.multi_reduction <minsi>, %984, %cst_231 [1] : vector<1x12xi32> to vector<1xi32>
    %986 = vector.shape_cast %985 : vector<1xi32> to vector<1x1xi32>
    %987 = vector.broadcast %986 : vector<1x1xi32> to vector<1x12xi32>
    %988 = arith.cmpi eq, %978, %987 : vector<1x12xi32>
    %989 = arith.extui %988 : vector<1x12xi1> to vector<1x12xi32>
    %990 = arith.sitofp %989 : vector<1x12xi32> to vector<1x12xf32>
    %cst_232 = arith.constant dense<0.000000e+00> : vector<1x32xf32>
    %991 = tpu.matmul %990, %791, %cst_232 {dimension_numbers = #tpu.dot_dimension_numbers<[1], [0], [0], [1], [0, 0, 1, 1], [], []>} : vector<1x12xf32>, vector<12x32xf32>, vector<1x32xf32> -> vector<1x32xf32>
    %c0_233 = arith.constant 0 : index
    %c0_234 = arith.constant 0 : index
    %992 = vector.load %arg12[%c0_233, %c0_234] : memref<32x32xf32, #tpu.memory_space<vmem>>, vector<32x32xf32>
    %cst_235 = arith.constant dense<0.000000e+00> : vector<1x32xf32>
    %993 = tpu.matmul %974, %992, %cst_235 {dimension_numbers = #tpu.dot_dimension_numbers<[1], [0], [0], [1], [0, 0, 1, 1], [], []>} : vector<1x32xf32>, vector<32x32xf32>, vector<1x32xf32> -> vector<1x32xf32>
    %994 = vector.broadcast %993 : vector<1x32xf32> to vector<8x32xf32>
    %995 = arith.addf %793, %994 : vector<8x32xf32>
    %996 = math.tanh %995 : vector<8x32xf32>
    %997 = vector.broadcast %794 : vector<1x32xf32> to vector<8x32xf32>
    %998 = arith.mulf %996, %997 : vector<8x32xf32>
    %cst_236 = arith.constant dense<0.000000e+00> : vector<8xf32>
    %999 = vector.multi_reduction <add>, %998, %cst_236 [1] : vector<8x32xf32> to vector<8xf32>
    %1000 = vector.shape_cast %999 : vector<8xf32> to vector<8x1xf32>
    %cst_237 = arith.constant dense<0xFF800000> : vector<1xf32>
    %1001 = vector.multi_reduction <maximumf>, %1000, %cst_237 [0] : vector<8x1xf32> to vector<1xf32>
    %1002 = vector.shape_cast %1001 : vector<1xf32> to vector<1x1xf32>
    %1003 = vector.broadcast %1002 : vector<1x1xf32> to vector<8x1xf32>
    %1004 = arith.subf %1000, %1003 : vector<8x1xf32>
    %1005 = math.exp %1004 : vector<8x1xf32>
    %cst_238 = arith.constant dense<0.000000e+00> : vector<1xf32>
    %1006 = vector.multi_reduction <add>, %1005, %cst_238 [0] : vector<8x1xf32> to vector<1xf32>
    %1007 = vector.shape_cast %1006 : vector<1xf32> to vector<1x1xf32>
    %1008 = tpu.reciprocal %1007 {approx = true} : vector<1x1xf32> -> vector<1x1xf32>
    %1009 = vector.broadcast %1008 : vector<1x1xf32> to vector<8x1xf32>
    %1010 = arith.mulf %1005, %1009 : vector<8x1xf32>
    %1011 = vector.broadcast %1010 : vector<8x1xf32> to vector<8x32xf32>
    %1012 = arith.mulf %1011, %790 : vector<8x32xf32>
    %cst_239 = arith.constant dense<0.000000e+00> : vector<32xf32>
    %1013 = vector.multi_reduction <add>, %1012, %cst_239 [0] : vector<8x32xf32> to vector<32xf32>
    %1014 = vector.shape_cast %1013 : vector<32xf32> to vector<1x32xf32>
    %1015 = tpu.concatenate %991, %1014 in 1 : vector<1x32xf32>, vector<1x32xf32> -> vector<1x64xf32>
    %c0_240 = arith.constant 0 : index
    %c0_241 = arith.constant 0 : index
    %1016 = vector.load %arg14[%c0_240, %c0_241] : memref<64x96xf32, #tpu.memory_space<vmem>>, vector<64x96xf32>
    %cst_242 = arith.constant dense<0.000000e+00> : vector<1x96xf32>
    %1017 = tpu.matmul %1015, %1016, %cst_242 {dimension_numbers = #tpu.dot_dimension_numbers<[1], [0], [0], [1], [0, 0, 1, 1], [], []>} : vector<1x64xf32>, vector<64x96xf32>, vector<1x96xf32> -> vector<1x96xf32>
    %c0_243 = arith.constant 0 : index
    %c0_244 = arith.constant 0 : index
    %1018 = vector.load %arg16[%c0_243, %c0_244] : memref<1x96xf32, #tpu.memory_space<vmem>>, vector<1x96xf32>
    %1019 = arith.addf %1017, %1018 : vector<1x96xf32>
    %c0_245 = arith.constant 0 : index
    %c0_246 = arith.constant 0 : index
    %1020 = vector.load %arg15[%c0_245, %c0_246] : memref<32x96xf32, #tpu.memory_space<vmem>>, vector<32x96xf32>
    %cst_247 = arith.constant dense<0.000000e+00> : vector<1x96xf32>
    %1021 = tpu.matmul %946, %1020, %cst_247 {dimension_numbers = #tpu.dot_dimension_numbers<[1], [0], [0], [1], [0, 0, 1, 1], [], []>} : vector<1x32xf32>, vector<32x96xf32>, vector<1x96xf32> -> vector<1x96xf32>
    %c0_248 = arith.constant 0 : index
    %c0_249 = arith.constant 0 : index
    %1022 = vector.load %arg17[%c0_248, %c0_249] : memref<1x96xf32, #tpu.memory_space<vmem>>, vector<1x96xf32>
    %1023 = arith.addf %1021, %1022 : vector<1x96xf32>
    %1024 = vector.extract_strided_slice %1019 {offsets = [0, 0], sizes = [1, 64], strides = [1, 1]} : vector<1x96xf32> to vector<1x64xf32>
    %1025 = vector.extract_strided_slice %1023 {offsets = [0, 0], sizes = [1, 64], strides = [1, 1]} : vector<1x96xf32> to vector<1x64xf32>
    %1026 = arith.addf %1024, %1025 : vector<1x64xf32>
    %1027 = arith.negf %1026 : vector<1x64xf32>
    %1028 = math.exp %1027 : vector<1x64xf32>
    %cst_250 = arith.constant 1.000000e+00 : f32
    %1029 = vector.broadcast %cst_250 : f32 to vector<1x64xf32>
    %1030 = arith.addf %1029, %1028 : vector<1x64xf32>
    %1031 = arith.divf %1029, %1030 : vector<1x64xf32>
    %1032 = vector.extract_strided_slice %1031 {offsets = [0, 0], sizes = [1, 32], strides = [1, 1]} : vector<1x64xf32> to vector<1x32xf32>
    %1033 = vector.extract_strided_slice %1031 {offsets = [0, 32], sizes = [1, 32], strides = [1, 1]} : vector<1x64xf32> to vector<1x32xf32>
    %1034 = vector.extract_strided_slice %1019 {offsets = [0, 64], sizes = [1, 32], strides = [1, 1]} : vector<1x96xf32> to vector<1x32xf32>
    %1035 = vector.extract_strided_slice %1023 {offsets = [0, 64], sizes = [1, 32], strides = [1, 1]} : vector<1x96xf32> to vector<1x32xf32>
    %1036 = arith.mulf %1032, %1035 : vector<1x32xf32>
    %1037 = arith.addf %1034, %1036 : vector<1x32xf32>
    %1038 = math.tanh %1037 : vector<1x32xf32>
    %cst_251 = arith.constant 1.000000e+00 : f32
    %1039 = vector.broadcast %cst_251 : f32 to vector<1x32xf32>
    %1040 = arith.subf %1039, %1033 : vector<1x32xf32>
    %1041 = arith.mulf %1040, %1038 : vector<1x32xf32>
    %1042 = arith.mulf %1033, %946 : vector<1x32xf32>
    %1043 = arith.addf %1041, %1042 : vector<1x32xf32>
    %c0_252 = arith.constant 0 : index
    %c0_253 = arith.constant 0 : index
    %1044 = vector.load %arg18[%c0_252, %c0_253] : memref<32x96xf32, #tpu.memory_space<vmem>>, vector<32x96xf32>
    %cst_254 = arith.constant dense<0.000000e+00> : vector<1x96xf32>
    %1045 = tpu.matmul %1043, %1044, %cst_254 {dimension_numbers = #tpu.dot_dimension_numbers<[1], [0], [0], [1], [0, 0, 1, 1], [], []>} : vector<1x32xf32>, vector<32x96xf32>, vector<1x96xf32> -> vector<1x96xf32>
    %c0_255 = arith.constant 0 : index
    %c0_256 = arith.constant 0 : index
    %1046 = vector.load %arg20[%c0_255, %c0_256] : memref<1x96xf32, #tpu.memory_space<vmem>>, vector<1x96xf32>
    %1047 = arith.addf %1045, %1046 : vector<1x96xf32>
    %c0_257 = arith.constant 0 : index
    %c0_258 = arith.constant 0 : index
    %1048 = vector.load %arg19[%c0_257, %c0_258] : memref<32x96xf32, #tpu.memory_space<vmem>>, vector<32x96xf32>
    %cst_259 = arith.constant dense<0.000000e+00> : vector<1x96xf32>
    %1049 = tpu.matmul %974, %1048, %cst_259 {dimension_numbers = #tpu.dot_dimension_numbers<[1], [0], [0], [1], [0, 0, 1, 1], [], []>} : vector<1x32xf32>, vector<32x96xf32>, vector<1x96xf32> -> vector<1x96xf32>
    %c0_260 = arith.constant 0 : index
    %c0_261 = arith.constant 0 : index
    %1050 = vector.load %arg21[%c0_260, %c0_261] : memref<1x96xf32, #tpu.memory_space<vmem>>, vector<1x96xf32>
    %1051 = arith.addf %1049, %1050 : vector<1x96xf32>
    %1052 = vector.extract_strided_slice %1047 {offsets = [0, 0], sizes = [1, 64], strides = [1, 1]} : vector<1x96xf32> to vector<1x64xf32>
    %1053 = vector.extract_strided_slice %1051 {offsets = [0, 0], sizes = [1, 64], strides = [1, 1]} : vector<1x96xf32> to vector<1x64xf32>
    %1054 = arith.addf %1052, %1053 : vector<1x64xf32>
    %1055 = arith.negf %1054 : vector<1x64xf32>
    %1056 = math.exp %1055 : vector<1x64xf32>
    %cst_262 = arith.constant 1.000000e+00 : f32
    %1057 = vector.broadcast %cst_262 : f32 to vector<1x64xf32>
    %1058 = arith.addf %1057, %1056 : vector<1x64xf32>
    %1059 = arith.divf %1057, %1058 : vector<1x64xf32>
    %1060 = vector.extract_strided_slice %1059 {offsets = [0, 0], sizes = [1, 32], strides = [1, 1]} : vector<1x64xf32> to vector<1x32xf32>
    %1061 = vector.extract_strided_slice %1059 {offsets = [0, 32], sizes = [1, 32], strides = [1, 1]} : vector<1x64xf32> to vector<1x32xf32>
    %1062 = vector.extract_strided_slice %1047 {offsets = [0, 64], sizes = [1, 32], strides = [1, 1]} : vector<1x96xf32> to vector<1x32xf32>
    %1063 = vector.extract_strided_slice %1051 {offsets = [0, 64], sizes = [1, 32], strides = [1, 1]} : vector<1x96xf32> to vector<1x32xf32>
    %1064 = arith.mulf %1060, %1063 : vector<1x32xf32>
    %1065 = arith.addf %1062, %1064 : vector<1x32xf32>
    %1066 = math.tanh %1065 : vector<1x32xf32>
    %cst_263 = arith.constant 1.000000e+00 : f32
    %1067 = vector.broadcast %cst_263 : f32 to vector<1x32xf32>
    %1068 = arith.subf %1067, %1061 : vector<1x32xf32>
    %1069 = arith.mulf %1068, %1066 : vector<1x32xf32>
    %1070 = arith.mulf %1061, %974 : vector<1x32xf32>
    %1071 = arith.addf %1069, %1070 : vector<1x32xf32>
    %1072 = tpu.concatenate %1071, %1014 in 1 : vector<1x32xf32>, vector<1x32xf32> -> vector<1x64xf32>
    %cst_264 = arith.constant dense<0.000000e+00> : vector<1x12xf32>
    %1073 = tpu.matmul %1072, %795, %cst_264 {dimension_numbers = #tpu.dot_dimension_numbers<[1], [0], [0], [1], [0, 0, 1, 1], [], []>} : vector<1x64xf32>, vector<64x12xf32>, vector<1x12xf32> -> vector<1x12xf32>
    %1074 = arith.addf %1073, %796 : vector<1x12xf32>
    %1075 = tpu.iota {dimensions = array<i32: 1>} : vector<1x12xi32>
    %cst_265 = arith.constant dense<0xFF800000> : vector<1xf32>
    %1076 = vector.multi_reduction <maximumf>, %1074, %cst_265 [1] : vector<1x12xf32> to vector<1xf32>
    %1077 = vector.shape_cast %1076 : vector<1xf32> to vector<1x1xf32>
    %1078 = vector.broadcast %1077 : vector<1x1xf32> to vector<1x12xf32>
    %1079 = arith.cmpf oge, %1074, %1078 : vector<1x12xf32>
    %c12_i32_266 = arith.constant 12 : i32
    %1080 = vector.broadcast %c12_i32_266 : i32 to vector<1x12xi32>
    %1081 = arith.select %1079, %1075, %1080 : vector<1x12xi1>, vector<1x12xi32>
    %cst_267 = arith.constant dense<2147483647> : vector<1xi32>
    %1082 = vector.multi_reduction <minsi>, %1081, %cst_267 [1] : vector<1x12xi32> to vector<1xi32>
    %1083 = vector.shape_cast %1082 : vector<1xi32> to vector<1x1xi32>
    %1084 = vector.broadcast %1083 : vector<1x1xi32> to vector<1x12xi32>
    %1085 = arith.cmpi eq, %1075, %1084 : vector<1x12xi32>
    %1086 = arith.extui %1085 : vector<1x12xi1> to vector<1x12xi32>
    %1087 = arith.sitofp %1086 : vector<1x12xi32> to vector<1x12xf32>
    %cst_268 = arith.constant dense<0.000000e+00> : vector<1x32xf32>
    %1088 = tpu.matmul %1087, %791, %cst_268 {dimension_numbers = #tpu.dot_dimension_numbers<[1], [0], [0], [1], [0, 0, 1, 1], [], []>} : vector<1x12xf32>, vector<12x32xf32>, vector<1x32xf32> -> vector<1x32xf32>
    %c0_269 = arith.constant 0 : index
    %c0_270 = arith.constant 0 : index
    %1089 = vector.load %arg12[%c0_269, %c0_270] : memref<32x32xf32, #tpu.memory_space<vmem>>, vector<32x32xf32>
    %cst_271 = arith.constant dense<0.000000e+00> : vector<1x32xf32>
    %1090 = tpu.matmul %1071, %1089, %cst_271 {dimension_numbers = #tpu.dot_dimension_numbers<[1], [0], [0], [1], [0, 0, 1, 1], [], []>} : vector<1x32xf32>, vector<32x32xf32>, vector<1x32xf32> -> vector<1x32xf32>
    %1091 = vector.broadcast %1090 : vector<1x32xf32> to vector<8x32xf32>
    %1092 = arith.addf %793, %1091 : vector<8x32xf32>
    %1093 = math.tanh %1092 : vector<8x32xf32>
    %1094 = vector.broadcast %794 : vector<1x32xf32> to vector<8x32xf32>
    %1095 = arith.mulf %1093, %1094 : vector<8x32xf32>
    %cst_272 = arith.constant dense<0.000000e+00> : vector<8xf32>
    %1096 = vector.multi_reduction <add>, %1095, %cst_272 [1] : vector<8x32xf32> to vector<8xf32>
    %1097 = vector.shape_cast %1096 : vector<8xf32> to vector<8x1xf32>
    %cst_273 = arith.constant dense<0xFF800000> : vector<1xf32>
    %1098 = vector.multi_reduction <maximumf>, %1097, %cst_273 [0] : vector<8x1xf32> to vector<1xf32>
    %1099 = vector.shape_cast %1098 : vector<1xf32> to vector<1x1xf32>
    %1100 = vector.broadcast %1099 : vector<1x1xf32> to vector<8x1xf32>
    %1101 = arith.subf %1097, %1100 : vector<8x1xf32>
    %1102 = math.exp %1101 : vector<8x1xf32>
    %cst_274 = arith.constant dense<0.000000e+00> : vector<1xf32>
    %1103 = vector.multi_reduction <add>, %1102, %cst_274 [0] : vector<8x1xf32> to vector<1xf32>
    %1104 = vector.shape_cast %1103 : vector<1xf32> to vector<1x1xf32>
    %1105 = tpu.reciprocal %1104 {approx = true} : vector<1x1xf32> -> vector<1x1xf32>
    %1106 = vector.broadcast %1105 : vector<1x1xf32> to vector<8x1xf32>
    %1107 = arith.mulf %1102, %1106 : vector<8x1xf32>
    %1108 = vector.broadcast %1107 : vector<8x1xf32> to vector<8x32xf32>
    %1109 = arith.mulf %1108, %790 : vector<8x32xf32>
    %cst_275 = arith.constant dense<0.000000e+00> : vector<32xf32>
    %1110 = vector.multi_reduction <add>, %1109, %cst_275 [0] : vector<8x32xf32> to vector<32xf32>
    %1111 = vector.shape_cast %1110 : vector<32xf32> to vector<1x32xf32>
    %1112 = tpu.concatenate %1088, %1111 in 1 : vector<1x32xf32>, vector<1x32xf32> -> vector<1x64xf32>
    %c0_276 = arith.constant 0 : index
    %c0_277 = arith.constant 0 : index
    %1113 = vector.load %arg14[%c0_276, %c0_277] : memref<64x96xf32, #tpu.memory_space<vmem>>, vector<64x96xf32>
    %cst_278 = arith.constant dense<0.000000e+00> : vector<1x96xf32>
    %1114 = tpu.matmul %1112, %1113, %cst_278 {dimension_numbers = #tpu.dot_dimension_numbers<[1], [0], [0], [1], [0, 0, 1, 1], [], []>} : vector<1x64xf32>, vector<64x96xf32>, vector<1x96xf32> -> vector<1x96xf32>
    %c0_279 = arith.constant 0 : index
    %c0_280 = arith.constant 0 : index
    %1115 = vector.load %arg16[%c0_279, %c0_280] : memref<1x96xf32, #tpu.memory_space<vmem>>, vector<1x96xf32>
    %1116 = arith.addf %1114, %1115 : vector<1x96xf32>
    %c0_281 = arith.constant 0 : index
    %c0_282 = arith.constant 0 : index
    %1117 = vector.load %arg15[%c0_281, %c0_282] : memref<32x96xf32, #tpu.memory_space<vmem>>, vector<32x96xf32>
    %cst_283 = arith.constant dense<0.000000e+00> : vector<1x96xf32>
    %1118 = tpu.matmul %1043, %1117, %cst_283 {dimension_numbers = #tpu.dot_dimension_numbers<[1], [0], [0], [1], [0, 0, 1, 1], [], []>} : vector<1x32xf32>, vector<32x96xf32>, vector<1x96xf32> -> vector<1x96xf32>
    %c0_284 = arith.constant 0 : index
    %c0_285 = arith.constant 0 : index
    %1119 = vector.load %arg17[%c0_284, %c0_285] : memref<1x96xf32, #tpu.memory_space<vmem>>, vector<1x96xf32>
    %1120 = arith.addf %1118, %1119 : vector<1x96xf32>
    %1121 = vector.extract_strided_slice %1116 {offsets = [0, 0], sizes = [1, 64], strides = [1, 1]} : vector<1x96xf32> to vector<1x64xf32>
    %1122 = vector.extract_strided_slice %1120 {offsets = [0, 0], sizes = [1, 64], strides = [1, 1]} : vector<1x96xf32> to vector<1x64xf32>
    %1123 = arith.addf %1121, %1122 : vector<1x64xf32>
    %1124 = arith.negf %1123 : vector<1x64xf32>
    %1125 = math.exp %1124 : vector<1x64xf32>
    %cst_286 = arith.constant 1.000000e+00 : f32
    %1126 = vector.broadcast %cst_286 : f32 to vector<1x64xf32>
    %1127 = arith.addf %1126, %1125 : vector<1x64xf32>
    %1128 = arith.divf %1126, %1127 : vector<1x64xf32>
    %1129 = vector.extract_strided_slice %1128 {offsets = [0, 0], sizes = [1, 32], strides = [1, 1]} : vector<1x64xf32> to vector<1x32xf32>
    %1130 = vector.extract_strided_slice %1128 {offsets = [0, 32], sizes = [1, 32], strides = [1, 1]} : vector<1x64xf32> to vector<1x32xf32>
    %1131 = vector.extract_strided_slice %1116 {offsets = [0, 64], sizes = [1, 32], strides = [1, 1]} : vector<1x96xf32> to vector<1x32xf32>
    %1132 = vector.extract_strided_slice %1120 {offsets = [0, 64], sizes = [1, 32], strides = [1, 1]} : vector<1x96xf32> to vector<1x32xf32>
    %1133 = arith.mulf %1129, %1132 : vector<1x32xf32>
    %1134 = arith.addf %1131, %1133 : vector<1x32xf32>
    %1135 = math.tanh %1134 : vector<1x32xf32>
    %cst_287 = arith.constant 1.000000e+00 : f32
    %1136 = vector.broadcast %cst_287 : f32 to vector<1x32xf32>
    %1137 = arith.subf %1136, %1130 : vector<1x32xf32>
    %1138 = arith.mulf %1137, %1135 : vector<1x32xf32>
    %1139 = arith.mulf %1130, %1043 : vector<1x32xf32>
    %1140 = arith.addf %1138, %1139 : vector<1x32xf32>
    %c0_288 = arith.constant 0 : index
    %c0_289 = arith.constant 0 : index
    %1141 = vector.load %arg18[%c0_288, %c0_289] : memref<32x96xf32, #tpu.memory_space<vmem>>, vector<32x96xf32>
    %cst_290 = arith.constant dense<0.000000e+00> : vector<1x96xf32>
    %1142 = tpu.matmul %1140, %1141, %cst_290 {dimension_numbers = #tpu.dot_dimension_numbers<[1], [0], [0], [1], [0, 0, 1, 1], [], []>} : vector<1x32xf32>, vector<32x96xf32>, vector<1x96xf32> -> vector<1x96xf32>
    %c0_291 = arith.constant 0 : index
    %c0_292 = arith.constant 0 : index
    %1143 = vector.load %arg20[%c0_291, %c0_292] : memref<1x96xf32, #tpu.memory_space<vmem>>, vector<1x96xf32>
    %1144 = arith.addf %1142, %1143 : vector<1x96xf32>
    %c0_293 = arith.constant 0 : index
    %c0_294 = arith.constant 0 : index
    %1145 = vector.load %arg19[%c0_293, %c0_294] : memref<32x96xf32, #tpu.memory_space<vmem>>, vector<32x96xf32>
    %cst_295 = arith.constant dense<0.000000e+00> : vector<1x96xf32>
    %1146 = tpu.matmul %1071, %1145, %cst_295 {dimension_numbers = #tpu.dot_dimension_numbers<[1], [0], [0], [1], [0, 0, 1, 1], [], []>} : vector<1x32xf32>, vector<32x96xf32>, vector<1x96xf32> -> vector<1x96xf32>
    %c0_296 = arith.constant 0 : index
    %c0_297 = arith.constant 0 : index
    %1147 = vector.load %arg21[%c0_296, %c0_297] : memref<1x96xf32, #tpu.memory_space<vmem>>, vector<1x96xf32>
    %1148 = arith.addf %1146, %1147 : vector<1x96xf32>
    %1149 = vector.extract_strided_slice %1144 {offsets = [0, 0], sizes = [1, 64], strides = [1, 1]} : vector<1x96xf32> to vector<1x64xf32>
    %1150 = vector.extract_strided_slice %1148 {offsets = [0, 0], sizes = [1, 64], strides = [1, 1]} : vector<1x96xf32> to vector<1x64xf32>
    %1151 = arith.addf %1149, %1150 : vector<1x64xf32>
    %1152 = arith.negf %1151 : vector<1x64xf32>
    %1153 = math.exp %1152 : vector<1x64xf32>
    %cst_298 = arith.constant 1.000000e+00 : f32
    %1154 = vector.broadcast %cst_298 : f32 to vector<1x64xf32>
    %1155 = arith.addf %1154, %1153 : vector<1x64xf32>
    %1156 = arith.divf %1154, %1155 : vector<1x64xf32>
    %1157 = vector.extract_strided_slice %1156 {offsets = [0, 0], sizes = [1, 32], strides = [1, 1]} : vector<1x64xf32> to vector<1x32xf32>
    %1158 = vector.extract_strided_slice %1156 {offsets = [0, 32], sizes = [1, 32], strides = [1, 1]} : vector<1x64xf32> to vector<1x32xf32>
    %1159 = vector.extract_strided_slice %1144 {offsets = [0, 64], sizes = [1, 32], strides = [1, 1]} : vector<1x96xf32> to vector<1x32xf32>
    %1160 = vector.extract_strided_slice %1148 {offsets = [0, 64], sizes = [1, 32], strides = [1, 1]} : vector<1x96xf32> to vector<1x32xf32>
    %1161 = arith.mulf %1157, %1160 : vector<1x32xf32>
    %1162 = arith.addf %1159, %1161 : vector<1x32xf32>
    %1163 = math.tanh %1162 : vector<1x32xf32>
    %cst_299 = arith.constant 1.000000e+00 : f32
    %1164 = vector.broadcast %cst_299 : f32 to vector<1x32xf32>
    %1165 = arith.subf %1164, %1158 : vector<1x32xf32>
    %1166 = arith.mulf %1165, %1163 : vector<1x32xf32>
    %1167 = arith.mulf %1158, %1071 : vector<1x32xf32>
    %1168 = arith.addf %1166, %1167 : vector<1x32xf32>
    %1169 = tpu.concatenate %1168, %1111 in 1 : vector<1x32xf32>, vector<1x32xf32> -> vector<1x64xf32>
    %cst_300 = arith.constant dense<0.000000e+00> : vector<1x12xf32>
    %1170 = tpu.matmul %1169, %795, %cst_300 {dimension_numbers = #tpu.dot_dimension_numbers<[1], [0], [0], [1], [0, 0, 1, 1], [], []>} : vector<1x64xf32>, vector<64x12xf32>, vector<1x12xf32> -> vector<1x12xf32>
    %1171 = arith.addf %1170, %796 : vector<1x12xf32>
    %1172 = tpu.iota {dimensions = array<i32: 1>} : vector<1x12xi32>
    %cst_301 = arith.constant dense<0xFF800000> : vector<1xf32>
    %1173 = vector.multi_reduction <maximumf>, %1171, %cst_301 [1] : vector<1x12xf32> to vector<1xf32>
    %1174 = vector.shape_cast %1173 : vector<1xf32> to vector<1x1xf32>
    %1175 = vector.broadcast %1174 : vector<1x1xf32> to vector<1x12xf32>
    %1176 = arith.cmpf oge, %1171, %1175 : vector<1x12xf32>
    %c12_i32_302 = arith.constant 12 : i32
    %1177 = vector.broadcast %c12_i32_302 : i32 to vector<1x12xi32>
    %1178 = arith.select %1176, %1172, %1177 : vector<1x12xi1>, vector<1x12xi32>
    %cst_303 = arith.constant dense<2147483647> : vector<1xi32>
    %1179 = vector.multi_reduction <minsi>, %1178, %cst_303 [1] : vector<1x12xi32> to vector<1xi32>
    %1180 = vector.shape_cast %1179 : vector<1xi32> to vector<1x1xi32>
    %1181 = vector.broadcast %1180 : vector<1x1xi32> to vector<1x12xi32>
    %1182 = arith.cmpi eq, %1172, %1181 : vector<1x12xi32>
    %1183 = arith.extui %1182 : vector<1x12xi1> to vector<1x12xi32>
    %1184 = arith.sitofp %1183 : vector<1x12xi32> to vector<1x12xf32>
    %cst_304 = arith.constant dense<0.000000e+00> : vector<1x32xf32>
    %1185 = tpu.matmul %1184, %791, %cst_304 {dimension_numbers = #tpu.dot_dimension_numbers<[1], [0], [0], [1], [0, 0, 1, 1], [], []>} : vector<1x12xf32>, vector<12x32xf32>, vector<1x32xf32> -> vector<1x32xf32>
    %c0_305 = arith.constant 0 : index
    %c0_306 = arith.constant 0 : index
    %1186 = vector.load %arg12[%c0_305, %c0_306] : memref<32x32xf32, #tpu.memory_space<vmem>>, vector<32x32xf32>
    %cst_307 = arith.constant dense<0.000000e+00> : vector<1x32xf32>
    %1187 = tpu.matmul %1168, %1186, %cst_307 {dimension_numbers = #tpu.dot_dimension_numbers<[1], [0], [0], [1], [0, 0, 1, 1], [], []>} : vector<1x32xf32>, vector<32x32xf32>, vector<1x32xf32> -> vector<1x32xf32>
    %1188 = vector.broadcast %1187 : vector<1x32xf32> to vector<8x32xf32>
    %1189 = arith.addf %793, %1188 : vector<8x32xf32>
    %1190 = math.tanh %1189 : vector<8x32xf32>
    %1191 = vector.broadcast %794 : vector<1x32xf32> to vector<8x32xf32>
    %1192 = arith.mulf %1190, %1191 : vector<8x32xf32>
    %cst_308 = arith.constant dense<0.000000e+00> : vector<8xf32>
    %1193 = vector.multi_reduction <add>, %1192, %cst_308 [1] : vector<8x32xf32> to vector<8xf32>
    %1194 = vector.shape_cast %1193 : vector<8xf32> to vector<8x1xf32>
    %cst_309 = arith.constant dense<0xFF800000> : vector<1xf32>
    %1195 = vector.multi_reduction <maximumf>, %1194, %cst_309 [0] : vector<8x1xf32> to vector<1xf32>
    %1196 = vector.shape_cast %1195 : vector<1xf32> to vector<1x1xf32>
    %1197 = vector.broadcast %1196 : vector<1x1xf32> to vector<8x1xf32>
    %1198 = arith.subf %1194, %1197 : vector<8x1xf32>
    %1199 = math.exp %1198 : vector<8x1xf32>
    %cst_310 = arith.constant dense<0.000000e+00> : vector<1xf32>
    %1200 = vector.multi_reduction <add>, %1199, %cst_310 [0] : vector<8x1xf32> to vector<1xf32>
    %1201 = vector.shape_cast %1200 : vector<1xf32> to vector<1x1xf32>
    %1202 = tpu.reciprocal %1201 {approx = true} : vector<1x1xf32> -> vector<1x1xf32>
    %1203 = vector.broadcast %1202 : vector<1x1xf32> to vector<8x1xf32>
    %1204 = arith.mulf %1199, %1203 : vector<8x1xf32>
    %1205 = vector.broadcast %1204 : vector<8x1xf32> to vector<8x32xf32>
    %1206 = arith.mulf %1205, %790 : vector<8x32xf32>
    %cst_311 = arith.constant dense<0.000000e+00> : vector<32xf32>
    %1207 = vector.multi_reduction <add>, %1206, %cst_311 [0] : vector<8x32xf32> to vector<32xf32>
    %1208 = vector.shape_cast %1207 : vector<32xf32> to vector<1x32xf32>
    %1209 = tpu.concatenate %1185, %1208 in 1 : vector<1x32xf32>, vector<1x32xf32> -> vector<1x64xf32>
    %c0_312 = arith.constant 0 : index
    %c0_313 = arith.constant 0 : index
    %1210 = vector.load %arg14[%c0_312, %c0_313] : memref<64x96xf32, #tpu.memory_space<vmem>>, vector<64x96xf32>
    %cst_314 = arith.constant dense<0.000000e+00> : vector<1x96xf32>
    %1211 = tpu.matmul %1209, %1210, %cst_314 {dimension_numbers = #tpu.dot_dimension_numbers<[1], [0], [0], [1], [0, 0, 1, 1], [], []>} : vector<1x64xf32>, vector<64x96xf32>, vector<1x96xf32> -> vector<1x96xf32>
    %c0_315 = arith.constant 0 : index
    %c0_316 = arith.constant 0 : index
    %1212 = vector.load %arg16[%c0_315, %c0_316] : memref<1x96xf32, #tpu.memory_space<vmem>>, vector<1x96xf32>
    %1213 = arith.addf %1211, %1212 : vector<1x96xf32>
    %c0_317 = arith.constant 0 : index
    %c0_318 = arith.constant 0 : index
    %1214 = vector.load %arg15[%c0_317, %c0_318] : memref<32x96xf32, #tpu.memory_space<vmem>>, vector<32x96xf32>
    %cst_319 = arith.constant dense<0.000000e+00> : vector<1x96xf32>
    %1215 = tpu.matmul %1140, %1214, %cst_319 {dimension_numbers = #tpu.dot_dimension_numbers<[1], [0], [0], [1], [0, 0, 1, 1], [], []>} : vector<1x32xf32>, vector<32x96xf32>, vector<1x96xf32> -> vector<1x96xf32>
    %c0_320 = arith.constant 0 : index
    %c0_321 = arith.constant 0 : index
    %1216 = vector.load %arg17[%c0_320, %c0_321] : memref<1x96xf32, #tpu.memory_space<vmem>>, vector<1x96xf32>
    %1217 = arith.addf %1215, %1216 : vector<1x96xf32>
    %1218 = vector.extract_strided_slice %1213 {offsets = [0, 0], sizes = [1, 64], strides = [1, 1]} : vector<1x96xf32> to vector<1x64xf32>
    %1219 = vector.extract_strided_slice %1217 {offsets = [0, 0], sizes = [1, 64], strides = [1, 1]} : vector<1x96xf32> to vector<1x64xf32>
    %1220 = arith.addf %1218, %1219 : vector<1x64xf32>
    %1221 = arith.negf %1220 : vector<1x64xf32>
    %1222 = math.exp %1221 : vector<1x64xf32>
    %cst_322 = arith.constant 1.000000e+00 : f32
    %1223 = vector.broadcast %cst_322 : f32 to vector<1x64xf32>
    %1224 = arith.addf %1223, %1222 : vector<1x64xf32>
    %1225 = arith.divf %1223, %1224 : vector<1x64xf32>
    %1226 = vector.extract_strided_slice %1225 {offsets = [0, 0], sizes = [1, 32], strides = [1, 1]} : vector<1x64xf32> to vector<1x32xf32>
    %1227 = vector.extract_strided_slice %1225 {offsets = [0, 32], sizes = [1, 32], strides = [1, 1]} : vector<1x64xf32> to vector<1x32xf32>
    %1228 = vector.extract_strided_slice %1213 {offsets = [0, 64], sizes = [1, 32], strides = [1, 1]} : vector<1x96xf32> to vector<1x32xf32>
    %1229 = vector.extract_strided_slice %1217 {offsets = [0, 64], sizes = [1, 32], strides = [1, 1]} : vector<1x96xf32> to vector<1x32xf32>
    %1230 = arith.mulf %1226, %1229 : vector<1x32xf32>
    %1231 = arith.addf %1228, %1230 : vector<1x32xf32>
    %1232 = math.tanh %1231 : vector<1x32xf32>
    %cst_323 = arith.constant 1.000000e+00 : f32
    %1233 = vector.broadcast %cst_323 : f32 to vector<1x32xf32>
    %1234 = arith.subf %1233, %1227 : vector<1x32xf32>
    %1235 = arith.mulf %1234, %1232 : vector<1x32xf32>
    %1236 = arith.mulf %1227, %1140 : vector<1x32xf32>
    %1237 = arith.addf %1235, %1236 : vector<1x32xf32>
    %c0_324 = arith.constant 0 : index
    %c0_325 = arith.constant 0 : index
    %1238 = vector.load %arg18[%c0_324, %c0_325] : memref<32x96xf32, #tpu.memory_space<vmem>>, vector<32x96xf32>
    %cst_326 = arith.constant dense<0.000000e+00> : vector<1x96xf32>
    %1239 = tpu.matmul %1237, %1238, %cst_326 {dimension_numbers = #tpu.dot_dimension_numbers<[1], [0], [0], [1], [0, 0, 1, 1], [], []>} : vector<1x32xf32>, vector<32x96xf32>, vector<1x96xf32> -> vector<1x96xf32>
    %c0_327 = arith.constant 0 : index
    %c0_328 = arith.constant 0 : index
    %1240 = vector.load %arg20[%c0_327, %c0_328] : memref<1x96xf32, #tpu.memory_space<vmem>>, vector<1x96xf32>
    %1241 = arith.addf %1239, %1240 : vector<1x96xf32>
    %c0_329 = arith.constant 0 : index
    %c0_330 = arith.constant 0 : index
    %1242 = vector.load %arg19[%c0_329, %c0_330] : memref<32x96xf32, #tpu.memory_space<vmem>>, vector<32x96xf32>
    %cst_331 = arith.constant dense<0.000000e+00> : vector<1x96xf32>
    %1243 = tpu.matmul %1168, %1242, %cst_331 {dimension_numbers = #tpu.dot_dimension_numbers<[1], [0], [0], [1], [0, 0, 1, 1], [], []>} : vector<1x32xf32>, vector<32x96xf32>, vector<1x96xf32> -> vector<1x96xf32>
    %c0_332 = arith.constant 0 : index
    %c0_333 = arith.constant 0 : index
    %1244 = vector.load %arg21[%c0_332, %c0_333] : memref<1x96xf32, #tpu.memory_space<vmem>>, vector<1x96xf32>
    %1245 = arith.addf %1243, %1244 : vector<1x96xf32>
    %1246 = vector.extract_strided_slice %1241 {offsets = [0, 0], sizes = [1, 64], strides = [1, 1]} : vector<1x96xf32> to vector<1x64xf32>
    %1247 = vector.extract_strided_slice %1245 {offsets = [0, 0], sizes = [1, 64], strides = [1, 1]} : vector<1x96xf32> to vector<1x64xf32>
    %1248 = arith.addf %1246, %1247 : vector<1x64xf32>
    %1249 = arith.negf %1248 : vector<1x64xf32>
    %1250 = math.exp %1249 : vector<1x64xf32>
    %cst_334 = arith.constant 1.000000e+00 : f32
    %1251 = vector.broadcast %cst_334 : f32 to vector<1x64xf32>
    %1252 = arith.addf %1251, %1250 : vector<1x64xf32>
    %1253 = arith.divf %1251, %1252 : vector<1x64xf32>
    %1254 = vector.extract_strided_slice %1253 {offsets = [0, 0], sizes = [1, 32], strides = [1, 1]} : vector<1x64xf32> to vector<1x32xf32>
    %1255 = vector.extract_strided_slice %1253 {offsets = [0, 32], sizes = [1, 32], strides = [1, 1]} : vector<1x64xf32> to vector<1x32xf32>
    %1256 = vector.extract_strided_slice %1241 {offsets = [0, 64], sizes = [1, 32], strides = [1, 1]} : vector<1x96xf32> to vector<1x32xf32>
    %1257 = vector.extract_strided_slice %1245 {offsets = [0, 64], sizes = [1, 32], strides = [1, 1]} : vector<1x96xf32> to vector<1x32xf32>
    %1258 = arith.mulf %1254, %1257 : vector<1x32xf32>
    %1259 = arith.addf %1256, %1258 : vector<1x32xf32>
    %1260 = math.tanh %1259 : vector<1x32xf32>
    %cst_335 = arith.constant 1.000000e+00 : f32
    %1261 = vector.broadcast %cst_335 : f32 to vector<1x32xf32>
    %1262 = arith.subf %1261, %1255 : vector<1x32xf32>
    %1263 = arith.mulf %1262, %1260 : vector<1x32xf32>
    %1264 = arith.mulf %1255, %1168 : vector<1x32xf32>
    %1265 = arith.addf %1263, %1264 : vector<1x32xf32>
    %1266 = tpu.concatenate %1265, %1208 in 1 : vector<1x32xf32>, vector<1x32xf32> -> vector<1x64xf32>
    %cst_336 = arith.constant dense<0.000000e+00> : vector<1x12xf32>
    %1267 = tpu.matmul %1266, %795, %cst_336 {dimension_numbers = #tpu.dot_dimension_numbers<[1], [0], [0], [1], [0, 0, 1, 1], [], []>} : vector<1x64xf32>, vector<64x12xf32>, vector<1x12xf32> -> vector<1x12xf32>
    %1268 = arith.addf %1267, %796 : vector<1x12xf32>
    %1269 = tpu.concatenate %880, %977, %1074, %1171, %1268 in 0 : vector<1x12xf32>, vector<1x12xf32>, vector<1x12xf32>, vector<1x12xf32>, vector<1x12xf32> -> vector<5x12xf32>
    %c0_337 = arith.constant 0 : index
    %c0_338 = arith.constant 0 : index
    %1270 = vector.load %arg24[%c0_337, %c0_338] : memref<5x12xf32, #tpu.memory_space<vmem>>, vector<5x12xf32>
    tpu.vector_store %arg24[%c0_337, %c0_338], %1269 {strides = array<i32>} : memref<5x12xf32, #tpu.memory_space<vmem>>, vector<5x12xf32>,
    %1271 = tpu.concatenate %816, %913, %1010, %1107, %1204 in 1 : vector<8x1xf32>, vector<8x1xf32>, vector<8x1xf32>, vector<8x1xf32>, vector<8x1xf32> -> vector<8x5xf32>
    %c0_339 = arith.constant 0 : index
    %c0_340 = arith.constant 0 : index
    %1272 = vector.load %arg25[%c0_339, %c0_340] : memref<8x5xf32, #tpu.memory_space<vmem>>, vector<8x5xf32>
    tpu.vector_store %arg25[%c0_339, %c0_340], %1271 {strides = array<i32>} : memref<8x5xf32, #tpu.memory_space<vmem>>, vector<8x5xf32>,
    return
  }
  func.func @transform_0(%arg0: i32) -> (i32, i32) {
    %c0_i32 = arith.constant 0 : i32
    %c0_i32_0 = arith.constant 0 : i32
    %c0_i32_1 = arith.constant 0 : i32
    return %c0_i32, %c0_i32_0 : i32, i32
  }
  func.func @transform_1(%arg0: i32) -> (i32, i32, i32) {
    %c0_i32 = arith.constant 0 : i32
    %c0_i32_0 = arith.constant 0 : i32
    %c0_i32_1 = arith.constant 0 : i32
    %c0_i32_2 = arith.constant 0 : i32
    return %c0_i32, %c0_i32_0, %c0_i32_1 : i32, i32, i32
  }
  func.func @transform_2(%arg0: i32) -> (i32, i32, i32) {
    %c0_i32 = arith.constant 0 : i32
    %c0_i32_0 = arith.constant 0 : i32
    %c0_i32_1 = arith.constant 0 : i32
    %c0_i32_2 = arith.constant 0 : i32
    return %c0_i32, %c0_i32_0, %c0_i32_1 : i32, i32, i32
  }
  func.func @transform_3(%arg0: i32) -> (i32, i32, i32) {
    %c0_i32 = arith.constant 0 : i32
    %c0_i32_0 = arith.constant 0 : i32
    %c0_i32_1 = arith.constant 0 : i32
    %c0_i32_2 = arith.constant 0 : i32
    return %c0_i32, %c0_i32_0, %c0_i32_1 : i32, i32, i32
  }
  func.func @transform_4(%arg0: i32) -> (i32, i32, i32) {
    %c0_i32 = arith.constant 0 : i32
    %c0_i32_0 = arith.constant 0 : i32
    %c0_i32_1 = arith.constant 0 : i32
    %c0_i32_2 = arith.constant 0 : i32
    return %c0_i32, %c0_i32_0, %c0_i32_1 : i32, i32, i32
  }
  func.func @transform_5(%arg0: i32) -> (i32, i32, i32) {
    %c0_i32 = arith.constant 0 : i32
    %c0_i32_0 = arith.constant 0 : i32
    %c0_i32_1 = arith.constant 0 : i32
    %c0_i32_2 = arith.constant 0 : i32
    return %c0_i32, %c0_i32_0, %c0_i32_1 : i32, i32, i32
  }
  func.func @transform_6(%arg0: i32) -> (i32, i32, i32) {
    %c0_i32 = arith.constant 0 : i32
    %c0_i32_0 = arith.constant 0 : i32
    %c0_i32_1 = arith.constant 0 : i32
    %c0_i32_2 = arith.constant 0 : i32
    return %c0_i32, %c0_i32_0, %c0_i32_1 : i32, i32, i32
  }
  func.func @transform_7(%arg0: i32) -> (i32, i32, i32) {
    %c0_i32 = arith.constant 0 : i32
    %c0_i32_0 = arith.constant 0 : i32
    %c0_i32_1 = arith.constant 0 : i32
    %c0_i32_2 = arith.constant 0 : i32
    return %c0_i32, %c0_i32_0, %c0_i32_1 : i32, i32, i32
  }
  func.func @transform_8(%arg0: i32) -> (i32, i32, i32) {
    %c0_i32 = arith.constant 0 : i32
    %c0_i32_0 = arith.constant 0 : i32
    %c0_i32_1 = arith.constant 0 : i32
    %c0_i32_2 = arith.constant 0 : i32
    return %c0_i32, %c0_i32_0, %c0_i32_1 : i32, i32, i32
  }
  func.func @transform_9(%arg0: i32) -> (i32, i32) {
    %c0_i32 = arith.constant 0 : i32
    %c0_i32_0 = arith.constant 0 : i32
    %c0_i32_1 = arith.constant 0 : i32
    return %c0_i32, %c0_i32_0 : i32, i32
  }
  func.func @transform_10(%arg0: i32) -> (i32, i32) {
    %c0_i32 = arith.constant 0 : i32
    %c0_i32_0 = arith.constant 0 : i32
    %c0_i32_1 = arith.constant 0 : i32
    return %c0_i32, %c0_i32_0 : i32, i32
  }
  func.func @transform_11(%arg0: i32) -> (i32, i32) {
    %c0_i32 = arith.constant 0 : i32
    %c0_i32_0 = arith.constant 0 : i32
    %c0_i32_1 = arith.constant 0 : i32
    return %c0_i32, %c0_i32_0 : i32, i32
  }
  func.func @transform_12(%arg0: i32) -> (i32, i32) {
    %c0_i32 = arith.constant 0 : i32
    %c0_i32_0 = arith.constant 0 : i32
    %c0_i32_1 = arith.constant 0 : i32
    return %c0_i32, %c0_i32_0 : i32, i32
  }
  func.func @transform_13(%arg0: i32) -> (i32, i32) {
    %c0_i32 = arith.constant 0 : i32
    %c0_i32_0 = arith.constant 0 : i32
    %c0_i32_1 = arith.constant 0 : i32
    return %c0_i32, %c0_i32_0 : i32, i32
  }
  func.func @transform_14(%arg0: i32) -> (i32, i32) {
    %c0_i32 = arith.constant 0 : i32
    %c0_i32_0 = arith.constant 0 : i32
    %c0_i32_1 = arith.constant 0 : i32
    return %c0_i32, %c0_i32_0 : i32, i32
  }
  func.func @transform_15(%arg0: i32) -> (i32, i32) {
    %c0_i32 = arith.constant 0 : i32
    %c0_i32_0 = arith.constant 0 : i32
    %c0_i32_1 = arith.constant 0 : i32
    return %c0_i32, %c0_i32_0 : i32, i32
  }
  func.func @transform_16(%arg0: i32) -> (i32, i32) {
    %c0_i32 = arith.constant 0 : i32
    %c0_i32_0 = arith.constant 0 : i32
    %c0_i32_1 = arith.constant 0 : i32
    return %c0_i32, %c0_i32_0 : i32, i32
  }
  func.func @transform_17(%arg0: i32) -> (i32, i32) {
    %c0_i32 = arith.constant 0 : i32
    %c0_i32_0 = arith.constant 0 : i32
    %c0_i32_1 = arith.constant 0 : i32
    return %c0_i32, %c0_i32_0 : i32, i32
  }
  func.func @transform_18(%arg0: i32) -> (i32, i32) {
    %c0_i32 = arith.constant 0 : i32
    %c0_i32_0 = arith.constant 0 : i32
    %c0_i32_1 = arith.constant 0 : i32
    return %c0_i32, %c0_i32_0 : i32, i32
  }
  func.func @transform_19(%arg0: i32) -> (i32, i32) {
    %c0_i32 = arith.constant 0 : i32
    %c0_i32_0 = arith.constant 0 : i32
    %c0_i32_1 = arith.constant 0 : i32
    return %c0_i32, %c0_i32_0 : i32, i32
  }
  func.func @transform_20(%arg0: i32) -> (i32, i32) {
    %c0_i32 = arith.constant 0 : i32
    %c0_i32_0 = arith.constant 0 : i32
    %c0_i32_1 = arith.constant 0 : i32
    return %c0_i32, %c0_i32_0 : i32, i32
  }
  func.func @transform_21(%arg0: i32) -> (i32, i32) {
    %c0_i32 = arith.constant 0 : i32
    %c0_i32_0 = arith.constant 0 : i32
    %c0_i32_1 = arith.constant 0 : i32
    return %c0_i32, %c0_i32_0 : i32, i32
  }
  func.func @transform_22(%arg0: i32) -> (i32, i32) {
    %c0_i32 = arith.constant 0 : i32
    %c0_i32_0 = arith.constant 0 : i32
    %c0_i32_1 = arith.constant 0 : i32
    return %c0_i32, %c0_i32_0 : i32, i32
  }
  func.func @transform_23(%arg0: i32) -> (i32, i32) {
    %c0_i32 = arith.constant 0 : i32
    %c0_i32_0 = arith.constant 0 : i32
    %c0_i32_1 = arith.constant 0 : i32
    return %c0_i32, %c0_i32_0 : i32, i32
  }
  func.func @transform_24(%arg0: i32) -> (i32, i32) {
    %c0_i32 = arith.constant 0 : i32
    %c0_i32_0 = arith.constant 0 : i32
    %c0_i32_1 = arith.constant 0 : i32
    return %c0_i32, %c0_i32_0 : i32, i32
  }
}

</mosaic_0001>

<llo_original>
// kernel: seq2seq_forward.1
$region0: #{seq2seq_forward.1}
  #allocation0 [shape = 'u32[]', space=smem, size = 0x4, offset = 0x4, fixed_abs, tag = 'smem constant byte address 0x4 - core index']
  #allocation1 [shape = 'u32[144,128]{1,0:T(1,128)}', space=vmem, size = 0x12000, scoped, tag = 'internal scratch']
  %s0 = inlined_call_operand.vmem [shape: f32[8,32], index: 0, kind: input, shape index: {}]
  %s1 = inlined_call_operand.vmem [shape: f32[2,32,96], index: 1, kind: input, shape index: {}]
  %s2 = inlined_call_operand.hbm [shape: f32[2,32,96], index: 2, kind: input, shape index: {}]
  %s3 = inlined_call_operand.hbm [shape: f32[2,1,96], index: 3, kind: input, shape index: {}]
  %s4 = inlined_call_operand.hbm [shape: f32[2,1,96], index: 4, kind: input, shape index: {}]
  %s5 = inlined_call_operand.vmem [shape: f32[2,64,96], index: 5, kind: input, shape index: {}]
  %s6 = inlined_call_operand.hbm [shape: f32[2,32,96], index: 6, kind: input, shape index: {}]
  %s7 = inlined_call_operand.hbm [shape: f32[2,1,96], index: 7, kind: input, shape index: {}]
  %s8 = inlined_call_operand.hbm [shape: f32[2,1,96], index: 8, kind: input, shape index: {}]
  %s9 = inlined_call_operand.hbm [shape: f32[12,32], index: 9, kind: input, shape index: {}]
  %s10 = inlined_call_operand.vmem [shape: f32[32,32], index: 10, kind: input, shape index: {}]
  %s11 = inlined_call_operand.hbm [shape: f32[32,32], index: 11, kind: input, shape index: {}]
  %s12 = inlined_call_operand.vmem [shape: f32[1,32], index: 12, kind: input, shape index: {}]
  %s13 = inlined_call_operand.hbm [shape: f32[64,96], index: 13, kind: input, shape index: {}]
  %s14 = inlined_call_operand.hbm [shape: f32[32,96], index: 14, kind: input, shape index: {}]
  %s15 = inlined_call_operand.hbm [shape: f32[1,96], index: 15, kind: input, shape index: {}]
  %s16 = inlined_call_operand.hbm [shape: f32[1,96], index: 16, kind: input, shape index: {}]
  %s17 = inlined_call_operand.hbm [shape: f32[32,96], index: 17, kind: input, shape index: {}]
  %s18 = inlined_call_operand.hbm [shape: f32[32,96], index: 18, kind: input, shape index: {}]
  %s19 = inlined_call_operand.hbm [shape: f32[1,96], index: 19, kind: input, shape index: {}]
  %s20 = inlined_call_operand.hbm [shape: f32[1,96], index: 20, kind: input, shape index: {}]
  %s21 = inlined_call_operand.vmem [shape: f32[64,12], index: 21, kind: input, shape index: {}]
  %s22 = inlined_call_operand.vmem [shape: f32[1,12], index: 22, kind: input, shape index: {}]
  %s23 = inlined_call_operand.vmem [shape: f32[5,12], index: 23, kind: output, shape index: {0}]
  %s24 = inlined_call_operand.vmem [shape: f32[8,5], index: 24, kind: output, shape index: {1}]
  %25 = xla_tuple %s23, %s24
  %s26 = sld [smem:[#allocation0]]
  $region174: #{seq2seq_forward.1} parent=0
    _
  %s28 = ssub.s32 1, %s26
  %s29 = scalar_select 0, %s28, %s26
  $region1: #{seq2seq_forward.1} parent=0
    #allocation2 [shape = 'u8[32768]{0}', space=vmem, size = 0x8000, scoped, tag = 'input window, operand 2, single buffered']
    #allocation3 [shape = 's32[1]{0}', space=sflag, size = 0x4, scoped, tag = 'scoped memory for seq2seq_forward.1']
    #allocation4 [shape = 'u8[1024]{0}', space=vmem, size = 0x400, scoped, tag = 'input window, operand 3, single buffered']
    #allocation5 [shape = 's32[1]{0}', space=sflag, size = 0x4, scoped, tag = 'scoped memory for seq2seq_forward.1']
    #allocation6 [shape = 'u8[1024]{0}', space=vmem, size = 0x400, scoped, tag = 'input window, operand 4, single buffered']
    #allocation7 [shape = 'u8[32768]{0}', space=vmem, size = 0x8000, scoped, tag = 'input window, operand 6, single buffered']
    #allocation8 [shape = 's32[1]{0}', space=sflag, size = 0x4, scoped, tag = 'scoped memory for seq2seq_forward.1']
    #allocation9 [shape = 'u8[1024]{0}', space=vmem, size = 0x400, scoped, tag = 'input window, operand 7, single buffered']
    #allocation10 [shape = 'u8[1024]{0}', space=vmem, size = 0x400, scoped, tag = 'input window, operand 8, single buffered']
    #allocation11 [shape = 's32[1]{0}', space=sflag, size = 0x4, scoped, tag = 'scoped memory for seq2seq_forward.1']
    #allocation12 [shape = 'u8[8192]{0}', space=vmem, size = 0x2000, scoped, tag = 'input window, operand 9, single buffered']
    #allocation13 [shape = 'u8[16384]{0}', space=vmem, size = 0x4000, scoped, tag = 'input window, operand 11, single buffered']
    #allocation14 [shape = 's32[1]{0}', space=sflag, size = 0x4, scoped, tag = 'scoped memory for seq2seq_forward.1']
    #allocation15 [shape = 'u8[32768]{0}', space=vmem, size = 0x8000, scoped, tag = 'input window, operand 13, single buffered']
    #allocation16 [shape = 'u8[16384]{0}', space=vmem, size = 0x4000, scoped, tag = 'input window, operand 14, single buffered']
    #allocation17 [shape = 's32[1]{0}', space=sflag, size = 0x4, scoped, tag = 'scoped memory for seq2seq_forward.1']
    #allocation18 [shape = 'u8[512]{0}', space=vmem, size = 0x400, scoped, tag = 'input window, operand 15, single buffered']
    #allocation19 [shape = 'u8[512]{0}', space=vmem, size = 0x400, scoped, tag = 'input window, operand 16, single buffered']
    #allocation20 [shape = 's32[1]{0}', space=sflag, size = 0x4, scoped, tag = 'scoped memory for seq2seq_forward.1']
    #allocation21 [shape = 'u8[16384]{0}', space=vmem, size = 0x4000, scoped, tag = 'input window, operand 17, single buffered']
    #allocation22 [shape = 'u8[16384]{0}', space=vmem, size = 0x4000, scoped, tag = 'input window, operand 18, single buffered']
    #allocation23 [shape = 's32[1]{0}', space=sflag, size = 0x4, scoped, tag = 'scoped memory for seq2seq_forward.1']
    #allocation24 [shape = 'u8[512]{0}', space=vmem, size = 0x400, scoped, tag = 'input window, operand 19, single buffered']
    #allocation25 [shape = 'u8[512]{0}', space=vmem, size = 0x400, scoped, tag = 'input window, operand 20, single buffered']
    #allocation26 [shape = 's32[1]{0}', space=sflag, size = 0x4, scoped, tag = 'scoped memory for seq2seq_forward.1']
    %30 = vsyncpa [#allocation3], 0
    %31 = vsyncpa [#allocation5], 0
    %32 = vsyncpa [#allocation8], 0
    %33 = vsyncpa [#allocation11], 0
    %34 = vsyncpa [#allocation14], 0
    %35 = vsyncpa [#allocation17], 0
    %36 = vsyncpa [#allocation20], 0
    %37 = vsyncpa [#allocation23], 0
    %38 = vsyncpa [#allocation26], 0
    // Predicated region
    $region2: #{seq2seq_forward.1} parent=1 // pred_check
      _
    $region3: #{seq2seq_forward.1} parent=1 // pred_check_branch
      %40 = sbr.rel (0) target = $region5
    $region4: #{seq2seq_forward.1} parent=1 // pred_region
      _
    $region5: #{seq2seq_forward.1} parent=1 // pred_fallthru
      _
    // Predicated region
    $region6: #{seq2seq_forward.1} parent=1 // pred_check
      _
    $region7: #{seq2seq_forward.1} parent=1 // pred_check_branch
      %42 = sbr.rel (0) target = $region9
    $region8: #{seq2seq_forward.1} parent=1 // pred_region
      _
    $region9: #{seq2seq_forward.1} parent=1 // pred_fallthru
      _
    // Predicated region
    $region10: #{seq2seq_forward.1} parent=1 // pred_check
      _
    $region11: #{seq2seq_forward.1} parent=1 // pred_check_branch
      %44 = sbr.rel (0) target = $region13
    $region12: #{seq2seq_forward.1} parent=1 // pred_region
      %s46 = ssub.s32 1024, 1024
      %47 = vsyncadd [#allocation3], %s46
      %s48 = sshll.u32 [#allocation2], 4
      %s49 = int_to_ptr.vmem [resolvable:$true] %s48
      %54 = dma.hbm_to_vmem [thread:$0]  %s2, 1024, %s49, [#allocation3], 128, 128, 8
    $region13: #{seq2seq_forward.1} parent=1 // pred_fallthru
      _
    // Predicated region
    $region14: #{seq2seq_forward.1} parent=1 // pred_check
      _
    $region15: #{seq2seq_forward.1} parent=1 // pred_check_branch
      %56 = sbr.rel (0) target = $region17
    $region16: #{seq2seq_forward.1} parent=1 // pred_region
      %s58 = ssub.s32 32, 32
      %59 = vsyncadd [#allocation5], %s58
      %s60 = sshll.u32 [#allocation4], 4
      %s61 = int_to_ptr.vmem [resolvable:$true] %s60
      %66 = dma.hbm_to_vmem [thread:$0]  %s3, 32, %s61, [#allocation5], 16, 16, 1
    $region17: #{seq2seq_forward.1} parent=1 // pred_fallthru
      _
    // Predicated region
    $region18: #{seq2seq_forward.1} parent=1 // pred_check
      _
    $region19: #{seq2seq_forward.1} parent=1 // pred_check_branch
      %68 = sbr.rel (0) target = $region21
    $region20: #{seq2seq_forward.1} parent=1 // pred_region
      %s70 = ssub.s32 32, 32
      %71 = vsyncadd [#allocation5], %s70
      %s72 = sshll.u32 [#allocation6], 4
      %s73 = int_to_ptr.vmem [resolvable:$true] %s72
      %78 = dma.hbm_to_vmem [thread:$0]  %s4, 32, %s73, [#allocation5], 16, 16, 1
    $region21: #{seq2seq_forward.1} parent=1 // pred_fallthru
      _
    // Predicated region
    $region22: #{seq2seq_forward.1} parent=1 // pred_check
      _
    $region23: #{seq2seq_forward.1} parent=1 // pred_check_branch
      %80 = sbr.rel (0) target = $region25
    $region24: #{seq2seq_forward.1} parent=1 // pred_region
      _
    $region25: #{seq2seq_forward.1} parent=1 // pred_fallthru
      _
    // Predicated region
    $region26: #{seq2seq_forward.1} parent=1 // pred_check
      _
    $region27: #{seq2seq_forward.1} parent=1 // pred_check_branch
      %82 = sbr.rel (0) target = $region29
    $region28: #{seq2seq_forward.1} parent=1 // pred_region
      %s84 = ssub.s32 1024, 1024
      %85 = vsyncadd [#allocation8], %s84
      %s86 = sshll.u32 [#allocation7], 4
      %s87 = int_to_ptr.vmem [resolvable:$true] %s86
      %92 = dma.hbm_to_vmem [thread:$0]  %s6, 1024, %s87, [#allocation8], 128, 128, 8
    $region29: #{seq2seq_forward.1} parent=1 // pred_fallthru
      _
    // Predicated region
    $region30: #{seq2seq_forward.1} parent=1 // pred_check
      _
    $region31: #{seq2seq_forward.1} parent=1 // pred_check_branch
      %94 = sbr.rel (0) target = $region33
    $region32: #{seq2seq_forward.1} parent=1 // pred_region
      %s96 = ssub.s32 32, 32
      %97 = vsyncadd [#allocation8], %s96
      %s98 = sshll.u32 [#allocation9], 4
      %s99 = int_to_ptr.vmem [resolvable:$true] %s98
      %104 = dma.hbm_to_vmem [thread:$0]  %s7, 32, %s99, [#allocation8], 16, 16, 1
    $region33: #{seq2seq_forward.1} parent=1 // pred_fallthru
      _
    // Predicated region
    $region34: #{seq2seq_forward.1} parent=1 // pred_check
      _
    $region35: #{seq2seq_forward.1} parent=1 // pred_check_branch
      %106 = sbr.rel (0) target = $region37
    $region36: #{seq2seq_forward.1} parent=1 // pred_region
      %s108 = ssub.s32 32, 32
      %109 = vsyncadd [#allocation11], %s108
      %s110 = sshll.u32 [#allocation10], 4
      %s111 = int_to_ptr.vmem [resolvable:$true] %s110
      %116 = dma.hbm_to_vmem [thread:$0]  %s8, 32, %s111, [#allocation11], 16, 16, 1
    $region37: #{seq2seq_forward.1} parent=1 // pred_fallthru
      _
    // Predicated region
    $region38: #{seq2seq_forward.1} parent=1 // pred_check
      _
    $region39: #{seq2seq_forward.1} parent=1 // pred_check_branch
      %118 = sbr.rel (0) target = $region41
    $region40: #{seq2seq_forward.1} parent=1 // pred_region
      %s120 = ssub.s32 256, 256
      %121 = vsyncadd [#allocation11], %s120
      %s122 = sshll.u32 [#allocation12], 4
      %s123 = int_to_ptr.vmem [resolvable:$true] %s122
      %128 = dma.hbm_to_vmem [thread:$0]  %s9, 256, %s123, [#allocation11], 128, 128, 8
    $region41: #{seq2seq_forward.1} parent=1 // pred_fallthru
      _
    // Predicated region
    $region42: #{seq2seq_forward.1} parent=1 // pred_check
      _
    $region43: #{seq2seq_forward.1} parent=1 // pred_check_branch
      %130 = sbr.rel (0) target = $region45
    $region44: #{seq2seq_forward.1} parent=1 // pred_region
      _
    $region45: #{seq2seq_forward.1} parent=1 // pred_fallthru
      _
    // Predicated region
    $region46: #{seq2seq_forward.1} parent=1 // pred_check
      _
    $region47: #{seq2seq_forward.1} parent=1 // pred_check_branch
      %132 = sbr.rel (0) target = $region49
    $region48: #{seq2seq_forward.1} parent=1 // pred_region
      %s134 = ssub.s32 512, 512
      %135 = vsyncadd [#allocation14], %s134
      %s136 = sshll.u32 [#allocation13], 4
      %s137 = int_to_ptr.vmem [resolvable:$true] %s136
      %142 = dma.hbm_to_vmem [thread:$0]  %s11, 512, %s137, [#allocation14], 128, 128, 8
    $region49: #{seq2seq_forward.1} parent=1 // pred_fallthru
      _
    // Predicated region
    $region50: #{seq2seq_forward.1} parent=1 // pred_check
      _
    $region51: #{seq2seq_forward.1} parent=1 // pred_check_branch
      %144 = sbr.rel (0) target = $region53
    $region52: #{seq2seq_forward.1} parent=1 // pred_region
      _
    $region53: #{seq2seq_forward.1} parent=1 // pred_fallthru
      _
    // Predicated region
    $region54: #{seq2seq_forward.1} parent=1 // pred_check
      _
    $region55: #{seq2seq_forward.1} parent=1 // pred_check_branch
      %146 = sbr.rel (0) target = $region57
    $region56: #{seq2seq_forward.1} parent=1 // pred_region
      %s148 = ssub.s32 1024, 1024
      %149 = vsyncadd [#allocation14], %s148
      %s150 = sshll.u32 [#allocation15], 4
      %s151 = int_to_ptr.vmem [resolvable:$true] %s150
      %156 = dma.hbm_to_vmem [thread:$0]  %s13, 1024, %s151, [#allocation14], 128, 128, 8
    $region57: #{seq2seq_forward.1} parent=1 // pred_fallthru
      _
    // Predicated region
    $region58: #{seq2seq_forward.1} parent=1 // pred_check
      _
    $region59: #{seq2seq_forward.1} parent=1 // pred_check_branch
      %158 = sbr.rel (0) target = $region61
    $region60: #{seq2seq_forward.1} parent=1 // pred_region
      %s160 = ssub.s32 512, 512
      %161 = vsyncadd [#allocation17], %s160
      %s162 = sshll.u32 [#allocation16], 4
      %s163 = int_to_ptr.vmem [resolvable:$true] %s162
      %168 = dma.hbm_to_vmem [thread:$0]  %s14, 512, %s163, [#allocation17], 128, 128, 8
    $region61: #{seq2seq_forward.1} parent=1 // pred_fallthru
      _
    // Predicated region
    $region62: #{seq2seq_forward.1} parent=1 // pred_check
      _
    $region63: #{seq2seq_forward.1} parent=1 // pred_check_branch
      %170 = sbr.rel (0) target = $region65
    $region64: #{seq2seq_forward.1} parent=1 // pred_region
      %s172 = ssub.s32 16, 16
      %173 = vsyncadd [#allocation17], %s172
      %s175 = sshll.u32 [#allocation18], 4
      %s176 = int_to_ptr.vmem [resolvable:$true] %s175
      %178 = dma.hbm_to_vmem [thread:$0]  %s15, 16, %s176, [#allocation17]
    $region65: #{seq2seq_forward.1} parent=1 // pred_fallthru
      _
    // Predicated region
    $region66: #{seq2seq_forward.1} parent=1 // pred_check
      _
    $region67: #{seq2seq_forward.1} parent=1 // pred_check_branch
      %180 = sbr.rel (0) target = $region69
    $region68: #{seq2seq_forward.1} parent=1 // pred_region
      %s182 = ssub.s32 16, 16
      %183 = vsyncadd [#allocation20], %s182
      %s185 = sshll.u32 [#allocation19], 4
      %s186 = int_to_ptr.vmem [resolvable:$true] %s185
      %188 = dma.hbm_to_vmem [thread:$0]  %s16, 16, %s186, [#allocation20]
    $region69: #{seq2seq_forward.1} parent=1 // pred_fallthru
      _
    // Predicated region
    $region70: #{seq2seq_forward.1} parent=1 // pred_check
      _
    $region71: #{seq2seq_forward.1} parent=1 // pred_check_branch
      %190 = sbr.rel (0) target = $region73
    $region72: #{seq2seq_forward.1} parent=1 // pred_region
      %s192 = ssub.s32 512, 512
      %193 = vsyncadd [#allocation20], %s192
      %s194 = sshll.u32 [#allocation21], 4
      %s195 = int_to_ptr.vmem [resolvable:$true] %s194
      %200 = dma.hbm_to_vmem [thread:$0]  %s17, 512, %s195, [#allocation20], 128, 128, 8
    $region73: #{seq2seq_forward.1} parent=1 // pred_fallthru
      _
    // Predicated region
    $region74: #{seq2seq_forward.1} parent=1 // pred_check
      _
    $region75: #{seq2seq_forward.1} parent=1 // pred_check_branch
      %202 = sbr.rel (0) target = $region77
    $region76: #{seq2seq_forward.1} parent=1 // pred_region
      %s204 = ssub.s32 512, 512
      %205 = vsyncadd [#allocation23], %s204
      %s206 = sshll.u32 [#allocation22], 4
      %s207 = int_to_ptr.vmem [resolvable:$true] %s206
      %212 = dma.hbm_to_vmem [thread:$0]  %s18, 512, %s207, [#allocation23], 128, 128, 8
    $region77: #{seq2seq_forward.1} parent=1 // pred_fallthru
      _
    // Predicated region
    $region78: #{seq2seq_forward.1} parent=1 // pred_check
      _
    $region79: #{seq2seq_forward.1} parent=1 // pred_check_branch
      %214 = sbr.rel (0) target = $region81
    $region80: #{seq2seq_forward.1} parent=1 // pred_region
      %s216 = ssub.s32 16, 16
      %217 = vsyncadd [#allocation23], %s216
      %s219 = sshll.u32 [#allocation24], 4
      %s220 = int_to_ptr.vmem [resolvable:$true] %s219
      %222 = dma.hbm_to_vmem [thread:$0]  %s19, 16, %s220, [#allocation23]
    $region81: #{seq2seq_forward.1} parent=1 // pred_fallthru
      _
    // Predicated region
    $region82: #{seq2seq_forward.1} parent=1 // pred_check
      _
    $region83: #{seq2seq_forward.1} parent=1 // pred_check_branch
      %224 = sbr.rel (0) target = $region85
    $region84: #{seq2seq_forward.1} parent=1 // pred_region
      %s226 = ssub.s32 16, 16
      %227 = vsyncadd [#allocation26], %s226
      %s229 = sshll.u32 [#allocation25], 4
      %s230 = int_to_ptr.vmem [resolvable:$true] %s229
      %232 = dma.hbm_to_vmem [thread:$0]  %s20, 16, %s230, [#allocation26]
    $region85: #{seq2seq_forward.1} parent=1 // pred_fallthru
      _
    // Predicated region
    $region86: #{seq2seq_forward.1} parent=1 // pred_check
      _
    $region87: #{seq2seq_forward.1} parent=1 // pred_check_branch
      %234 = sbr.rel (0) target = $region89
    $region88: #{seq2seq_forward.1} parent=1 // pred_region
      _
    $region89: #{seq2seq_forward.1} parent=1 // pred_fallthru
      _
    // Predicated region
    $region90: #{seq2seq_forward.1} parent=1 // pred_check
      _
    $region91: #{seq2seq_forward.1} parent=1 // pred_check_branch
      %236 = sbr.rel (0) target = $region93
    $region92: #{seq2seq_forward.1} parent=1 // pred_region
      _
    $region93: #{seq2seq_forward.1} parent=1 // pred_fallthru
      _
    // Predicated region
    $region94: #{seq2seq_forward.1} parent=1 // pred_check
      _
    $region95: #{seq2seq_forward.1} parent=1 // pred_check_branch
      %238 = sbr.rel (0) target = $region97
    $region96: #{seq2seq_forward.1} parent=1 // pred_region
      %239 = dma.done [#allocation3], 1024
    $region97: #{seq2seq_forward.1} parent=1 // pred_fallthru
      _
    // Predicated region
    $region98: #{seq2seq_forward.1} parent=1 // pred_check
      _
    $region99: #{seq2seq_forward.1} parent=1 // pred_check_branch
      %241 = sbr.rel (0) target = $region101
    $region100: #{seq2seq_forward.1} parent=1 // pred_region
      %242 = dma.done [#allocation5], 32
    $region101: #{seq2seq_forward.1} parent=1 // pred_fallthru
      _
    // Predicated region
    $region102: #{seq2seq_forward.1} parent=1 // pred_check
      _
    $region103: #{seq2seq_forward.1} parent=1 // pred_check_branch
      %244 = sbr.rel (0) target = $region105
    $region104: #{seq2seq_forward.1} parent=1 // pred_region
      %245 = dma.done [#allocation5], 32
    $region105: #{seq2seq_forward.1} parent=1 // pred_fallthru
      _
    // Predicated region
    $region106: #{seq2seq_forward.1} parent=1 // pred_check
      _
    $region107: #{seq2seq_forward.1} parent=1 // pred_check_branch
      %247 = sbr.rel (0) target = $region109
    $region108: #{seq2seq_forward.1} parent=1 // pred_region
      %248 = dma.done [#allocation8], 1024
    $region109: #{seq2seq_forward.1} parent=1 // pred_fallthru
      _
    // Predicated region
    $region110: #{seq2seq_forward.1} parent=1 // pred_check
      _
    $region111: #{seq2seq_forward.1} parent=1 // pred_check_branch
      %250 = sbr.rel (0) target = $region113
    $region112: #{seq2seq_forward.1} parent=1 // pred_region
      %251 = dma.done [#allocation8], 32
    $region113: #{seq2seq_forward.1} parent=1 // pred_fallthru
      _
    // Predicated region
    $region114: #{seq2seq_forward.1} parent=1 // pred_check
      _
    $region115: #{seq2seq_forward.1} parent=1 // pred_check_branch
      %253 = sbr.rel (0) target = $region117
    $region116: #{seq2seq_forward.1} parent=1 // pred_region
      %254 = dma.done [#allocation11], 32
    $region117: #{seq2seq_forward.1} parent=1 // pred_fallthru
      _
    // Predicated region
    $region118: #{seq2seq_forward.1} parent=1 // pred_check
      _
    $region119: #{seq2seq_forward.1} parent=1 // pred_check_branch
      %256 = sbr.rel (0) target = $region121
    $region120: #{seq2seq_forward.1} parent=1 // pred_region
      %257 = dma.done [#allocation11], 256
    $region121: #{seq2seq_forward.1} parent=1 // pred_fallthru
      _
    // Predicated region
    $region122: #{seq2seq_forward.1} parent=1 // pred_check
      _
    $region123: #{seq2seq_forward.1} parent=1 // pred_check_branch
      %259 = sbr.rel (0) target = $region125
    $region124: #{seq2seq_forward.1} parent=1 // pred_region
      %260 = dma.done [#allocation14], 512
    $region125: #{seq2seq_forward.1} parent=1 // pred_fallthru
      _
    // Predicated region
    $region126: #{seq2seq_forward.1} parent=1 // pred_check
      _
    $region127: #{seq2seq_forward.1} parent=1 // pred_check_branch
      %262 = sbr.rel (0) target = $region129
    $region128: #{seq2seq_forward.1} parent=1 // pred_region
      %263 = dma.done [#allocation14], 1024
    $region129: #{seq2seq_forward.1} parent=1 // pred_fallthru
      _
    // Predicated region
    $region130: #{seq2seq_forward.1} parent=1 // pred_check
      _
    $region131: #{seq2seq_forward.1} parent=1 // pred_check_branch
      %265 = sbr.rel (0) target = $region133
    $region132: #{seq2seq_forward.1} parent=1 // pred_region
      %266 = dma.done [#allocation17], 512
    $region133: #{seq2seq_forward.1} parent=1 // pred_fallthru
      _
    // Predicated region
    $region134: #{seq2seq_forward.1} parent=1 // pred_check
      _
    $region135: #{seq2seq_forward.1} parent=1 // pred_check_branch
      %268 = sbr.rel (0) target = $region137
    $region136: #{seq2seq_forward.1} parent=1 // pred_region
      %269 = dma.done [#allocation17], 16
    $region137: #{seq2seq_forward.1} parent=1 // pred_fallthru
      _
    // Predicated region
    $region138: #{seq2seq_forward.1} parent=1 // pred_check
      _
    $region139: #{seq2seq_forward.1} parent=1 // pred_check_branch
      %271 = sbr.rel (0) target = $region141
    $region140: #{seq2seq_forward.1} parent=1 // pred_region
      %272 = dma.done [#allocation20], 16
    $region141: #{seq2seq_forward.1} parent=1 // pred_fallthru
      _
    // Predicated region
    $region142: #{seq2seq_forward.1} parent=1 // pred_check
      _
    $region143: #{seq2seq_forward.1} parent=1 // pred_check_branch
      %274 = sbr.rel (0) target = $region145
    $region144: #{seq2seq_forward.1} parent=1 // pred_region
      %275 = dma.done [#allocation20], 512
    $region145: #{seq2seq_forward.1} parent=1 // pred_fallthru
      _
    // Predicated region
    $region146: #{seq2seq_forward.1} parent=1 // pred_check
      _
    $region147: #{seq2seq_forward.1} parent=1 // pred_check_branch
      %277 = sbr.rel (0) target = $region149
    $region148: #{seq2seq_forward.1} parent=1 // pred_region
      %278 = dma.done [#allocation23], 512
    $region149: #{seq2seq_forward.1} parent=1 // pred_fallthru
      _
    // Predicated region
    $region150: #{seq2seq_forward.1} parent=1 // pred_check
      _
    $region151: #{seq2seq_forward.1} parent=1 // pred_check_branch
      %280 = sbr.rel (0) target = $region153
    $region152: #{seq2seq_forward.1} parent=1 // pred_region
      %281 = dma.done [#allocation23], 16
    $region153: #{seq2seq_forward.1} parent=1 // pred_fallthru
      _
    // Predicated region
    $region154: #{seq2seq_forward.1} parent=1 // pred_check
      _
    $region155: #{seq2seq_forward.1} parent=1 // pred_check_branch
      %283 = sbr.rel (0) target = $region157
    $region156: #{seq2seq_forward.1} parent=1 // pred_region
      %284 = dma.done [#allocation26], 16
    $region157: #{seq2seq_forward.1} parent=1 // pred_fallthru
      _
    %v285 = vld [vmem:[%s0] sm:$0xff]
    %v286 = vld [vmem:[%s1] sm:$0xff]
    %v287 = vld [vmem:[%s1 + $0x8] sm:$0xff]
    %v288 = vld [vmem:[%s1 + $0x10] sm:$0xff]
    %v289 = vld [vmem:[%s1 + $0x18] sm:$0xff]
    %v290 = vld [vmem:[#allocation2] sm:$0xff]
    %v291 = vld [vmem:[#allocation2 + $0x8] sm:$0xff]
    %v292 = vld [vmem:[#allocation2 + $0x10] sm:$0xff]
    %v293 = vld [vmem:[#allocation2 + $0x18] sm:$0xff]
    %v294 = vld [vmem:[#allocation4] sm:$0x1]
    %v295 = vld [vmem:[#allocation6] sm:$0x1]
    %v297 = vlaneseq
    %v298 = vshrl.u32 %v297, 7
    %v299 = vsub.s32 0, %v298
    %v300 = vrot.slane %v294, %v299
    %vm302 = vcmask 261120
    %v304 = vsel %vm302, %v285, 0
    %306 = vmatprep.subr.mxu0 0.0
    %307 = vmatpush1.msra.mxu0 %v286
    %308 = vmatprep.subr.mxu0 0.0
    %309 = vmatpush1.msra.mxu0 %v287
    %310 = vmatprep.subr.mxu0 0.0
    %311 = vmatpush1.msra.mxu0 %v288
    %312 = vmatprep.subr.mxu0 0.0
    %313 = vmatpush1.msra.mxu0 %v289
    %314 = vmatprep.subr.mxu0 0.0
    %315 = vmatpush1.msra.mxu0 0.0
    %316 = vmatprep.subr.mxu0 0.0
    %317 = vmatpush1.msra.mxu0 0.0
    %318 = vmatprep.subr.mxu0 0.0
    %319 = vmatpush1.msra.mxu0 0.0
    %320 = vmatprep.subr.mxu0 0.0
    %321 = vmatpush1.msra.mxu0 0.0
    %322 = vmatprep.subr.mxu0 0.0
    %323 = vmatpush1.msra.mxu0 0.0
    %324 = vmatprep.subr.mxu0 0.0
    %325 = vmatpush1.msra.mxu0 0.0
    %326 = vmatprep.subr.mxu0 0.0
    %327 = vmatpush1.msra.mxu0 0.0
    %328 = vmatprep.subr.mxu0 0.0
    %329 = vmatpush1.msra.mxu0 0.0
    %330 = vmatprep.subr.mxu0 0.0
    %331 = vmatpush1.msra.mxu0 0.0
    %332 = vmatprep.subr.mxu0 0.0
    %333 = vmatpush1.msra.mxu0 0.0
    %334 = vmatprep.subr.mxu0 0.0
    %335 = vmatpush1.msra.mxu0 0.0
    %336 = vmatprep.subr.mxu0 0.0
    %337 = vmatpush1.msra.mxu0 0.0
    %338 = vmatprep.subr.mxu0 0.0
    %339 = vmatpush1.msra.mxu0 0.0
    %340 = vmatprep.subr.mxu0 0.0
    %341 = vmatpush1.msra.mxu0 0.0
    %342 = vmatprep.subr.mxu0 0.0
    %343 = vmatpush1.msra.mxu0 0.0
    %344 = vmatprep.subr.mxu0 0.0
    %345 = vmatpush1.msra.mxu0 0.0
    %346 = vmatprep.subr.mxu0 0.0
    %347 = vmatpush1.msra.mxu0 0.0
    %348 = vmatprep.subr.mxu0 0.0
    %349 = vmatpush1.msra.mxu0 0.0
    %350 = vmatprep.subr.mxu0 0.0
    %351 = vmatpush1.msra.mxu0 0.0
    %352 = vmatprep.subr.mxu0 0.0
    %353 = vmatpush1.msra.mxu0 0.0
    %354 = vmatprep.subr.mxu0 0.0
    %355 = vmatpush1.msra.mxu0 0.0
    %356 = vmatprep.subr.mxu0 0.0
    %357 = vmatpush1.msra.mxu0 0.0
    %358 = vmatprep.subr.mxu0 0.0
    %359 = vmatpush1.msra.mxu0 0.0
    %360 = vmatprep.subr.mxu0 0.0
    %361 = vmatpush1.msra.mxu0 0.0
    %362 = vmatprep.subr.mxu0 0.0
    %363 = vmatpush1.msra.mxu0 0.0
    %364 = vmatprep.subr.mxu0 0.0
    %365 = vmatpush1.msra.mxu0 0.0
    %366 = vmatprep.subr.mxu0 0.0
    %367 = vmatpush1.msra.mxu0 0.0
    %368 = vmatprep.subr.mxu0 0.0
    %369 = vmatpush1.msra.mxu0 0.0
    %370 = vmatprep.mubr.f32.mxu0 0.0
    %371 = vmatmul.mubr.f32.gmra.mrb[0].mxu0 %v304
    %v372 = vpop.f32.mrb[0].mxu0
    %v373 = vadd.f32 %v300, %v372
    %v374 = vpop.f32.mrb[0].mxu0
    %375 = vdwg.mxu0
    %v377 = vsel %vm302, 0.0, 0
    %379 = vmatprep.subr.mxu0 0.0
    %380 = vmatpush1.msra.mxu0 %v290
    %381 = vmatprep.subr.mxu0 0.0
    %382 = vmatpush1.msra.mxu0 %v291
    %383 = vmatprep.subr.mxu0 0.0
    %384 = vmatpush1.msra.mxu0 %v292
    %385 = vmatprep.subr.mxu0 0.0
    %386 = vmatpush1.msra.mxu0 %v293
    %387 = vmatprep.subr.mxu0 0.0
    %388 = vmatpush1.msra.mxu0 0.0
    %389 = vmatprep.subr.mxu0 0.0
    %390 = vmatpush1.msra.mxu0 0.0
    %391 = vmatprep.subr.mxu0 0.0
    %392 = vmatpush1.msra.mxu0 0.0
    %393 = vmatprep.subr.mxu0 0.0
    %394 = vmatpush1.msra.mxu0 0.0
    %395 = vmatprep.subr.mxu0 0.0
    %396 = vmatpush1.msra.mxu0 0.0
    %397 = vmatprep.subr.mxu0 0.0
    %398 = vmatpush1.msra.mxu0 0.0
    %399 = vmatprep.subr.mxu0 0.0
    %400 = vmatpush1.msra.mxu0 0.0
    %401 = vmatprep.subr.mxu0 0.0
    %402 = vmatpush1.msra.mxu0 0.0
    %403 = vmatprep.subr.mxu0 0.0
    %404 = vmatpush1.msra.mxu0 0.0
    %405 = vmatprep.subr.mxu0 0.0
    %406 = vmatpush1.msra.mxu0 0.0
    %407 = vmatprep.subr.mxu0 0.0
    %408 = vmatpush1.msra.mxu0 0.0
    %409 = vmatprep.subr.mxu0 0.0
    %410 = vmatpush1.msra.mxu0 0.0
    %411 = vmatprep.subr.mxu0 0.0
    %412 = vmatpush1.msra.mxu0 0.0
    %413 = vmatprep.subr.mxu0 0.0
    %414 = vmatpush1.msra.mxu0 0.0
    %415 = vmatprep.subr.mxu0 0.0
    %416 = vmatpush1.msra.mxu0 0.0
    %417 = vmatprep.subr.mxu0 0.0
    %418 = vmatpush1.msra.mxu0 0.0
    %419 = vmatprep.subr.mxu0 0.0
    %420 = vmatpush1.msra.mxu0 0.0
    %421 = vmatprep.subr.mxu0 0.0
    %422 = vmatpush1.msra.mxu0 0.0
    %423 = vmatprep.subr.mxu0 0.0
    %424 = vmatpush1.msra.mxu0 0.0
    %425 = vmatprep.subr.mxu0 0.0
    %426 = vmatpush1.msra.mxu0 0.0
    %427 = vmatprep.subr.mxu0 0.0
    %428 = vmatpush1.msra.mxu0 0.0
    %429 = vmatprep.subr.mxu0 0.0
    %430 = vmatpush1.msra.mxu0 0.0
    %431 = vmatprep.subr.mxu0 0.0
    %432 = vmatpush1.msra.mxu0 0.0
    %433 = vmatprep.subr.mxu0 0.0
    %434 = vmatpush1.msra.mxu0 0.0
    %435 = vmatprep.subr.mxu0 0.0
    %436 = vmatpush1.msra.mxu0 0.0
    %437 = vmatprep.subr.mxu0 0.0
    %438 = vmatpush1.msra.mxu0 0.0
    %439 = vmatprep.subr.mxu0 0.0
    %440 = vmatpush1.msra.mxu0 0.0
    %441 = vmatprep.subr.mxu0 0.0
    %442 = vmatpush1.msra.mxu0 0.0
    %443 = vmatprep.mubr.f32.mxu0 0.0
    %444 = vmatmul.mubr.f32.gmra.mrb[0].mxu0 %v377
    %v445 = vpop.f32.mrb[0].mxu0
    %v446 = vadd.f32 %v295, %v445
    %v447 = vpop.f32.mrb[0].mxu0
    %448 = vdwg.mxu0
    %v449 = vadd.f32 %v373, %v446
    %v450 = vxor.u32 %v449, 2147483648
    %v451 = vmul.f32 %v450, 1.442695
    %v452 = vpow.pop %v451
    %v453 = vadd.f32 %v452, 1.0
    %v454 = vrcp.pop %v453
    %v455 = vmul.f32 1.0, %v454
    %457 = vrot.lane.b32.xlu0 %v446, 64
    %v458 = vpop.permute.xlu0 %457
    %v460 = vmul.f32 %v455, %v458
    %462 = vrot.lane.b32.xlu0 %v460, 64
    %v463 = vpop.permute.xlu0 %462
    %v465 = vadd.f32 %v373, %v463
    %v466 = vtanh.pop %v465
    %v467 = vsub.f32 1.0, %v455
    %469 = vrot.lane.b32.xlu0 %v466, 96
    %v470 = vpop.permute.xlu0 %469
    %v472 = vmul.f32 %v467, %v470
    %v473 = vmul.f32 %v455, 0.0
    %v474 = vadd.f32 %v472, %v473
    %476 = vrot.lane.b32.xlu0 %v474, 96
    %v477 = vpop.permute.xlu0 %476
    %v478 = vsel %vm302, %v477, 0
    %480 = vmatprep.subr.mxu0 0.0
    %481 = vmatpush1.msra.mxu0 %v290
    %482 = vmatprep.subr.mxu0 0.0
    %483 = vmatpush1.msra.mxu0 %v291
    %484 = vmatprep.subr.mxu0 0.0
    %485 = vmatpush1.msra.mxu0 %v292
    %486 = vmatprep.subr.mxu0 0.0
    %487 = vmatpush1.msra.mxu0 %v293
    %488 = vmatprep.subr.mxu0 0.0
    %489 = vmatpush1.msra.mxu0 0.0
    %490 = vmatprep.subr.mxu0 0.0
    %491 = vmatpush1.msra.mxu0 0.0
    %492 = vmatprep.subr.mxu0 0.0
    %493 = vmatpush1.msra.mxu0 0.0
    %494 = vmatprep.subr.mxu0 0.0
    %495 = vmatpush1.msra.mxu0 0.0
    %496 = vmatprep.subr.mxu0 0.0
    %497 = vmatpush1.msra.mxu0 0.0
    %498 = vmatprep.subr.mxu0 0.0
    %499 = vmatpush1.msra.mxu0 0.0
    %500 = vmatprep.subr.mxu0 0.0
    %501 = vmatpush1.msra.mxu0 0.0
    %502 = vmatprep.subr.mxu0 0.0
    %503 = vmatpush1.msra.mxu0 0.0
    %504 = vmatprep.subr.mxu0 0.0
    %505 = vmatpush1.msra.mxu0 0.0
    %506 = vmatprep.subr.mxu0 0.0
    %507 = vmatpush1.msra.mxu0 0.0
    %508 = vmatprep.subr.mxu0 0.0
    %509 = vmatpush1.msra.mxu0 0.0
    %510 = vmatprep.subr.mxu0 0.0
    %511 = vmatpush1.msra.mxu0 0.0
    %512 = vmatprep.subr.mxu0 0.0
    %513 = vmatpush1.msra.mxu0 0.0
    %514 = vmatprep.subr.mxu0 0.0
    %515 = vmatpush1.msra.mxu0 0.0
    %516 = vmatprep.subr.mxu0 0.0
    %517 = vmatpush1.msra.mxu0 0.0
    %518 = vmatprep.subr.mxu0 0.0
    %519 = vmatpush1.msra.mxu0 0.0
    %520 = vmatprep.subr.mxu0 0.0
    %521 = vmatpush1.msra.mxu0 0.0
    %522 = vmatprep.subr.mxu0 0.0
    %523 = vmatpush1.msra.mxu0 0.0
    %524 = vmatprep.subr.mxu0 0.0
    %525 = vmatpush1.msra.mxu0 0.0
    %526 = vmatprep.subr.mxu0 0.0
    %527 = vmatpush1.msra.mxu0 0.0
    %528 = vmatprep.subr.mxu0 0.0
    %529 = vmatpush1.msra.mxu0 0.0
    %530 = vmatprep.subr.mxu0 0.0
    %531 = vmatpush1.msra.mxu0 0.0
    %532 = vmatprep.subr.mxu0 0.0
    %533 = vmatpush1.msra.mxu0 0.0
    %534 = vmatprep.subr.mxu0 0.0
    %535 = vmatpush1.msra.mxu0 0.0
    %536 = vmatprep.subr.mxu0 0.0
    %537 = vmatpush1.msra.mxu0 0.0
    %538 = vmatprep.subr.mxu0 0.0
    %539 = vmatpush1.msra.mxu0 0.0
    %540 = vmatprep.subr.mxu0 0.0
    %541 = vmatpush1.msra.mxu0 0.0
    %542 = vmatprep.subr.mxu0 0.0
    %543 = vmatpush1.msra.mxu0 0.0
    %544 = vmatprep.mubr.f32.mxu0 0.0
    %545 = vmatmul.mubr.f32.gmra.mrb[0].mxu0 %v478
    %v546 = vpop.f32.mrb[0].mxu0
    %v547 = vadd.f32 %v295, %v546
    %v548 = vpop.f32.mrb[0].mxu0
    %549 = vdwg.mxu0
    %v551 = vrot.slane %v547, 7
    %v553 = vadd.f32 %v373, %v551
    %v554 = vxor.u32 %v553, 2147483648
    %v555 = vmul.f32 %v554, 1.442695
    %v556 = vpow.pop %v555
    %v557 = vadd.f32 %v556, 1.0
    %v558 = vrcp.pop %v557
    %v559 = vmul.f32 1.0, %v558
    %560 = vrot.lane.b32.xlu0 %v551, 64
    %v561 = vpop.permute.xlu0 %560
    %v563 = vmul.f32 %v559, %v561
    %565 = vrot.lane.b32.xlu0 %v563, 64
    %v566 = vpop.permute.xlu0 %565
    %v568 = vadd.f32 %v373, %v566
    %v569 = vtanh.pop %v568
    %v570 = vsub.f32 1.0, %v559
    %572 = vrot.lane.b32.xlu0 %v569, 96
    %v573 = vpop.permute.xlu0 %572
    %v575 = vmul.f32 %v570, %v573
    %v576 = vrot.slane %v474, 7
    %v578 = vmul.f32 %v559, %v576
    %v579 = vadd.f32 %v575, %v578
    %v581 = vrot.slane %v579, 1
    %582 = vrot.lane.b32.xlu0 %v581, 96
    %v583 = vpop.permute.xlu0 %582
    %v584 = vsel %vm302, %v583, 0
    %586 = vmatprep.subr.mxu0 0.0
    %587 = vmatpush1.msra.mxu0 %v290
    %588 = vmatprep.subr.mxu0 0.0
    %589 = vmatpush1.msra.mxu0 %v291
    %590 = vmatprep.subr.mxu0 0.0
    %591 = vmatpush1.msra.mxu0 %v292
    %592 = vmatprep.subr.mxu0 0.0
    %593 = vmatpush1.msra.mxu0 %v293
    %594 = vmatprep.subr.mxu0 0.0
    %595 = vmatpush1.msra.mxu0 0.0
    %596 = vmatprep.subr.mxu0 0.0
    %597 = vmatpush1.msra.mxu0 0.0
    %598 = vmatprep.subr.mxu0 0.0
    %599 = vmatpush1.msra.mxu0 0.0
    %600 = vmatprep.subr.mxu0 0.0
    %601 = vmatpush1.msra.mxu0 0.0
    %602 = vmatprep.subr.mxu0 0.0
    %603 = vmatpush1.msra.mxu0 0.0
    %604 = vmatprep.subr.mxu0 0.0
    %605 = vmatpush1.msra.mxu0 0.0
    %606 = vmatprep.subr.mxu0 0.0
    %607 = vmatpush1.msra.mxu0 0.0
    %608 = vmatprep.subr.mxu0 0.0
    %609 = vmatpush1.msra.mxu0 0.0
    %610 = vmatprep.subr.mxu0 0.0
    %611 = vmatpush1.msra.mxu0 0.0
    %612 = vmatprep.subr.mxu0 0.0
    %613 = vmatpush1.msra.mxu0 0.0
    %614 = vmatprep.subr.mxu0 0.0
    %615 = vmatpush1.msra.mxu0 0.0
    %616 = vmatprep.subr.mxu0 0.0
    %617 = vmatpush1.msra.mxu0 0.0
    %618 = vmatprep.subr.mxu0 0.0
    %619 = vmatpush1.msra.mxu0 0.0
    %620 = vmatprep.subr.mxu0 0.0
    %621 = vmatpush1.msra.mxu0 0.0
    %622 = vmatprep.subr.mxu0 0.0
    %623 = vmatpush1.msra.mxu0 0.0
    %624 = vmatprep.subr.mxu0 0.0
    %625 = vmatpush1.msra.mxu0 0.0
    %626 = vmatprep.subr.mxu0 0.0
    %627 = vmatpush1.msra.mxu0 0.0
    %628 = vmatprep.subr.mxu0 0.0
    %629 = vmatpush1.msra.mxu0 0.0
    %630 = vmatprep.subr.mxu0 0.0
    %631 = vmatpush1.msra.mxu0 0.0
    %632 = vmatprep.subr.mxu0 0.0
    %633 = vmatpush1.msra.mxu0 0.0
    %634 = vmatprep.subr.mxu0 0.0
    %635 = vmatpush1.msra.mxu0 0.0
    %636 = vmatprep.subr.mxu0 0.0
    %637 = vmatpush1.msra.mxu0 0.0
    %638 = vmatprep.subr.mxu0 0.0
    %639 = vmatpush1.msra.mxu0 0.0
    %640 = vmatprep.subr.mxu0 0.0
    %641 = vmatpush1.msra.mxu0 0.0
    %642 = vmatprep.subr.mxu0 0.0
    %643 = vmatpush1.msra.mxu0 0.0
    %644 = vmatprep.subr.mxu0 0.0
    %645 = vmatpush1.msra.mxu0 0.0
    %646 = vmatprep.subr.mxu0 0.0
    %647 = vmatpush1.msra.mxu0 0.0
    %648 = vmatprep.subr.mxu0 0.0
    %649 = vmatpush1.msra.mxu0 0.0
    %650 = vmatprep.mubr.f32.mxu0 0.0
    %651 = vmatmul.mubr.f32.gmra.mrb[0].mxu0 %v584
    %v652 = vpop.f32.mrb[0].mxu0
    %v653 = vadd.f32 %v295, %v652
    %v654 = vpop.f32.mrb[0].mxu0
    %655 = vdwg.mxu0
    %v657 = vrot.slane %v653, 6
    %v659 = vadd.f32 %v373, %v657
    %v660 = vxor.u32 %v659, 2147483648
    %v661 = vmul.f32 %v660, 1.442695
    %v662 = vpow.pop %v661
    %v663 = vadd.f32 %v662, 1.0
    %v664 = vrcp.pop %v663
    %v665 = vmul.f32 1.0, %v664
    %666 = vrot.lane.b32.xlu0 %v657, 64
    %v667 = vpop.permute.xlu0 %666
    %v669 = vmul.f32 %v665, %v667
    %671 = vrot.lane.b32.xlu0 %v669, 64
    %v672 = vpop.permute.xlu0 %671
    %v674 = vadd.f32 %v373, %v672
    %v675 = vtanh.pop %v674
    %v676 = vsub.f32 1.0, %v665
    %678 = vrot.lane.b32.xlu0 %v675, 96
    %v679 = vpop.permute.xlu0 %678
    %v681 = vmul.f32 %v676, %v679
    %v682 = vrot.slane %v579, 7
    %v684 = vmul.f32 %v665, %v682
    %v685 = vadd.f32 %v681, %v684
    %v687 = vrot.slane %v685, 2
    %688 = vrot.lane.b32.xlu0 %v687, 96
    %v689 = vpop.permute.xlu0 %688
    %v690 = vsel %vm302, %v689, 0
    %692 = vmatprep.subr.mxu0 0.0
    %693 = vmatpush1.msra.mxu0 %v290
    %694 = vmatprep.subr.mxu0 0.0
    %695 = vmatpush1.msra.mxu0 %v291
    %696 = vmatprep.subr.mxu0 0.0
    %697 = vmatpush1.msra.mxu0 %v292
    %698 = vmatprep.subr.mxu0 0.0
    %699 = vmatpush1.msra.mxu0 %v293
    %700 = vmatprep.subr.mxu0 0.0
    %701 = vmatpush1.msra.mxu0 0.0
    %702 = vmatprep.subr.mxu0 0.0
    %703 = vmatpush1.msra.mxu0 0.0
    %704 = vmatprep.subr.mxu0 0.0
    %705 = vmatpush1.msra.mxu0 0.0
    %706 = vmatprep.subr.mxu0 0.0
    %707 = vmatpush1.msra.mxu0 0.0
    %708 = vmatprep.subr.mxu0 0.0
    %709 = vmatpush1.msra.mxu0 0.0
    %710 = vmatprep.subr.mxu0 0.0
    %711 = vmatpush1.msra.mxu0 0.0
    %712 = vmatprep.subr.mxu0 0.0
    %713 = vmatpush1.msra.mxu0 0.0
    %714 = vmatprep.subr.mxu0 0.0
    %715 = vmatpush1.msra.mxu0 0.0
    %716 = vmatprep.subr.mxu0 0.0
    %717 = vmatpush1.msra.mxu0 0.0
    %718 = vmatprep.subr.mxu0 0.0
    %719 = vmatpush1.msra.mxu0 0.0
    %720 = vmatprep.subr.mxu0 0.0
    %721 = vmatpush1.msra.mxu0 0.0
    %722 = vmatprep.subr.mxu0 0.0
    %723 = vmatpush1.msra.mxu0 0.0
    %724 = vmatprep.subr.mxu0 0.0
    %725 = vmatpush1.msra.mxu0 0.0
    %726 = vmatprep.subr.mxu0 0.0
    %727 = vmatpush1.msra.mxu0 0.0
    %728 = vmatprep.subr.mxu0 0.0
    %729 = vmatpush1.msra.mxu0 0.0
    %730 = vmatprep.subr.mxu0 0.0
    %731 = vmatpush1.msra.mxu0 0.0
    %732 = vmatprep.subr.mxu0 0.0
    %733 = vmatpush1.msra.mxu0 0.0
    %734 = vmatprep.subr.mxu0 0.0
    %735 = vmatpush1.msra.mxu0 0.0
    %736 = vmatprep.subr.mxu0 0.0
    %737 = vmatpush1.msra.mxu0 0.0
    %738 = vmatprep.subr.mxu0 0.0
    %739 = vmatpush1.msra.mxu0 0.0
    %740 = vmatprep.subr.mxu0 0.0
    %741 = vmatpush1.msra.mxu0 0.0
    %742 = vmatprep.subr.mxu0 0.0
    %743 = vmatpush1.msra.mxu0 0.0
    %744 = vmatprep.subr.mxu0 0.0
    %745 = vmatpush1.msra.mxu0 0.0
    %746 = vmatprep.subr.mxu0 0.0
    %747 = vmatpush1.msra.mxu0 0.0
    %748 = vmatprep.subr.mxu0 0.0
    %749 = vmatpush1.msra.mxu0 0.0
    %750 = vmatprep.subr.mxu0 0.0
    %751 = vmatpush1.msra.mxu0 0.0
    %752 = vmatprep.subr.mxu0 0.0
    %753 = vmatpush1.msra.mxu0 0.0
    %754 = vmatprep.subr.mxu0 0.0
    %755 = vmatpush1.msra.mxu0 0.0
    %756 = vmatprep.mubr.f32.mxu0 0.0
    %757 = vmatmul.mubr.f32.gmra.mrb[0].mxu0 %v690
    %v758 = vpop.f32.mrb[0].mxu0
    %v759 = vadd.f32 %v295, %v758
    %v760 = vpop.f32.mrb[0].mxu0
    %761 = vdwg.mxu0
    %v763 = vrot.slane %v759, 5
    %v765 = vadd.f32 %v373, %v763
    %v766 = vxor.u32 %v765, 2147483648
    %v767 = vmul.f32 %v766, 1.442695
    %v768 = vpow.pop %v767
    %v769 = vadd.f32 %v768, 1.0
    %v770 = vrcp.pop %v769
    %v771 = vmul.f32 1.0, %v770
    %772 = vrot.lane.b32.xlu0 %v763, 64
    %v773 = vpop.permute.xlu0 %772
    %v775 = vmul.f32 %v771, %v773
    %777 = vrot.lane.b32.xlu0 %v775, 64
    %v778 = vpop.permute.xlu0 %777
    %v780 = vadd.f32 %v373, %v778
    %v781 = vtanh.pop %v780
    %v782 = vsub.f32 1.0, %v771
    %784 = vrot.lane.b32.xlu0 %v781, 96
    %v785 = vpop.permute.xlu0 %784
    %v787 = vmul.f32 %v782, %v785
    %v788 = vrot.slane %v685, 7
    %v790 = vmul.f32 %v771, %v788
    %v791 = vadd.f32 %v787, %v790
    %v793 = vrot.slane %v791, 3
    %794 = vrot.lane.b32.xlu0 %v793, 96
    %v795 = vpop.permute.xlu0 %794
    %v796 = vsel %vm302, %v795, 0
    %798 = vmatprep.subr.mxu0 0.0
    %799 = vmatpush1.msra.mxu0 %v290
    %800 = vmatprep.subr.mxu0 0.0
    %801 = vmatpush1.msra.mxu0 %v291
    %802 = vmatprep.subr.mxu0 0.0
    %803 = vmatpush1.msra.mxu0 %v292
    %804 = vmatprep.subr.mxu0 0.0
    %805 = vmatpush1.msra.mxu0 %v293
    %806 = vmatprep.subr.mxu0 0.0
    %807 = vmatpush1.msra.mxu0 0.0
    %808 = vmatprep.subr.mxu0 0.0
    %809 = vmatpush1.msra.mxu0 0.0
    %810 = vmatprep.subr.mxu0 0.0
    %811 = vmatpush1.msra.mxu0 0.0
    %812 = vmatprep.subr.mxu0 0.0
    %813 = vmatpush1.msra.mxu0 0.0
    %814 = vmatprep.subr.mxu0 0.0
    %815 = vmatpush1.msra.mxu0 0.0
    %816 = vmatprep.subr.mxu0 0.0
    %817 = vmatpush1.msra.mxu0 0.0
    %818 = vmatprep.subr.mxu0 0.0
    %819 = vmatpush1.msra.mxu0 0.0
    %820 = vmatprep.subr.mxu0 0.0
    %821 = vmatpush1.msra.mxu0 0.0
    %822 = vmatprep.subr.mxu0 0.0
    %823 = vmatpush1.msra.mxu0 0.0
    %824 = vmatprep.subr.mxu0 0.0
    %825 = vmatpush1.msra.mxu0 0.0
    %826 = vmatprep.subr.mxu0 0.0
    %827 = vmatpush1.msra.mxu0 0.0
    %828 = vmatprep.subr.mxu0 0.0
    %829 = vmatpush1.msra.mxu0 0.0
    %830 = vmatprep.subr.mxu0 0.0
    %831 = vmatpush1.msra.mxu0 0.0
    %832 = vmatprep.subr.mxu0 0.0
    %833 = vmatpush1.msra.mxu0 0.0
    %834 = vmatprep.subr.mxu0 0.0
    %835 = vmatpush1.msra.mxu0 0.0
    %836 = vmatprep.subr.mxu0 0.0
    %837 = vmatpush1.msra.mxu0 0.0
    %838 = vmatprep.subr.mxu0 0.0
    %839 = vmatpush1.msra.mxu0 0.0
    %840 = vmatprep.subr.mxu0 0.0
    %841 = vmatpush1.msra.mxu0 0.0
    %842 = vmatprep.subr.mxu0 0.0
    %843 = vmatpush1.msra.mxu0 0.0
    %844 = vmatprep.subr.mxu0 0.0
    %845 = vmatpush1.msra.mxu0 0.0
    %846 = vmatprep.subr.mxu0 0.0
    %847 = vmatpush1.msra.mxu0 0.0
    %848 = vmatprep.subr.mxu0 0.0
    %849 = vmatpush1.msra.mxu0 0.0
    %850 = vmatprep.subr.mxu0 0.0
    %851 = vmatpush1.msra.mxu0 0.0
    %852 = vmatprep.subr.mxu0 0.0
    %853 = vmatpush1.msra.mxu0 0.0
    %854 = vmatprep.subr.mxu0 0.0
    %855 = vmatpush1.msra.mxu0 0.0
    %856 = vmatprep.subr.mxu0 0.0
    %857 = vmatpush1.msra.mxu0 0.0
    %858 = vmatprep.subr.mxu0 0.0
    %859 = vmatpush1.msra.mxu0 0.0
    %860 = vmatprep.subr.mxu0 0.0
    %861 = vmatpush1.msra.mxu0 0.0
    %862 = vmatprep.mubr.f32.mxu0 0.0
    %863 = vmatmul.mubr.f32.gmra.mrb[0].mxu0 %v796
    %v864 = vpop.f32.mrb[0].mxu0
    %v865 = vadd.f32 %v295, %v864
    %v866 = vpop.f32.mrb[0].mxu0
    %867 = vdwg.mxu0
    %v869 = vrot.slane %v865, 4
    %v871 = vadd.f32 %v373, %v869
    %v872 = vxor.u32 %v871, 2147483648
    %v873 = vmul.f32 %v872, 1.442695
    %v874 = vpow.pop %v873
    %v875 = vadd.f32 %v874, 1.0
    %v876 = vrcp.pop %v875
    %v877 = vmul.f32 1.0, %v876
    %878 = vrot.lane.b32.xlu0 %v869, 64
    %v879 = vpop.permute.xlu0 %878
    %v881 = vmul.f32 %v877, %v879
    %883 = vrot.lane.b32.xlu0 %v881, 64
    %v884 = vpop.permute.xlu0 %883
    %v886 = vadd.f32 %v373, %v884
    %v887 = vtanh.pop %v886
    %v888 = vsub.f32 1.0, %v877
    %890 = vrot.lane.b32.xlu0 %v887, 96
    %v891 = vpop.permute.xlu0 %890
    %v893 = vmul.f32 %v888, %v891
    %v894 = vrot.slane %v791, 7
    %v896 = vmul.f32 %v877, %v894
    %v897 = vadd.f32 %v893, %v896
    %v899 = vrot.slane %v897, 4
    %900 = vrot.lane.b32.xlu0 %v899, 96
    %v901 = vpop.permute.xlu0 %900
    %v902 = vsel %vm302, %v901, 0
    %904 = vmatprep.subr.mxu0 0.0
    %905 = vmatpush1.msra.mxu0 %v290
    %906 = vmatprep.subr.mxu0 0.0
    %907 = vmatpush1.msra.mxu0 %v291
    %908 = vmatprep.subr.mxu0 0.0
    %909 = vmatpush1.msra.mxu0 %v292
    %910 = vmatprep.subr.mxu0 0.0
    %911 = vmatpush1.msra.mxu0 %v293
    %912 = vmatprep.subr.mxu0 0.0
    %913 = vmatpush1.msra.mxu0 0.0
    %914 = vmatprep.subr.mxu0 0.0
    %915 = vmatpush1.msra.mxu0 0.0
    %916 = vmatprep.subr.mxu0 0.0
    %917 = vmatpush1.msra.mxu0 0.0
    %918 = vmatprep.subr.mxu0 0.0
    %919 = vmatpush1.msra.mxu0 0.0
    %920 = vmatprep.subr.mxu0 0.0
    %921 = vmatpush1.msra.mxu0 0.0
    %922 = vmatprep.subr.mxu0 0.0
    %923 = vmatpush1.msra.mxu0 0.0
    %924 = vmatprep.subr.mxu0 0.0
    %925 = vmatpush1.msra.mxu0 0.0
    %926 = vmatprep.subr.mxu0 0.0
    %927 = vmatpush1.msra.mxu0 0.0
    %928 = vmatprep.subr.mxu0 0.0
    %929 = vmatpush1.msra.mxu0 0.0
    %930 = vmatprep.subr.mxu0 0.0
    %931 = vmatpush1.msra.mxu0 0.0
    %932 = vmatprep.subr.mxu0 0.0
    %933 = vmatpush1.msra.mxu0 0.0
    %934 = vmatprep.subr.mxu0 0.0
    %935 = vmatpush1.msra.mxu0 0.0
    %936 = vmatprep.subr.mxu0 0.0
    %937 = vmatpush1.msra.mxu0 0.0
    %938 = vmatprep.subr.mxu0 0.0
    %939 = vmatpush1.msra.mxu0 0.0
    %940 = vmatprep.subr.mxu0 0.0
    %941 = vmatpush1.msra.mxu0 0.0
    %942 = vmatprep.subr.mxu0 0.0
    %943 = vmatpush1.msra.mxu0 0.0
    %944 = vmatprep.subr.mxu0 0.0
    %945 = vmatpush1.msra.mxu0 0.0
    %946 = vmatprep.subr.mxu0 0.0
    %947 = vmatpush1.msra.mxu0 0.0
    %948 = vmatprep.subr.mxu0 0.0
    %949 = vmatpush1.msra.mxu0 0.0
    %950 = vmatprep.subr.mxu0 0.0
    %951 = vmatpush1.msra.mxu0 0.0
    %952 = vmatprep.subr.mxu0 0.0
    %953 = vmatpush1.msra.mxu0 0.0
    %954 = vmatprep.subr.mxu0 0.0
    %955 = vmatpush1.msra.mxu0 0.0
    %956 = vmatprep.subr.mxu0 0.0
    %957 = vmatpush1.msra.mxu0 0.0
    %958 = vmatprep.subr.mxu0 0.0
    %959 = vmatpush1.msra.mxu0 0.0
    %960 = vmatprep.subr.mxu0 0.0
    %961 = vmatpush1.msra.mxu0 0.0
    %962 = vmatprep.subr.mxu0 0.0
    %963 = vmatpush1.msra.mxu0 0.0
    %964 = vmatprep.subr.mxu0 0.0
    %965 = vmatpush1.msra.mxu0 0.0
    %966 = vmatprep.subr.mxu0 0.0
    %967 = vmatpush1.msra.mxu0 0.0
    %968 = vmatprep.mubr.f32.mxu0 0.0
    %969 = vmatmul.mubr.f32.gmra.mrb[0].mxu0 %v902
    %v970 = vpop.f32.mrb[0].mxu0
    %v971 = vadd.f32 %v295, %v970
    %v972 = vpop.f32.mrb[0].mxu0
    %973 = vdwg.mxu0
    %v975 = vrot.slane %v971, 3
    %v977 = vadd.f32 %v373, %v975
    %v978 = vxor.u32 %v977, 2147483648
    %v979 = vmul.f32 %v978, 1.442695
    %v980 = vpow.pop %v979
    %v981 = vadd.f32 %v980, 1.0
    %v982 = vrcp.pop %v981
    %v983 = vmul.f32 1.0, %v982
    %984 = vrot.lane.b32.xlu0 %v975, 64
    %v985 = vpop.permute.xlu0 %984
    %v987 = vmul.f32 %v983, %v985
    %989 = vrot.lane.b32.xlu0 %v987, 64
    %v990 = vpop.permute.xlu0 %989
    %v992 = vadd.f32 %v373, %v990
    %v993 = vtanh.pop %v992
    %v994 = vsub.f32 1.0, %v983
    %996 = vrot.lane.b32.xlu0 %v993, 96
    %v997 = vpop.permute.xlu0 %996
    %v999 = vmul.f32 %v994, %v997
    %v1000 = vrot.slane %v897, 7
    %v1002 = vmul.f32 %v983, %v1000
    %v1003 = vadd.f32 %v999, %v1002
    %v1005 = vrot.slane %v1003, 5
    %1006 = vrot.lane.b32.xlu0 %v1005, 96
    %v1007 = vpop.permute.xlu0 %1006
    %v1008 = vsel %vm302, %v1007, 0
    %1010 = vmatprep.subr.mxu0 0.0
    %1011 = vmatpush1.msra.mxu0 %v290
    %1012 = vmatprep.subr.mxu0 0.0
    %1013 = vmatpush1.msra.mxu0 %v291
    %1014 = vmatprep.subr.mxu0 0.0
    %1015 = vmatpush1.msra.mxu0 %v292
    %1016 = vmatprep.subr.mxu0 0.0
    %1017 = vmatpush1.msra.mxu0 %v293
    %1018 = vmatprep.subr.mxu0 0.0
    %1019 = vmatpush1.msra.mxu0 0.0
    %1020 = vmatprep.subr.mxu0 0.0
    %1021 = vmatpush1.msra.mxu0 0.0
    %1022 = vmatprep.subr.mxu0 0.0
    %1023 = vmatpush1.msra.mxu0 0.0
    %1024 = vmatprep.subr.mxu0 0.0
    %1025 = vmatpush1.msra.mxu0 0.0
    %1026 = vmatprep.subr.mxu0 0.0
    %1027 = vmatpush1.msra.mxu0 0.0
    %1028 = vmatprep.subr.mxu0 0.0
    %1029 = vmatpush1.msra.mxu0 0.0
    %1030 = vmatprep.subr.mxu0 0.0
    %1031 = vmatpush1.msra.mxu0 0.0
    %1032 = vmatprep.subr.mxu0 0.0
    %1033 = vmatpush1.msra.mxu0 0.0
    %1034 = vmatprep.subr.mxu0 0.0
    %1035 = vmatpush1.msra.mxu0 0.0
    %1036 = vmatprep.subr.mxu0 0.0
    %1037 = vmatpush1.msra.mxu0 0.0
    %1038 = vmatprep.subr.mxu0 0.0
    %1039 = vmatpush1.msra.mxu0 0.0
    %1040 = vmatprep.subr.mxu0 0.0
    %1041 = vmatpush1.msra.mxu0 0.0
    %1042 = vmatprep.subr.mxu0 0.0
    %1043 = vmatpush1.msra.mxu0 0.0
    %1044 = vmatprep.subr.mxu0 0.0
    %1045 = vmatpush1.msra.mxu0 0.0
    %1046 = vmatprep.subr.mxu0 0.0
    %1047 = vmatpush1.msra.mxu0 0.0
    %1048 = vmatprep.subr.mxu0 0.0
    %1049 = vmatpush1.msra.mxu0 0.0
    %1050 = vmatprep.subr.mxu0 0.0
    %1051 = vmatpush1.msra.mxu0 0.0
    %1052 = vmatprep.subr.mxu0 0.0
    %1053 = vmatpush1.msra.mxu0 0.0
    %1054 = vmatprep.subr.mxu0 0.0
    %1055 = vmatpush1.msra.mxu0 0.0
    %1056 = vmatprep.subr.mxu0 0.0
    %1057 = vmatpush1.msra.mxu0 0.0
    %1058 = vmatprep.subr.mxu0 0.0
    %1059 = vmatpush1.msra.mxu0 0.0
    %1060 = vmatprep.subr.mxu0 0.0
    %1061 = vmatpush1.msra.mxu0 0.0
    %1062 = vmatprep.subr.mxu0 0.0
    %1063 = vmatpush1.msra.mxu0 0.0
    %1064 = vmatprep.subr.mxu0 0.0
    %1065 = vmatpush1.msra.mxu0 0.0
    %1066 = vmatprep.subr.mxu0 0.0
    %1067 = vmatpush1.msra.mxu0 0.0
    %1068 = vmatprep.subr.mxu0 0.0
    %1069 = vmatpush1.msra.mxu0 0.0
    %1070 = vmatprep.subr.mxu0 0.0
    %1071 = vmatpush1.msra.mxu0 0.0
    %1072 = vmatprep.subr.mxu0 0.0
    %1073 = vmatpush1.msra.mxu0 0.0
    %1074 = vmatprep.mubr.f32.mxu0 0.0
    %1075 = vmatmul.mubr.f32.gmra.mrb[0].mxu0 %v1008
    %v1076 = vpop.f32.mrb[0].mxu0
    %v1077 = vadd.f32 %v295, %v1076
    %v1078 = vpop.f32.mrb[0].mxu0
    %1079 = vdwg.mxu0
    %v1081 = vrot.slane %v1077, 2
    %v1083 = vadd.f32 %v373, %v1081
    %v1084 = vxor.u32 %v1083, 2147483648
    %v1085 = vmul.f32 %v1084, 1.442695
    %v1086 = vpow.pop %v1085
    %v1087 = vadd.f32 %v1086, 1.0
    %v1088 = vrcp.pop %v1087
    %v1089 = vmul.f32 1.0, %v1088
    %1090 = vrot.lane.b32.xlu0 %v1081, 64
    %v1091 = vpop.permute.xlu0 %1090
    %v1093 = vmul.f32 %v1089, %v1091
    %1095 = vrot.lane.b32.xlu0 %v1093, 64
    %v1096 = vpop.permute.xlu0 %1095
    %v1098 = vadd.f32 %v373, %v1096
    %v1099 = vtanh.pop %v1098
    %v1100 = vsub.f32 1.0, %v1089
    %1102 = vrot.lane.b32.xlu0 %v1099, 96
    %v1103 = vpop.permute.xlu0 %1102
    %v1105 = vmul.f32 %v1100, %v1103
    %v1106 = vrot.slane %v1003, 7
    %v1108 = vmul.f32 %v1089, %v1106
    %v1109 = vadd.f32 %v1105, %v1108
    %v1111 = vrot.slane %v1109, 6
    %1112 = vrot.lane.b32.xlu0 %v1111, 96
    %v1113 = vpop.permute.xlu0 %1112
    %v1114 = vsel %vm302, %v1113, 0
    %1116 = vmatprep.subr.mxu0 0.0
    %1117 = vmatpush1.msra.mxu0 %v290
    %1118 = vmatprep.subr.mxu0 0.0
    %1119 = vmatpush1.msra.mxu0 %v291
    %1120 = vmatprep.subr.mxu0 0.0
    %1121 = vmatpush1.msra.mxu0 %v292
    %1122 = vmatprep.subr.mxu0 0.0
    %1123 = vmatpush1.msra.mxu0 %v293
    %1124 = vmatprep.subr.mxu0 0.0
    %1125 = vmatpush1.msra.mxu0 0.0
    %1126 = vmatprep.subr.mxu0 0.0
    %1127 = vmatpush1.msra.mxu0 0.0
    %1128 = vmatprep.subr.mxu0 0.0
    %1129 = vmatpush1.msra.mxu0 0.0
    %1130 = vmatprep.subr.mxu0 0.0
    %1131 = vmatpush1.msra.mxu0 0.0
    %1132 = vmatprep.subr.mxu0 0.0
    %1133 = vmatpush1.msra.mxu0 0.0
    %1134 = vmatprep.subr.mxu0 0.0
    %1135 = vmatpush1.msra.mxu0 0.0
    %1136 = vmatprep.subr.mxu0 0.0
    %1137 = vmatpush1.msra.mxu0 0.0
    %1138 = vmatprep.subr.mxu0 0.0
    %1139 = vmatpush1.msra.mxu0 0.0
    %1140 = vmatprep.subr.mxu0 0.0
    %1141 = vmatpush1.msra.mxu0 0.0
    %1142 = vmatprep.subr.mxu0 0.0
    %1143 = vmatpush1.msra.mxu0 0.0
    %1144 = vmatprep.subr.mxu0 0.0
    %1145 = vmatpush1.msra.mxu0 0.0
    %1146 = vmatprep.subr.mxu0 0.0
    %1147 = vmatpush1.msra.mxu0 0.0
    %1148 = vmatprep.subr.mxu0 0.0
    %1149 = vmatpush1.msra.mxu0 0.0
    %1150 = vmatprep.subr.mxu0 0.0
    %1151 = vmatpush1.msra.mxu0 0.0
    %1152 = vmatprep.subr.mxu0 0.0
    %1153 = vmatpush1.msra.mxu0 0.0
    %1154 = vmatprep.subr.mxu0 0.0
    %1155 = vmatpush1.msra.mxu0 0.0
    %1156 = vmatprep.subr.mxu0 0.0
    %1157 = vmatpush1.msra.mxu0 0.0
    %1158 = vmatprep.subr.mxu0 0.0
    %1159 = vmatpush1.msra.mxu0 0.0
    %1160 = vmatprep.subr.mxu0 0.0
    %1161 = vmatpush1.msra.mxu0 0.0
    %1162 = vmatprep.subr.mxu0 0.0
    %1163 = vmatpush1.msra.mxu0 0.0
    %1164 = vmatprep.subr.mxu0 0.0
    %1165 = vmatpush1.msra.mxu0 0.0
    %1166 = vmatprep.subr.mxu0 0.0
    %1167 = vmatpush1.msra.mxu0 0.0
    %1168 = vmatprep.subr.mxu0 0.0
    %1169 = vmatpush1.msra.mxu0 0.0
    %1170 = vmatprep.subr.mxu0 0.0
    %1171 = vmatpush1.msra.mxu0 0.0
    %1172 = vmatprep.subr.mxu0 0.0
    %1173 = vmatpush1.msra.mxu0 0.0
    %1174 = vmatprep.subr.mxu0 0.0
    %1175 = vmatpush1.msra.mxu0 0.0
    %1176 = vmatprep.subr.mxu0 0.0
    %1177 = vmatpush1.msra.mxu0 0.0
    %1178 = vmatprep.subr.mxu0 0.0
    %1179 = vmatpush1.msra.mxu0 0.0
    %1180 = vmatprep.mubr.f32.mxu0 0.0
    %1181 = vmatmul.mubr.f32.gmra.mrb[0].mxu0 %v1114
    %v1182 = vpop.f32.mrb[0].mxu0
    %v1183 = vadd.f32 %v295, %v1182
    %v1184 = vpop.f32.mrb[0].mxu0
    %1185 = vdwg.mxu0
    %v1187 = vrot.slane %v1183, 1
    %v1189 = vadd.f32 %v373, %v1187
    %v1190 = vxor.u32 %v1189, 2147483648
    %v1191 = vmul.f32 %v1190, 1.442695
    %v1192 = vpow.pop %v1191
    %v1193 = vadd.f32 %v1192, 1.0
    %v1194 = vrcp.pop %v1193
    %v1195 = vmul.f32 1.0, %v1194
    %1196 = vrot.lane.b32.xlu0 %v1187, 64
    %v1197 = vpop.permute.xlu0 %1196
    %v1199 = vmul.f32 %v1195, %v1197
    %1201 = vrot.lane.b32.xlu0 %v1199, 64
    %v1202 = vpop.permute.xlu0 %1201
    %v1204 = vadd.f32 %v373, %v1202
    %v1205 = vtanh.pop %v1204
    %v1206 = vsub.f32 1.0, %v1195
    %1208 = vrot.lane.b32.xlu0 %v1205, 96
    %v1209 = vpop.permute.xlu0 %1208
    %v1211 = vmul.f32 %v1206, %v1209
    %v1212 = vrot.slane %v1109, 7
    %v1214 = vmul.f32 %v1195, %v1212
    %v1215 = vadd.f32 %v1211, %v1214
    %vm1216 = vcmask 1040384
    %v1217 = vsel %vm1216, %v474, %v579
    %vm1218 = vcmask 1041408
    %v1219 = vsel %vm1218, %v1217, %v685
    %vm1220 = vcmask 1042432
    %v1221 = vsel %vm1220, %v1219, %v791
    %vm1222 = vcmask 1043456
    %v1223 = vsel %vm1222, %v1221, %v897
    %vm1224 = vcmask 1044480
    %v1225 = vsel %vm1224, %v1223, %v1003
    %vm1226 = vcmask 1045504
    %v1227 = vsel %vm1226, %v1225, %v1109
    %vm1228 = vcmask 1046528
    %v1229 = vsel %vm1228, %v1227, %v1215
    %s1230 = scalar_lea.vmem %s1, 32
    %v1231 = vld [vmem:[%s1230] sm:$0xff]
    %v1232 = vld [vmem:[%s1230 + $0x8] sm:$0xff]
    %v1233 = vld [vmem:[%s1230 + $0x10] sm:$0xff]
    %v1234 = vld [vmem:[%s1230 + $0x18] sm:$0xff]
    %s1235 = scalar_lea.vmem [#allocation2], 32
    %v1236 = vld [vmem:[%s1235] sm:$0xff]
    %v1237 = vld [vmem:[%s1235 + $0x8] sm:$0xff]
    %v1238 = vld [vmem:[%s1235 + $0x10] sm:$0xff]
    %v1239 = vld [vmem:[%s1235 + $0x18] sm:$0xff]
    %s1240 = scalar_lea.vmem [#allocation4], 1
    %v1241 = vld [vmem:[%s1240] sm:$0x1]
    %s1242 = scalar_lea.vmem [#allocation6], 1
    %v1243 = vld [vmem:[%s1242] sm:$0x1]
    %v1245 = vlaneseq
    %v1246 = vshrl.u32 %v1245, 7
    %v1247 = vsub.s32 0, %v1246
    %v1248 = vrot.slane %v1241, %v1247
    %1250 = vmatprep.subr.mxu0 0.0
    %1251 = vmatpush1.msra.mxu0 %v1231
    %1252 = vmatprep.subr.mxu0 0.0
    %1253 = vmatpush1.msra.mxu0 %v1232
    %1254 = vmatprep.subr.mxu0 0.0
    %1255 = vmatpush1.msra.mxu0 %v1233
    %1256 = vmatprep.subr.mxu0 0.0
    %1257 = vmatpush1.msra.mxu0 %v1234
    %1258 = vmatprep.subr.mxu0 0.0
    %1259 = vmatpush1.msra.mxu0 0.0
    %1260 = vmatprep.subr.mxu0 0.0
    %1261 = vmatpush1.msra.mxu0 0.0
    %1262 = vmatprep.subr.mxu0 0.0
    %1263 = vmatpush1.msra.mxu0 0.0
    %1264 = vmatprep.subr.mxu0 0.0
    %1265 = vmatpush1.msra.mxu0 0.0
    %1266 = vmatprep.subr.mxu0 0.0
    %1267 = vmatpush1.msra.mxu0 0.0
    %1268 = vmatprep.subr.mxu0 0.0
    %1269 = vmatpush1.msra.mxu0 0.0
    %1270 = vmatprep.subr.mxu0 0.0
    %1271 = vmatpush1.msra.mxu0 0.0
    %1272 = vmatprep.subr.mxu0 0.0
    %1273 = vmatpush1.msra.mxu0 0.0
    %1274 = vmatprep.subr.mxu0 0.0
    %1275 = vmatpush1.msra.mxu0 0.0
    %1276 = vmatprep.subr.mxu0 0.0
    %1277 = vmatpush1.msra.mxu0 0.0
    %1278 = vmatprep.subr.mxu0 0.0
    %1279 = vmatpush1.msra.mxu0 0.0
    %1280 = vmatprep.subr.mxu0 0.0
    %1281 = vmatpush1.msra.mxu0 0.0
    %1282 = vmatprep.subr.mxu0 0.0
    %1283 = vmatpush1.msra.mxu0 0.0
    %1284 = vmatprep.subr.mxu0 0.0
    %1285 = vmatpush1.msra.mxu0 0.0
    %1286 = vmatprep.subr.mxu0 0.0
    %1287 = vmatpush1.msra.mxu0 0.0
    %1288 = vmatprep.subr.mxu0 0.0
    %1289 = vmatpush1.msra.mxu0 0.0
    %1290 = vmatprep.subr.mxu0 0.0
    %1291 = vmatpush1.msra.mxu0 0.0
    %1292 = vmatprep.subr.mxu0 0.0
    %1293 = vmatpush1.msra.mxu0 0.0
    %1294 = vmatprep.subr.mxu0 0.0
    %1295 = vmatpush1.msra.mxu0 0.0
    %1296 = vmatprep.subr.mxu0 0.0
    %1297 = vmatpush1.msra.mxu0 0.0
    %1298 = vmatprep.subr.mxu0 0.0
    %1299 = vmatpush1.msra.mxu0 0.0
    %1300 = vmatprep.subr.mxu0 0.0
    %1301 = vmatpush1.msra.mxu0 0.0
    %1302 = vmatprep.subr.mxu0 0.0
    %1303 = vmatpush1.msra.mxu0 0.0
    %1304 = vmatprep.subr.mxu0 0.0
    %1305 = vmatpush1.msra.mxu0 0.0
    %1306 = vmatprep.subr.mxu0 0.0
    %1307 = vmatpush1.msra.mxu0 0.0
    %1308 = vmatprep.subr.mxu0 0.0
    %1309 = vmatpush1.msra.mxu0 0.0
    %1310 = vmatprep.subr.mxu0 0.0
    %1311 = vmatpush1.msra.mxu0 0.0
    %1312 = vmatprep.subr.mxu0 0.0
    %1313 = vmatpush1.msra.mxu0 0.0
    %1314 = vmatprep.mubr.f32.mxu0 0.0
    %1315 = vmatmul.mubr.f32.gmra.mrb[0].mxu0 %v304
    %v1316 = vpop.f32.mrb[0].mxu0
    %v1317 = vadd.f32 %v1248, %v1316
    %v1318 = vpop.f32.mrb[0].mxu0
    %1319 = vdwg.mxu0
    %1320 = vmatprep.subr.mxu0 0.0
    %1321 = vmatpush1.msra.mxu0 %v1236
    %1322 = vmatprep.subr.mxu0 0.0
    %1323 = vmatpush1.msra.mxu0 %v1237
    %1324 = vmatprep.subr.mxu0 0.0
    %1325 = vmatpush1.msra.mxu0 %v1238
    %1326 = vmatprep.subr.mxu0 0.0
    %1327 = vmatpush1.msra.mxu0 %v1239
    %1328 = vmatprep.subr.mxu0 0.0
    %1329 = vmatpush1.msra.mxu0 0.0
    %1330 = vmatprep.subr.mxu0 0.0
    %1331 = vmatpush1.msra.mxu0 0.0
    %1332 = vmatprep.subr.mxu0 0.0
    %1333 = vmatpush1.msra.mxu0 0.0
    %1334 = vmatprep.subr.mxu0 0.0
    %1335 = vmatpush1.msra.mxu0 0.0
    %1336 = vmatprep.subr.mxu0 0.0
    %1337 = vmatpush1.msra.mxu0 0.0
    %1338 = vmatprep.subr.mxu0 0.0
    %1339 = vmatpush1.msra.mxu0 0.0
    %1340 = vmatprep.subr.mxu0 0.0
    %1341 = vmatpush1.msra.mxu0 0.0
    %1342 = vmatprep.subr.mxu0 0.0
    %1343 = vmatpush1.msra.mxu0 0.0
    %1344 = vmatprep.subr.mxu0 0.0
    %1345 = vmatpush1.msra.mxu0 0.0
    %1346 = vmatprep.subr.mxu0 0.0
    %1347 = vmatpush1.msra.mxu0 0.0
    %1348 = vmatprep.subr.mxu0 0.0
    %1349 = vmatpush1.msra.mxu0 0.0
    %1350 = vmatprep.subr.mxu0 0.0
    %1351 = vmatpush1.msra.mxu0 0.0
    %1352 = vmatprep.subr.mxu0 0.0
    %1353 = vmatpush1.msra.mxu0 0.0
    %1354 = vmatprep.subr.mxu0 0.0
    %1355 = vmatpush1.msra.mxu0 0.0
    %1356 = vmatprep.subr.mxu0 0.0
    %1357 = vmatpush1.msra.mxu0 0.0
    %1358 = vmatprep.subr.mxu0 0.0
    %1359 = vmatpush1.msra.mxu0 0.0
    %1360 = vmatprep.subr.mxu0 0.0
    %1361 = vmatpush1.msra.mxu0 0.0
    %1362 = vmatprep.subr.mxu0 0.0
    %1363 = vmatpush1.msra.mxu0 0.0
    %1364 = vmatprep.subr.mxu0 0.0
    %1365 = vmatpush1.msra.mxu0 0.0
    %1366 = vmatprep.subr.mxu0 0.0
    %1367 = vmatpush1.msra.mxu0 0.0
    %1368 = vmatprep.subr.mxu0 0.0
    %1369 = vmatpush1.msra.mxu0 0.0
    %1370 = vmatprep.subr.mxu0 0.0
    %1371 = vmatpush1.msra.mxu0 0.0
    %1372 = vmatprep.subr.mxu0 0.0
    %1373 = vmatpush1.msra.mxu0 0.0
    %1374 = vmatprep.subr.mxu0 0.0
    %1375 = vmatpush1.msra.mxu0 0.0
    %1376 = vmatprep.subr.mxu0 0.0
    %1377 = vmatpush1.msra.mxu0 0.0
    %1378 = vmatprep.subr.mxu0 0.0
    %1379 = vmatpush1.msra.mxu0 0.0
    %1380 = vmatprep.subr.mxu0 0.0
    %1381 = vmatpush1.msra.mxu0 0.0
    %1382 = vmatprep.subr.mxu0 0.0
    %1383 = vmatpush1.msra.mxu0 0.0
    %1384 = vmatprep.mubr.f32.mxu0 0.0
    %1385 = vmatmul.mubr.f32.gmra.mrb[0].mxu0 %v377
    %v1386 = vpop.f32.mrb[0].mxu0
    %v1387 = vadd.f32 %v1243, %v1386
    %v1388 = vpop.f32.mrb[0].mxu0
    %1389 = vdwg.mxu0
    %v1391 = vrot.slane %v1387, 1
    %v1393 = vadd.f32 %v1317, %v1391
    %v1394 = vxor.u32 %v1393, 2147483648
    %v1395 = vmul.f32 %v1394, 1.442695
    %v1396 = vpow.pop %v1395
    %v1397 = vadd.f32 %v1396, 1.0
    %v1398 = vrcp.pop %v1397
    %v1399 = vmul.f32 1.0, %v1398
    %1400 = vrot.lane.b32.xlu0 %v1391, 64
    %v1401 = vpop.permute.xlu0 %1400
    %v1403 = vmul.f32 %v1399, %v1401
    %1405 = vrot.lane.b32.xlu0 %v1403, 64
    %v1406 = vpop.permute.xlu0 %1405
    %v1408 = vadd.f32 %v1317, %v1406
    %v1409 = vtanh.pop %v1408
    %v1410 = vsub.f32 1.0, %v1399
    %1412 = vrot.lane.b32.xlu0 %v1409, 96
    %v1413 = vpop.permute.xlu0 %1412
    %v1415 = vmul.f32 %v1410, %v1413
    %v1416 = vmul.f32 %v1399, 0.0
    %v1417 = vadd.f32 %v1415, %v1416
    %v1419 = vrot.slane %v1417, 7
    %1420 = vrot.lane.b32.xlu0 %v1419, 96
    %v1421 = vpop.permute.xlu0 %1420
    %v1422 = vsel %vm302, %v1421, 0
    %1424 = vmatprep.subr.mxu0 0.0
    %1425 = vmatpush1.msra.mxu0 %v1236
    %1426 = vmatprep.subr.mxu0 0.0
    %1427 = vmatpush1.msra.mxu0 %v1237
    %1428 = vmatprep.subr.mxu0 0.0
    %1429 = vmatpush1.msra.mxu0 %v1238
    %1430 = vmatprep.subr.mxu0 0.0
    %1431 = vmatpush1.msra.mxu0 %v1239
    %1432 = vmatprep.subr.mxu0 0.0
    %1433 = vmatpush1.msra.mxu0 0.0
    %1434 = vmatprep.subr.mxu0 0.0
    %1435 = vmatpush1.msra.mxu0 0.0
    %1436 = vmatprep.subr.mxu0 0.0
    %1437 = vmatpush1.msra.mxu0 0.0
    %1438 = vmatprep.subr.mxu0 0.0
    %1439 = vmatpush1.msra.mxu0 0.0
    %1440 = vmatprep.subr.mxu0 0.0
    %1441 = vmatpush1.msra.mxu0 0.0
    %1442 = vmatprep.subr.mxu0 0.0
    %1443 = vmatpush1.msra.mxu0 0.0
    %1444 = vmatprep.subr.mxu0 0.0
    %1445 = vmatpush1.msra.mxu0 0.0
    %1446 = vmatprep.subr.mxu0 0.0
    %1447 = vmatpush1.msra.mxu0 0.0
    %1448 = vmatprep.subr.mxu0 0.0
    %1449 = vmatpush1.msra.mxu0 0.0
    %1450 = vmatprep.subr.mxu0 0.0
    %1451 = vmatpush1.msra.mxu0 0.0
    %1452 = vmatprep.subr.mxu0 0.0
    %1453 = vmatpush1.msra.mxu0 0.0
    %1454 = vmatprep.subr.mxu0 0.0
    %1455 = vmatpush1.msra.mxu0 0.0
    %1456 = vmatprep.subr.mxu0 0.0
    %1457 = vmatpush1.msra.mxu0 0.0
    %1458 = vmatprep.subr.mxu0 0.0
    %1459 = vmatpush1.msra.mxu0 0.0
    %1460 = vmatprep.subr.mxu0 0.0
    %1461 = vmatpush1.msra.mxu0 0.0
    %1462 = vmatprep.subr.mxu0 0.0
    %1463 = vmatpush1.msra.mxu0 0.0
    %1464 = vmatprep.subr.mxu0 0.0
    %1465 = vmatpush1.msra.mxu0 0.0
    %1466 = vmatprep.subr.mxu0 0.0
    %1467 = vmatpush1.msra.mxu0 0.0
    %1468 = vmatprep.subr.mxu0 0.0
    %1469 = vmatpush1.msra.mxu0 0.0
    %1470 = vmatprep.subr.mxu0 0.0
    %1471 = vmatpush1.msra.mxu0 0.0
    %1472 = vmatprep.subr.mxu0 0.0
    %1473 = vmatpush1.msra.mxu0 0.0
    %1474 = vmatprep.subr.mxu0 0.0
    %1475 = vmatpush1.msra.mxu0 0.0
    %1476 = vmatprep.subr.mxu0 0.0
    %1477 = vmatpush1.msra.mxu0 0.0
    %1478 = vmatprep.subr.mxu0 0.0
    %1479 = vmatpush1.msra.mxu0 0.0
    %1480 = vmatprep.subr.mxu0 0.0
    %1481 = vmatpush1.msra.mxu0 0.0
    %1482 = vmatprep.subr.mxu0 0.0
    %1483 = vmatpush1.msra.mxu0 0.0
    %1484 = vmatprep.subr.mxu0 0.0
    %1485 = vmatpush1.msra.mxu0 0.0
    %1486 = vmatprep.subr.mxu0 0.0
    %1487 = vmatpush1.msra.mxu0 0.0
    %1488 = vmatprep.mubr.f32.mxu0 0.0
    %1489 = vmatmul.mubr.f32.gmra.mrb[0].mxu0 %v1422
    %v1490 = vpop.f32.mrb[0].mxu0
    %v1491 = vadd.f32 %v1243, %v1490
    %v1492 = vpop.f32.mrb[0].mxu0
    %1493 = vdwg.mxu0
    %v1495 = vrot.slane %v1491, 2
    %v1497 = vadd.f32 %v1317, %v1495
    %v1498 = vxor.u32 %v1497, 2147483648
    %v1499 = vmul.f32 %v1498, 1.442695
    %v1500 = vpow.pop %v1499
    %v1501 = vadd.f32 %v1500, 1.0
    %v1502 = vrcp.pop %v1501
    %v1503 = vmul.f32 1.0, %v1502
    %1504 = vrot.lane.b32.xlu0 %v1495, 64
    %v1505 = vpop.permute.xlu0 %1504
    %v1507 = vmul.f32 %v1503, %v1505
    %1509 = vrot.lane.b32.xlu0 %v1507, 64
    %v1510 = vpop.permute.xlu0 %1509
    %v1512 = vadd.f32 %v1317, %v1510
    %v1513 = vtanh.pop %v1512
    %v1514 = vsub.f32 1.0, %v1503
    %1516 = vrot.lane.b32.xlu0 %v1513, 96
    %v1517 = vpop.permute.xlu0 %1516
    %v1519 = vmul.f32 %v1514, %v1517
    %v1520 = vrot.slane %v1417, 1
    %v1522 = vmul.f32 %v1503, %v1520
    %v1523 = vadd.f32 %v1519, %v1522
    %v1525 = vrot.slane %v1523, 6
    %1526 = vrot.lane.b32.xlu0 %v1525, 96
    %v1527 = vpop.permute.xlu0 %1526
    %v1528 = vsel %vm302, %v1527, 0
    %1530 = vmatprep.subr.mxu0 0.0
    %1531 = vmatpush1.msra.mxu0 %v1236
    %1532 = vmatprep.subr.mxu0 0.0
    %1533 = vmatpush1.msra.mxu0 %v1237
    %1534 = vmatprep.subr.mxu0 0.0
    %1535 = vmatpush1.msra.mxu0 %v1238
    %1536 = vmatprep.subr.mxu0 0.0
    %1537 = vmatpush1.msra.mxu0 %v1239
    %1538 = vmatprep.subr.mxu0 0.0
    %1539 = vmatpush1.msra.mxu0 0.0
    %1540 = vmatprep.subr.mxu0 0.0
    %1541 = vmatpush1.msra.mxu0 0.0
    %1542 = vmatprep.subr.mxu0 0.0
    %1543 = vmatpush1.msra.mxu0 0.0
    %1544 = vmatprep.subr.mxu0 0.0
    %1545 = vmatpush1.msra.mxu0 0.0
    %1546 = vmatprep.subr.mxu0 0.0
    %1547 = vmatpush1.msra.mxu0 0.0
    %1548 = vmatprep.subr.mxu0 0.0
    %1549 = vmatpush1.msra.mxu0 0.0
    %1550 = vmatprep.subr.mxu0 0.0
    %1551 = vmatpush1.msra.mxu0 0.0
    %1552 = vmatprep.subr.mxu0 0.0
    %1553 = vmatpush1.msra.mxu0 0.0
    %1554 = vmatprep.subr.mxu0 0.0
    %1555 = vmatpush1.msra.mxu0 0.0
    %1556 = vmatprep.subr.mxu0 0.0
    %1557 = vmatpush1.msra.mxu0 0.0
    %1558 = vmatprep.subr.mxu0 0.0
    %1559 = vmatpush1.msra.mxu0 0.0
    %1560 = vmatprep.subr.mxu0 0.0
    %1561 = vmatpush1.msra.mxu0 0.0
    %1562 = vmatprep.subr.mxu0 0.0
    %1563 = vmatpush1.msra.mxu0 0.0
    %1564 = vmatprep.subr.mxu0 0.0
    %1565 = vmatpush1.msra.mxu0 0.0
    %1566 = vmatprep.subr.mxu0 0.0
    %1567 = vmatpush1.msra.mxu0 0.0
    %1568 = vmatprep.subr.mxu0 0.0
    %1569 = vmatpush1.msra.mxu0 0.0
    %1570 = vmatprep.subr.mxu0 0.0
    %1571 = vmatpush1.msra.mxu0 0.0
    %1572 = vmatprep.subr.mxu0 0.0
    %1573 = vmatpush1.msra.mxu0 0.0
    %1574 = vmatprep.subr.mxu0 0.0
    %1575 = vmatpush1.msra.mxu0 0.0
    %1576 = vmatprep.subr.mxu0 0.0
    %1577 = vmatpush1.msra.mxu0 0.0
    %1578 = vmatprep.subr.mxu0 0.0
    %1579 = vmatpush1.msra.mxu0 0.0
    %1580 = vmatprep.subr.mxu0 0.0
    %1581 = vmatpush1.msra.mxu0 0.0
    %1582 = vmatprep.subr.mxu0 0.0
    %1583 = vmatpush1.msra.mxu0 0.0
    %1584 = vmatprep.subr.mxu0 0.0
    %1585 = vmatpush1.msra.mxu0 0.0
    %1586 = vmatprep.subr.mxu0 0.0
    %1587 = vmatpush1.msra.mxu0 0.0
    %1588 = vmatprep.subr.mxu0 0.0
    %1589 = vmatpush1.msra.mxu0 0.0
    %1590 = vmatprep.subr.mxu0 0.0
    %1591 = vmatpush1.msra.mxu0 0.0
    %1592 = vmatprep.subr.mxu0 0.0
    %1593 = vmatpush1.msra.mxu0 0.0
    %1594 = vmatprep.mubr.f32.mxu0 0.0
    %1595 = vmatmul.mubr.f32.gmra.mrb[0].mxu0 %v1528
    %v1596 = vpop.f32.mrb[0].mxu0
    %v1597 = vadd.f32 %v1243, %v1596
    %v1598 = vpop.f32.mrb[0].mxu0
    %1599 = vdwg.mxu0
    %v1601 = vrot.slane %v1597, 3
    %v1603 = vadd.f32 %v1317, %v1601
    %v1604 = vxor.u32 %v1603, 2147483648
    %v1605 = vmul.f32 %v1604, 1.442695
    %v1606 = vpow.pop %v1605
    %v1607 = vadd.f32 %v1606, 1.0
    %v1608 = vrcp.pop %v1607
    %v1609 = vmul.f32 1.0, %v1608
    %1610 = vrot.lane.b32.xlu0 %v1601, 64
    %v1611 = vpop.permute.xlu0 %1610
    %v1613 = vmul.f32 %v1609, %v1611
    %1615 = vrot.lane.b32.xlu0 %v1613, 64
    %v1616 = vpop.permute.xlu0 %1615
    %v1618 = vadd.f32 %v1317, %v1616
    %v1619 = vtanh.pop %v1618
    %v1620 = vsub.f32 1.0, %v1609
    %1622 = vrot.lane.b32.xlu0 %v1619, 96
    %v1623 = vpop.permute.xlu0 %1622
    %v1625 = vmul.f32 %v1620, %v1623
    %v1626 = vrot.slane %v1523, 1
    %v1628 = vmul.f32 %v1609, %v1626
    %v1629 = vadd.f32 %v1625, %v1628
    %v1631 = vrot.slane %v1629, 5
    %1632 = vrot.lane.b32.xlu0 %v1631, 96
    %v1633 = vpop.permute.xlu0 %1632
    %v1634 = vsel %vm302, %v1633, 0
    %1636 = vmatprep.subr.mxu0 0.0
    %1637 = vmatpush1.msra.mxu0 %v1236
    %1638 = vmatprep.subr.mxu0 0.0
    %1639 = vmatpush1.msra.mxu0 %v1237
    %1640 = vmatprep.subr.mxu0 0.0
    %1641 = vmatpush1.msra.mxu0 %v1238
    %1642 = vmatprep.subr.mxu0 0.0
    %1643 = vmatpush1.msra.mxu0 %v1239
    %1644 = vmatprep.subr.mxu0 0.0
    %1645 = vmatpush1.msra.mxu0 0.0
    %1646 = vmatprep.subr.mxu0 0.0
    %1647 = vmatpush1.msra.mxu0 0.0
    %1648 = vmatprep.subr.mxu0 0.0
    %1649 = vmatpush1.msra.mxu0 0.0
    %1650 = vmatprep.subr.mxu0 0.0
    %1651 = vmatpush1.msra.mxu0 0.0
    %1652 = vmatprep.subr.mxu0 0.0
    %1653 = vmatpush1.msra.mxu0 0.0
    %1654 = vmatprep.subr.mxu0 0.0
    %1655 = vmatpush1.msra.mxu0 0.0
    %1656 = vmatprep.subr.mxu0 0.0
    %1657 = vmatpush1.msra.mxu0 0.0
    %1658 = vmatprep.subr.mxu0 0.0
    %1659 = vmatpush1.msra.mxu0 0.0
    %1660 = vmatprep.subr.mxu0 0.0
    %1661 = vmatpush1.msra.mxu0 0.0
    %1662 = vmatprep.subr.mxu0 0.0
    %1663 = vmatpush1.msra.mxu0 0.0
    %1664 = vmatprep.subr.mxu0 0.0
    %1665 = vmatpush1.msra.mxu0 0.0
    %1666 = vmatprep.subr.mxu0 0.0
    %1667 = vmatpush1.msra.mxu0 0.0
    %1668 = vmatprep.subr.mxu0 0.0
    %1669 = vmatpush1.msra.mxu0 0.0
    %1670 = vmatprep.subr.mxu0 0.0
    %1671 = vmatpush1.msra.mxu0 0.0
    %1672 = vmatprep.subr.mxu0 0.0
    %1673 = vmatpush1.msra.mxu0 0.0
    %1674 = vmatprep.subr.mxu0 0.0
    %1675 = vmatpush1.msra.mxu0 0.0
    %1676 = vmatprep.subr.mxu0 0.0
    %1677 = vmatpush1.msra.mxu0 0.0
    %1678 = vmatprep.subr.mxu0 0.0
    %1679 = vmatpush1.msra.mxu0 0.0
    %1680 = vmatprep.subr.mxu0 0.0
    %1681 = vmatpush1.msra.mxu0 0.0
    %1682 = vmatprep.subr.mxu0 0.0
    %1683 = vmatpush1.msra.mxu0 0.0
    %1684 = vmatprep.subr.mxu0 0.0
    %1685 = vmatpush1.msra.mxu0 0.0
    %1686 = vmatprep.subr.mxu0 0.0
    %1687 = vmatpush1.msra.mxu0 0.0
    %1688 = vmatprep.subr.mxu0 0.0
    %1689 = vmatpush1.msra.mxu0 0.0
    %1690 = vmatprep.subr.mxu0 0.0
    %1691 = vmatpush1.msra.mxu0 0.0
    %1692 = vmatprep.subr.mxu0 0.0
    %1693 = vmatpush1.msra.mxu0 0.0
    %1694 = vmatprep.subr.mxu0 0.0
    %1695 = vmatpush1.msra.mxu0 0.0
    %1696 = vmatprep.subr.mxu0 0.0
    %1697 = vmatpush1.msra.mxu0 0.0
    %1698 = vmatprep.subr.mxu0 0.0
    %1699 = vmatpush1.msra.mxu0 0.0
    %1700 = vmatprep.mubr.f32.mxu0 0.0
    %1701 = vmatmul.mubr.f32.gmra.mrb[0].mxu0 %v1634
    %v1702 = vpop.f32.mrb[0].mxu0
    %v1703 = vadd.f32 %v1243, %v1702
    %v1704 = vpop.f32.mrb[0].mxu0
    %1705 = vdwg.mxu0
    %v1707 = vrot.slane %v1703, 4
    %v1709 = vadd.f32 %v1317, %v1707
    %v1710 = vxor.u32 %v1709, 2147483648
    %v1711 = vmul.f32 %v1710, 1.442695
    %v1712 = vpow.pop %v1711
    %v1713 = vadd.f32 %v1712, 1.0
    %v1714 = vrcp.pop %v1713
    %v1715 = vmul.f32 1.0, %v1714
    %1716 = vrot.lane.b32.xlu0 %v1707, 64
    %v1717 = vpop.permute.xlu0 %1716
    %v1719 = vmul.f32 %v1715, %v1717
    %1721 = vrot.lane.b32.xlu0 %v1719, 64
    %v1722 = vpop.permute.xlu0 %1721
    %v1724 = vadd.f32 %v1317, %v1722
    %v1725 = vtanh.pop %v1724
    %v1726 = vsub.f32 1.0, %v1715
    %1728 = vrot.lane.b32.xlu0 %v1725, 96
    %v1729 = vpop.permute.xlu0 %1728
    %v1731 = vmul.f32 %v1726, %v1729
    %v1732 = vrot.slane %v1629, 1
    %v1734 = vmul.f32 %v1715, %v1732
    %v1735 = vadd.f32 %v1731, %v1734
    %v1737 = vrot.slane %v1735, 4
    %1738 = vrot.lane.b32.xlu0 %v1737, 96
    %v1739 = vpop.permute.xlu0 %1738
    %v1740 = vsel %vm302, %v1739, 0
    %1742 = vmatprep.subr.mxu0 0.0
    %1743 = vmatpush1.msra.mxu0 %v1236
    %1744 = vmatprep.subr.mxu0 0.0
    %1745 = vmatpush1.msra.mxu0 %v1237
    %1746 = vmatprep.subr.mxu0 0.0
    %1747 = vmatpush1.msra.mxu0 %v1238
    %1748 = vmatprep.subr.mxu0 0.0
    %1749 = vmatpush1.msra.mxu0 %v1239
    %1750 = vmatprep.subr.mxu0 0.0
    %1751 = vmatpush1.msra.mxu0 0.0
    %1752 = vmatprep.subr.mxu0 0.0
    %1753 = vmatpush1.msra.mxu0 0.0
    %1754 = vmatprep.subr.mxu0 0.0
    %1755 = vmatpush1.msra.mxu0 0.0
    %1756 = vmatprep.subr.mxu0 0.0
    %1757 = vmatpush1.msra.mxu0 0.0
    %1758 = vmatprep.subr.mxu0 0.0
    %1759 = vmatpush1.msra.mxu0 0.0
    %1760 = vmatprep.subr.mxu0 0.0
    %1761 = vmatpush1.msra.mxu0 0.0
    %1762 = vmatprep.subr.mxu0 0.0
    %1763 = vmatpush1.msra.mxu0 0.0
    %1764 = vmatprep.subr.mxu0 0.0
    %1765 = vmatpush1.msra.mxu0 0.0
    %1766 = vmatprep.subr.mxu0 0.0
    %1767 = vmatpush1.msra.mxu0 0.0
    %1768 = vmatprep.subr.mxu0 0.0
    %1769 = vmatpush1.msra.mxu0 0.0
    %1770 = vmatprep.subr.mxu0 0.0
    %1771 = vmatpush1.msra.mxu0 0.0
    %1772 = vmatprep.subr.mxu0 0.0
    %1773 = vmatpush1.msra.mxu0 0.0
    %1774 = vmatprep.subr.mxu0 0.0
    %1775 = vmatpush1.msra.mxu0 0.0
    %1776 = vmatprep.subr.mxu0 0.0
    %1777 = vmatpush1.msra.mxu0 0.0
    %1778 = vmatprep.subr.mxu0 0.0
    %1779 = vmatpush1.msra.mxu0 0.0
    %1780 = vmatprep.subr.mxu0 0.0
    %1781 = vmatpush1.msra.mxu0 0.0
    %1782 = vmatprep.subr.mxu0 0.0
    %1783 = vmatpush1.msra.mxu0 0.0
    %1784 = vmatprep.subr.mxu0 0.0
    %1785 = vmatpush1.msra.mxu0 0.0
    %1786 = vmatprep.subr.mxu0 0.0
    %1787 = vmatpush1.msra.mxu0 0.0
    %1788 = vmatprep.subr.mxu0 0.0
    %1789 = vmatpush1.msra.mxu0 0.0
    %1790 = vmatprep.subr.mxu0 0.0
    %1791 = vmatpush1.msra.mxu0 0.0
    %1792 = vmatprep.subr.mxu0 0.0
    %1793 = vmatpush1.msra.mxu0 0.0
    %1794 = vmatprep.subr.mxu0 0.0
    %1795 = vmatpush1.msra.mxu0 0.0
    %1796 = vmatprep.subr.mxu0 0.0
    %1797 = vmatpush1.msra.mxu0 0.0
    %1798 = vmatprep.subr.mxu0 0.0
    %1799 = vmatpush1.msra.mxu0 0.0
    %1800 = vmatprep.subr.mxu0 0.0
    %1801 = vmatpush1.msra.mxu0 0.0
    %1802 = vmatprep.subr.mxu0 0.0
    %1803 = vmatpush1.msra.mxu0 0.0
    %1804 = vmatprep.subr.mxu0 0.0
    %1805 = vmatpush1.msra.mxu0 0.0
    %1806 = vmatprep.mubr.f32.mxu0 0.0
    %1807 = vmatmul.mubr.f32.gmra.mrb[0].mxu0 %v1740
    %v1808 = vpop.f32.mrb[0].mxu0
    %v1809 = vadd.f32 %v1243, %v1808
    %v1810 = vpop.f32.mrb[0].mxu0
    %1811 = vdwg.mxu0
    %v1813 = vrot.slane %v1809, 5
    %v1815 = vadd.f32 %v1317, %v1813
    %v1816 = vxor.u32 %v1815, 2147483648
    %v1817 = vmul.f32 %v1816, 1.442695
    %v1818 = vpow.pop %v1817
    %v1819 = vadd.f32 %v1818, 1.0
    %v1820 = vrcp.pop %v1819
    %v1821 = vmul.f32 1.0, %v1820
    %1822 = vrot.lane.b32.xlu0 %v1813, 64
    %v1823 = vpop.permute.xlu0 %1822
    %v1825 = vmul.f32 %v1821, %v1823
    %1827 = vrot.lane.b32.xlu0 %v1825, 64
    %v1828 = vpop.permute.xlu0 %1827
    %v1830 = vadd.f32 %v1317, %v1828
    %v1831 = vtanh.pop %v1830
    %v1832 = vsub.f32 1.0, %v1821
    %1834 = vrot.lane.b32.xlu0 %v1831, 96
    %v1835 = vpop.permute.xlu0 %1834
    %v1837 = vmul.f32 %v1832, %v1835
    %v1838 = vrot.slane %v1735, 1
    %v1840 = vmul.f32 %v1821, %v1838
    %v1841 = vadd.f32 %v1837, %v1840
    %v1843 = vrot.slane %v1841, 3
    %1844 = vrot.lane.b32.xlu0 %v1843, 96
    %v1845 = vpop.permute.xlu0 %1844
    %v1846 = vsel %vm302, %v1845, 0
    %1848 = vmatprep.subr.mxu0 0.0
    %1849 = vmatpush1.msra.mxu0 %v1236
    %1850 = vmatprep.subr.mxu0 0.0
    %1851 = vmatpush1.msra.mxu0 %v1237
    %1852 = vmatprep.subr.mxu0 0.0
    %1853 = vmatpush1.msra.mxu0 %v1238
    %1854 = vmatprep.subr.mxu0 0.0
    %1855 = vmatpush1.msra.mxu0 %v1239
    %1856 = vmatprep.subr.mxu0 0.0
    %1857 = vmatpush1.msra.mxu0 0.0
    %1858 = vmatprep.subr.mxu0 0.0
    %1859 = vmatpush1.msra.mxu0 0.0
    %1860 = vmatprep.subr.mxu0 0.0
    %1861 = vmatpush1.msra.mxu0 0.0
    %1862 = vmatprep.subr.mxu0 0.0
    %1863 = vmatpush1.msra.mxu0 0.0
    %1864 = vmatprep.subr.mxu0 0.0
    %1865 = vmatpush1.msra.mxu0 0.0
    %1866 = vmatprep.subr.mxu0 0.0
    %1867 = vmatpush1.msra.mxu0 0.0
    %1868 = vmatprep.subr.mxu0 0.0
    %1869 = vmatpush1.msra.mxu0 0.0
    %1870 = vmatprep.subr.mxu0 0.0
    %1871 = vmatpush1.msra.mxu0 0.0
    %1872 = vmatprep.subr.mxu0 0.0
    %1873 = vmatpush1.msra.mxu0 0.0
    %1874 = vmatprep.subr.mxu0 0.0
    %1875 = vmatpush1.msra.mxu0 0.0
    %1876 = vmatprep.subr.mxu0 0.0
    %1877 = vmatpush1.msra.mxu0 0.0
    %1878 = vmatprep.subr.mxu0 0.0
    %1879 = vmatpush1.msra.mxu0 0.0
    %1880 = vmatprep.subr.mxu0 0.0
    %1881 = vmatpush1.msra.mxu0 0.0
    %1882 = vmatprep.subr.mxu0 0.0
    %1883 = vmatpush1.msra.mxu0 0.0
    %1884 = vmatprep.subr.mxu0 0.0
    %1885 = vmatpush1.msra.mxu0 0.0
    %1886 = vmatprep.subr.mxu0 0.0
    %1887 = vmatpush1.msra.mxu0 0.0
    %1888 = vmatprep.subr.mxu0 0.0
    %1889 = vmatpush1.msra.mxu0 0.0
    %1890 = vmatprep.subr.mxu0 0.0
    %1891 = vmatpush1.msra.mxu0 0.0
    %1892 = vmatprep.subr.mxu0 0.0
    %1893 = vmatpush1.msra.mxu0 0.0
    %1894 = vmatprep.subr.mxu0 0.0
    %1895 = vmatpush1.msra.mxu0 0.0
    %1896 = vmatprep.subr.mxu0 0.0
    %1897 = vmatpush1.msra.mxu0 0.0
    %1898 = vmatprep.subr.mxu0 0.0
    %1899 = vmatpush1.msra.mxu0 0.0
    %1900 = vmatprep.subr.mxu0 0.0
    %1901 = vmatpush1.msra.mxu0 0.0
    %1902 = vmatprep.subr.mxu0 0.0
    %1903 = vmatpush1.msra.mxu0 0.0
    %1904 = vmatprep.subr.mxu0 0.0
    %1905 = vmatpush1.msra.mxu0 0.0
    %1906 = vmatprep.subr.mxu0 0.0
    %1907 = vmatpush1.msra.mxu0 0.0
    %1908 = vmatprep.subr.mxu0 0.0
    %1909 = vmatpush1.msra.mxu0 0.0
    %1910 = vmatprep.subr.mxu0 0.0
    %1911 = vmatpush1.msra.mxu0 0.0
    %1912 = vmatprep.mubr.f32.mxu0 0.0
    %1913 = vmatmul.mubr.f32.gmra.mrb[0].mxu0 %v1846
    %v1914 = vpop.f32.mrb[0].mxu0
    %v1915 = vadd.f32 %v1243, %v1914
    %v1916 = vpop.f32.mrb[0].mxu0
    %1917 = vdwg.mxu0
    %v1919 = vrot.slane %v1915, 6
    %v1921 = vadd.f32 %v1317, %v1919
    %v1922 = vxor.u32 %v1921, 2147483648
    %v1923 = vmul.f32 %v1922, 1.442695
    %v1924 = vpow.pop %v1923
    %v1925 = vadd.f32 %v1924, 1.0
    %v1926 = vrcp.pop %v1925
    %v1927 = vmul.f32 1.0, %v1926
    %1928 = vrot.lane.b32.xlu0 %v1919, 64
    %v1929 = vpop.permute.xlu0 %1928
    %v1931 = vmul.f32 %v1927, %v1929
    %1933 = vrot.lane.b32.xlu0 %v1931, 64
    %v1934 = vpop.permute.xlu0 %1933
    %v1936 = vadd.f32 %v1317, %v1934
    %v1937 = vtanh.pop %v1936
    %v1938 = vsub.f32 1.0, %v1927
    %1940 = vrot.lane.b32.xlu0 %v1937, 96
    %v1941 = vpop.permute.xlu0 %1940
    %v1943 = vmul.f32 %v1938, %v1941
    %v1944 = vrot.slane %v1841, 1
    %v1946 = vmul.f32 %v1927, %v1944
    %v1947 = vadd.f32 %v1943, %v1946
    %v1949 = vrot.slane %v1947, 2
    %1950 = vrot.lane.b32.xlu0 %v1949, 96
    %v1951 = vpop.permute.xlu0 %1950
    %v1952 = vsel %vm302, %v1951, 0
    %1954 = vmatprep.subr.mxu0 0.0
    %1955 = vmatpush1.msra.mxu0 %v1236
    %1956 = vmatprep.subr.mxu0 0.0
    %1957 = vmatpush1.msra.mxu0 %v1237
    %1958 = vmatprep.subr.mxu0 0.0
    %1959 = vmatpush1.msra.mxu0 %v1238
    %1960 = vmatprep.subr.mxu0 0.0
    %1961 = vmatpush1.msra.mxu0 %v1239
    %1962 = vmatprep.subr.mxu0 0.0
    %1963 = vmatpush1.msra.mxu0 0.0
    %1964 = vmatprep.subr.mxu0 0.0
    %1965 = vmatpush1.msra.mxu0 0.0
    %1966 = vmatprep.subr.mxu0 0.0
    %1967 = vmatpush1.msra.mxu0 0.0
    %1968 = vmatprep.subr.mxu0 0.0
    %1969 = vmatpush1.msra.mxu0 0.0
    %1970 = vmatprep.subr.mxu0 0.0
    %1971 = vmatpush1.msra.mxu0 0.0
    %1972 = vmatprep.subr.mxu0 0.0
    %1973 = vmatpush1.msra.mxu0 0.0
    %1974 = vmatprep.subr.mxu0 0.0
    %1975 = vmatpush1.msra.mxu0 0.0
    %1976 = vmatprep.subr.mxu0 0.0
    %1977 = vmatpush1.msra.mxu0 0.0
    %1978 = vmatprep.subr.mxu0 0.0
    %1979 = vmatpush1.msra.mxu0 0.0
    %1980 = vmatprep.subr.mxu0 0.0
    %1981 = vmatpush1.msra.mxu0 0.0
    %1982 = vmatprep.subr.mxu0 0.0
    %1983 = vmatpush1.msra.mxu0 0.0
    %1984 = vmatprep.subr.mxu0 0.0
    %1985 = vmatpush1.msra.mxu0 0.0
    %1986 = vmatprep.subr.mxu0 0.0
    %1987 = vmatpush1.msra.mxu0 0.0
    %1988 = vmatprep.subr.mxu0 0.0
    %1989 = vmatpush1.msra.mxu0 0.0
    %1990 = vmatprep.subr.mxu0 0.0
    %1991 = vmatpush1.msra.mxu0 0.0
    %1992 = vmatprep.subr.mxu0 0.0
    %1993 = vmatpush1.msra.mxu0 0.0
    %1994 = vmatprep.subr.mxu0 0.0
    %1995 = vmatpush1.msra.mxu0 0.0
    %1996 = vmatprep.subr.mxu0 0.0
    %1997 = vmatpush1.msra.mxu0 0.0
    %1998 = vmatprep.subr.mxu0 0.0
    %1999 = vmatpush1.msra.mxu0 0.0
    %2000 = vmatprep.subr.mxu0 0.0
    %2001 = vmatpush1.msra.mxu0 0.0
    %2002 = vmatprep.subr.mxu0 0.0
    %2003 = vmatpush1.msra.mxu0 0.0
    %2004 = vmatprep.subr.mxu0 0.0
    %2005 = vmatpush1.msra.mxu0 0.0
    %2006 = vmatprep.subr.mxu0 0.0
    %2007 = vmatpush1.msra.mxu0 0.0
    %2008 = vmatprep.subr.mxu0 0.0
    %2009 = vmatpush1.msra.mxu0 0.0
    %2010 = vmatprep.subr.mxu0 0.0
    %2011 = vmatpush1.msra.mxu0 0.0
    %2012 = vmatprep.subr.mxu0 0.0
    %2013 = vmatpush1.msra.mxu0 0.0
    %2014 = vmatprep.subr.mxu0 0.0
    %2015 = vmatpush1.msra.mxu0 0.0
    %2016 = vmatprep.subr.mxu0 0.0
    %2017 = vmatpush1.msra.mxu0 0.0
    %2018 = vmatprep.mubr.f32.mxu0 0.0
    %2019 = vmatmul.mubr.f32.gmra.mrb[0].mxu0 %v1952
    %v2020 = vpop.f32.mrb[0].mxu0
    %v2021 = vadd.f32 %v1243, %v2020
    %v2022 = vpop.f32.mrb[0].mxu0
    %2023 = vdwg.mxu0
    %v2025 = vrot.slane %v2021, 7
    %v2027 = vadd.f32 %v1317, %v2025
    %v2028 = vxor.u32 %v2027, 2147483648
    %v2029 = vmul.f32 %v2028, 1.442695
    %v2030 = vpow.pop %v2029
    %v2031 = vadd.f32 %v2030, 1.0
    %v2032 = vrcp.pop %v2031
    %v2033 = vmul.f32 1.0, %v2032
    %2034 = vrot.lane.b32.xlu0 %v2025, 64
    %v2035 = vpop.permute.xlu0 %2034
    %v2037 = vmul.f32 %v2033, %v2035
    %2039 = vrot.lane.b32.xlu0 %v2037, 64
    %v2040 = vpop.permute.xlu0 %2039
    %v2042 = vadd.f32 %v1317, %v2040
    %v2043 = vtanh.pop %v2042
    %v2044 = vsub.f32 1.0, %v2033
    %2046 = vrot.lane.b32.xlu0 %v2043, 96
    %v2047 = vpop.permute.xlu0 %2046
    %v2049 = vmul.f32 %v2044, %v2047
    %v2050 = vrot.slane %v1947, 1
    %v2052 = vmul.f32 %v2033, %v2050
    %v2053 = vadd.f32 %v2049, %v2052
    %v2055 = vrot.slane %v2053, 1
    %2056 = vrot.lane.b32.xlu0 %v2055, 96
    %v2057 = vpop.permute.xlu0 %2056
    %v2058 = vsel %vm302, %v2057, 0
    %2060 = vmatprep.subr.mxu0 0.0
    %2061 = vmatpush1.msra.mxu0 %v1236
    %2062 = vmatprep.subr.mxu0 0.0
    %2063 = vmatpush1.msra.mxu0 %v1237
    %2064 = vmatprep.subr.mxu0 0.0
    %2065 = vmatpush1.msra.mxu0 %v1238
    %2066 = vmatprep.subr.mxu0 0.0
    %2067 = vmatpush1.msra.mxu0 %v1239
    %2068 = vmatprep.subr.mxu0 0.0
    %2069 = vmatpush1.msra.mxu0 0.0
    %2070 = vmatprep.subr.mxu0 0.0
    %2071 = vmatpush1.msra.mxu0 0.0
    %2072 = vmatprep.subr.mxu0 0.0
    %2073 = vmatpush1.msra.mxu0 0.0
    %2074 = vmatprep.subr.mxu0 0.0
    %2075 = vmatpush1.msra.mxu0 0.0
    %2076 = vmatprep.subr.mxu0 0.0
    %2077 = vmatpush1.msra.mxu0 0.0
    %2078 = vmatprep.subr.mxu0 0.0
    %2079 = vmatpush1.msra.mxu0 0.0
    %2080 = vmatprep.subr.mxu0 0.0
    %2081 = vmatpush1.msra.mxu0 0.0
    %2082 = vmatprep.subr.mxu0 0.0
    %2083 = vmatpush1.msra.mxu0 0.0
    %2084 = vmatprep.subr.mxu0 0.0
    %2085 = vmatpush1.msra.mxu0 0.0
    %2086 = vmatprep.subr.mxu0 0.0
    %2087 = vmatpush1.msra.mxu0 0.0
    %2088 = vmatprep.subr.mxu0 0.0
    %2089 = vmatpush1.msra.mxu0 0.0
    %2090 = vmatprep.subr.mxu0 0.0
    %2091 = vmatpush1.msra.mxu0 0.0
    %2092 = vmatprep.subr.mxu0 0.0
    %2093 = vmatpush1.msra.mxu0 0.0
    %2094 = vmatprep.subr.mxu0 0.0
    %2095 = vmatpush1.msra.mxu0 0.0
    %2096 = vmatprep.subr.mxu0 0.0
    %2097 = vmatpush1.msra.mxu0 0.0
    %2098 = vmatprep.subr.mxu0 0.0
    %2099 = vmatpush1.msra.mxu0 0.0
    %2100 = vmatprep.subr.mxu0 0.0
    %2101 = vmatpush1.msra.mxu0 0.0
    %2102 = vmatprep.subr.mxu0 0.0
    %2103 = vmatpush1.msra.mxu0 0.0
    %2104 = vmatprep.subr.mxu0 0.0
    %2105 = vmatpush1.msra.mxu0 0.0
    %2106 = vmatprep.subr.mxu0 0.0
    %2107 = vmatpush1.msra.mxu0 0.0
    %2108 = vmatprep.subr.mxu0 0.0
    %2109 = vmatpush1.msra.mxu0 0.0
    %2110 = vmatprep.subr.mxu0 0.0
    %2111 = vmatpush1.msra.mxu0 0.0
    %2112 = vmatprep.subr.mxu0 0.0
    %2113 = vmatpush1.msra.mxu0 0.0
    %2114 = vmatprep.subr.mxu0 0.0
    %2115 = vmatpush1.msra.mxu0 0.0
    %2116 = vmatprep.subr.mxu0 0.0
    %2117 = vmatpush1.msra.mxu0 0.0
    %2118 = vmatprep.subr.mxu0 0.0
    %2119 = vmatpush1.msra.mxu0 0.0
    %2120 = vmatprep.subr.mxu0 0.0
    %2121 = vmatpush1.msra.mxu0 0.0
    %2122 = vmatprep.subr.mxu0 0.0
    %2123 = vmatpush1.msra.mxu0 0.0
    %2124 = vmatprep.mubr.f32.mxu0 0.0
    %2125 = vmatmul.mubr.f32.gmra.mrb[0].mxu0 %v2058
    %v2126 = vpop.f32.mrb[0].mxu0
    %v2127 = vadd.f32 %v1243, %v2126
    %v2128 = vpop.f32.mrb[0].mxu0
    %2129 = vdwg.mxu0
    %v2130 = vadd.f32 %v1317, %v2127
    %v2131 = vxor.u32 %v2130, 2147483648
    %v2132 = vmul.f32 %v2131, 1.442695
    %v2133 = vpow.pop %v2132
    %v2134 = vadd.f32 %v2133, 1.0
    %v2135 = vrcp.pop %v2134
    %v2136 = vmul.f32 1.0, %v2135
    %2138 = vrot.lane.b32.xlu0 %v2127, 64
    %v2139 = vpop.permute.xlu0 %2138
    %v2141 = vmul.f32 %v2136, %v2139
    %2143 = vrot.lane.b32.xlu0 %v2141, 64
    %v2144 = vpop.permute.xlu0 %2143
    %v2146 = vadd.f32 %v1317, %v2144
    %v2147 = vtanh.pop %v2146
    %v2148 = vsub.f32 1.0, %v2136
    %2150 = vrot.lane.b32.xlu0 %v2147, 96
    %v2151 = vpop.permute.xlu0 %2150
    %v2153 = vmul.f32 %v2148, %v2151
    %v2155 = vmul.f32 %v2136, %v2055
    %v2156 = vadd.f32 %v2153, %v2155
    %v2157 = vsel %vm1216, %v2156, %v2053
    %v2158 = vsel %vm1218, %v2157, %v1947
    %v2159 = vsel %vm1220, %v2158, %v1841
    %v2160 = vsel %vm1222, %v2159, %v1735
    %v2161 = vsel %vm1224, %v2160, %v1629
    %v2162 = vsel %vm1226, %v2161, %v1523
    %v2163 = vsel %vm1228, %v2162, %v1417
    %2165 = vrot.lane.b32.xlu0 %v1229, 96
    %v2166 = vpop.permute.xlu0 %2165
    %v2168 = vsel %vm302, %v2166, %v2163
    %v2169 = vld [vmem:[%s5] sm:$0xff]
    %v2170 = vld [vmem:[%s5 + $0x8] sm:$0xff]
    %v2171 = vld [vmem:[%s5 + $0x10] sm:$0xff]
    %v2172 = vld [vmem:[%s5 + $0x18] sm:$0xff]
    %v2173 = vld [vmem:[%s5 + $0x20] sm:$0xff]
    %v2174 = vld [vmem:[%s5 + $0x28] sm:$0xff]
    %v2175 = vld [vmem:[%s5 + $0x30] sm:$0xff]
    %v2176 = vld [vmem:[%s5 + $0x38] sm:$0xff]
    %v2177 = vld [vmem:[#allocation7] sm:$0xff]
    %v2178 = vld [vmem:[#allocation7 + $0x8] sm:$0xff]
    %v2179 = vld [vmem:[#allocation7 + $0x10] sm:$0xff]
    %v2180 = vld [vmem:[#allocation7 + $0x18] sm:$0xff]
    %v2181 = vld [vmem:[#allocation9] sm:$0x1]
    %v2182 = vld [vmem:[#allocation10] sm:$0x1]
    %v2184 = vlaneseq
    %v2185 = vshrl.u32 %v2184, 7
    %v2186 = vsub.s32 0, %v2185
    %v2187 = vrot.slane %v2181, %v2186
    %vm2189 = vcmask 523264
    %v2191 = vsel %vm2189, %v2168, 0
    %2193 = vmatprep.subr.mxu0 0.0
    %2194 = vmatpush1.msra.mxu0 %v2169
    %2195 = vmatprep.subr.mxu0 0.0
    %2196 = vmatpush1.msra.mxu0 %v2170
    %2197 = vmatprep.subr.mxu0 0.0
    %2198 = vmatpush1.msra.mxu0 %v2171
    %2199 = vmatprep.subr.mxu0 0.0
    %2200 = vmatpush1.msra.mxu0 %v2172
    %2201 = vmatprep.subr.mxu0 0.0
    %2202 = vmatpush1.msra.mxu0 %v2173
    %2203 = vmatprep.subr.mxu0 0.0
    %2204 = vmatpush1.msra.mxu0 %v2174
    %2205 = vmatprep.subr.mxu0 0.0
    %2206 = vmatpush1.msra.mxu0 %v2175
    %2207 = vmatprep.subr.mxu0 0.0
    %2208 = vmatpush1.msra.mxu0 %v2176
    %2209 = vmatprep.subr.mxu0 0.0
    %2210 = vmatpush1.msra.mxu0 0.0
    %2211 = vmatprep.subr.mxu0 0.0
    %2212 = vmatpush1.msra.mxu0 0.0
    %2213 = vmatprep.subr.mxu0 0.0
    %2214 = vmatpush1.msra.mxu0 0.0
    %2215 = vmatprep.subr.mxu0 0.0
    %2216 = vmatpush1.msra.mxu0 0.0
    %2217 = vmatprep.subr.mxu0 0.0
    %2218 = vmatpush1.msra.mxu0 0.0
    %2219 = vmatprep.subr.mxu0 0.0
    %2220 = vmatpush1.msra.mxu0 0.0
    %2221 = vmatprep.subr.mxu0 0.0
    %2222 = vmatpush1.msra.mxu0 0.0
    %2223 = vmatprep.subr.mxu0 0.0
    %2224 = vmatpush1.msra.mxu0 0.0
    %2225 = vmatprep.subr.mxu0 0.0
    %2226 = vmatpush1.msra.mxu0 0.0
    %2227 = vmatprep.subr.mxu0 0.0
    %2228 = vmatpush1.msra.mxu0 0.0
    %2229 = vmatprep.subr.mxu0 0.0
    %2230 = vmatpush1.msra.mxu0 0.0
    %2231 = vmatprep.subr.mxu0 0.0
    %2232 = vmatpush1.msra.mxu0 0.0
    %2233 = vmatprep.subr.mxu0 0.0
    %2234 = vmatpush1.msra.mxu0 0.0
    %2235 = vmatprep.subr.mxu0 0.0
    %2236 = vmatpush1.msra.mxu0 0.0
    %2237 = vmatprep.subr.mxu0 0.0
    %2238 = vmatpush1.msra.mxu0 0.0
    %2239 = vmatprep.subr.mxu0 0.0
    %2240 = vmatpush1.msra.mxu0 0.0
    %2241 = vmatprep.subr.mxu0 0.0
    %2242 = vmatpush1.msra.mxu0 0.0
    %2243 = vmatprep.subr.mxu0 0.0
    %2244 = vmatpush1.msra.mxu0 0.0
    %2245 = vmatprep.subr.mxu0 0.0
    %2246 = vmatpush1.msra.mxu0 0.0
    %2247 = vmatprep.subr.mxu0 0.0
    %2248 = vmatpush1.msra.mxu0 0.0
    %2249 = vmatprep.subr.mxu0 0.0
    %2250 = vmatpush1.msra.mxu0 0.0
    %2251 = vmatprep.subr.mxu0 0.0
    %2252 = vmatpush1.msra.mxu0 0.0
    %2253 = vmatprep.subr.mxu0 0.0
    %2254 = vmatpush1.msra.mxu0 0.0
    %2255 = vmatprep.subr.mxu0 0.0
    %2256 = vmatpush1.msra.mxu0 0.0
    %2257 = vmatprep.mubr.f32.mxu0 0.0
    %2258 = vmatmul.mubr.f32.gmra.mrb[0].mxu0 %v2191
    %v2259 = vpop.f32.mrb[0].mxu0
    %v2260 = vadd.f32 %v2187, %v2259
    %v2261 = vpop.f32.mrb[0].mxu0
    %2262 = vdwg.mxu0
    %2263 = vmatprep.subr.mxu0 0.0
    %2264 = vmatpush1.msra.mxu0 %v2177
    %2265 = vmatprep.subr.mxu0 0.0
    %2266 = vmatpush1.msra.mxu0 %v2178
    %2267 = vmatprep.subr.mxu0 0.0
    %2268 = vmatpush1.msra.mxu0 %v2179
    %2269 = vmatprep.subr.mxu0 0.0
    %2270 = vmatpush1.msra.mxu0 %v2180
    %2271 = vmatprep.subr.mxu0 0.0
    %2272 = vmatpush1.msra.mxu0 0.0
    %2273 = vmatprep.subr.mxu0 0.0
    %2274 = vmatpush1.msra.mxu0 0.0
    %2275 = vmatprep.subr.mxu0 0.0
    %2276 = vmatpush1.msra.mxu0 0.0
    %2277 = vmatprep.subr.mxu0 0.0
    %2278 = vmatpush1.msra.mxu0 0.0
    %2279 = vmatprep.subr.mxu0 0.0
    %2280 = vmatpush1.msra.mxu0 0.0
    %2281 = vmatprep.subr.mxu0 0.0
    %2282 = vmatpush1.msra.mxu0 0.0
    %2283 = vmatprep.subr.mxu0 0.0
    %2284 = vmatpush1.msra.mxu0 0.0
    %2285 = vmatprep.subr.mxu0 0.0
    %2286 = vmatpush1.msra.mxu0 0.0
    %2287 = vmatprep.subr.mxu0 0.0
    %2288 = vmatpush1.msra.mxu0 0.0
    %2289 = vmatprep.subr.mxu0 0.0
    %2290 = vmatpush1.msra.mxu0 0.0
    %2291 = vmatprep.subr.mxu0 0.0
    %2292 = vmatpush1.msra.mxu0 0.0
    %2293 = vmatprep.subr.mxu0 0.0
    %2294 = vmatpush1.msra.mxu0 0.0
    %2295 = vmatprep.subr.mxu0 0.0
    %2296 = vmatpush1.msra.mxu0 0.0
    %2297 = vmatprep.subr.mxu0 0.0
    %2298 = vmatpush1.msra.mxu0 0.0
    %2299 = vmatprep.subr.mxu0 0.0
    %2300 = vmatpush1.msra.mxu0 0.0
    %2301 = vmatprep.subr.mxu0 0.0
    %2302 = vmatpush1.msra.mxu0 0.0
    %2303 = vmatprep.subr.mxu0 0.0
    %2304 = vmatpush1.msra.mxu0 0.0
    %2305 = vmatprep.subr.mxu0 0.0
    %2306 = vmatpush1.msra.mxu0 0.0
    %2307 = vmatprep.subr.mxu0 0.0
    %2308 = vmatpush1.msra.mxu0 0.0
    %2309 = vmatprep.subr.mxu0 0.0
    %2310 = vmatpush1.msra.mxu0 0.0
    %2311 = vmatprep.subr.mxu0 0.0
    %2312 = vmatpush1.msra.mxu0 0.0
    %2313 = vmatprep.subr.mxu0 0.0
    %2314 = vmatpush1.msra.mxu0 0.0
    %2315 = vmatprep.subr.mxu0 0.0
    %2316 = vmatpush1.msra.mxu0 0.0
    %2317 = vmatprep.subr.mxu0 0.0
    %2318 = vmatpush1.msra.mxu0 0.0
    %2319 = vmatprep.subr.mxu0 0.0
    %2320 = vmatpush1.msra.mxu0 0.0
    %2321 = vmatprep.subr.mxu0 0.0
    %2322 = vmatpush1.msra.mxu0 0.0
    %2323 = vmatprep.subr.mxu0 0.0
    %2324 = vmatpush1.msra.mxu0 0.0
    %2325 = vmatprep.subr.mxu0 0.0
    %2326 = vmatpush1.msra.mxu0 0.0
    %2327 = vmatprep.mubr.f32.mxu0 0.0
    %2328 = vmatmul.mubr.f32.gmra.mrb[0].mxu0 %v377
    %v2329 = vpop.f32.mrb[0].mxu0
    %v2330 = vadd.f32 %v2182, %v2329
    %v2331 = vpop.f32.mrb[0].mxu0
    %2332 = vdwg.mxu0
    %v2333 = vadd.f32 %v2260, %v2330
    %v2334 = vxor.u32 %v2333, 2147483648
    %v2335 = vmul.f32 %v2334, 1.442695
    %v2336 = vpow.pop %v2335
    %v2337 = vadd.f32 %v2336, 1.0
    %v2338 = vrcp.pop %v2337
    %v2339 = vmul.f32 1.0, %v2338
    %2341 = vrot.lane.b32.xlu0 %v2330, 64
    %v2342 = vpop.permute.xlu0 %2341
    %v2344 = vmul.f32 %v2339, %v2342
    %2346 = vrot.lane.b32.xlu0 %v2344, 64
    %v2347 = vpop.permute.xlu0 %2346
    %v2349 = vadd.f32 %v2260, %v2347
    %v2350 = vtanh.pop %v2349
    %v2351 = vsub.f32 1.0, %v2339
    %2353 = vrot.lane.b32.xlu0 %v2350, 96
    %v2354 = vpop.permute.xlu0 %2353
    %v2356 = vmul.f32 %v2351, %v2354
    %v2357 = vmul.f32 %v2339, 0.0
    %v2358 = vadd.f32 %v2356, %v2357
    %2360 = vrot.lane.b32.xlu0 %v2358, 96
    %v2361 = vpop.permute.xlu0 %2360
    %v2362 = vsel %vm302, %v2361, 0
    %2364 = vmatprep.subr.mxu0 0.0
    %2365 = vmatpush1.msra.mxu0 %v2177
    %2366 = vmatprep.subr.mxu0 0.0
    %2367 = vmatpush1.msra.mxu0 %v2178
    %2368 = vmatprep.subr.mxu0 0.0
    %2369 = vmatpush1.msra.mxu0 %v2179
    %2370 = vmatprep.subr.mxu0 0.0
    %2371 = vmatpush1.msra.mxu0 %v2180
    %2372 = vmatprep.subr.mxu0 0.0
    %2373 = vmatpush1.msra.mxu0 0.0
    %2374 = vmatprep.subr.mxu0 0.0
    %2375 = vmatpush1.msra.mxu0 0.0
    %2376 = vmatprep.subr.mxu0 0.0
    %2377 = vmatpush1.msra.mxu0 0.0
    %2378 = vmatprep.subr.mxu0 0.0
    %2379 = vmatpush1.msra.mxu0 0.0
    %2380 = vmatprep.subr.mxu0 0.0
    %2381 = vmatpush1.msra.mxu0 0.0
    %2382 = vmatprep.subr.mxu0 0.0
    %2383 = vmatpush1.msra.mxu0 0.0
    %2384 = vmatprep.subr.mxu0 0.0
    %2385 = vmatpush1.msra.mxu0 0.0
    %2386 = vmatprep.subr.mxu0 0.0
    %2387 = vmatpush1.msra.mxu0 0.0
    %2388 = vmatprep.subr.mxu0 0.0
    %2389 = vmatpush1.msra.mxu0 0.0
    %2390 = vmatprep.subr.mxu0 0.0
    %2391 = vmatpush1.msra.mxu0 0.0
    %2392 = vmatprep.subr.mxu0 0.0
    %2393 = vmatpush1.msra.mxu0 0.0
    %2394 = vmatprep.subr.mxu0 0.0
    %2395 = vmatpush1.msra.mxu0 0.0
    %2396 = vmatprep.subr.mxu0 0.0
    %2397 = vmatpush1.msra.mxu0 0.0
    %2398 = vmatprep.subr.mxu0 0.0
    %2399 = vmatpush1.msra.mxu0 0.0
    %2400 = vmatprep.subr.mxu0 0.0
    %2401 = vmatpush1.msra.mxu0 0.0
    %2402 = vmatprep.subr.mxu0 0.0
    %2403 = vmatpush1.msra.mxu0 0.0
    %2404 = vmatprep.subr.mxu0 0.0
    %2405 = vmatpush1.msra.mxu0 0.0
    %2406 = vmatprep.subr.mxu0 0.0
    %2407 = vmatpush1.msra.mxu0 0.0
    %2408 = vmatprep.subr.mxu0 0.0
    %2409 = vmatpush1.msra.mxu0 0.0
    %2410 = vmatprep.subr.mxu0 0.0
    %2411 = vmatpush1.msra.mxu0 0.0
    %2412 = vmatprep.subr.mxu0 0.0
    %2413 = vmatpush1.msra.mxu0 0.0
    %2414 = vmatprep.subr.mxu0 0.0
    %2415 = vmatpush1.msra.mxu0 0.0
    %2416 = vmatprep.subr.mxu0 0.0
    %2417 = vmatpush1.msra.mxu0 0.0
    %2418 = vmatprep.subr.mxu0 0.0
    %2419 = vmatpush1.msra.mxu0 0.0
    %2420 = vmatprep.subr.mxu0 0.0
    %2421 = vmatpush1.msra.mxu0 0.0
    %2422 = vmatprep.subr.mxu0 0.0
    %2423 = vmatpush1.msra.mxu0 0.0
    %2424 = vmatprep.subr.mxu0 0.0
    %2425 = vmatpush1.msra.mxu0 0.0
    %2426 = vmatprep.subr.mxu0 0.0
    %2427 = vmatpush1.msra.mxu0 0.0
    %2428 = vmatprep.mubr.f32.mxu0 0.0
    %2429 = vmatmul.mubr.f32.gmra.mrb[0].mxu0 %v2362
    %v2430 = vpop.f32.mrb[0].mxu0
    %v2431 = vadd.f32 %v2182, %v2430
    %v2432 = vpop.f32.mrb[0].mxu0
    %2433 = vdwg.mxu0
    %v2435 = vrot.slane %v2431, 7
    %v2437 = vadd.f32 %v2260, %v2435
    %v2438 = vxor.u32 %v2437, 2147483648
    %v2439 = vmul.f32 %v2438, 1.442695
    %v2440 = vpow.pop %v2439
    %v2441 = vadd.f32 %v2440, 1.0
    %v2442 = vrcp.pop %v2441
    %v2443 = vmul.f32 1.0, %v2442
    %2444 = vrot.lane.b32.xlu0 %v2435, 64
    %v2445 = vpop.permute.xlu0 %2444
    %v2447 = vmul.f32 %v2443, %v2445
    %2449 = vrot.lane.b32.xlu0 %v2447, 64
    %v2450 = vpop.permute.xlu0 %2449
    %v2452 = vadd.f32 %v2260, %v2450
    %v2453 = vtanh.pop %v2452
    %v2454 = vsub.f32 1.0, %v2443
    %2456 = vrot.lane.b32.xlu0 %v2453, 96
    %v2457 = vpop.permute.xlu0 %2456
    %v2459 = vmul.f32 %v2454, %v2457
    %v2460 = vrot.slane %v2358, 7
    %v2462 = vmul.f32 %v2443, %v2460
    %v2463 = vadd.f32 %v2459, %v2462
    %v2465 = vrot.slane %v2463, 1
    %2466 = vrot.lane.b32.xlu0 %v2465, 96
    %v2467 = vpop.permute.xlu0 %2466
    %v2468 = vsel %vm302, %v2467, 0
    %2470 = vmatprep.subr.mxu0 0.0
    %2471 = vmatpush1.msra.mxu0 %v2177
    %2472 = vmatprep.subr.mxu0 0.0
    %2473 = vmatpush1.msra.mxu0 %v2178
    %2474 = vmatprep.subr.mxu0 0.0
    %2475 = vmatpush1.msra.mxu0 %v2179
    %2476 = vmatprep.subr.mxu0 0.0
    %2477 = vmatpush1.msra.mxu0 %v2180
    %2478 = vmatprep.subr.mxu0 0.0
    %2479 = vmatpush1.msra.mxu0 0.0
    %2480 = vmatprep.subr.mxu0 0.0
    %2481 = vmatpush1.msra.mxu0 0.0
    %2482 = vmatprep.subr.mxu0 0.0
    %2483 = vmatpush1.msra.mxu0 0.0
    %2484 = vmatprep.subr.mxu0 0.0
    %2485 = vmatpush1.msra.mxu0 0.0
    %2486 = vmatprep.subr.mxu0 0.0
    %2487 = vmatpush1.msra.mxu0 0.0
    %2488 = vmatprep.subr.mxu0 0.0
    %2489 = vmatpush1.msra.mxu0 0.0
    %2490 = vmatprep.subr.mxu0 0.0
    %2491 = vmatpush1.msra.mxu0 0.0
    %2492 = vmatprep.subr.mxu0 0.0
    %2493 = vmatpush1.msra.mxu0 0.0
    %2494 = vmatprep.subr.mxu0 0.0
    %2495 = vmatpush1.msra.mxu0 0.0
    %2496 = vmatprep.subr.mxu0 0.0
    %2497 = vmatpush1.msra.mxu0 0.0
    %2498 = vmatprep.subr.mxu0 0.0
    %2499 = vmatpush1.msra.mxu0 0.0
    %2500 = vmatprep.subr.mxu0 0.0
    %2501 = vmatpush1.msra.mxu0 0.0
    %2502 = vmatprep.subr.mxu0 0.0
    %2503 = vmatpush1.msra.mxu0 0.0
    %2504 = vmatprep.subr.mxu0 0.0
    %2505 = vmatpush1.msra.mxu0 0.0
    %2506 = vmatprep.subr.mxu0 0.0
    %2507 = vmatpush1.msra.mxu0 0.0
    %2508 = vmatprep.subr.mxu0 0.0
    %2509 = vmatpush1.msra.mxu0 0.0
    %2510 = vmatprep.subr.mxu0 0.0
    %2511 = vmatpush1.msra.mxu0 0.0
    %2512 = vmatprep.subr.mxu0 0.0
    %2513 = vmatpush1.msra.mxu0 0.0
    %2514 = vmatprep.subr.mxu0 0.0
    %2515 = vmatpush1.msra.mxu0 0.0
    %2516 = vmatprep.subr.mxu0 0.0
    %2517 = vmatpush1.msra.mxu0 0.0
    %2518 = vmatprep.subr.mxu0 0.0
    %2519 = vmatpush1.msra.mxu0 0.0
    %2520 = vmatprep.subr.mxu0 0.0
    %2521 = vmatpush1.msra.mxu0 0.0
    %2522 = vmatprep.subr.mxu0 0.0
    %2523 = vmatpush1.msra.mxu0 0.0
    %2524 = vmatprep.subr.mxu0 0.0
    %2525 = vmatpush1.msra.mxu0 0.0
    %2526 = vmatprep.subr.mxu0 0.0
    %2527 = vmatpush1.msra.mxu0 0.0
    %2528 = vmatprep.subr.mxu0 0.0
    %2529 = vmatpush1.msra.mxu0 0.0
    %2530 = vmatprep.subr.mxu0 0.0
    %2531 = vmatpush1.msra.mxu0 0.0
    %2532 = vmatprep.subr.mxu0 0.0
    %2533 = vmatpush1.msra.mxu0 0.0
    %2534 = vmatprep.mubr.f32.mxu0 0.0
    %2535 = vmatmul.mubr.f32.gmra.mrb[0].mxu0 %v2468
    %v2536 = vpop.f32.mrb[0].mxu0
    %v2537 = vadd.f32 %v2182, %v2536
    %v2538 = vpop.f32.mrb[0].mxu0
    %2539 = vdwg.mxu0
    %v2541 = vrot.slane %v2537, 6
    %v2543 = vadd.f32 %v2260, %v2541
    %v2544 = vxor.u32 %v2543, 2147483648
    %v2545 = vmul.f32 %v2544, 1.442695
    %v2546 = vpow.pop %v2545
    %v2547 = vadd.f32 %v2546, 1.0
    %v2548 = vrcp.pop %v2547
    %v2549 = vmul.f32 1.0, %v2548
    %2550 = vrot.lane.b32.xlu0 %v2541, 64
    %v2551 = vpop.permute.xlu0 %2550
    %v2553 = vmul.f32 %v2549, %v2551
    %2555 = vrot.lane.b32.xlu0 %v2553, 64
    %v2556 = vpop.permute.xlu0 %2555
    %v2558 = vadd.f32 %v2260, %v2556
    %v2559 = vtanh.pop %v2558
    %v2560 = vsub.f32 1.0, %v2549
    %2562 = vrot.lane.b32.xlu0 %v2559, 96
    %v2563 = vpop.permute.xlu0 %2562
    %v2565 = vmul.f32 %v2560, %v2563
    %v2566 = vrot.slane %v2463, 7
    %v2568 = vmul.f32 %v2549, %v2566
    %v2569 = vadd.f32 %v2565, %v2568
    %v2571 = vrot.slane %v2569, 2
    %2572 = vrot.lane.b32.xlu0 %v2571, 96
    %v2573 = vpop.permute.xlu0 %2572
    %v2574 = vsel %vm302, %v2573, 0
    %2576 = vmatprep.subr.mxu0 0.0
    %2577 = vmatpush1.msra.mxu0 %v2177
    %2578 = vmatprep.subr.mxu0 0.0
    %2579 = vmatpush1.msra.mxu0 %v2178
    %2580 = vmatprep.subr.mxu0 0.0
    %2581 = vmatpush1.msra.mxu0 %v2179
    %2582 = vmatprep.subr.mxu0 0.0
    %2583 = vmatpush1.msra.mxu0 %v2180
    %2584 = vmatprep.subr.mxu0 0.0
    %2585 = vmatpush1.msra.mxu0 0.0
    %2586 = vmatprep.subr.mxu0 0.0
    %2587 = vmatpush1.msra.mxu0 0.0
    %2588 = vmatprep.subr.mxu0 0.0
    %2589 = vmatpush1.msra.mxu0 0.0
    %2590 = vmatprep.subr.mxu0 0.0
    %2591 = vmatpush1.msra.mxu0 0.0
    %2592 = vmatprep.subr.mxu0 0.0
    %2593 = vmatpush1.msra.mxu0 0.0
    %2594 = vmatprep.subr.mxu0 0.0
    %2595 = vmatpush1.msra.mxu0 0.0
    %2596 = vmatprep.subr.mxu0 0.0
    %2597 = vmatpush1.msra.mxu0 0.0
    %2598 = vmatprep.subr.mxu0 0.0
    %2599 = vmatpush1.msra.mxu0 0.0
    %2600 = vmatprep.subr.mxu0 0.0
    %2601 = vmatpush1.msra.mxu0 0.0
    %2602 = vmatprep.subr.mxu0 0.0
    %2603 = vmatpush1.msra.mxu0 0.0
    %2604 = vmatprep.subr.mxu0 0.0
    %2605 = vmatpush1.msra.mxu0 0.0
    %2606 = vmatprep.subr.mxu0 0.0
    %2607 = vmatpush1.msra.mxu0 0.0
    %2608 = vmatprep.subr.mxu0 0.0
    %2609 = vmatpush1.msra.mxu0 0.0
    %2610 = vmatprep.subr.mxu0 0.0
    %2611 = vmatpush1.msra.mxu0 0.0
    %2612 = vmatprep.subr.mxu0 0.0
    %2613 = vmatpush1.msra.mxu0 0.0
    %2614 = vmatprep.subr.mxu0 0.0
    %2615 = vmatpush1.msra.mxu0 0.0
    %2616 = vmatprep.subr.mxu0 0.0
    %2617 = vmatpush1.msra.mxu0 0.0
    %2618 = vmatprep.subr.mxu0 0.0
    %2619 = vmatpush1.msra.mxu0 0.0
    %2620 = vmatprep.subr.mxu0 0.0
    %2621 = vmatpush1.msra.mxu0 0.0
    %2622 = vmatprep.subr.mxu0 0.0
    %2623 = vmatpush1.msra.mxu0 0.0
    %2624 = vmatprep.subr.mxu0 0.0
    %2625 = vmatpush1.msra.mxu0 0.0
    %2626 = vmatprep.subr.mxu0 0.0
    %2627 = vmatpush1.msra.mxu0 0.0
    %2628 = vmatprep.subr.mxu0 0.0
    %2629 = vmatpush1.msra.mxu0 0.0
    %2630 = vmatprep.subr.mxu0 0.0
    %2631 = vmatpush1.msra.mxu0 0.0
    %2632 = vmatprep.subr.mxu0 0.0
    %2633 = vmatpush1.msra.mxu0 0.0
    %2634 = vmatprep.subr.mxu0 0.0
    %2635 = vmatpush1.msra.mxu0 0.0
    %2636 = vmatprep.subr.mxu0 0.0
    %2637 = vmatpush1.msra.mxu0 0.0
    %2638 = vmatprep.subr.mxu0 0.0
    %2639 = vmatpush1.msra.mxu0 0.0
    %2640 = vmatprep.mubr.f32.mxu0 0.0
    %2641 = vmatmul.mubr.f32.gmra.mrb[0].mxu0 %v2574
    %v2642 = vpop.f32.mrb[0].mxu0
    %v2643 = vadd.f32 %v2182, %v2642
    %v2644 = vpop.f32.mrb[0].mxu0
    %2645 = vdwg.mxu0
    %v2647 = vrot.slane %v2643, 5
    %v2649 = vadd.f32 %v2260, %v2647
    %v2650 = vxor.u32 %v2649, 2147483648
    %v2651 = vmul.f32 %v2650, 1.442695
    %v2652 = vpow.pop %v2651
    %v2653 = vadd.f32 %v2652, 1.0
    %v2654 = vrcp.pop %v2653
    %v2655 = vmul.f32 1.0, %v2654
    %2656 = vrot.lane.b32.xlu0 %v2647, 64
    %v2657 = vpop.permute.xlu0 %2656
    %v2659 = vmul.f32 %v2655, %v2657
    %2661 = vrot.lane.b32.xlu0 %v2659, 64
    %v2662 = vpop.permute.xlu0 %2661
    %v2664 = vadd.f32 %v2260, %v2662
    %v2665 = vtanh.pop %v2664
    %v2666 = vsub.f32 1.0, %v2655
    %2668 = vrot.lane.b32.xlu0 %v2665, 96
    %v2669 = vpop.permute.xlu0 %2668
    %v2671 = vmul.f32 %v2666, %v2669
    %v2672 = vrot.slane %v2569, 7
    %v2674 = vmul.f32 %v2655, %v2672
    %v2675 = vadd.f32 %v2671, %v2674
    %v2677 = vrot.slane %v2675, 3
    %2678 = vrot.lane.b32.xlu0 %v2677, 96
    %v2679 = vpop.permute.xlu0 %2678
    %v2680 = vsel %vm302, %v2679, 0
    %2682 = vmatprep.subr.mxu0 0.0
    %2683 = vmatpush1.msra.mxu0 %v2177
    %2684 = vmatprep.subr.mxu0 0.0
    %2685 = vmatpush1.msra.mxu0 %v2178
    %2686 = vmatprep.subr.mxu0 0.0
    %2687 = vmatpush1.msra.mxu0 %v2179
    %2688 = vmatprep.subr.mxu0 0.0
    %2689 = vmatpush1.msra.mxu0 %v2180
    %2690 = vmatprep.subr.mxu0 0.0
    %2691 = vmatpush1.msra.mxu0 0.0
    %2692 = vmatprep.subr.mxu0 0.0
    %2693 = vmatpush1.msra.mxu0 0.0
    %2694 = vmatprep.subr.mxu0 0.0
    %2695 = vmatpush1.msra.mxu0 0.0
    %2696 = vmatprep.subr.mxu0 0.0
    %2697 = vmatpush1.msra.mxu0 0.0
    %2698 = vmatprep.subr.mxu0 0.0
    %2699 = vmatpush1.msra.mxu0 0.0
    %2700 = vmatprep.subr.mxu0 0.0
    %2701 = vmatpush1.msra.mxu0 0.0
    %2702 = vmatprep.subr.mxu0 0.0
    %2703 = vmatpush1.msra.mxu0 0.0
    %2704 = vmatprep.subr.mxu0 0.0
    %2705 = vmatpush1.msra.mxu0 0.0
    %2706 = vmatprep.subr.mxu0 0.0
    %2707 = vmatpush1.msra.mxu0 0.0
    %2708 = vmatprep.subr.mxu0 0.0
    %2709 = vmatpush1.msra.mxu0 0.0
    %2710 = vmatprep.subr.mxu0 0.0
    %2711 = vmatpush1.msra.mxu0 0.0
    %2712 = vmatprep.subr.mxu0 0.0
    %2713 = vmatpush1.msra.mxu0 0.0
    %2714 = vmatprep.subr.mxu0 0.0
    %2715 = vmatpush1.msra.mxu0 0.0
    %2716 = vmatprep.subr.mxu0 0.0
    %2717 = vmatpush1.msra.mxu0 0.0
    %2718 = vmatprep.subr.mxu0 0.0
    %2719 = vmatpush1.msra.mxu0 0.0
    %2720 = vmatprep.subr.mxu0 0.0
    %2721 = vmatpush1.msra.mxu0 0.0
    %2722 = vmatprep.subr.mxu0 0.0
    %2723 = vmatpush1.msra.mxu0 0.0
    %2724 = vmatprep.subr.mxu0 0.0
    %2725 = vmatpush1.msra.mxu0 0.0
    %2726 = vmatprep.subr.mxu0 0.0
    %2727 = vmatpush1.msra.mxu0 0.0
    %2728 = vmatprep.subr.mxu0 0.0
    %2729 = vmatpush1.msra.mxu0 0.0
    %2730 = vmatprep.subr.mxu0 0.0
    %2731 = vmatpush1.msra.mxu0 0.0
    %2732 = vmatprep.subr.mxu0 0.0
    %2733 = vmatpush1.msra.mxu0 0.0
    %2734 = vmatprep.subr.mxu0 0.0
    %2735 = vmatpush1.msra.mxu0 0.0
    %2736 = vmatprep.subr.mxu0 0.0
    %2737 = vmatpush1.msra.mxu0 0.0
    %2738 = vmatprep.subr.mxu0 0.0
    %2739 = vmatpush1.msra.mxu0 0.0
    %2740 = vmatprep.subr.mxu0 0.0
    %2741 = vmatpush1.msra.mxu0 0.0
    %2742 = vmatprep.subr.mxu0 0.0
    %2743 = vmatpush1.msra.mxu0 0.0
    %2744 = vmatprep.subr.mxu0 0.0
    %2745 = vmatpush1.msra.mxu0 0.0
    %2746 = vmatprep.mubr.f32.mxu0 0.0
    %2747 = vmatmul.mubr.f32.gmra.mrb[0].mxu0 %v2680
    %v2748 = vpop.f32.mrb[0].mxu0
    %v2749 = vadd.f32 %v2182, %v2748
    %v2750 = vpop.f32.mrb[0].mxu0
    %2751 = vdwg.mxu0
    %v2753 = vrot.slane %v2749, 4
    %v2755 = vadd.f32 %v2260, %v2753
    %v2756 = vxor.u32 %v2755, 2147483648
    %v2757 = vmul.f32 %v2756, 1.442695
    %v2758 = vpow.pop %v2757
    %v2759 = vadd.f32 %v2758, 1.0
    %v2760 = vrcp.pop %v2759
    %v2761 = vmul.f32 1.0, %v2760
    %2762 = vrot.lane.b32.xlu0 %v2753, 64
    %v2763 = vpop.permute.xlu0 %2762
    %v2765 = vmul.f32 %v2761, %v2763
    %2767 = vrot.lane.b32.xlu0 %v2765, 64
    %v2768 = vpop.permute.xlu0 %2767
    %v2770 = vadd.f32 %v2260, %v2768
    %v2771 = vtanh.pop %v2770
    %v2772 = vsub.f32 1.0, %v2761
    %2774 = vrot.lane.b32.xlu0 %v2771, 96
    %v2775 = vpop.permute.xlu0 %2774
    %v2777 = vmul.f32 %v2772, %v2775
    %v2778 = vrot.slane %v2675, 7
    %v2780 = vmul.f32 %v2761, %v2778
    %v2781 = vadd.f32 %v2777, %v2780
    %v2783 = vrot.slane %v2781, 4
    %2784 = vrot.lane.b32.xlu0 %v2783, 96
    %v2785 = vpop.permute.xlu0 %2784
    %v2786 = vsel %vm302, %v2785, 0
    %2788 = vmatprep.subr.mxu0 0.0
    %2789 = vmatpush1.msra.mxu0 %v2177
    %2790 = vmatprep.subr.mxu0 0.0
    %2791 = vmatpush1.msra.mxu0 %v2178
    %2792 = vmatprep.subr.mxu0 0.0
    %2793 = vmatpush1.msra.mxu0 %v2179
    %2794 = vmatprep.subr.mxu0 0.0
    %2795 = vmatpush1.msra.mxu0 %v2180
    %2796 = vmatprep.subr.mxu0 0.0
    %2797 = vmatpush1.msra.mxu0 0.0
    %2798 = vmatprep.subr.mxu0 0.0
    %2799 = vmatpush1.msra.mxu0 0.0
    %2800 = vmatprep.subr.mxu0 0.0
    %2801 = vmatpush1.msra.mxu0 0.0
    %2802 = vmatprep.subr.mxu0 0.0
    %2803 = vmatpush1.msra.mxu0 0.0
    %2804 = vmatprep.subr.mxu0 0.0
    %2805 = vmatpush1.msra.mxu0 0.0
    %2806 = vmatprep.subr.mxu0 0.0
    %2807 = vmatpush1.msra.mxu0 0.0
    %2808 = vmatprep.subr.mxu0 0.0
    %2809 = vmatpush1.msra.mxu0 0.0
    %2810 = vmatprep.subr.mxu0 0.0
    %2811 = vmatpush1.msra.mxu0 0.0
    %2812 = vmatprep.subr.mxu0 0.0
    %2813 = vmatpush1.msra.mxu0 0.0
    %2814 = vmatprep.subr.mxu0 0.0
    %2815 = vmatpush1.msra.mxu0 0.0
    %2816 = vmatprep.subr.mxu0 0.0
    %2817 = vmatpush1.msra.mxu0 0.0
    %2818 = vmatprep.subr.mxu0 0.0
    %2819 = vmatpush1.msra.mxu0 0.0
    %2820 = vmatprep.subr.mxu0 0.0
    %2821 = vmatpush1.msra.mxu0 0.0
    %2822 = vmatprep.subr.mxu0 0.0
    %2823 = vmatpush1.msra.mxu0 0.0
    %2824 = vmatprep.subr.mxu0 0.0
    %2825 = vmatpush1.msra.mxu0 0.0
    %2826 = vmatprep.subr.mxu0 0.0
    %2827 = vmatpush1.msra.mxu0 0.0
    %2828 = vmatprep.subr.mxu0 0.0
    %2829 = vmatpush1.msra.mxu0 0.0
    %2830 = vmatprep.subr.mxu0 0.0
    %2831 = vmatpush1.msra.mxu0 0.0
    %2832 = vmatprep.subr.mxu0 0.0
    %2833 = vmatpush1.msra.mxu0 0.0
    %2834 = vmatprep.subr.mxu0 0.0
    %2835 = vmatpush1.msra.mxu0 0.0
    %2836 = vmatprep.subr.mxu0 0.0
    %2837 = vmatpush1.msra.mxu0 0.0
    %2838 = vmatprep.subr.mxu0 0.0
    %2839 = vmatpush1.msra.mxu0 0.0
    %2840 = vmatprep.subr.mxu0 0.0
    %2841 = vmatpush1.msra.mxu0 0.0
    %2842 = vmatprep.subr.mxu0 0.0
    %2843 = vmatpush1.msra.mxu0 0.0
    %2844 = vmatprep.subr.mxu0 0.0
    %2845 = vmatpush1.msra.mxu0 0.0
    %2846 = vmatprep.subr.mxu0 0.0
    %2847 = vmatpush1.msra.mxu0 0.0
    %2848 = vmatprep.subr.mxu0 0.0
    %2849 = vmatpush1.msra.mxu0 0.0
    %2850 = vmatprep.subr.mxu0 0.0
    %2851 = vmatpush1.msra.mxu0 0.0
    %2852 = vmatprep.mubr.f32.mxu0 0.0
    %2853 = vmatmul.mubr.f32.gmra.mrb[0].mxu0 %v2786
    %v2854 = vpop.f32.mrb[0].mxu0
    %v2855 = vadd.f32 %v2182, %v2854
    %v2856 = vpop.f32.mrb[0].mxu0
    %2857 = vdwg.mxu0
    %v2859 = vrot.slane %v2855, 3
    %v2861 = vadd.f32 %v2260, %v2859
    %v2862 = vxor.u32 %v2861, 2147483648
    %v2863 = vmul.f32 %v2862, 1.442695
    %v2864 = vpow.pop %v2863
    %v2865 = vadd.f32 %v2864, 1.0
    %v2866 = vrcp.pop %v2865
    %v2867 = vmul.f32 1.0, %v2866
    %2868 = vrot.lane.b32.xlu0 %v2859, 64
    %v2869 = vpop.permute.xlu0 %2868
    %v2871 = vmul.f32 %v2867, %v2869
    %2873 = vrot.lane.b32.xlu0 %v2871, 64
    %v2874 = vpop.permute.xlu0 %2873
    %v2876 = vadd.f32 %v2260, %v2874
    %v2877 = vtanh.pop %v2876
    %v2878 = vsub.f32 1.0, %v2867
    %2880 = vrot.lane.b32.xlu0 %v2877, 96
    %v2881 = vpop.permute.xlu0 %2880
    %v2883 = vmul.f32 %v2878, %v2881
    %v2884 = vrot.slane %v2781, 7
    %v2886 = vmul.f32 %v2867, %v2884
    %v2887 = vadd.f32 %v2883, %v2886
    %v2889 = vrot.slane %v2887, 5
    %2890 = vrot.lane.b32.xlu0 %v2889, 96
    %v2891 = vpop.permute.xlu0 %2890
    %v2892 = vsel %vm302, %v2891, 0
    %2894 = vmatprep.subr.mxu0 0.0
    %2895 = vmatpush1.msra.mxu0 %v2177
    %2896 = vmatprep.subr.mxu0 0.0
    %2897 = vmatpush1.msra.mxu0 %v2178
    %2898 = vmatprep.subr.mxu0 0.0
    %2899 = vmatpush1.msra.mxu0 %v2179
    %2900 = vmatprep.subr.mxu0 0.0
    %2901 = vmatpush1.msra.mxu0 %v2180
    %2902 = vmatprep.subr.mxu0 0.0
    %2903 = vmatpush1.msra.mxu0 0.0
    %2904 = vmatprep.subr.mxu0 0.0
    %2905 = vmatpush1.msra.mxu0 0.0
    %2906 = vmatprep.subr.mxu0 0.0
    %2907 = vmatpush1.msra.mxu0 0.0
    %2908 = vmatprep.subr.mxu0 0.0
    %2909 = vmatpush1.msra.mxu0 0.0
    %2910 = vmatprep.subr.mxu0 0.0
    %2911 = vmatpush1.msra.mxu0 0.0
    %2912 = vmatprep.subr.mxu0 0.0
    %2913 = vmatpush1.msra.mxu0 0.0
    %2914 = vmatprep.subr.mxu0 0.0
    %2915 = vmatpush1.msra.mxu0 0.0
    %2916 = vmatprep.subr.mxu0 0.0
    %2917 = vmatpush1.msra.mxu0 0.0
    %2918 = vmatprep.subr.mxu0 0.0
    %2919 = vmatpush1.msra.mxu0 0.0
    %2920 = vmatprep.subr.mxu0 0.0
    %2921 = vmatpush1.msra.mxu0 0.0
    %2922 = vmatprep.subr.mxu0 0.0
    %2923 = vmatpush1.msra.mxu0 0.0
    %2924 = vmatprep.subr.mxu0 0.0
    %2925 = vmatpush1.msra.mxu0 0.0
    %2926 = vmatprep.subr.mxu0 0.0
    %2927 = vmatpush1.msra.mxu0 0.0
    %2928 = vmatprep.subr.mxu0 0.0
    %2929 = vmatpush1.msra.mxu0 0.0
    %2930 = vmatprep.subr.mxu0 0.0
    %2931 = vmatpush1.msra.mxu0 0.0
    %2932 = vmatprep.subr.mxu0 0.0
    %2933 = vmatpush1.msra.mxu0 0.0
    %2934 = vmatprep.subr.mxu0 0.0
    %2935 = vmatpush1.msra.mxu0 0.0
    %2936 = vmatprep.subr.mxu0 0.0
    %2937 = vmatpush1.msra.mxu0 0.0
    %2938 = vmatprep.subr.mxu0 0.0
    %2939 = vmatpush1.msra.mxu0 0.0
    %2940 = vmatprep.subr.mxu0 0.0
    %2941 = vmatpush1.msra.mxu0 0.0
    %2942 = vmatprep.subr.mxu0 0.0
    %2943 = vmatpush1.msra.mxu0 0.0
    %2944 = vmatprep.subr.mxu0 0.0
    %2945 = vmatpush1.msra.mxu0 0.0
    %2946 = vmatprep.subr.mxu0 0.0
    %2947 = vmatpush1.msra.mxu0 0.0
    %2948 = vmatprep.subr.mxu0 0.0
    %2949 = vmatpush1.msra.mxu0 0.0
    %2950 = vmatprep.subr.mxu0 0.0
    %2951 = vmatpush1.msra.mxu0 0.0
    %2952 = vmatprep.subr.mxu0 0.0
    %2953 = vmatpush1.msra.mxu0 0.0
    %2954 = vmatprep.subr.mxu0 0.0
    %2955 = vmatpush1.msra.mxu0 0.0
    %2956 = vmatprep.subr.mxu0 0.0
    %2957 = vmatpush1.msra.mxu0 0.0
    %2958 = vmatprep.mubr.f32.mxu0 0.0
    %2959 = vmatmul.mubr.f32.gmra.mrb[0].mxu0 %v2892
    %v2960 = vpop.f32.mrb[0].mxu0
    %v2961 = vadd.f32 %v2182, %v2960
    %v2962 = vpop.f32.mrb[0].mxu0
    %2963 = vdwg.mxu0
    %v2965 = vrot.slane %v2961, 2
    %v2967 = vadd.f32 %v2260, %v2965
    %v2968 = vxor.u32 %v2967, 2147483648
    %v2969 = vmul.f32 %v2968, 1.442695
    %v2970 = vpow.pop %v2969
    %v2971 = vadd.f32 %v2970, 1.0
    %v2972 = vrcp.pop %v2971
    %v2973 = vmul.f32 1.0, %v2972
    %2974 = vrot.lane.b32.xlu0 %v2965, 64
    %v2975 = vpop.permute.xlu0 %2974
    %v2977 = vmul.f32 %v2973, %v2975
    %2979 = vrot.lane.b32.xlu0 %v2977, 64
    %v2980 = vpop.permute.xlu0 %2979
    %v2982 = vadd.f32 %v2260, %v2980
    %v2983 = vtanh.pop %v2982
    %v2984 = vsub.f32 1.0, %v2973
    %2986 = vrot.lane.b32.xlu0 %v2983, 96
    %v2987 = vpop.permute.xlu0 %2986
    %v2989 = vmul.f32 %v2984, %v2987
    %v2990 = vrot.slane %v2887, 7
    %v2992 = vmul.f32 %v2973, %v2990
    %v2993 = vadd.f32 %v2989, %v2992
    %v2995 = vrot.slane %v2993, 6
    %2996 = vrot.lane.b32.xlu0 %v2995, 96
    %v2997 = vpop.permute.xlu0 %2996
    %v2998 = vsel %vm302, %v2997, 0
    %3000 = vmatprep.subr.mxu0 0.0
    %3001 = vmatpush1.msra.mxu0 %v2177
    %3002 = vmatprep.subr.mxu0 0.0
    %3003 = vmatpush1.msra.mxu0 %v2178
    %3004 = vmatprep.subr.mxu0 0.0
    %3005 = vmatpush1.msra.mxu0 %v2179
    %3006 = vmatprep.subr.mxu0 0.0
    %3007 = vmatpush1.msra.mxu0 %v2180
    %3008 = vmatprep.subr.mxu0 0.0
    %3009 = vmatpush1.msra.mxu0 0.0
    %3010 = vmatprep.subr.mxu0 0.0
    %3011 = vmatpush1.msra.mxu0 0.0
    %3012 = vmatprep.subr.mxu0 0.0
    %3013 = vmatpush1.msra.mxu0 0.0
    %3014 = vmatprep.subr.mxu0 0.0
    %3015 = vmatpush1.msra.mxu0 0.0
    %3016 = vmatprep.subr.mxu0 0.0
    %3017 = vmatpush1.msra.mxu0 0.0
    %3018 = vmatprep.subr.mxu0 0.0
    %3019 = vmatpush1.msra.mxu0 0.0
    %3020 = vmatprep.subr.mxu0 0.0
    %3021 = vmatpush1.msra.mxu0 0.0
    %3022 = vmatprep.subr.mxu0 0.0
    %3023 = vmatpush1.msra.mxu0 0.0
    %3024 = vmatprep.subr.mxu0 0.0
    %3025 = vmatpush1.msra.mxu0 0.0
    %3026 = vmatprep.subr.mxu0 0.0
    %3027 = vmatpush1.msra.mxu0 0.0
    %3028 = vmatprep.subr.mxu0 0.0
    %3029 = vmatpush1.msra.mxu0 0.0
    %3030 = vmatprep.subr.mxu0 0.0
    %3031 = vmatpush1.msra.mxu0 0.0
    %3032 = vmatprep.subr.mxu0 0.0
    %3033 = vmatpush1.msra.mxu0 0.0
    %3034 = vmatprep.subr.mxu0 0.0
    %3035 = vmatpush1.msra.mxu0 0.0
    %3036 = vmatprep.subr.mxu0 0.0
    %3037 = vmatpush1.msra.mxu0 0.0
    %3038 = vmatprep.subr.mxu0 0.0
    %3039 = vmatpush1.msra.mxu0 0.0
    %3040 = vmatprep.subr.mxu0 0.0
    %3041 = vmatpush1.msra.mxu0 0.0
    %3042 = vmatprep.subr.mxu0 0.0
    %3043 = vmatpush1.msra.mxu0 0.0
    %3044 = vmatprep.subr.mxu0 0.0
    %3045 = vmatpush1.msra.mxu0 0.0
    %3046 = vmatprep.subr.mxu0 0.0
    %3047 = vmatpush1.msra.mxu0 0.0
    %3048 = vmatprep.subr.mxu0 0.0
    %3049 = vmatpush1.msra.mxu0 0.0
    %3050 = vmatprep.subr.mxu0 0.0
    %3051 = vmatpush1.msra.mxu0 0.0
    %3052 = vmatprep.subr.mxu0 0.0
    %3053 = vmatpush1.msra.mxu0 0.0
    %3054 = vmatprep.subr.mxu0 0.0
    %3055 = vmatpush1.msra.mxu0 0.0
    %3056 = vmatprep.subr.mxu0 0.0
    %3057 = vmatpush1.msra.mxu0 0.0
    %3058 = vmatprep.subr.mxu0 0.0
    %3059 = vmatpush1.msra.mxu0 0.0
    %3060 = vmatprep.subr.mxu0 0.0
    %3061 = vmatpush1.msra.mxu0 0.0
    %3062 = vmatprep.subr.mxu0 0.0
    %3063 = vmatpush1.msra.mxu0 0.0
    %3064 = vmatprep.mubr.f32.mxu0 0.0
    %3065 = vmatmul.mubr.f32.gmra.mrb[0].mxu0 %v2998
    %v3066 = vpop.f32.mrb[0].mxu0
    %v3067 = vadd.f32 %v2182, %v3066
    %v3068 = vpop.f32.mrb[0].mxu0
    %3069 = vdwg.mxu0
    %v3071 = vrot.slane %v3067, 1
    %v3073 = vadd.f32 %v2260, %v3071
    %v3074 = vxor.u32 %v3073, 2147483648
    %v3075 = vmul.f32 %v3074, 1.442695
    %v3076 = vpow.pop %v3075
    %v3077 = vadd.f32 %v3076, 1.0
    %v3078 = vrcp.pop %v3077
    %v3079 = vmul.f32 1.0, %v3078
    %3080 = vrot.lane.b32.xlu0 %v3071, 64
    %v3081 = vpop.permute.xlu0 %3080
    %v3083 = vmul.f32 %v3079, %v3081
    %3085 = vrot.lane.b32.xlu0 %v3083, 64
    %v3086 = vpop.permute.xlu0 %3085
    %v3088 = vadd.f32 %v2260, %v3086
    %v3089 = vtanh.pop %v3088
    %v3090 = vsub.f32 1.0, %v3079
    %3092 = vrot.lane.b32.xlu0 %v3089, 96
    %v3093 = vpop.permute.xlu0 %3092
    %v3095 = vmul.f32 %v3090, %v3093
    %v3096 = vrot.slane %v2993, 7
    %v3098 = vmul.f32 %v3079, %v3096
    %v3099 = vadd.f32 %v3095, %v3098
    %v3100 = vsel %vm1216, %v2358, %v2463
    %v3101 = vsel %vm1218, %v3100, %v2569
    %v3102 = vsel %vm1220, %v3101, %v2675
    %v3103 = vsel %vm1222, %v3102, %v2781
    %v3104 = vsel %vm1224, %v3103, %v2887
    %v3105 = vsel %vm1226, %v3104, %v2993
    %v3106 = vsel %vm1228, %v3105, %v3099
    %s3107 = scalar_lea.vmem %s5, 64
    %v3108 = vld [vmem:[%s3107] sm:$0xff]
    %v3109 = vld [vmem:[%s3107 + $0x8] sm:$0xff]
    %v3110 = vld [vmem:[%s3107 + $0x10] sm:$0xff]
    %v3111 = vld [vmem:[%s3107 + $0x18] sm:$0xff]
    %v3112 = vld [vmem:[%s3107 + $0x20] sm:$0xff]
    %v3113 = vld [vmem:[%s3107 + $0x28] sm:$0xff]
    %v3114 = vld [vmem:[%s3107 + $0x30] sm:$0xff]
    %v3115 = vld [vmem:[%s3107 + $0x38] sm:$0xff]
    %s3116 = scalar_lea.vmem [#allocation7], 32
    %v3117 = vld [vmem:[%s3116] sm:$0xff]
    %v3118 = vld [vmem:[%s3116 + $0x8] sm:$0xff]
    %v3119 = vld [vmem:[%s3116 + $0x10] sm:$0xff]
    %v3120 = vld [vmem:[%s3116 + $0x18] sm:$0xff]
    %s3121 = scalar_lea.vmem [#allocation9], 1
    %v3122 = vld [vmem:[%s3121] sm:$0x1]
    %s3123 = scalar_lea.vmem [#allocation10], 1
    %v3124 = vld [vmem:[%s3123] sm:$0x1]
    %v3126 = vlaneseq
    %v3127 = vshrl.u32 %v3126, 7
    %v3128 = vsub.s32 0, %v3127
    %v3129 = vrot.slane %v3122, %v3128
    %3131 = vmatprep.subr.mxu0 0.0
    %3132 = vmatpush1.msra.mxu0 %v3108
    %3133 = vmatprep.subr.mxu0 0.0
    %3134 = vmatpush1.msra.mxu0 %v3109
    %3135 = vmatprep.subr.mxu0 0.0
    %3136 = vmatpush1.msra.mxu0 %v3110
    %3137 = vmatprep.subr.mxu0 0.0
    %3138 = vmatpush1.msra.mxu0 %v3111
    %3139 = vmatprep.subr.mxu0 0.0
    %3140 = vmatpush1.msra.mxu0 %v3112
    %3141 = vmatprep.subr.mxu0 0.0
    %3142 = vmatpush1.msra.mxu0 %v3113
    %3143 = vmatprep.subr.mxu0 0.0
    %3144 = vmatpush1.msra.mxu0 %v3114
    %3145 = vmatprep.subr.mxu0 0.0
    %3146 = vmatpush1.msra.mxu0 %v3115
    %3147 = vmatprep.subr.mxu0 0.0
    %3148 = vmatpush1.msra.mxu0 0.0
    %3149 = vmatprep.subr.mxu0 0.0
    %3150 = vmatpush1.msra.mxu0 0.0
    %3151 = vmatprep.subr.mxu0 0.0
    %3152 = vmatpush1.msra.mxu0 0.0
    %3153 = vmatprep.subr.mxu0 0.0
    %3154 = vmatpush1.msra.mxu0 0.0
    %3155 = vmatprep.subr.mxu0 0.0
    %3156 = vmatpush1.msra.mxu0 0.0
    %3157 = vmatprep.subr.mxu0 0.0
    %3158 = vmatpush1.msra.mxu0 0.0
    %3159 = vmatprep.subr.mxu0 0.0
    %3160 = vmatpush1.msra.mxu0 0.0
    %3161 = vmatprep.subr.mxu0 0.0
    %3162 = vmatpush1.msra.mxu0 0.0
    %3163 = vmatprep.subr.mxu0 0.0
    %3164 = vmatpush1.msra.mxu0 0.0
    %3165 = vmatprep.subr.mxu0 0.0
    %3166 = vmatpush1.msra.mxu0 0.0
    %3167 = vmatprep.subr.mxu0 0.0
    %3168 = vmatpush1.msra.mxu0 0.0
    %3169 = vmatprep.subr.mxu0 0.0
    %3170 = vmatpush1.msra.mxu0 0.0
    %3171 = vmatprep.subr.mxu0 0.0
    %3172 = vmatpush1.msra.mxu0 0.0
    %3173 = vmatprep.subr.mxu0 0.0
    %3174 = vmatpush1.msra.mxu0 0.0
    %3175 = vmatprep.subr.mxu0 0.0
    %3176 = vmatpush1.msra.mxu0 0.0
    %3177 = vmatprep.subr.mxu0 0.0
    %3178 = vmatpush1.msra.mxu0 0.0
    %3179 = vmatprep.subr.mxu0 0.0
    %3180 = vmatpush1.msra.mxu0 0.0
    %3181 = vmatprep.subr.mxu0 0.0
    %3182 = vmatpush1.msra.mxu0 0.0
    %3183 = vmatprep.subr.mxu0 0.0
    %3184 = vmatpush1.msra.mxu0 0.0
    %3185 = vmatprep.subr.mxu0 0.0
    %3186 = vmatpush1.msra.mxu0 0.0
    %3187 = vmatprep.subr.mxu0 0.0
    %3188 = vmatpush1.msra.mxu0 0.0
    %3189 = vmatprep.subr.mxu0 0.0
    %3190 = vmatpush1.msra.mxu0 0.0
    %3191 = vmatprep.subr.mxu0 0.0
    %3192 = vmatpush1.msra.mxu0 0.0
    %3193 = vmatprep.subr.mxu0 0.0
    %3194 = vmatpush1.msra.mxu0 0.0
    %3195 = vmatprep.mubr.f32.mxu0 0.0
    %3196 = vmatmul.mubr.f32.gmra.mrb[0].mxu0 %v2191
    %v3197 = vpop.f32.mrb[0].mxu0
    %v3198 = vadd.f32 %v3129, %v3197
    %v3199 = vpop.f32.mrb[0].mxu0
    %3200 = vdwg.mxu0
    %3201 = vmatprep.subr.mxu0 0.0
    %3202 = vmatpush1.msra.mxu0 %v3117
    %3203 = vmatprep.subr.mxu0 0.0
    %3204 = vmatpush1.msra.mxu0 %v3118
    %3205 = vmatprep.subr.mxu0 0.0
    %3206 = vmatpush1.msra.mxu0 %v3119
    %3207 = vmatprep.subr.mxu0 0.0
    %3208 = vmatpush1.msra.mxu0 %v3120
    %3209 = vmatprep.subr.mxu0 0.0
    %3210 = vmatpush1.msra.mxu0 0.0
    %3211 = vmatprep.subr.mxu0 0.0
    %3212 = vmatpush1.msra.mxu0 0.0
    %3213 = vmatprep.subr.mxu0 0.0
    %3214 = vmatpush1.msra.mxu0 0.0
    %3215 = vmatprep.subr.mxu0 0.0
    %3216 = vmatpush1.msra.mxu0 0.0
    %3217 = vmatprep.subr.mxu0 0.0
    %3218 = vmatpush1.msra.mxu0 0.0
    %3219 = vmatprep.subr.mxu0 0.0
    %3220 = vmatpush1.msra.mxu0 0.0
    %3221 = vmatprep.subr.mxu0 0.0
    %3222 = vmatpush1.msra.mxu0 0.0
    %3223 = vmatprep.subr.mxu0 0.0
    %3224 = vmatpush1.msra.mxu0 0.0
    %3225 = vmatprep.subr.mxu0 0.0
    %3226 = vmatpush1.msra.mxu0 0.0
    %3227 = vmatprep.subr.mxu0 0.0
    %3228 = vmatpush1.msra.mxu0 0.0
    %3229 = vmatprep.subr.mxu0 0.0
    %3230 = vmatpush1.msra.mxu0 0.0
    %3231 = vmatprep.subr.mxu0 0.0
    %3232 = vmatpush1.msra.mxu0 0.0
    %3233 = vmatprep.subr.mxu0 0.0
    %3234 = vmatpush1.msra.mxu0 0.0
    %3235 = vmatprep.subr.mxu0 0.0
    %3236 = vmatpush1.msra.mxu0 0.0
    %3237 = vmatprep.subr.mxu0 0.0
    %3238 = vmatpush1.msra.mxu0 0.0
    %3239 = vmatprep.subr.mxu0 0.0
    %3240 = vmatpush1.msra.mxu0 0.0
    %3241 = vmatprep.subr.mxu0 0.0
    %3242 = vmatpush1.msra.mxu0 0.0
    %3243 = vmatprep.subr.mxu0 0.0
    %3244 = vmatpush1.msra.mxu0 0.0
    %3245 = vmatprep.subr.mxu0 0.0
    %3246 = vmatpush1.msra.mxu0 0.0
    %3247 = vmatprep.subr.mxu0 0.0
    %3248 = vmatpush1.msra.mxu0 0.0
    %3249 = vmatprep.subr.mxu0 0.0
    %3250 = vmatpush1.msra.mxu0 0.0
    %3251 = vmatprep.subr.mxu0 0.0
    %3252 = vmatpush1.msra.mxu0 0.0
    %3253 = vmatprep.subr.mxu0 0.0
    %3254 = vmatpush1.msra.mxu0 0.0
    %3255 = vmatprep.subr.mxu0 0.0
    %3256 = vmatpush1.msra.mxu0 0.0
    %3257 = vmatprep.subr.mxu0 0.0
    %3258 = vmatpush1.msra.mxu0 0.0
    %3259 = vmatprep.subr.mxu0 0.0
    %3260 = vmatpush1.msra.mxu0 0.0
    %3261 = vmatprep.subr.mxu0 0.0
    %3262 = vmatpush1.msra.mxu0 0.0
    %3263 = vmatprep.subr.mxu0 0.0
    %3264 = vmatpush1.msra.mxu0 0.0
    %3265 = vmatprep.mubr.f32.mxu0 0.0
    %3266 = vmatmul.mubr.f32.gmra.mrb[0].mxu0 %v377
    %v3267 = vpop.f32.mrb[0].mxu0
    %v3268 = vadd.f32 %v3124, %v3267
    %v3269 = vpop.f32.mrb[0].mxu0
    %3270 = vdwg.mxu0
    %v3272 = vrot.slane %v3268, 1
    %v3274 = vadd.f32 %v3198, %v3272
    %v3275 = vxor.u32 %v3274, 2147483648
    %v3276 = vmul.f32 %v3275, 1.442695
    %v3277 = vpow.pop %v3276
    %v3278 = vadd.f32 %v3277, 1.0
    %v3279 = vrcp.pop %v3278
    %v3280 = vmul.f32 1.0, %v3279
    %3281 = vrot.lane.b32.xlu0 %v3272, 64
    %v3282 = vpop.permute.xlu0 %3281
    %v3284 = vmul.f32 %v3280, %v3282
    %3286 = vrot.lane.b32.xlu0 %v3284, 64
    %v3287 = vpop.permute.xlu0 %3286
    %v3289 = vadd.f32 %v3198, %v3287
    %v3290 = vtanh.pop %v3289
    %v3291 = vsub.f32 1.0, %v3280
    %3293 = vrot.lane.b32.xlu0 %v3290, 96
    %v3294 = vpop.permute.xlu0 %3293
    %v3296 = vmul.f32 %v3291, %v3294
    %v3297 = vmul.f32 %v3280, 0.0
    %v3298 = vadd.f32 %v3296, %v3297
    %v3300 = vrot.slane %v3298, 7
    %3301 = vrot.lane.b32.xlu0 %v3300, 96
    %v3302 = vpop.permute.xlu0 %3301
    %v3303 = vsel %vm302, %v3302, 0
    %3305 = vmatprep.subr.mxu0 0.0
    %3306 = vmatpush1.msra.mxu0 %v3117
    %3307 = vmatprep.subr.mxu0 0.0
    %3308 = vmatpush1.msra.mxu0 %v3118
    %3309 = vmatprep.subr.mxu0 0.0
    %3310 = vmatpush1.msra.mxu0 %v3119
    %3311 = vmatprep.subr.mxu0 0.0
    %3312 = vmatpush1.msra.mxu0 %v3120
    %3313 = vmatprep.subr.mxu0 0.0
    %3314 = vmatpush1.msra.mxu0 0.0
    %3315 = vmatprep.subr.mxu0 0.0
    %3316 = vmatpush1.msra.mxu0 0.0
    %3317 = vmatprep.subr.mxu0 0.0
    %3318 = vmatpush1.msra.mxu0 0.0
    %3319 = vmatprep.subr.mxu0 0.0
    %3320 = vmatpush1.msra.mxu0 0.0
    %3321 = vmatprep.subr.mxu0 0.0
    %3322 = vmatpush1.msra.mxu0 0.0
    %3323 = vmatprep.subr.mxu0 0.0
    %3324 = vmatpush1.msra.mxu0 0.0
    %3325 = vmatprep.subr.mxu0 0.0
    %3326 = vmatpush1.msra.mxu0 0.0
    %3327 = vmatprep.subr.mxu0 0.0
    %3328 = vmatpush1.msra.mxu0 0.0
    %3329 = vmatprep.subr.mxu0 0.0
    %3330 = vmatpush1.msra.mxu0 0.0
    %3331 = vmatprep.subr.mxu0 0.0
    %3332 = vmatpush1.msra.mxu0 0.0
    %3333 = vmatprep.subr.mxu0 0.0
    %3334 = vmatpush1.msra.mxu0 0.0
    %3335 = vmatprep.subr.mxu0 0.0
    %3336 = vmatpush1.msra.mxu0 0.0
    %3337 = vmatprep.subr.mxu0 0.0
    %3338 = vmatpush1.msra.mxu0 0.0
    %3339 = vmatprep.subr.mxu0 0.0
    %3340 = vmatpush1.msra.mxu0 0.0
    %3341 = vmatprep.subr.mxu0 0.0
    %3342 = vmatpush1.msra.mxu0 0.0
    %3343 = vmatprep.subr.mxu0 0.0
    %3344 = vmatpush1.msra.mxu0 0.0
    %3345 = vmatprep.subr.mxu0 0.0
    %3346 = vmatpush1.msra.mxu0 0.0
    %3347 = vmatprep.subr.mxu0 0.0
    %3348 = vmatpush1.msra.mxu0 0.0
    %3349 = vmatprep.subr.mxu0 0.0
    %3350 = vmatpush1.msra.mxu0 0.0
    %3351 = vmatprep.subr.mxu0 0.0
    %3352 = vmatpush1.msra.mxu0 0.0
    %3353 = vmatprep.subr.mxu0 0.0
    %3354 = vmatpush1.msra.mxu0 0.0
    %3355 = vmatprep.subr.mxu0 0.0
    %3356 = vmatpush1.msra.mxu0 0.0
    %3357 = vmatprep.subr.mxu0 0.0
    %3358 = vmatpush1.msra.mxu0 0.0
    %3359 = vmatprep.subr.mxu0 0.0
    %3360 = vmatpush1.msra.mxu0 0.0
    %3361 = vmatprep.subr.mxu0 0.0
    %3362 = vmatpush1.msra.mxu0 0.0
    %3363 = vmatprep.subr.mxu0 0.0
    %3364 = vmatpush1.msra.mxu0 0.0
    %3365 = vmatprep.subr.mxu0 0.0
    %3366 = vmatpush1.msra.mxu0 0.0
    %3367 = vmatprep.subr.mxu0 0.0
    %3368 = vmatpush1.msra.mxu0 0.0
    %3369 = vmatprep.mubr.f32.mxu0 0.0
    %3370 = vmatmul.mubr.f32.gmra.mrb[0].mxu0 %v3303
    %v3371 = vpop.f32.mrb[0].mxu0
    %v3372 = vadd.f32 %v3124, %v3371
    %v3373 = vpop.f32.mrb[0].mxu0
    %3374 = vdwg.mxu0
    %v3376 = vrot.slane %v3372, 2
    %v3378 = vadd.f32 %v3198, %v3376
    %v3379 = vxor.u32 %v3378, 2147483648
    %v3380 = vmul.f32 %v3379, 1.442695
    %v3381 = vpow.pop %v3380
    %v3382 = vadd.f32 %v3381, 1.0
    %v3383 = vrcp.pop %v3382
    %v3384 = vmul.f32 1.0, %v3383
    %3385 = vrot.lane.b32.xlu0 %v3376, 64
    %v3386 = vpop.permute.xlu0 %3385
    %v3388 = vmul.f32 %v3384, %v3386
    %3390 = vrot.lane.b32.xlu0 %v3388, 64
    %v3391 = vpop.permute.xlu0 %3390
    %v3393 = vadd.f32 %v3198, %v3391
    %v3394 = vtanh.pop %v3393
    %v3395 = vsub.f32 1.0, %v3384
    %3397 = vrot.lane.b32.xlu0 %v3394, 96
    %v3398 = vpop.permute.xlu0 %3397
    %v3400 = vmul.f32 %v3395, %v3398
    %v3401 = vrot.slane %v3298, 1
    %v3403 = vmul.f32 %v3384, %v3401
    %v3404 = vadd.f32 %v3400, %v3403
    %v3406 = vrot.slane %v3404, 6
    %3407 = vrot.lane.b32.xlu0 %v3406, 96
    %v3408 = vpop.permute.xlu0 %3407
    %v3409 = vsel %vm302, %v3408, 0
    %3411 = vmatprep.subr.mxu0 0.0
    %3412 = vmatpush1.msra.mxu0 %v3117
    %3413 = vmatprep.subr.mxu0 0.0
    %3414 = vmatpush1.msra.mxu0 %v3118
    %3415 = vmatprep.subr.mxu0 0.0
    %3416 = vmatpush1.msra.mxu0 %v3119
    %3417 = vmatprep.subr.mxu0 0.0
    %3418 = vmatpush1.msra.mxu0 %v3120
    %3419 = vmatprep.subr.mxu0 0.0
    %3420 = vmatpush1.msra.mxu0 0.0
    %3421 = vmatprep.subr.mxu0 0.0
    %3422 = vmatpush1.msra.mxu0 0.0
    %3423 = vmatprep.subr.mxu0 0.0
    %3424 = vmatpush1.msra.mxu0 0.0
    %3425 = vmatprep.subr.mxu0 0.0
    %3426 = vmatpush1.msra.mxu0 0.0
    %3427 = vmatprep.subr.mxu0 0.0
    %3428 = vmatpush1.msra.mxu0 0.0
    %3429 = vmatprep.subr.mxu0 0.0
    %3430 = vmatpush1.msra.mxu0 0.0
    %3431 = vmatprep.subr.mxu0 0.0
    %3432 = vmatpush1.msra.mxu0 0.0
    %3433 = vmatprep.subr.mxu0 0.0
    %3434 = vmatpush1.msra.mxu0 0.0
    %3435 = vmatprep.subr.mxu0 0.0
    %3436 = vmatpush1.msra.mxu0 0.0
    %3437 = vmatprep.subr.mxu0 0.0
    %3438 = vmatpush1.msra.mxu0 0.0
    %3439 = vmatprep.subr.mxu0 0.0
    %3440 = vmatpush1.msra.mxu0 0.0
    %3441 = vmatprep.subr.mxu0 0.0
    %3442 = vmatpush1.msra.mxu0 0.0
    %3443 = vmatprep.subr.mxu0 0.0
    %3444 = vmatpush1.msra.mxu0 0.0
    %3445 = vmatprep.subr.mxu0 0.0
    %3446 = vmatpush1.msra.mxu0 0.0
    %3447 = vmatprep.subr.mxu0 0.0
    %3448 = vmatpush1.msra.mxu0 0.0
    %3449 = vmatprep.subr.mxu0 0.0
    %3450 = vmatpush1.msra.mxu0 0.0
    %3451 = vmatprep.subr.mxu0 0.0
    %3452 = vmatpush1.msra.mxu0 0.0
    %3453 = vmatprep.subr.mxu0 0.0
    %3454 = vmatpush1.msra.mxu0 0.0
    %3455 = vmatprep.subr.mxu0 0.0
    %3456 = vmatpush1.msra.mxu0 0.0
    %3457 = vmatprep.subr.mxu0 0.0
    %3458 = vmatpush1.msra.mxu0 0.0
    %3459 = vmatprep.subr.mxu0 0.0
    %3460 = vmatpush1.msra.mxu0 0.0
    %3461 = vmatprep.subr.mxu0 0.0
    %3462 = vmatpush1.msra.mxu0 0.0
    %3463 = vmatprep.subr.mxu0 0.0
    %3464 = vmatpush1.msra.mxu0 0.0
    %3465 = vmatprep.subr.mxu0 0.0
    %3466 = vmatpush1.msra.mxu0 0.0
    %3467 = vmatprep.subr.mxu0 0.0
    %3468 = vmatpush1.msra.mxu0 0.0
    %3469 = vmatprep.subr.mxu0 0.0
    %3470 = vmatpush1.msra.mxu0 0.0
    %3471 = vmatprep.subr.mxu0 0.0
    %3472 = vmatpush1.msra.mxu0 0.0
    %3473 = vmatprep.subr.mxu0 0.0
    %3474 = vmatpush1.msra.mxu0 0.0
    %3475 = vmatprep.mubr.f32.mxu0 0.0
    %3476 = vmatmul.mubr.f32.gmra.mrb[0].mxu0 %v3409
    %v3477 = vpop.f32.mrb[0].mxu0
    %v3478 = vadd.f32 %v3124, %v3477
    %v3479 = vpop.f32.mrb[0].mxu0
    %3480 = vdwg.mxu0
    %v3482 = vrot.slane %v3478, 3
    %v3484 = vadd.f32 %v3198, %v3482
    %v3485 = vxor.u32 %v3484, 2147483648
    %v3486 = vmul.f32 %v3485, 1.442695
    %v3487 = vpow.pop %v3486
    %v3488 = vadd.f32 %v3487, 1.0
    %v3489 = vrcp.pop %v3488
    %v3490 = vmul.f32 1.0, %v3489
    %3491 = vrot.lane.b32.xlu0 %v3482, 64
    %v3492 = vpop.permute.xlu0 %3491
    %v3494 = vmul.f32 %v3490, %v3492
    %3496 = vrot.lane.b32.xlu0 %v3494, 64
    %v3497 = vpop.permute.xlu0 %3496
    %v3499 = vadd.f32 %v3198, %v3497
    %v3500 = vtanh.pop %v3499
    %v3501 = vsub.f32 1.0, %v3490
    %3503 = vrot.lane.b32.xlu0 %v3500, 96
    %v3504 = vpop.permute.xlu0 %3503
    %v3506 = vmul.f32 %v3501, %v3504
    %v3507 = vrot.slane %v3404, 1
    %v3509 = vmul.f32 %v3490, %v3507
    %v3510 = vadd.f32 %v3506, %v3509
    %v3512 = vrot.slane %v3510, 5
    %3513 = vrot.lane.b32.xlu0 %v3512, 96
    %v3514 = vpop.permute.xlu0 %3513
    %v3515 = vsel %vm302, %v3514, 0
    %3517 = vmatprep.subr.mxu0 0.0
    %3518 = vmatpush1.msra.mxu0 %v3117
    %3519 = vmatprep.subr.mxu0 0.0
    %3520 = vmatpush1.msra.mxu0 %v3118
    %3521 = vmatprep.subr.mxu0 0.0
    %3522 = vmatpush1.msra.mxu0 %v3119
    %3523 = vmatprep.subr.mxu0 0.0
    %3524 = vmatpush1.msra.mxu0 %v3120
    %3525 = vmatprep.subr.mxu0 0.0
    %3526 = vmatpush1.msra.mxu0 0.0
    %3527 = vmatprep.subr.mxu0 0.0
    %3528 = vmatpush1.msra.mxu0 0.0
    %3529 = vmatprep.subr.mxu0 0.0
    %3530 = vmatpush1.msra.mxu0 0.0
    %3531 = vmatprep.subr.mxu0 0.0
    %3532 = vmatpush1.msra.mxu0 0.0
    %3533 = vmatprep.subr.mxu0 0.0
    %3534 = vmatpush1.msra.mxu0 0.0
    %3535 = vmatprep.subr.mxu0 0.0
    %3536 = vmatpush1.msra.mxu0 0.0
    %3537 = vmatprep.subr.mxu0 0.0
    %3538 = vmatpush1.msra.mxu0 0.0
    %3539 = vmatprep.subr.mxu0 0.0
    %3540 = vmatpush1.msra.mxu0 0.0
    %3541 = vmatprep.subr.mxu0 0.0
    %3542 = vmatpush1.msra.mxu0 0.0
    %3543 = vmatprep.subr.mxu0 0.0
    %3544 = vmatpush1.msra.mxu0 0.0
    %3545 = vmatprep.subr.mxu0 0.0
    %3546 = vmatpush1.msra.mxu0 0.0
    %3547 = vmatprep.subr.mxu0 0.0
    %3548 = vmatpush1.msra.mxu0 0.0
    %3549 = vmatprep.subr.mxu0 0.0
    %3550 = vmatpush1.msra.mxu0 0.0
    %3551 = vmatprep.subr.mxu0 0.0
    %3552 = vmatpush1.msra.mxu0 0.0
    %3553 = vmatprep.subr.mxu0 0.0
    %3554 = vmatpush1.msra.mxu0 0.0
    %3555 = vmatprep.subr.mxu0 0.0
    %3556 = vmatpush1.msra.mxu0 0.0
    %3557 = vmatprep.subr.mxu0 0.0
    %3558 = vmatpush1.msra.mxu0 0.0
    %3559 = vmatprep.subr.mxu0 0.0
    %3560 = vmatpush1.msra.mxu0 0.0
    %3561 = vmatprep.subr.mxu0 0.0
    %3562 = vmatpush1.msra.mxu0 0.0
    %3563 = vmatprep.subr.mxu0 0.0
    %3564 = vmatpush1.msra.mxu0 0.0
    %3565 = vmatprep.subr.mxu0 0.0
    %3566 = vmatpush1.msra.mxu0 0.0
    %3567 = vmatprep.subr.mxu0 0.0
    %3568 = vmatpush1.msra.mxu0 0.0
    %3569 = vmatprep.subr.mxu0 0.0
    %3570 = vmatpush1.msra.mxu0 0.0
    %3571 = vmatprep.subr.mxu0 0.0
    %3572 = vmatpush1.msra.mxu0 0.0
    %3573 = vmatprep.subr.mxu0 0.0
    %3574 = vmatpush1.msra.mxu0 0.0
    %3575 = vmatprep.subr.mxu0 0.0
    %3576 = vmatpush1.msra.mxu0 0.0
    %3577 = vmatprep.subr.mxu0 0.0
    %3578 = vmatpush1.msra.mxu0 0.0
    %3579 = vmatprep.subr.mxu0 0.0
    %3580 = vmatpush1.msra.mxu0 0.0
    %3581 = vmatprep.mubr.f32.mxu0 0.0
    %3582 = vmatmul.mubr.f32.gmra.mrb[0].mxu0 %v3515
    %v3583 = vpop.f32.mrb[0].mxu0
    %v3584 = vadd.f32 %v3124, %v3583
    %v3585 = vpop.f32.mrb[0].mxu0
    %3586 = vdwg.mxu0
    %v3588 = vrot.slane %v3584, 4
    %v3590 = vadd.f32 %v3198, %v3588
    %v3591 = vxor.u32 %v3590, 2147483648
    %v3592 = vmul.f32 %v3591, 1.442695
    %v3593 = vpow.pop %v3592
    %v3594 = vadd.f32 %v3593, 1.0
    %v3595 = vrcp.pop %v3594
    %v3596 = vmul.f32 1.0, %v3595
    %3597 = vrot.lane.b32.xlu0 %v3588, 64
    %v3598 = vpop.permute.xlu0 %3597
    %v3600 = vmul.f32 %v3596, %v3598
    %3602 = vrot.lane.b32.xlu0 %v3600, 64
    %v3603 = vpop.permute.xlu0 %3602
    %v3605 = vadd.f32 %v3198, %v3603
    %v3606 = vtanh.pop %v3605
    %v3607 = vsub.f32 1.0, %v3596
    %3609 = vrot.lane.b32.xlu0 %v3606, 96
    %v3610 = vpop.permute.xlu0 %3609
    %v3612 = vmul.f32 %v3607, %v3610
    %v3613 = vrot.slane %v3510, 1
    %v3615 = vmul.f32 %v3596, %v3613
    %v3616 = vadd.f32 %v3612, %v3615
    %v3618 = vrot.slane %v3616, 4
    %3619 = vrot.lane.b32.xlu0 %v3618, 96
    %v3620 = vpop.permute.xlu0 %3619
    %v3621 = vsel %vm302, %v3620, 0
    %3623 = vmatprep.subr.mxu0 0.0
    %3624 = vmatpush1.msra.mxu0 %v3117
    %3625 = vmatprep.subr.mxu0 0.0
    %3626 = vmatpush1.msra.mxu0 %v3118
    %3627 = vmatprep.subr.mxu0 0.0
    %3628 = vmatpush1.msra.mxu0 %v3119
    %3629 = vmatprep.subr.mxu0 0.0
    %3630 = vmatpush1.msra.mxu0 %v3120
    %3631 = vmatprep.subr.mxu0 0.0
    %3632 = vmatpush1.msra.mxu0 0.0
    %3633 = vmatprep.subr.mxu0 0.0
    %3634 = vmatpush1.msra.mxu0 0.0
    %3635 = vmatprep.subr.mxu0 0.0
    %3636 = vmatpush1.msra.mxu0 0.0
    %3637 = vmatprep.subr.mxu0 0.0
    %3638 = vmatpush1.msra.mxu0 0.0
    %3639 = vmatprep.subr.mxu0 0.0
    %3640 = vmatpush1.msra.mxu0 0.0
    %3641 = vmatprep.subr.mxu0 0.0
    %3642 = vmatpush1.msra.mxu0 0.0
    %3643 = vmatprep.subr.mxu0 0.0
    %3644 = vmatpush1.msra.mxu0 0.0
    %3645 = vmatprep.subr.mxu0 0.0
    %3646 = vmatpush1.msra.mxu0 0.0
    %3647 = vmatprep.subr.mxu0 0.0
    %3648 = vmatpush1.msra.mxu0 0.0
    %3649 = vmatprep.subr.mxu0 0.0
    %3650 = vmatpush1.msra.mxu0 0.0
    %3651 = vmatprep.subr.mxu0 0.0
    %3652 = vmatpush1.msra.mxu0 0.0
    %3653 = vmatprep.subr.mxu0 0.0
    %3654 = vmatpush1.msra.mxu0 0.0
    %3655 = vmatprep.subr.mxu0 0.0
    %3656 = vmatpush1.msra.mxu0 0.0
    %3657 = vmatprep.subr.mxu0 0.0
    %3658 = vmatpush1.msra.mxu0 0.0
    %3659 = vmatprep.subr.mxu0 0.0
    %3660 = vmatpush1.msra.mxu0 0.0
    %3661 = vmatprep.subr.mxu0 0.0
    %3662 = vmatpush1.msra.mxu0 0.0
    %3663 = vmatprep.subr.mxu0 0.0
    %3664 = vmatpush1.msra.mxu0 0.0
    %3665 = vmatprep.subr.mxu0 0.0
    %3666 = vmatpush1.msra.mxu0 0.0
    %3667 = vmatprep.subr.mxu0 0.0
    %3668 = vmatpush1.msra.mxu0 0.0
    %3669 = vmatprep.subr.mxu0 0.0
    %3670 = vmatpush1.msra.mxu0 0.0
    %3671 = vmatprep.subr.mxu0 0.0
    %3672 = vmatpush1.msra.mxu0 0.0
    %3673 = vmatprep.subr.mxu0 0.0
    %3674 = vmatpush1.msra.mxu0 0.0
    %3675 = vmatprep.subr.mxu0 0.0
    %3676 = vmatpush1.msra.mxu0 0.0
    %3677 = vmatprep.subr.mxu0 0.0
    %3678 = vmatpush1.msra.mxu0 0.0
    %3679 = vmatprep.subr.mxu0 0.0
    %3680 = vmatpush1.msra.mxu0 0.0
    %3681 = vmatprep.subr.mxu0 0.0
    %3682 = vmatpush1.msra.mxu0 0.0
    %3683 = vmatprep.subr.mxu0 0.0
    %3684 = vmatpush1.msra.mxu0 0.0
    %3685 = vmatprep.subr.mxu0 0.0
    %3686 = vmatpush1.msra.mxu0 0.0
    %3687 = vmatprep.mubr.f32.mxu0 0.0
    %3688 = vmatmul.mubr.f32.gmra.mrb[0].mxu0 %v3621
    %v3689 = vpop.f32.mrb[0].mxu0
    %v3690 = vadd.f32 %v3124, %v3689
    %v3691 = vpop.f32.mrb[0].mxu0
    %3692 = vdwg.mxu0
    %v3694 = vrot.slane %v3690, 5
    %v3696 = vadd.f32 %v3198, %v3694
    %v3697 = vxor.u32 %v3696, 2147483648
    %v3698 = vmul.f32 %v3697, 1.442695
    %v3699 = vpow.pop %v3698
    %v3700 = vadd.f32 %v3699, 1.0
    %v3701 = vrcp.pop %v3700
    %v3702 = vmul.f32 1.0, %v3701
    %3703 = vrot.lane.b32.xlu0 %v3694, 64
    %v3704 = vpop.permute.xlu0 %3703
    %v3706 = vmul.f32 %v3702, %v3704
    %3708 = vrot.lane.b32.xlu0 %v3706, 64
    %v3709 = vpop.permute.xlu0 %3708
    %v3711 = vadd.f32 %v3198, %v3709
    %v3712 = vtanh.pop %v3711
    %v3713 = vsub.f32 1.0, %v3702
    %3715 = vrot.lane.b32.xlu0 %v3712, 96
    %v3716 = vpop.permute.xlu0 %3715
    %v3718 = vmul.f32 %v3713, %v3716
    %v3719 = vrot.slane %v3616, 1
    %v3721 = vmul.f32 %v3702, %v3719
    %v3722 = vadd.f32 %v3718, %v3721
    %v3724 = vrot.slane %v3722, 3
    %3725 = vrot.lane.b32.xlu0 %v3724, 96
    %v3726 = vpop.permute.xlu0 %3725
    %v3727 = vsel %vm302, %v3726, 0
    %3729 = vmatprep.subr.mxu0 0.0
    %3730 = vmatpush1.msra.mxu0 %v3117
    %3731 = vmatprep.subr.mxu0 0.0
    %3732 = vmatpush1.msra.mxu0 %v3118
    %3733 = vmatprep.subr.mxu0 0.0
    %3734 = vmatpush1.msra.mxu0 %v3119
    %3735 = vmatprep.subr.mxu0 0.0
    %3736 = vmatpush1.msra.mxu0 %v3120
    %3737 = vmatprep.subr.mxu0 0.0
    %3738 = vmatpush1.msra.mxu0 0.0
    %3739 = vmatprep.subr.mxu0 0.0
    %3740 = vmatpush1.msra.mxu0 0.0
    %3741 = vmatprep.subr.mxu0 0.0
    %3742 = vmatpush1.msra.mxu0 0.0
    %3743 = vmatprep.subr.mxu0 0.0
    %3744 = vmatpush1.msra.mxu0 0.0
    %3745 = vmatprep.subr.mxu0 0.0
    %3746 = vmatpush1.msra.mxu0 0.0
    %3747 = vmatprep.subr.mxu0 0.0
    %3748 = vmatpush1.msra.mxu0 0.0
    %3749 = vmatprep.subr.mxu0 0.0
    %3750 = vmatpush1.msra.mxu0 0.0
    %3751 = vmatprep.subr.mxu0 0.0
    %3752 = vmatpush1.msra.mxu0 0.0
    %3753 = vmatprep.subr.mxu0 0.0
    %3754 = vmatpush1.msra.mxu0 0.0
    %3755 = vmatprep.subr.mxu0 0.0
    %3756 = vmatpush1.msra.mxu0 0.0
    %3757 = vmatprep.subr.mxu0 0.0
    %3758 = vmatpush1.msra.mxu0 0.0
    %3759 = vmatprep.subr.mxu0 0.0
    %3760 = vmatpush1.msra.mxu0 0.0
    %3761 = vmatprep.subr.mxu0 0.0
    %3762 = vmatpush1.msra.mxu0 0.0
    %3763 = vmatprep.subr.mxu0 0.0
    %3764 = vmatpush1.msra.mxu0 0.0
    %3765 = vmatprep.subr.mxu0 0.0
    %3766 = vmatpush1.msra.mxu0 0.0
    %3767 = vmatprep.subr.mxu0 0.0
    %3768 = vmatpush1.msra.mxu0 0.0
    %3769 = vmatprep.subr.mxu0 0.0
    %3770 = vmatpush1.msra.mxu0 0.0
    %3771 = vmatprep.subr.mxu0 0.0
    %3772 = vmatpush1.msra.mxu0 0.0
    %3773 = vmatprep.subr.mxu0 0.0
    %3774 = vmatpush1.msra.mxu0 0.0
    %3775 = vmatprep.subr.mxu0 0.0
    %3776 = vmatpush1.msra.mxu0 0.0
    %3777 = vmatprep.subr.mxu0 0.0
    %3778 = vmatpush1.msra.mxu0 0.0
    %3779 = vmatprep.subr.mxu0 0.0
    %3780 = vmatpush1.msra.mxu0 0.0
    %3781 = vmatprep.subr.mxu0 0.0
    %3782 = vmatpush1.msra.mxu0 0.0
    %3783 = vmatprep.subr.mxu0 0.0
    %3784 = vmatpush1.msra.mxu0 0.0
    %3785 = vmatprep.subr.mxu0 0.0
    %3786 = vmatpush1.msra.mxu0 0.0
    %3787 = vmatprep.subr.mxu0 0.0
    %3788 = vmatpush1.msra.mxu0 0.0
    %3789 = vmatprep.subr.mxu0 0.0
    %3790 = vmatpush1.msra.mxu0 0.0
    %3791 = vmatprep.subr.mxu0 0.0
    %3792 = vmatpush1.msra.mxu0 0.0
    %3793 = vmatprep.mubr.f32.mxu0 0.0
    %3794 = vmatmul.mubr.f32.gmra.mrb[0].mxu0 %v3727
    %v3795 = vpop.f32.mrb[0].mxu0
    %v3796 = vadd.f32 %v3124, %v3795
    %v3797 = vpop.f32.mrb[0].mxu0
    %3798 = vdwg.mxu0
    %v3800 = vrot.slane %v3796, 6
    %v3802 = vadd.f32 %v3198, %v3800
    %v3803 = vxor.u32 %v3802, 2147483648
    %v3804 = vmul.f32 %v3803, 1.442695
    %v3805 = vpow.pop %v3804
    %v3806 = vadd.f32 %v3805, 1.0
    %v3807 = vrcp.pop %v3806
    %v3808 = vmul.f32 1.0, %v3807
    %3809 = vrot.lane.b32.xlu0 %v3800, 64
    %v3810 = vpop.permute.xlu0 %3809
    %v3812 = vmul.f32 %v3808, %v3810
    %3814 = vrot.lane.b32.xlu0 %v3812, 64
    %v3815 = vpop.permute.xlu0 %3814
    %v3817 = vadd.f32 %v3198, %v3815
    %v3818 = vtanh.pop %v3817
    %v3819 = vsub.f32 1.0, %v3808
    %3821 = vrot.lane.b32.xlu0 %v3818, 96
    %v3822 = vpop.permute.xlu0 %3821
    %v3824 = vmul.f32 %v3819, %v3822
    %v3825 = vrot.slane %v3722, 1
    %v3827 = vmul.f32 %v3808, %v3825
    %v3828 = vadd.f32 %v3824, %v3827
    %v3830 = vrot.slane %v3828, 2
    %3831 = vrot.lane.b32.xlu0 %v3830, 96
    %v3832 = vpop.permute.xlu0 %3831
    %v3833 = vsel %vm302, %v3832, 0
    %3835 = vmatprep.subr.mxu0 0.0
    %3836 = vmatpush1.msra.mxu0 %v3117
    %3837 = vmatprep.subr.mxu0 0.0
    %3838 = vmatpush1.msra.mxu0 %v3118
    %3839 = vmatprep.subr.mxu0 0.0
    %3840 = vmatpush1.msra.mxu0 %v3119
    %3841 = vmatprep.subr.mxu0 0.0
    %3842 = vmatpush1.msra.mxu0 %v3120
    %3843 = vmatprep.subr.mxu0 0.0
    %3844 = vmatpush1.msra.mxu0 0.0
    %3845 = vmatprep.subr.mxu0 0.0
    %3846 = vmatpush1.msra.mxu0 0.0
    %3847 = vmatprep.subr.mxu0 0.0
    %3848 = vmatpush1.msra.mxu0 0.0
    %3849 = vmatprep.subr.mxu0 0.0
    %3850 = vmatpush1.msra.mxu0 0.0
    %3851 = vmatprep.subr.mxu0 0.0
    %3852 = vmatpush1.msra.mxu0 0.0
    %3853 = vmatprep.subr.mxu0 0.0
    %3854 = vmatpush1.msra.mxu0 0.0
    %3855 = vmatprep.subr.mxu0 0.0
    %3856 = vmatpush1.msra.mxu0 0.0
    %3857 = vmatprep.subr.mxu0 0.0
    %3858 = vmatpush1.msra.mxu0 0.0
    %3859 = vmatprep.subr.mxu0 0.0
    %3860 = vmatpush1.msra.mxu0 0.0
    %3861 = vmatprep.subr.mxu0 0.0
    %3862 = vmatpush1.msra.mxu0 0.0
    %3863 = vmatprep.subr.mxu0 0.0
    %3864 = vmatpush1.msra.mxu0 0.0
    %3865 = vmatprep.subr.mxu0 0.0
    %3866 = vmatpush1.msra.mxu0 0.0
    %3867 = vmatprep.subr.mxu0 0.0
    %3868 = vmatpush1.msra.mxu0 0.0
    %3869 = vmatprep.subr.mxu0 0.0
    %3870 = vmatpush1.msra.mxu0 0.0
    %3871 = vmatprep.subr.mxu0 0.0
    %3872 = vmatpush1.msra.mxu0 0.0
    %3873 = vmatprep.subr.mxu0 0.0
    %3874 = vmatpush1.msra.mxu0 0.0
    %3875 = vmatprep.subr.mxu0 0.0
    %3876 = vmatpush1.msra.mxu0 0.0
    %3877 = vmatprep.subr.mxu0 0.0
    %3878 = vmatpush1.msra.mxu0 0.0
    %3879 = vmatprep.subr.mxu0 0.0
    %3880 = vmatpush1.msra.mxu0 0.0
    %3881 = vmatprep.subr.mxu0 0.0
    %3882 = vmatpush1.msra.mxu0 0.0
    %3883 = vmatprep.subr.mxu0 0.0
    %3884 = vmatpush1.msra.mxu0 0.0
    %3885 = vmatprep.subr.mxu0 0.0
    %3886 = vmatpush1.msra.mxu0 0.0
    %3887 = vmatprep.subr.mxu0 0.0
    %3888 = vmatpush1.msra.mxu0 0.0
    %3889 = vmatprep.subr.mxu0 0.0
    %3890 = vmatpush1.msra.mxu0 0.0
    %3891 = vmatprep.subr.mxu0 0.0
    %3892 = vmatpush1.msra.mxu0 0.0
    %3893 = vmatprep.subr.mxu0 0.0
    %3894 = vmatpush1.msra.mxu0 0.0
    %3895 = vmatprep.subr.mxu0 0.0
    %3896 = vmatpush1.msra.mxu0 0.0
    %3897 = vmatprep.subr.mxu0 0.0
    %3898 = vmatpush1.msra.mxu0 0.0
    %3899 = vmatprep.mubr.f32.mxu0 0.0
    %3900 = vmatmul.mubr.f32.gmra.mrb[0].mxu0 %v3833
    %v3901 = vpop.f32.mrb[0].mxu0
    %v3902 = vadd.f32 %v3124, %v3901
    %v3903 = vpop.f32.mrb[0].mxu0
    %3904 = vdwg.mxu0
    %v3906 = vrot.slane %v3902, 7
    %v3908 = vadd.f32 %v3198, %v3906
    %v3909 = vxor.u32 %v3908, 2147483648
    %v3910 = vmul.f32 %v3909, 1.442695
    %v3911 = vpow.pop %v3910
    %v3912 = vadd.f32 %v3911, 1.0
    %v3913 = vrcp.pop %v3912
    %v3914 = vmul.f32 1.0, %v3913
    %3915 = vrot.lane.b32.xlu0 %v3906, 64
    %v3916 = vpop.permute.xlu0 %3915
    %v3918 = vmul.f32 %v3914, %v3916
    %3920 = vrot.lane.b32.xlu0 %v3918, 64
    %v3921 = vpop.permute.xlu0 %3920
    %v3923 = vadd.f32 %v3198, %v3921
    %v3924 = vtanh.pop %v3923
    %v3925 = vsub.f32 1.0, %v3914
    %3927 = vrot.lane.b32.xlu0 %v3924, 96
    %v3928 = vpop.permute.xlu0 %3927
    %v3930 = vmul.f32 %v3925, %v3928
    %v3931 = vrot.slane %v3828, 1
    %v3933 = vmul.f32 %v3914, %v3931
    %v3934 = vadd.f32 %v3930, %v3933
    %v3936 = vrot.slane %v3934, 1
    %3937 = vrot.lane.b32.xlu0 %v3936, 96
    %v3938 = vpop.permute.xlu0 %3937
    %v3939 = vsel %vm302, %v3938, 0
    %3941 = vmatprep.subr.mxu0 0.0
    %3942 = vmatpush1.msra.mxu0 %v3117
    %3943 = vmatprep.subr.mxu0 0.0
    %3944 = vmatpush1.msra.mxu0 %v3118
    %3945 = vmatprep.subr.mxu0 0.0
    %3946 = vmatpush1.msra.mxu0 %v3119
    %3947 = vmatprep.subr.mxu0 0.0
    %3948 = vmatpush1.msra.mxu0 %v3120
    %3949 = vmatprep.subr.mxu0 0.0
    %3950 = vmatpush1.msra.mxu0 0.0
    %3951 = vmatprep.subr.mxu0 0.0
    %3952 = vmatpush1.msra.mxu0 0.0
    %3953 = vmatprep.subr.mxu0 0.0
    %3954 = vmatpush1.msra.mxu0 0.0
    %3955 = vmatprep.subr.mxu0 0.0
    %3956 = vmatpush1.msra.mxu0 0.0
    %3957 = vmatprep.subr.mxu0 0.0
    %3958 = vmatpush1.msra.mxu0 0.0
    %3959 = vmatprep.subr.mxu0 0.0
    %3960 = vmatpush1.msra.mxu0 0.0
    %3961 = vmatprep.subr.mxu0 0.0
    %3962 = vmatpush1.msra.mxu0 0.0
    %3963 = vmatprep.subr.mxu0 0.0
    %3964 = vmatpush1.msra.mxu0 0.0
    %3965 = vmatprep.subr.mxu0 0.0
    %3966 = vmatpush1.msra.mxu0 0.0
    %3967 = vmatprep.subr.mxu0 0.0
    %3968 = vmatpush1.msra.mxu0 0.0
    %3969 = vmatprep.subr.mxu0 0.0
    %3970 = vmatpush1.msra.mxu0 0.0
    %3971 = vmatprep.subr.mxu0 0.0
    %3972 = vmatpush1.msra.mxu0 0.0
    %3973 = vmatprep.subr.mxu0 0.0
    %3974 = vmatpush1.msra.mxu0 0.0
    %3975 = vmatprep.subr.mxu0 0.0
    %3976 = vmatpush1.msra.mxu0 0.0
    %3977 = vmatprep.subr.mxu0 0.0
    %3978 = vmatpush1.msra.mxu0 0.0
    %3979 = vmatprep.subr.mxu0 0.0
    %3980 = vmatpush1.msra.mxu0 0.0
    %3981 = vmatprep.subr.mxu0 0.0
    %3982 = vmatpush1.msra.mxu0 0.0
    %3983 = vmatprep.subr.mxu0 0.0
    %3984 = vmatpush1.msra.mxu0 0.0
    %3985 = vmatprep.subr.mxu0 0.0
    %3986 = vmatpush1.msra.mxu0 0.0
    %3987 = vmatprep.subr.mxu0 0.0
    %3988 = vmatpush1.msra.mxu0 0.0
    %3989 = vmatprep.subr.mxu0 0.0
    %3990 = vmatpush1.msra.mxu0 0.0
    %3991 = vmatprep.subr.mxu0 0.0
    %3992 = vmatpush1.msra.mxu0 0.0
    %3993 = vmatprep.subr.mxu0 0.0
    %3994 = vmatpush1.msra.mxu0 0.0
    %3995 = vmatprep.subr.mxu0 0.0
    %3996 = vmatpush1.msra.mxu0 0.0
    %3997 = vmatprep.subr.mxu0 0.0
    %3998 = vmatpush1.msra.mxu0 0.0
    %3999 = vmatprep.subr.mxu0 0.0
    %4000 = vmatpush1.msra.mxu0 0.0
    %4001 = vmatprep.subr.mxu0 0.0
    %4002 = vmatpush1.msra.mxu0 0.0
    %4003 = vmatprep.subr.mxu0 0.0
    %4004 = vmatpush1.msra.mxu0 0.0
    %4005 = vmatprep.mubr.f32.mxu0 0.0
    %4006 = vmatmul.mubr.f32.gmra.mrb[0].mxu0 %v3939
    %v4007 = vpop.f32.mrb[0].mxu0
    %v4008 = vadd.f32 %v3124, %v4007
    %v4009 = vpop.f32.mrb[0].mxu0
    %4010 = vdwg.mxu0
    %v4011 = vadd.f32 %v3198, %v4008
    %v4012 = vxor.u32 %v4011, 2147483648
    %v4013 = vmul.f32 %v4012, 1.442695
    %v4014 = vpow.pop %v4013
    %v4015 = vadd.f32 %v4014, 1.0
    %v4016 = vrcp.pop %v4015
    %v4017 = vmul.f32 1.0, %v4016
    %4019 = vrot.lane.b32.xlu0 %v4008, 64
    %v4020 = vpop.permute.xlu0 %4019
    %v4022 = vmul.f32 %v4017, %v4020
    %4024 = vrot.lane.b32.xlu0 %v4022, 64
    %v4025 = vpop.permute.xlu0 %4024
    %v4027 = vadd.f32 %v3198, %v4025
    %v4028 = vtanh.pop %v4027
    %v4029 = vsub.f32 1.0, %v4017
    %4031 = vrot.lane.b32.xlu0 %v4028, 96
    %v4032 = vpop.permute.xlu0 %4031
    %v4034 = vmul.f32 %v4029, %v4032
    %v4036 = vmul.f32 %v4017, %v3936
    %v4037 = vadd.f32 %v4034, %v4036
    %v4038 = vsel %vm1216, %v4037, %v3934
    %v4039 = vsel %vm1218, %v4038, %v3828
    %v4040 = vsel %vm1220, %v4039, %v3722
    %v4041 = vsel %vm1222, %v4040, %v3616
    %v4042 = vsel %vm1224, %v4041, %v3510
    %v4043 = vsel %vm1226, %v4042, %v3404
    %v4044 = vsel %vm1228, %v4043, %v3298
    %v4045 = vadd.f32 %v3106, %v4044
    %v4046 = vld [vmem:[#allocation12] sm:$0xff]
    %v4047 = vld [vmem:[#allocation12 + $0x8] sm:$0xf]
    %v4048 = vld [vmem:[%s10] sm:$0xff]
    %v4049 = vld [vmem:[%s10 + $0x8] sm:$0xff]
    %v4050 = vld [vmem:[%s10 + $0x10] sm:$0xff]
    %v4051 = vld [vmem:[%s10 + $0x18] sm:$0xff]
    %4053 = vrot.lane.b32.xlu0 %v4045, 96
    %v4054 = vpop.permute.xlu0 %4053
    %v4055 = vsel %vm302, %v4054, 0
    %4057 = vmatprep.subr.mxu0 0.0
    %4058 = vmatpush1.msra.mxu0 %v4048
    %4059 = vmatprep.subr.mxu0 0.0
    %4060 = vmatpush1.msra.mxu0 %v4049
    %4061 = vmatprep.subr.mxu0 0.0
    %4062 = vmatpush1.msra.mxu0 %v4050
    %4063 = vmatprep.subr.mxu0 0.0
    %4064 = vmatpush1.msra.mxu0 %v4051
    %4065 = vmatprep.subr.mxu0 0.0
    %4066 = vmatpush1.msra.mxu0 0.0
    %4067 = vmatprep.subr.mxu0 0.0
    %4068 = vmatpush1.msra.mxu0 0.0
    %4069 = vmatprep.subr.mxu0 0.0
    %4070 = vmatpush1.msra.mxu0 0.0
    %4071 = vmatprep.subr.mxu0 0.0
    %4072 = vmatpush1.msra.mxu0 0.0
    %4073 = vmatprep.subr.mxu0 0.0
    %4074 = vmatpush1.msra.mxu0 0.0
    %4075 = vmatprep.subr.mxu0 0.0
    %4076 = vmatpush1.msra.mxu0 0.0
    %4077 = vmatprep.subr.mxu0 0.0
    %4078 = vmatpush1.msra.mxu0 0.0
    %4079 = vmatprep.subr.mxu0 0.0
    %4080 = vmatpush1.msra.mxu0 0.0
    %4081 = vmatprep.subr.mxu0 0.0
    %4082 = vmatpush1.msra.mxu0 0.0
    %4083 = vmatprep.subr.mxu0 0.0
    %4084 = vmatpush1.msra.mxu0 0.0
    %4085 = vmatprep.subr.mxu0 0.0
    %4086 = vmatpush1.msra.mxu0 0.0
    %4087 = vmatprep.subr.mxu0 0.0
    %4088 = vmatpush1.msra.mxu0 0.0
    %4089 = vmatprep.subr.mxu0 0.0
    %4090 = vmatpush1.msra.mxu0 0.0
    %4091 = vmatprep.subr.mxu0 0.0
    %4092 = vmatpush1.msra.mxu0 0.0
    %4093 = vmatprep.subr.mxu0 0.0
    %4094 = vmatpush1.msra.mxu0 0.0
    %4095 = vmatprep.subr.mxu0 0.0
    %4096 = vmatpush1.msra.mxu0 0.0
    %4097 = vmatprep.subr.mxu0 0.0
    %4098 = vmatpush1.msra.mxu0 0.0
    %4099 = vmatprep.subr.mxu0 0.0
    %4100 = vmatpush1.msra.mxu0 0.0
    %4101 = vmatprep.subr.mxu0 0.0
    %4102 = vmatpush1.msra.mxu0 0.0
    %4103 = vmatprep.subr.mxu0 0.0
    %4104 = vmatpush1.msra.mxu0 0.0
    %4105 = vmatprep.subr.mxu0 0.0
    %4106 = vmatpush1.msra.mxu0 0.0
    %4107 = vmatprep.subr.mxu0 0.0
    %4108 = vmatpush1.msra.mxu0 0.0
    %4109 = vmatprep.subr.mxu0 0.0
    %4110 = vmatpush1.msra.mxu0 0.0
    %4111 = vmatprep.subr.mxu0 0.0
    %4112 = vmatpush1.msra.mxu0 0.0
    %4113 = vmatprep.subr.mxu0 0.0
    %4114 = vmatpush1.msra.mxu0 0.0
    %4115 = vmatprep.subr.mxu0 0.0
    %4116 = vmatpush1.msra.mxu0 0.0
    %4117 = vmatprep.subr.mxu0 0.0
    %4118 = vmatpush1.msra.mxu0 0.0
    %4119 = vmatprep.subr.mxu0 0.0
    %4120 = vmatpush1.msra.mxu0 0.0
    %4121 = vmatprep.mubr.f32.mxu0 0.0
    %4122 = vmatmul.mubr.f32.gmra.mrb[0].mxu0 %v4055
    %v4123 = vpop.f32.mrb[0].mxu0
    %v4124 = vadd.f32 0.0, %v4123
    %v4125 = vpop.f32.mrb[0].mxu0
    %4126 = vdwg.mxu0
    %v4127 = vld [vmem:[%s12] sm:$0x1]
    %v4128 = vld [vmem:[%s21] sm:$0xff]
    %v4129 = vld [vmem:[%s21 + $0x8] sm:$0xff]
    %v4130 = vld [vmem:[%s21 + $0x10] sm:$0xff]
    %v4131 = vld [vmem:[%s21 + $0x18] sm:$0xff]
    %v4132 = vld [vmem:[%s21 + $0x20] sm:$0xff]
    %v4133 = vld [vmem:[%s21 + $0x28] sm:$0xff]
    %v4134 = vld [vmem:[%s21 + $0x30] sm:$0xff]
    %v4135 = vld [vmem:[%s21 + $0x38] sm:$0xff]
    %v4136 = vld [vmem:[%s22] sm:$0x1]
    %v4137 = vld [vmem:[#allocation13] sm:$0xff]
    %v4138 = vld [vmem:[#allocation13 + $0x8] sm:$0xff]
    %v4139 = vld [vmem:[#allocation13 + $0x10] sm:$0xff]
    %v4140 = vld [vmem:[#allocation13 + $0x18] sm:$0xff]
    %4142 = vrot.lane.b32.xlu0 %v4037, 96
    %v4143 = vpop.permute.xlu0 %4142
    %v4144 = vsel %vm302, %v4143, 0
    %4146 = vmatprep.subr.mxu0 0.0
    %4147 = vmatpush1.msra.mxu0 %v4137
    %4148 = vmatprep.subr.mxu0 0.0
    %4149 = vmatpush1.msra.mxu0 %v4138
    %4150 = vmatprep.subr.mxu0 0.0
    %4151 = vmatpush1.msra.mxu0 %v4139
    %4152 = vmatprep.subr.mxu0 0.0
    %4153 = vmatpush1.msra.mxu0 %v4140
    %4154 = vmatprep.subr.mxu0 0.0
    %4155 = vmatpush1.msra.mxu0 0.0
    %4156 = vmatprep.subr.mxu0 0.0
    %4157 = vmatpush1.msra.mxu0 0.0
    %4158 = vmatprep.subr.mxu0 0.0
    %4159 = vmatpush1.msra.mxu0 0.0
    %4160 = vmatprep.subr.mxu0 0.0
    %4161 = vmatpush1.msra.mxu0 0.0
    %4162 = vmatprep.subr.mxu0 0.0
    %4163 = vmatpush1.msra.mxu0 0.0
    %4164 = vmatprep.subr.mxu0 0.0
    %4165 = vmatpush1.msra.mxu0 0.0
    %4166 = vmatprep.subr.mxu0 0.0
    %4167 = vmatpush1.msra.mxu0 0.0
    %4168 = vmatprep.subr.mxu0 0.0
    %4169 = vmatpush1.msra.mxu0 0.0
    %4170 = vmatprep.subr.mxu0 0.0
    %4171 = vmatpush1.msra.mxu0 0.0
    %4172 = vmatprep.subr.mxu0 0.0
    %4173 = vmatpush1.msra.mxu0 0.0
    %4174 = vmatprep.subr.mxu0 0.0
    %4175 = vmatpush1.msra.mxu0 0.0
    %4176 = vmatprep.subr.mxu0 0.0
    %4177 = vmatpush1.msra.mxu0 0.0
    %4178 = vmatprep.subr.mxu0 0.0
    %4179 = vmatpush1.msra.mxu0 0.0
    %4180 = vmatprep.subr.mxu0 0.0
    %4181 = vmatpush1.msra.mxu0 0.0
    %4182 = vmatprep.subr.mxu0 0.0
    %4183 = vmatpush1.msra.mxu0 0.0
    %4184 = vmatprep.subr.mxu0 0.0
    %4185 = vmatpush1.msra.mxu0 0.0
    %4186 = vmatprep.subr.mxu0 0.0
    %4187 = vmatpush1.msra.mxu0 0.0
    %4188 = vmatprep.subr.mxu0 0.0
    %4189 = vmatpush1.msra.mxu0 0.0
    %4190 = vmatprep.subr.mxu0 0.0
    %4191 = vmatpush1.msra.mxu0 0.0
    %4192 = vmatprep.subr.mxu0 0.0
    %4193 = vmatpush1.msra.mxu0 0.0
    %4194 = vmatprep.subr.mxu0 0.0
    %4195 = vmatpush1.msra.mxu0 0.0
    %4196 = vmatprep.subr.mxu0 0.0
    %4197 = vmatpush1.msra.mxu0 0.0
    %4198 = vmatprep.subr.mxu0 0.0
    %4199 = vmatpush1.msra.mxu0 0.0
    %4200 = vmatprep.subr.mxu0 0.0
    %4201 = vmatpush1.msra.mxu0 0.0
    %4202 = vmatprep.subr.mxu0 0.0
    %4203 = vmatpush1.msra.mxu0 0.0
    %4204 = vmatprep.subr.mxu0 0.0
    %4205 = vmatpush1.msra.mxu0 0.0
    %4206 = vmatprep.subr.mxu0 0.0
    %4207 = vmatpush1.msra.mxu0 0.0
    %4208 = vmatprep.subr.mxu0 0.0
    %4209 = vmatpush1.msra.mxu0 0.0
    %4210 = vmatprep.mubr.f32.mxu0 0.0
    %4211 = vmatmul.mubr.f32.gmra.mrb[0].mxu0 %v4144
    %v4212 = vpop.f32.mrb[0].mxu0
    %v4213 = vadd.f32 0.0, %v4212
    %v4214 = vpop.f32.mrb[0].mxu0
    %4215 = vdwg.mxu0
    %v4216 = vlaneseq
    %v4217 = vshrl.u32 %v4216, 7
    %v4218 = vsub.s32 0, %v4217
    %v4219 = vrot.slane %v4213, %v4218
    %v4220 = vadd.f32 %v4124, %v4219
    %v4221 = vtanh.pop %v4220
    %v4223 = vlaneseq
    %v4224 = vshrl.u32 %v4223, 7
    %v4225 = vsub.s32 0, %v4224
    %v4226 = vrot.slane %v4127, %v4225
    %v4228 = vmul.f32 %v4221, %v4226
    %v4229 = vsel %vm302, %v4228, 0.0
    %4230 = vadd.xlane.f32.xlu0 %v4229
    %v4231 = vpop.xlane.xlu0 %4230
    %v4232 = vrot.slane %v4231, 4
    %v4233 = vmax.f32 %v4231, %v4232
    %v4234 = vrot.slane %v4233, 2
    %v4235 = vmax.f32 %v4233, %v4234
    %v4236 = vrot.slane %v4235, 1
    %v4237 = vmax.f32 %v4235, %v4236
    %v4238 = vsub.f32 %v4231, %v4237
    %v4239 = vmul.f32 %v4238, 1.442695
    %v4240 = vpow.pop %v4239
    %v4241 = vrot.slane %v4240, 4
    %v4242 = vadd.f32 %v4240, %v4241
    %v4243 = vrot.slane %v4242, 2
    %v4244 = vadd.f32 %v4242, %v4243
    %v4245 = vrot.slane %v4244, 1
    %v4246 = vadd.f32 %v4244, %v4245
    %v4247 = vrcp.pop %v4246
    %v4248 = vmul.f32 %v4240, %v4247
    %v4249 = vmul.f32 %v4248, %v4045
    %vm4250 = vcmask 523520
    %v4251 = vsel %vm4250, %v4249, 0.0
    %v4252 = vrot.slane %v4251, 4
    %v4253 = vadd.f32 %v4251, %v4252
    %v4254 = vrot.slane %v4253, 2
    %v4255 = vadd.f32 %v4253, %v4254
    %v4256 = vrot.slane %v4255, 1
    %v4257 = vadd.f32 %v4255, %v4256
    %v4258 = vsel %vm302, %v4046, %v4257
    %v4259 = vld [vmem:[#allocation15] sm:$0xff]
    %v4260 = vld [vmem:[#allocation15 + $0x8] sm:$0xff]
    %v4261 = vld [vmem:[#allocation15 + $0x10] sm:$0xff]
    %v4262 = vld [vmem:[#allocation15 + $0x18] sm:$0xff]
    %v4263 = vld [vmem:[#allocation15 + $0x20] sm:$0xff]
    %v4264 = vld [vmem:[#allocation15 + $0x28] sm:$0xff]
    %v4265 = vld [vmem:[#allocation15 + $0x30] sm:$0xff]
    %v4266 = vld [vmem:[#allocation15 + $0x38] sm:$0xff]
    %v4267 = vld [vmem:[#allocation18] sm:$0x1]
    %v4269 = vrot.slane %v4258, 1
    %v4270 = vsel %vm2189, %v4269, 0
    %4272 = vmatprep.subr.mxu0 0.0
    %4273 = vmatpush1.msra.mxu0 %v4259
    %4274 = vmatprep.subr.mxu0 0.0
    %4275 = vmatpush1.msra.mxu0 %v4260
    %4276 = vmatprep.subr.mxu0 0.0
    %4277 = vmatpush1.msra.mxu0 %v4261
    %4278 = vmatprep.subr.mxu0 0.0
    %4279 = vmatpush1.msra.mxu0 %v4262
    %4280 = vmatprep.subr.mxu0 0.0
    %4281 = vmatpush1.msra.mxu0 %v4263
    %4282 = vmatprep.subr.mxu0 0.0
    %4283 = vmatpush1.msra.mxu0 %v4264
    %4284 = vmatprep.subr.mxu0 0.0
    %4285 = vmatpush1.msra.mxu0 %v4265
    %4286 = vmatprep.subr.mxu0 0.0
    %4287 = vmatpush1.msra.mxu0 %v4266
    %4288 = vmatprep.subr.mxu0 0.0
    %4289 = vmatpush1.msra.mxu0 0.0
    %4290 = vmatprep.subr.mxu0 0.0
    %4291 = vmatpush1.msra.mxu0 0.0
    %4292 = vmatprep.subr.mxu0 0.0
    %4293 = vmatpush1.msra.mxu0 0.0
    %4294 = vmatprep.subr.mxu0 0.0
    %4295 = vmatpush1.msra.mxu0 0.0
    %4296 = vmatprep.subr.mxu0 0.0
    %4297 = vmatpush1.msra.mxu0 0.0
    %4298 = vmatprep.subr.mxu0 0.0
    %4299 = vmatpush1.msra.mxu0 0.0
    %4300 = vmatprep.subr.mxu0 0.0
    %4301 = vmatpush1.msra.mxu0 0.0
    %4302 = vmatprep.subr.mxu0 0.0
    %4303 = vmatpush1.msra.mxu0 0.0
    %4304 = vmatprep.subr.mxu0 0.0
    %4305 = vmatpush1.msra.mxu0 0.0
    %4306 = vmatprep.subr.mxu0 0.0
    %4307 = vmatpush1.msra.mxu0 0.0
    %4308 = vmatprep.subr.mxu0 0.0
    %4309 = vmatpush1.msra.mxu0 0.0
    %4310 = vmatprep.subr.mxu0 0.0
    %4311 = vmatpush1.msra.mxu0 0.0
    %4312 = vmatprep.subr.mxu0 0.0
    %4313 = vmatpush1.msra.mxu0 0.0
    %4314 = vmatprep.subr.mxu0 0.0
    %4315 = vmatpush1.msra.mxu0 0.0
    %4316 = vmatprep.subr.mxu0 0.0
    %4317 = vmatpush1.msra.mxu0 0.0
    %4318 = vmatprep.subr.mxu0 0.0
    %4319 = vmatpush1.msra.mxu0 0.0
    %4320 = vmatprep.subr.mxu0 0.0
    %4321 = vmatpush1.msra.mxu0 0.0
    %4322 = vmatprep.subr.mxu0 0.0
    %4323 = vmatpush1.msra.mxu0 0.0
    %4324 = vmatprep.subr.mxu0 0.0
    %4325 = vmatpush1.msra.mxu0 0.0
    %4326 = vmatprep.subr.mxu0 0.0
    %4327 = vmatpush1.msra.mxu0 0.0
    %4328 = vmatprep.subr.mxu0 0.0
    %4329 = vmatpush1.msra.mxu0 0.0
    %4330 = vmatprep.subr.mxu0 0.0
    %4331 = vmatpush1.msra.mxu0 0.0
    %4332 = vmatprep.subr.mxu0 0.0
    %4333 = vmatpush1.msra.mxu0 0.0
    %4334 = vmatprep.subr.mxu0 0.0
    %4335 = vmatpush1.msra.mxu0 0.0
    %4336 = vmatprep.mubr.f32.mxu0 0.0
    %4337 = vmatmul.mubr.f32.gmra.mrb[0].mxu0 %v4270
    %v4338 = vpop.f32.mrb[0].mxu0
    %v4339 = vadd.f32 %v4267, %v4338
    %v4340 = vpop.f32.mrb[0].mxu0
    %4341 = vdwg.mxu0
    %v4342 = vld [vmem:[#allocation16] sm:$0xff]
    %v4343 = vld [vmem:[#allocation16 + $0x8] sm:$0xff]
    %v4344 = vld [vmem:[#allocation16 + $0x10] sm:$0xff]
    %v4345 = vld [vmem:[#allocation16 + $0x18] sm:$0xff]
    %v4346 = vld [vmem:[#allocation19] sm:$0x1]
    %v4348 = vrot.slane %v3099, 7
    %4349 = vrot.lane.b32.xlu0 %v4348, 96
    %v4350 = vpop.permute.xlu0 %4349
    %v4351 = vsel %vm302, %v4350, 0
    %4353 = vmatprep.subr.mxu0 0.0
    %4354 = vmatpush1.msra.mxu0 %v4342
    %4355 = vmatprep.subr.mxu0 0.0
    %4356 = vmatpush1.msra.mxu0 %v4343
    %4357 = vmatprep.subr.mxu0 0.0
    %4358 = vmatpush1.msra.mxu0 %v4344
    %4359 = vmatprep.subr.mxu0 0.0
    %4360 = vmatpush1.msra.mxu0 %v4345
    %4361 = vmatprep.subr.mxu0 0.0
    %4362 = vmatpush1.msra.mxu0 0.0
    %4363 = vmatprep.subr.mxu0 0.0
    %4364 = vmatpush1.msra.mxu0 0.0
    %4365 = vmatprep.subr.mxu0 0.0
    %4366 = vmatpush1.msra.mxu0 0.0
    %4367 = vmatprep.subr.mxu0 0.0
    %4368 = vmatpush1.msra.mxu0 0.0
    %4369 = vmatprep.subr.mxu0 0.0
    %4370 = vmatpush1.msra.mxu0 0.0
    %4371 = vmatprep.subr.mxu0 0.0
    %4372 = vmatpush1.msra.mxu0 0.0
    %4373 = vmatprep.subr.mxu0 0.0
    %4374 = vmatpush1.msra.mxu0 0.0
    %4375 = vmatprep.subr.mxu0 0.0
    %4376 = vmatpush1.msra.mxu0 0.0
    %4377 = vmatprep.subr.mxu0 0.0
    %4378 = vmatpush1.msra.mxu0 0.0
    %4379 = vmatprep.subr.mxu0 0.0
    %4380 = vmatpush1.msra.mxu0 0.0
    %4381 = vmatprep.subr.mxu0 0.0
    %4382 = vmatpush1.msra.mxu0 0.0
    %4383 = vmatprep.subr.mxu0 0.0
    %4384 = vmatpush1.msra.mxu0 0.0
    %4385 = vmatprep.subr.mxu0 0.0
    %4386 = vmatpush1.msra.mxu0 0.0
    %4387 = vmatprep.subr.mxu0 0.0
    %4388 = vmatpush1.msra.mxu0 0.0
    %4389 = vmatprep.subr.mxu0 0.0
    %4390 = vmatpush1.msra.mxu0 0.0
    %4391 = vmatprep.subr.mxu0 0.0
    %4392 = vmatpush1.msra.mxu0 0.0
    %4393 = vmatprep.subr.mxu0 0.0
    %4394 = vmatpush1.msra.mxu0 0.0
    %4395 = vmatprep.subr.mxu0 0.0
    %4396 = vmatpush1.msra.mxu0 0.0
    %4397 = vmatprep.subr.mxu0 0.0
    %4398 = vmatpush1.msra.mxu0 0.0
    %4399 = vmatprep.subr.mxu0 0.0
    %4400 = vmatpush1.msra.mxu0 0.0
    %4401 = vmatprep.subr.mxu0 0.0
    %4402 = vmatpush1.msra.mxu0 0.0
    %4403 = vmatprep.subr.mxu0 0.0
    %4404 = vmatpush1.msra.mxu0 0.0
    %4405 = vmatprep.subr.mxu0 0.0
    %4406 = vmatpush1.msra.mxu0 0.0
    %4407 = vmatprep.subr.mxu0 0.0
    %4408 = vmatpush1.msra.mxu0 0.0
    %4409 = vmatprep.subr.mxu0 0.0
    %4410 = vmatpush1.msra.mxu0 0.0
    %4411 = vmatprep.subr.mxu0 0.0
    %4412 = vmatpush1.msra.mxu0 0.0
    %4413 = vmatprep.subr.mxu0 0.0
    %4414 = vmatpush1.msra.mxu0 0.0
    %4415 = vmatprep.subr.mxu0 0.0
    %4416 = vmatpush1.msra.mxu0 0.0
    %4417 = vmatprep.mubr.f32.mxu0 0.0
    %4418 = vmatmul.mubr.f32.gmra.mrb[0].mxu0 %v4351
    %v4419 = vpop.f32.mrb[0].mxu0
    %v4420 = vadd.f32 %v4346, %v4419
    %v4421 = vpop.f32.mrb[0].mxu0
    %4422 = vdwg.mxu0
    %v4423 = vadd.f32 %v4339, %v4420
    %v4424 = vxor.u32 %v4423, 2147483648
    %v4425 = vmul.f32 %v4424, 1.442695
    %v4426 = vpow.pop %v4425
    %v4427 = vadd.f32 %v4426, 1.0
    %v4428 = vrcp.pop %v4427
    %v4429 = vmul.f32 1.0, %v4428
    %4431 = vrot.lane.b32.xlu0 %v4420, 64
    %v4432 = vpop.permute.xlu0 %4431
    %v4434 = vmul.f32 %v4429, %v4432
    %4436 = vrot.lane.b32.xlu0 %v4434, 64
    %v4437 = vpop.permute.xlu0 %4436
    %v4439 = vadd.f32 %v4339, %v4437
    %v4440 = vtanh.pop %v4439
    %v4441 = vsub.f32 1.0, %v4429
    %4443 = vrot.lane.b32.xlu0 %v4440, 96
    %v4444 = vpop.permute.xlu0 %4443
    %v4446 = vmul.f32 %v4441, %v4444
    %v4448 = vmul.f32 %v4429, %v4348
    %v4449 = vadd.f32 %v4446, %v4448
    %v4450 = vld [vmem:[#allocation21] sm:$0xff]
    %v4451 = vld [vmem:[#allocation21 + $0x8] sm:$0xff]
    %v4452 = vld [vmem:[#allocation21 + $0x10] sm:$0xff]
    %v4453 = vld [vmem:[#allocation21 + $0x18] sm:$0xff]
    %v4454 = vld [vmem:[#allocation24] sm:$0x1]
    %4456 = vrot.lane.b32.xlu0 %v4449, 96
    %v4457 = vpop.permute.xlu0 %4456
    %v4458 = vsel %vm302, %v4457, 0
    %4460 = vmatprep.subr.mxu0 0.0
    %4461 = vmatpush1.msra.mxu0 %v4450
    %4462 = vmatprep.subr.mxu0 0.0
    %4463 = vmatpush1.msra.mxu0 %v4451
    %4464 = vmatprep.subr.mxu0 0.0
    %4465 = vmatpush1.msra.mxu0 %v4452
    %4466 = vmatprep.subr.mxu0 0.0
    %4467 = vmatpush1.msra.mxu0 %v4453
    %4468 = vmatprep.subr.mxu0 0.0
    %4469 = vmatpush1.msra.mxu0 0.0
    %4470 = vmatprep.subr.mxu0 0.0
    %4471 = vmatpush1.msra.mxu0 0.0
    %4472 = vmatprep.subr.mxu0 0.0
    %4473 = vmatpush1.msra.mxu0 0.0
    %4474 = vmatprep.subr.mxu0 0.0
    %4475 = vmatpush1.msra.mxu0 0.0
    %4476 = vmatprep.subr.mxu0 0.0
    %4477 = vmatpush1.msra.mxu0 0.0
    %4478 = vmatprep.subr.mxu0 0.0
    %4479 = vmatpush1.msra.mxu0 0.0
    %4480 = vmatprep.subr.mxu0 0.0
    %4481 = vmatpush1.msra.mxu0 0.0
    %4482 = vmatprep.subr.mxu0 0.0
    %4483 = vmatpush1.msra.mxu0 0.0
    %4484 = vmatprep.subr.mxu0 0.0
    %4485 = vmatpush1.msra.mxu0 0.0
    %4486 = vmatprep.subr.mxu0 0.0
    %4487 = vmatpush1.msra.mxu0 0.0
    %4488 = vmatprep.subr.mxu0 0.0
    %4489 = vmatpush1.msra.mxu0 0.0
    %4490 = vmatprep.subr.mxu0 0.0
    %4491 = vmatpush1.msra.mxu0 0.0
    %4492 = vmatprep.subr.mxu0 0.0
    %4493 = vmatpush1.msra.mxu0 0.0
    %4494 = vmatprep.subr.mxu0 0.0
    %4495 = vmatpush1.msra.mxu0 0.0
    %4496 = vmatprep.subr.mxu0 0.0
    %4497 = vmatpush1.msra.mxu0 0.0
    %4498 = vmatprep.subr.mxu0 0.0
    %4499 = vmatpush1.msra.mxu0 0.0
    %4500 = vmatprep.subr.mxu0 0.0
    %4501 = vmatpush1.msra.mxu0 0.0
    %4502 = vmatprep.subr.mxu0 0.0
    %4503 = vmatpush1.msra.mxu0 0.0
    %4504 = vmatprep.subr.mxu0 0.0
    %4505 = vmatpush1.msra.mxu0 0.0
    %4506 = vmatprep.subr.mxu0 0.0
    %4507 = vmatpush1.msra.mxu0 0.0
    %4508 = vmatprep.subr.mxu0 0.0
    %4509 = vmatpush1.msra.mxu0 0.0
    %4510 = vmatprep.subr.mxu0 0.0
    %4511 = vmatpush1.msra.mxu0 0.0
    %4512 = vmatprep.subr.mxu0 0.0
    %4513 = vmatpush1.msra.mxu0 0.0
    %4514 = vmatprep.subr.mxu0 0.0
    %4515 = vmatpush1.msra.mxu0 0.0
    %4516 = vmatprep.subr.mxu0 0.0
    %4517 = vmatpush1.msra.mxu0 0.0
    %4518 = vmatprep.subr.mxu0 0.0
    %4519 = vmatpush1.msra.mxu0 0.0
    %4520 = vmatprep.subr.mxu0 0.0
    %4521 = vmatpush1.msra.mxu0 0.0
    %4522 = vmatprep.subr.mxu0 0.0
    %4523 = vmatpush1.msra.mxu0 0.0
    %4524 = vmatprep.mubr.f32.mxu0 0.0
    %4525 = vmatmul.mubr.f32.gmra.mrb[0].mxu0 %v4458
    %v4526 = vpop.f32.mrb[0].mxu0
    %v4527 = vadd.f32 %v4454, %v4526
    %v4528 = vpop.f32.mrb[0].mxu0
    %4529 = vdwg.mxu0
    %v4530 = vld [vmem:[#allocation22] sm:$0xff]
    %v4531 = vld [vmem:[#allocation22 + $0x8] sm:$0xff]
    %v4532 = vld [vmem:[#allocation22 + $0x10] sm:$0xff]
    %v4533 = vld [vmem:[#allocation22 + $0x18] sm:$0xff]
    %v4534 = vld [vmem:[#allocation25] sm:$0x1]
    %4535 = vmatprep.subr.mxu0 0.0
    %4536 = vmatpush1.msra.mxu0 %v4530
    %4537 = vmatprep.subr.mxu0 0.0
    %4538 = vmatpush1.msra.mxu0 %v4531
    %4539 = vmatprep.subr.mxu0 0.0
    %4540 = vmatpush1.msra.mxu0 %v4532
    %4541 = vmatprep.subr.mxu0 0.0
    %4542 = vmatpush1.msra.mxu0 %v4533
    %4543 = vmatprep.subr.mxu0 0.0
    %4544 = vmatpush1.msra.mxu0 0.0
    %4545 = vmatprep.subr.mxu0 0.0
    %4546 = vmatpush1.msra.mxu0 0.0
    %4547 = vmatprep.subr.mxu0 0.0
    %4548 = vmatpush1.msra.mxu0 0.0
    %4549 = vmatprep.subr.mxu0 0.0
    %4550 = vmatpush1.msra.mxu0 0.0
    %4551 = vmatprep.subr.mxu0 0.0
    %4552 = vmatpush1.msra.mxu0 0.0
    %4553 = vmatprep.subr.mxu0 0.0
    %4554 = vmatpush1.msra.mxu0 0.0
    %4555 = vmatprep.subr.mxu0 0.0
    %4556 = vmatpush1.msra.mxu0 0.0
    %4557 = vmatprep.subr.mxu0 0.0
    %4558 = vmatpush1.msra.mxu0 0.0
    %4559 = vmatprep.subr.mxu0 0.0
    %4560 = vmatpush1.msra.mxu0 0.0
    %4561 = vmatprep.subr.mxu0 0.0
    %4562 = vmatpush1.msra.mxu0 0.0
    %4563 = vmatprep.subr.mxu0 0.0
    %4564 = vmatpush1.msra.mxu0 0.0
    %4565 = vmatprep.subr.mxu0 0.0
    %4566 = vmatpush1.msra.mxu0 0.0
    %4567 = vmatprep.subr.mxu0 0.0
    %4568 = vmatpush1.msra.mxu0 0.0
    %4569 = vmatprep.subr.mxu0 0.0
    %4570 = vmatpush1.msra.mxu0 0.0
    %4571 = vmatprep.subr.mxu0 0.0
    %4572 = vmatpush1.msra.mxu0 0.0
    %4573 = vmatprep.subr.mxu0 0.0
    %4574 = vmatpush1.msra.mxu0 0.0
    %4575 = vmatprep.subr.mxu0 0.0
    %4576 = vmatpush1.msra.mxu0 0.0
    %4577 = vmatprep.subr.mxu0 0.0
    %4578 = vmatpush1.msra.mxu0 0.0
    %4579 = vmatprep.subr.mxu0 0.0
    %4580 = vmatpush1.msra.mxu0 0.0
    %4581 = vmatprep.subr.mxu0 0.0
    %4582 = vmatpush1.msra.mxu0 0.0
    %4583 = vmatprep.subr.mxu0 0.0
    %4584 = vmatpush1.msra.mxu0 0.0
    %4585 = vmatprep.subr.mxu0 0.0
    %4586 = vmatpush1.msra.mxu0 0.0
    %4587 = vmatprep.subr.mxu0 0.0
    %4588 = vmatpush1.msra.mxu0 0.0
    %4589 = vmatprep.subr.mxu0 0.0
    %4590 = vmatpush1.msra.mxu0 0.0
    %4591 = vmatprep.subr.mxu0 0.0
    %4592 = vmatpush1.msra.mxu0 0.0
    %4593 = vmatprep.subr.mxu0 0.0
    %4594 = vmatpush1.msra.mxu0 0.0
    %4595 = vmatprep.subr.mxu0 0.0
    %4596 = vmatpush1.msra.mxu0 0.0
    %4597 = vmatprep.subr.mxu0 0.0
    %4598 = vmatpush1.msra.mxu0 0.0
    %4599 = vmatprep.mubr.f32.mxu0 0.0
    %4600 = vmatmul.mubr.f32.gmra.mrb[0].mxu0 %v4144
    %v4601 = vpop.f32.mrb[0].mxu0
    %v4602 = vadd.f32 %v4534, %v4601
    %v4603 = vpop.f32.mrb[0].mxu0
    %4604 = vdwg.mxu0
    %v4605 = vadd.f32 %v4527, %v4602
    %v4606 = vxor.u32 %v4605, 2147483648
    %v4607 = vmul.f32 %v4606, 1.442695
    %v4608 = vpow.pop %v4607
    %v4609 = vadd.f32 %v4608, 1.0
    %v4610 = vrcp.pop %v4609
    %v4611 = vmul.f32 1.0, %v4610
    %4613 = vrot.lane.b32.xlu0 %v4602, 64
    %v4614 = vpop.permute.xlu0 %4613
    %v4616 = vmul.f32 %v4611, %v4614
    %4618 = vrot.lane.b32.xlu0 %v4616, 64
    %v4619 = vpop.permute.xlu0 %4618
    %v4621 = vadd.f32 %v4527, %v4619
    %v4622 = vtanh.pop %v4621
    %v4623 = vsub.f32 1.0, %v4611
    %4625 = vrot.lane.b32.xlu0 %v4622, 96
    %v4626 = vpop.permute.xlu0 %4625
    %v4628 = vmul.f32 %v4623, %v4626
    %v4629 = vmul.f32 %v4611, %v4037
    %v4630 = vadd.f32 %v4628, %v4629
    %4632 = vrot.lane.b32.xlu0 %v4630, 96
    %v4633 = vpop.permute.xlu0 %4632
    %v4635 = vsel %vm302, %v4633, %v4257
    %v4637 = vsel %vm2189, %v4635, 0
    %4639 = vmatprep.subr.mxu0 0.0
    %4640 = vmatpush1.msra.mxu0 %v4128
    %4641 = vmatprep.subr.mxu0 0.0
    %4642 = vmatpush1.msra.mxu0 %v4129
    %4643 = vmatprep.subr.mxu0 0.0
    %4644 = vmatpush1.msra.mxu0 %v4130
    %4645 = vmatprep.subr.mxu0 0.0
    %4646 = vmatpush1.msra.mxu0 %v4131
    %4647 = vmatprep.subr.mxu0 0.0
    %4648 = vmatpush1.msra.mxu0 %v4132
    %4649 = vmatprep.subr.mxu0 0.0
    %4650 = vmatpush1.msra.mxu0 %v4133
    %4651 = vmatprep.subr.mxu0 0.0
    %4652 = vmatpush1.msra.mxu0 %v4134
    %4653 = vmatprep.subr.mxu0 0.0
    %4654 = vmatpush1.msra.mxu0 %v4135
    %4655 = vmatprep.subr.mxu0 0.0
    %4656 = vmatpush1.msra.mxu0 0.0
    %4657 = vmatprep.subr.mxu0 0.0
    %4658 = vmatpush1.msra.mxu0 0.0
    %4659 = vmatprep.subr.mxu0 0.0
    %4660 = vmatpush1.msra.mxu0 0.0
    %4661 = vmatprep.subr.mxu0 0.0
    %4662 = vmatpush1.msra.mxu0 0.0
    %4663 = vmatprep.subr.mxu0 0.0
    %4664 = vmatpush1.msra.mxu0 0.0
    %4665 = vmatprep.subr.mxu0 0.0
    %4666 = vmatpush1.msra.mxu0 0.0
    %4667 = vmatprep.subr.mxu0 0.0
    %4668 = vmatpush1.msra.mxu0 0.0
    %4669 = vmatprep.subr.mxu0 0.0
    %4670 = vmatpush1.msra.mxu0 0.0
    %4671 = vmatprep.subr.mxu0 0.0
    %4672 = vmatpush1.msra.mxu0 0.0
    %4673 = vmatprep.subr.mxu0 0.0
    %4674 = vmatpush1.msra.mxu0 0.0
    %4675 = vmatprep.subr.mxu0 0.0
    %4676 = vmatpush1.msra.mxu0 0.0
    %4677 = vmatprep.subr.mxu0 0.0
    %4678 = vmatpush1.msra.mxu0 0.0
    %4679 = vmatprep.subr.mxu0 0.0
    %4680 = vmatpush1.msra.mxu0 0.0
    %4681 = vmatprep.subr.mxu0 0.0
    %4682 = vmatpush1.msra.mxu0 0.0
    %4683 = vmatprep.subr.mxu0 0.0
    %4684 = vmatpush1.msra.mxu0 0.0
    %4685 = vmatprep.subr.mxu0 0.0
    %4686 = vmatpush1.msra.mxu0 0.0
    %4687 = vmatprep.subr.mxu0 0.0
    %4688 = vmatpush1.msra.mxu0 0.0
    %4689 = vmatprep.subr.mxu0 0.0
    %4690 = vmatpush1.msra.mxu0 0.0
    %4691 = vmatprep.subr.mxu0 0.0
    %4692 = vmatpush1.msra.mxu0 0.0
    %4693 = vmatprep.subr.mxu0 0.0
    %4694 = vmatpush1.msra.mxu0 0.0
    %4695 = vmatprep.subr.mxu0 0.0
    %4696 = vmatpush1.msra.mxu0 0.0
    %4697 = vmatprep.subr.mxu0 0.0
    %4698 = vmatpush1.msra.mxu0 0.0
    %4699 = vmatprep.subr.mxu0 0.0
    %4700 = vmatpush1.msra.mxu0 0.0
    %4701 = vmatprep.subr.mxu0 0.0
    %4702 = vmatpush1.msra.mxu0 0.0
    %4703 = vmatprep.mubr.f32.mxu0 0.0
    %4704 = vmatmul.mubr.f32.gmra.mrb[0].mxu0 %v4637
    %v4705 = vpop.f32.mrb[0].mxu0
    %v4706 = vadd.f32 %v4136, %v4705
    %v4707 = vpop.f32.mrb[0].mxu0
    %4708 = vdwg.mxu0
    %v4709 = vlaneseq
    %v4710 = vand.u32 %v4709, 127
    %vm4711 = vcmask 90112
    %v4712 = vsel %vm4711, %v4706, -inf
    %4713 = vmax.xlane.f32.xlu0 %v4712
    %v4714 = vpop.xlane.xlu0 %4713
    %vm4715 = vcmp.ge.f32.partialorder %v4706, %v4714
    %v4716 = vsel %vm4715, %v4710, 12
    %v4717 = vsel %vm4711, %v4716, 2147483647
    %v4718 = vand.u32 %v4717, 65535
    %v4719 = vshra.s32 %v4717, 16
    %v4720 = vcvt.s32.f32 %v4718
    %v4721 = vcvt.s32.f32 %v4719
    %4722 = vmin.xlane.f32.xlu0 %v4721
    %v4723 = vpop.xlane.xlu0 %4722
    %vm4724 = vcmp.eq.f32.partialorder %v4721, %v4723
    %v4725 = vsel %vm4724, %v4720, inf
    %4726 = vmin.xlane.f32.xlu0 %v4725
    %v4727 = vpop.xlane.xlu0 %4726
    %v4728 = vcvt.f32.s32 %v4727
    %v4729 = vcvt.f32.s32 %v4723
    %v4730 = vshll.u32 %v4729, 16
    %v4731 = vadd.s32 %v4730, %v4728
    %vm4732 = vcmp.eq.s32.totalorder %v4710, %v4731
    %v4733 = vsel %vm4732, 1, 0
    %v4734 = vcvt.s32.f32 %v4733
    %vm4735 = vcmask 97280
    %v4737 = vsel %vm4735, %v4734, 0
    %v4740 = vsel %vm1222, %v4047, 0
    %4742 = vmatprep.subr.mxu0 0.0
    %4743 = vmatpush1.msra.mxu0 %v4046
    %4744 = vmatprep.subr.mxu0 0.0
    %4745 = vmatpush1.msra.mxu0 %v4740
    %4746 = vmatprep.subr.mxu0 0.0
    %4747 = vmatpush1.msra.mxu0 0.0
    %4748 = vmatprep.subr.mxu0 0.0
    %4749 = vmatpush1.msra.mxu0 0.0
    %4750 = vmatprep.subr.mxu0 0.0
    %4751 = vmatpush1.msra.mxu0 0.0
    %4752 = vmatprep.subr.mxu0 0.0
    %4753 = vmatpush1.msra.mxu0 0.0
    %4754 = vmatprep.subr.mxu0 0.0
    %4755 = vmatpush1.msra.mxu0 0.0
    %4756 = vmatprep.subr.mxu0 0.0
    %4757 = vmatpush1.msra.mxu0 0.0
    %4758 = vmatprep.subr.mxu0 0.0
    %4759 = vmatpush1.msra.mxu0 0.0
    %4760 = vmatprep.subr.mxu0 0.0
    %4761 = vmatpush1.msra.mxu0 0.0
    %4762 = vmatprep.subr.mxu0 0.0
    %4763 = vmatpush1.msra.mxu0 0.0
    %4764 = vmatprep.subr.mxu0 0.0
    %4765 = vmatpush1.msra.mxu0 0.0
    %4766 = vmatprep.subr.mxu0 0.0
    %4767 = vmatpush1.msra.mxu0 0.0
    %4768 = vmatprep.subr.mxu0 0.0
    %4769 = vmatpush1.msra.mxu0 0.0
    %4770 = vmatprep.subr.mxu0 0.0
    %4771 = vmatpush1.msra.mxu0 0.0
    %4772 = vmatprep.subr.mxu0 0.0
    %4773 = vmatpush1.msra.mxu0 0.0
    %4774 = vmatprep.subr.mxu0 0.0
    %4775 = vmatpush1.msra.mxu0 0.0
    %4776 = vmatprep.subr.mxu0 0.0
    %4777 = vmatpush1.msra.mxu0 0.0
    %4778 = vmatprep.subr.mxu0 0.0
    %4779 = vmatpush1.msra.mxu0 0.0
    %4780 = vmatprep.subr.mxu0 0.0
    %4781 = vmatpush1.msra.mxu0 0.0
    %4782 = vmatprep.subr.mxu0 0.0
    %4783 = vmatpush1.msra.mxu0 0.0
    %4784 = vmatprep.subr.mxu0 0.0
    %4785 = vmatpush1.msra.mxu0 0.0
    %4786 = vmatprep.subr.mxu0 0.0
    %4787 = vmatpush1.msra.mxu0 0.0
    %4788 = vmatprep.subr.mxu0 0.0
    %4789 = vmatpush1.msra.mxu0 0.0
    %4790 = vmatprep.subr.mxu0 0.0
    %4791 = vmatpush1.msra.mxu0 0.0
    %4792 = vmatprep.subr.mxu0 0.0
    %4793 = vmatpush1.msra.mxu0 0.0
    %4794 = vmatprep.subr.mxu0 0.0
    %4795 = vmatpush1.msra.mxu0 0.0
    %4796 = vmatprep.subr.mxu0 0.0
    %4797 = vmatpush1.msra.mxu0 0.0
    %4798 = vmatprep.subr.mxu0 0.0
    %4799 = vmatpush1.msra.mxu0 0.0
    %4800 = vmatprep.subr.mxu0 0.0
    %4801 = vmatpush1.msra.mxu0 0.0
    %4802 = vmatprep.subr.mxu0 0.0
    %4803 = vmatpush1.msra.mxu0 0.0
    %4804 = vmatprep.subr.mxu0 0.0
    %4805 = vmatpush1.msra.mxu0 0.0
    %4806 = vmatprep.mubr.f32.mxu0 0.0
    %4807 = vmatmul.mubr.f32.gmra.mrb[0].mxu0 %v4737
    %v4808 = vpop.f32.mrb[0].mxu0
    %v4809 = vadd.f32 0.0, %v4808
    %v4810 = vpop.f32.mrb[0].mxu0
    %4811 = vdwg.mxu0
    %v4812 = vsel %vm302, %v4633, 0
    %4814 = vmatprep.subr.mxu0 0.0
    %4815 = vmatpush1.msra.mxu0 %v4137
    %4816 = vmatprep.subr.mxu0 0.0
    %4817 = vmatpush1.msra.mxu0 %v4138
    %4818 = vmatprep.subr.mxu0 0.0
    %4819 = vmatpush1.msra.mxu0 %v4139
    %4820 = vmatprep.subr.mxu0 0.0
    %4821 = vmatpush1.msra.mxu0 %v4140
    %4822 = vmatprep.subr.mxu0 0.0
    %4823 = vmatpush1.msra.mxu0 0.0
    %4824 = vmatprep.subr.mxu0 0.0
    %4825 = vmatpush1.msra.mxu0 0.0
    %4826 = vmatprep.subr.mxu0 0.0
    %4827 = vmatpush1.msra.mxu0 0.0
    %4828 = vmatprep.subr.mxu0 0.0
    %4829 = vmatpush1.msra.mxu0 0.0
    %4830 = vmatprep.subr.mxu0 0.0
    %4831 = vmatpush1.msra.mxu0 0.0
    %4832 = vmatprep.subr.mxu0 0.0
    %4833 = vmatpush1.msra.mxu0 0.0
    %4834 = vmatprep.subr.mxu0 0.0
    %4835 = vmatpush1.msra.mxu0 0.0
    %4836 = vmatprep.subr.mxu0 0.0
    %4837 = vmatpush1.msra.mxu0 0.0
    %4838 = vmatprep.subr.mxu0 0.0
    %4839 = vmatpush1.msra.mxu0 0.0
    %4840 = vmatprep.subr.mxu0 0.0
    %4841 = vmatpush1.msra.mxu0 0.0
    %4842 = vmatprep.subr.mxu0 0.0
    %4843 = vmatpush1.msra.mxu0 0.0
    %4844 = vmatprep.subr.mxu0 0.0
    %4845 = vmatpush1.msra.mxu0 0.0
    %4846 = vmatprep.subr.mxu0 0.0
    %4847 = vmatpush1.msra.mxu0 0.0
    %4848 = vmatprep.subr.mxu0 0.0
    %4849 = vmatpush1.msra.mxu0 0.0
    %4850 = vmatprep.subr.mxu0 0.0
    %4851 = vmatpush1.msra.mxu0 0.0
    %4852 = vmatprep.subr.mxu0 0.0
    %4853 = vmatpush1.msra.mxu0 0.0
    %4854 = vmatprep.subr.mxu0 0.0
    %4855 = vmatpush1.msra.mxu0 0.0
    %4856 = vmatprep.subr.mxu0 0.0
    %4857 = vmatpush1.msra.mxu0 0.0
    %4858 = vmatprep.subr.mxu0 0.0
    %4859 = vmatpush1.msra.mxu0 0.0
    %4860 = vmatprep.subr.mxu0 0.0
    %4861 = vmatpush1.msra.mxu0 0.0
    %4862 = vmatprep.subr.mxu0 0.0
    %4863 = vmatpush1.msra.mxu0 0.0
    %4864 = vmatprep.subr.mxu0 0.0
    %4865 = vmatpush1.msra.mxu0 0.0
    %4866 = vmatprep.subr.mxu0 0.0
    %4867 = vmatpush1.msra.mxu0 0.0
    %4868 = vmatprep.subr.mxu0 0.0
    %4869 = vmatpush1.msra.mxu0 0.0
    %4870 = vmatprep.subr.mxu0 0.0
    %4871 = vmatpush1.msra.mxu0 0.0
    %4872 = vmatprep.subr.mxu0 0.0
    %4873 = vmatpush1.msra.mxu0 0.0
    %4874 = vmatprep.subr.mxu0 0.0
    %4875 = vmatpush1.msra.mxu0 0.0
    %4876 = vmatprep.subr.mxu0 0.0
    %4877 = vmatpush1.msra.mxu0 0.0
    %4878 = vmatprep.mubr.f32.mxu0 0.0
    %4879 = vmatmul.mubr.f32.gmra.mrb[0].mxu0 %v4812
    %v4880 = vpop.f32.mrb[0].mxu0
    %v4881 = vadd.f32 0.0, %v4880
    %v4882 = vpop.f32.mrb[0].mxu0
    %4883 = vdwg.mxu0
    %v4884 = vlaneseq
    %v4885 = vshrl.u32 %v4884, 7
    %v4886 = vsub.s32 0, %v4885
    %v4887 = vrot.slane %v4881, %v4886
    %v4888 = vadd.f32 %v4124, %v4887
    %v4889 = vtanh.pop %v4888
    %v4890 = vmul.f32 %v4889, %v4226
    %v4891 = vsel %vm302, %v4890, 0.0
    %4892 = vadd.xlane.f32.xlu0 %v4891
    %v4893 = vpop.xlane.xlu0 %4892
    %v4894 = vrot.slane %v4893, 4
    %v4895 = vmax.f32 %v4893, %v4894
    %v4896 = vrot.slane %v4895, 2
    %v4897 = vmax.f32 %v4895, %v4896
    %v4898 = vrot.slane %v4897, 1
    %v4899 = vmax.f32 %v4897, %v4898
    %v4900 = vsub.f32 %v4893, %v4899
    %v4901 = vmul.f32 %v4900, 1.442695
    %v4902 = vpow.pop %v4901
    %v4903 = vrot.slane %v4902, 4
    %v4904 = vadd.f32 %v4902, %v4903
    %v4905 = vrot.slane %v4904, 2
    %v4906 = vadd.f32 %v4904, %v4905
    %v4907 = vrot.slane %v4906, 1
    %v4908 = vadd.f32 %v4906, %v4907
    %v4909 = vrcp.pop %v4908
    %v4910 = vmul.f32 %v4902, %v4909
    %v4911 = vmul.f32 %v4910, %v4045
    %v4912 = vsel %vm4250, %v4911, 0.0
    %v4913 = vrot.slane %v4912, 4
    %v4914 = vadd.f32 %v4912, %v4913
    %v4915 = vrot.slane %v4914, 2
    %v4916 = vadd.f32 %v4914, %v4915
    %v4917 = vrot.slane %v4916, 1
    %v4918 = vadd.f32 %v4916, %v4917
    %v4919 = vsel %vm302, %v4809, %v4918
    %v4921 = vsel %vm2189, %v4919, 0
    %4923 = vmatprep.subr.mxu0 0.0
    %4924 = vmatpush1.msra.mxu0 %v4259
    %4925 = vmatprep.subr.mxu0 0.0
    %4926 = vmatpush1.msra.mxu0 %v4260
    %4927 = vmatprep.subr.mxu0 0.0
    %4928 = vmatpush1.msra.mxu0 %v4261
    %4929 = vmatprep.subr.mxu0 0.0
    %4930 = vmatpush1.msra.mxu0 %v4262
    %4931 = vmatprep.subr.mxu0 0.0
    %4932 = vmatpush1.msra.mxu0 %v4263
    %4933 = vmatprep.subr.mxu0 0.0
    %4934 = vmatpush1.msra.mxu0 %v4264
    %4935 = vmatprep.subr.mxu0 0.0
    %4936 = vmatpush1.msra.mxu0 %v4265
    %4937 = vmatprep.subr.mxu0 0.0
    %4938 = vmatpush1.msra.mxu0 %v4266
    %4939 = vmatprep.subr.mxu0 0.0
    %4940 = vmatpush1.msra.mxu0 0.0
    %4941 = vmatprep.subr.mxu0 0.0
    %4942 = vmatpush1.msra.mxu0 0.0
    %4943 = vmatprep.subr.mxu0 0.0
    %4944 = vmatpush1.msra.mxu0 0.0
    %4945 = vmatprep.subr.mxu0 0.0
    %4946 = vmatpush1.msra.mxu0 0.0
    %4947 = vmatprep.subr.mxu0 0.0
    %4948 = vmatpush1.msra.mxu0 0.0
    %4949 = vmatprep.subr.mxu0 0.0
    %4950 = vmatpush1.msra.mxu0 0.0
    %4951 = vmatprep.subr.mxu0 0.0
    %4952 = vmatpush1.msra.mxu0 0.0
    %4953 = vmatprep.subr.mxu0 0.0
    %4954 = vmatpush1.msra.mxu0 0.0
    %4955 = vmatprep.subr.mxu0 0.0
    %4956 = vmatpush1.msra.mxu0 0.0
    %4957 = vmatprep.subr.mxu0 0.0
    %4958 = vmatpush1.msra.mxu0 0.0
    %4959 = vmatprep.subr.mxu0 0.0
    %4960 = vmatpush1.msra.mxu0 0.0
    %4961 = vmatprep.subr.mxu0 0.0
    %4962 = vmatpush1.msra.mxu0 0.0
    %4963 = vmatprep.subr.mxu0 0.0
    %4964 = vmatpush1.msra.mxu0 0.0
    %4965 = vmatprep.subr.mxu0 0.0
    %4966 = vmatpush1.msra.mxu0 0.0
    %4967 = vmatprep.subr.mxu0 0.0
    %4968 = vmatpush1.msra.mxu0 0.0
    %4969 = vmatprep.subr.mxu0 0.0
    %4970 = vmatpush1.msra.mxu0 0.0
    %4971 = vmatprep.subr.mxu0 0.0
    %4972 = vmatpush1.msra.mxu0 0.0
    %4973 = vmatprep.subr.mxu0 0.0
    %4974 = vmatpush1.msra.mxu0 0.0
    %4975 = vmatprep.subr.mxu0 0.0
    %4976 = vmatpush1.msra.mxu0 0.0
    %4977 = vmatprep.subr.mxu0 0.0
    %4978 = vmatpush1.msra.mxu0 0.0
    %4979 = vmatprep.subr.mxu0 0.0
    %4980 = vmatpush1.msra.mxu0 0.0
    %4981 = vmatprep.subr.mxu0 0.0
    %4982 = vmatpush1.msra.mxu0 0.0
    %4983 = vmatprep.subr.mxu0 0.0
    %4984 = vmatpush1.msra.mxu0 0.0
    %4985 = vmatprep.subr.mxu0 0.0
    %4986 = vmatpush1.msra.mxu0 0.0
    %4987 = vmatprep.mubr.f32.mxu0 0.0
    %4988 = vmatmul.mubr.f32.gmra.mrb[0].mxu0 %v4921
    %v4989 = vpop.f32.mrb[0].mxu0
    %v4990 = vadd.f32 %v4267, %v4989
    %v4991 = vpop.f32.mrb[0].mxu0
    %4992 = vdwg.mxu0
    %4993 = vmatprep.subr.mxu0 0.0
    %4994 = vmatpush1.msra.mxu0 %v4342
    %4995 = vmatprep.subr.mxu0 0.0
    %4996 = vmatpush1.msra.mxu0 %v4343
    %4997 = vmatprep.subr.mxu0 0.0
    %4998 = vmatpush1.msra.mxu0 %v4344
    %4999 = vmatprep.subr.mxu0 0.0
    %5000 = vmatpush1.msra.mxu0 %v4345
    %5001 = vmatprep.subr.mxu0 0.0
    %5002 = vmatpush1.msra.mxu0 0.0
    %5003 = vmatprep.subr.mxu0 0.0
    %5004 = vmatpush1.msra.mxu0 0.0
    %5005 = vmatprep.subr.mxu0 0.0
    %5006 = vmatpush1.msra.mxu0 0.0
    %5007 = vmatprep.subr.mxu0 0.0
    %5008 = vmatpush1.msra.mxu0 0.0
    %5009 = vmatprep.subr.mxu0 0.0
    %5010 = vmatpush1.msra.mxu0 0.0
    %5011 = vmatprep.subr.mxu0 0.0
    %5012 = vmatpush1.msra.mxu0 0.0
    %5013 = vmatprep.subr.mxu0 0.0
    %5014 = vmatpush1.msra.mxu0 0.0
    %5015 = vmatprep.subr.mxu0 0.0
    %5016 = vmatpush1.msra.mxu0 0.0
    %5017 = vmatprep.subr.mxu0 0.0
    %5018 = vmatpush1.msra.mxu0 0.0
    %5019 = vmatprep.subr.mxu0 0.0
    %5020 = vmatpush1.msra.mxu0 0.0
    %5021 = vmatprep.subr.mxu0 0.0
    %5022 = vmatpush1.msra.mxu0 0.0
    %5023 = vmatprep.subr.mxu0 0.0
    %5024 = vmatpush1.msra.mxu0 0.0
    %5025 = vmatprep.subr.mxu0 0.0
    %5026 = vmatpush1.msra.mxu0 0.0
    %5027 = vmatprep.subr.mxu0 0.0
    %5028 = vmatpush1.msra.mxu0 0.0
    %5029 = vmatprep.subr.mxu0 0.0
    %5030 = vmatpush1.msra.mxu0 0.0
    %5031 = vmatprep.subr.mxu0 0.0
    %5032 = vmatpush1.msra.mxu0 0.0
    %5033 = vmatprep.subr.mxu0 0.0
    %5034 = vmatpush1.msra.mxu0 0.0
    %5035 = vmatprep.subr.mxu0 0.0
    %5036 = vmatpush1.msra.mxu0 0.0
    %5037 = vmatprep.subr.mxu0 0.0
    %5038 = vmatpush1.msra.mxu0 0.0
    %5039 = vmatprep.subr.mxu0 0.0
    %5040 = vmatpush1.msra.mxu0 0.0
    %5041 = vmatprep.subr.mxu0 0.0
    %5042 = vmatpush1.msra.mxu0 0.0
    %5043 = vmatprep.subr.mxu0 0.0
    %5044 = vmatpush1.msra.mxu0 0.0
    %5045 = vmatprep.subr.mxu0 0.0
    %5046 = vmatpush1.msra.mxu0 0.0
    %5047 = vmatprep.subr.mxu0 0.0
    %5048 = vmatpush1.msra.mxu0 0.0
    %5049 = vmatprep.subr.mxu0 0.0
    %5050 = vmatpush1.msra.mxu0 0.0
    %5051 = vmatprep.subr.mxu0 0.0
    %5052 = vmatpush1.msra.mxu0 0.0
    %5053 = vmatprep.subr.mxu0 0.0
    %5054 = vmatpush1.msra.mxu0 0.0
    %5055 = vmatprep.subr.mxu0 0.0
    %5056 = vmatpush1.msra.mxu0 0.0
    %5057 = vmatprep.mubr.f32.mxu0 0.0
    %5058 = vmatmul.mubr.f32.gmra.mrb[0].mxu0 %v4458
    %v5059 = vpop.f32.mrb[0].mxu0
    %v5060 = vadd.f32 %v4346, %v5059
    %v5061 = vpop.f32.mrb[0].mxu0
    %5062 = vdwg.mxu0
    %v5063 = vadd.f32 %v4990, %v5060
    %v5064 = vxor.u32 %v5063, 2147483648
    %v5065 = vmul.f32 %v5064, 1.442695
    %v5066 = vpow.pop %v5065
    %v5067 = vadd.f32 %v5066, 1.0
    %v5068 = vrcp.pop %v5067
    %v5069 = vmul.f32 1.0, %v5068
    %5071 = vrot.lane.b32.xlu0 %v5060, 64
    %v5072 = vpop.permute.xlu0 %5071
    %v5074 = vmul.f32 %v5069, %v5072
    %5076 = vrot.lane.b32.xlu0 %v5074, 64
    %v5077 = vpop.permute.xlu0 %5076
    %v5079 = vadd.f32 %v4990, %v5077
    %v5080 = vtanh.pop %v5079
    %v5081 = vsub.f32 1.0, %v5069
    %5083 = vrot.lane.b32.xlu0 %v5080, 96
    %v5084 = vpop.permute.xlu0 %5083
    %v5086 = vmul.f32 %v5081, %v5084
    %v5087 = vmul.f32 %v5069, %v4449
    %v5088 = vadd.f32 %v5086, %v5087
    %5090 = vrot.lane.b32.xlu0 %v5088, 96
    %v5091 = vpop.permute.xlu0 %5090
    %v5092 = vsel %vm302, %v5091, 0
    %5094 = vmatprep.subr.mxu0 0.0
    %5095 = vmatpush1.msra.mxu0 %v4450
    %5096 = vmatprep.subr.mxu0 0.0
    %5097 = vmatpush1.msra.mxu0 %v4451
    %5098 = vmatprep.subr.mxu0 0.0
    %5099 = vmatpush1.msra.mxu0 %v4452
    %5100 = vmatprep.subr.mxu0 0.0
    %5101 = vmatpush1.msra.mxu0 %v4453
    %5102 = vmatprep.subr.mxu0 0.0
    %5103 = vmatpush1.msra.mxu0 0.0
    %5104 = vmatprep.subr.mxu0 0.0
    %5105 = vmatpush1.msra.mxu0 0.0
    %5106 = vmatprep.subr.mxu0 0.0
    %5107 = vmatpush1.msra.mxu0 0.0
    %5108 = vmatprep.subr.mxu0 0.0
    %5109 = vmatpush1.msra.mxu0 0.0
    %5110 = vmatprep.subr.mxu0 0.0
    %5111 = vmatpush1.msra.mxu0 0.0
    %5112 = vmatprep.subr.mxu0 0.0
    %5113 = vmatpush1.msra.mxu0 0.0
    %5114 = vmatprep.subr.mxu0 0.0
    %5115 = vmatpush1.msra.mxu0 0.0
    %5116 = vmatprep.subr.mxu0 0.0
    %5117 = vmatpush1.msra.mxu0 0.0
    %5118 = vmatprep.subr.mxu0 0.0
    %5119 = vmatpush1.msra.mxu0 0.0
    %5120 = vmatprep.subr.mxu0 0.0
    %5121 = vmatpush1.msra.mxu0 0.0
    %5122 = vmatprep.subr.mxu0 0.0
    %5123 = vmatpush1.msra.mxu0 0.0
    %5124 = vmatprep.subr.mxu0 0.0
    %5125 = vmatpush1.msra.mxu0 0.0
    %5126 = vmatprep.subr.mxu0 0.0
    %5127 = vmatpush1.msra.mxu0 0.0
    %5128 = vmatprep.subr.mxu0 0.0
    %5129 = vmatpush1.msra.mxu0 0.0
    %5130 = vmatprep.subr.mxu0 0.0
    %5131 = vmatpush1.msra.mxu0 0.0
    %5132 = vmatprep.subr.mxu0 0.0
    %5133 = vmatpush1.msra.mxu0 0.0
    %5134 = vmatprep.subr.mxu0 0.0
    %5135 = vmatpush1.msra.mxu0 0.0
    %5136 = vmatprep.subr.mxu0 0.0
    %5137 = vmatpush1.msra.mxu0 0.0
    %5138 = vmatprep.subr.mxu0 0.0
    %5139 = vmatpush1.msra.mxu0 0.0
    %5140 = vmatprep.subr.mxu0 0.0
    %5141 = vmatpush1.msra.mxu0 0.0
    %5142 = vmatprep.subr.mxu0 0.0
    %5143 = vmatpush1.msra.mxu0 0.0
    %5144 = vmatprep.subr.mxu0 0.0
    %5145 = vmatpush1.msra.mxu0 0.0
    %5146 = vmatprep.subr.mxu0 0.0
    %5147 = vmatpush1.msra.mxu0 0.0
    %5148 = vmatprep.subr.mxu0 0.0
    %5149 = vmatpush1.msra.mxu0 0.0
    %5150 = vmatprep.subr.mxu0 0.0
    %5151 = vmatpush1.msra.mxu0 0.0
    %5152 = vmatprep.subr.mxu0 0.0
    %5153 = vmatpush1.msra.mxu0 0.0
    %5154 = vmatprep.subr.mxu0 0.0
    %5155 = vmatpush1.msra.mxu0 0.0
    %5156 = vmatprep.subr.mxu0 0.0
    %5157 = vmatpush1.msra.mxu0 0.0
    %5158 = vmatprep.mubr.f32.mxu0 0.0
    %5159 = vmatmul.mubr.f32.gmra.mrb[0].mxu0 %v5092
    %v5160 = vpop.f32.mrb[0].mxu0
    %v5161 = vadd.f32 %v4454, %v5160
    %v5162 = vpop.f32.mrb[0].mxu0
    %5163 = vdwg.mxu0
    %5164 = vmatprep.subr.mxu0 0.0
    %5165 = vmatpush1.msra.mxu0 %v4530
    %5166 = vmatprep.subr.mxu0 0.0
    %5167 = vmatpush1.msra.mxu0 %v4531
    %5168 = vmatprep.subr.mxu0 0.0
    %5169 = vmatpush1.msra.mxu0 %v4532
    %5170 = vmatprep.subr.mxu0 0.0
    %5171 = vmatpush1.msra.mxu0 %v4533
    %5172 = vmatprep.subr.mxu0 0.0
    %5173 = vmatpush1.msra.mxu0 0.0
    %5174 = vmatprep.subr.mxu0 0.0
    %5175 = vmatpush1.msra.mxu0 0.0
    %5176 = vmatprep.subr.mxu0 0.0
    %5177 = vmatpush1.msra.mxu0 0.0
    %5178 = vmatprep.subr.mxu0 0.0
    %5179 = vmatpush1.msra.mxu0 0.0
    %5180 = vmatprep.subr.mxu0 0.0
    %5181 = vmatpush1.msra.mxu0 0.0
    %5182 = vmatprep.subr.mxu0 0.0
    %5183 = vmatpush1.msra.mxu0 0.0
    %5184 = vmatprep.subr.mxu0 0.0
    %5185 = vmatpush1.msra.mxu0 0.0
    %5186 = vmatprep.subr.mxu0 0.0
    %5187 = vmatpush1.msra.mxu0 0.0
    %5188 = vmatprep.subr.mxu0 0.0
    %5189 = vmatpush1.msra.mxu0 0.0
    %5190 = vmatprep.subr.mxu0 0.0
    %5191 = vmatpush1.msra.mxu0 0.0
    %5192 = vmatprep.subr.mxu0 0.0
    %5193 = vmatpush1.msra.mxu0 0.0
    %5194 = vmatprep.subr.mxu0 0.0
    %5195 = vmatpush1.msra.mxu0 0.0
    %5196 = vmatprep.subr.mxu0 0.0
    %5197 = vmatpush1.msra.mxu0 0.0
    %5198 = vmatprep.subr.mxu0 0.0
    %5199 = vmatpush1.msra.mxu0 0.0
    %5200 = vmatprep.subr.mxu0 0.0
    %5201 = vmatpush1.msra.mxu0 0.0
    %5202 = vmatprep.subr.mxu0 0.0
    %5203 = vmatpush1.msra.mxu0 0.0
    %5204 = vmatprep.subr.mxu0 0.0
    %5205 = vmatpush1.msra.mxu0 0.0
    %5206 = vmatprep.subr.mxu0 0.0
    %5207 = vmatpush1.msra.mxu0 0.0
    %5208 = vmatprep.subr.mxu0 0.0
    %5209 = vmatpush1.msra.mxu0 0.0
    %5210 = vmatprep.subr.mxu0 0.0
    %5211 = vmatpush1.msra.mxu0 0.0
    %5212 = vmatprep.subr.mxu0 0.0
    %5213 = vmatpush1.msra.mxu0 0.0
    %5214 = vmatprep.subr.mxu0 0.0
    %5215 = vmatpush1.msra.mxu0 0.0
    %5216 = vmatprep.subr.mxu0 0.0
    %5217 = vmatpush1.msra.mxu0 0.0
    %5218 = vmatprep.subr.mxu0 0.0
    %5219 = vmatpush1.msra.mxu0 0.0
    %5220 = vmatprep.subr.mxu0 0.0
    %5221 = vmatpush1.msra.mxu0 0.0
    %5222 = vmatprep.subr.mxu0 0.0
    %5223 = vmatpush1.msra.mxu0 0.0
    %5224 = vmatprep.subr.mxu0 0.0
    %5225 = vmatpush1.msra.mxu0 0.0
    %5226 = vmatprep.subr.mxu0 0.0
    %5227 = vmatpush1.msra.mxu0 0.0
    %5228 = vmatprep.mubr.f32.mxu0 0.0
    %5229 = vmatmul.mubr.f32.gmra.mrb[0].mxu0 %v4812
    %v5230 = vpop.f32.mrb[0].mxu0
    %v5231 = vadd.f32 %v4534, %v5230
    %v5232 = vpop.f32.mrb[0].mxu0
    %5233 = vdwg.mxu0
    %v5234 = vadd.f32 %v5161, %v5231
    %v5235 = vxor.u32 %v5234, 2147483648
    %v5236 = vmul.f32 %v5235, 1.442695
    %v5237 = vpow.pop %v5236
    %v5238 = vadd.f32 %v5237, 1.0
    %v5239 = vrcp.pop %v5238
    %v5240 = vmul.f32 1.0, %v5239
    %5242 = vrot.lane.b32.xlu0 %v5231, 64
    %v5243 = vpop.permute.xlu0 %5242
    %v5245 = vmul.f32 %v5240, %v5243
    %5247 = vrot.lane.b32.xlu0 %v5245, 64
    %v5248 = vpop.permute.xlu0 %5247
    %v5250 = vadd.f32 %v5161, %v5248
    %v5251 = vtanh.pop %v5250
    %v5252 = vsub.f32 1.0, %v5240
    %5254 = vrot.lane.b32.xlu0 %v5251, 96
    %v5255 = vpop.permute.xlu0 %5254
    %v5257 = vmul.f32 %v5252, %v5255
    %v5258 = vmul.f32 %v5240, %v4630
    %v5259 = vadd.f32 %v5257, %v5258
    %5261 = vrot.lane.b32.xlu0 %v5259, 96
    %v5262 = vpop.permute.xlu0 %5261
    %v5264 = vsel %vm302, %v5262, %v4918
    %v5266 = vsel %vm2189, %v5264, 0
    %5268 = vmatprep.subr.mxu0 0.0
    %5269 = vmatpush1.msra.mxu0 %v4128
    %5270 = vmatprep.subr.mxu0 0.0
    %5271 = vmatpush1.msra.mxu0 %v4129
    %5272 = vmatprep.subr.mxu0 0.0
    %5273 = vmatpush1.msra.mxu0 %v4130
    %5274 = vmatprep.subr.mxu0 0.0
    %5275 = vmatpush1.msra.mxu0 %v4131
    %5276 = vmatprep.subr.mxu0 0.0
    %5277 = vmatpush1.msra.mxu0 %v4132
    %5278 = vmatprep.subr.mxu0 0.0
    %5279 = vmatpush1.msra.mxu0 %v4133
    %5280 = vmatprep.subr.mxu0 0.0
    %5281 = vmatpush1.msra.mxu0 %v4134
    %5282 = vmatprep.subr.mxu0 0.0
    %5283 = vmatpush1.msra.mxu0 %v4135
    %5284 = vmatprep.subr.mxu0 0.0
    %5285 = vmatpush1.msra.mxu0 0.0
    %5286 = vmatprep.subr.mxu0 0.0
    %5287 = vmatpush1.msra.mxu0 0.0
    %5288 = vmatprep.subr.mxu0 0.0
    %5289 = vmatpush1.msra.mxu0 0.0
    %5290 = vmatprep.subr.mxu0 0.0
    %5291 = vmatpush1.msra.mxu0 0.0
    %5292 = vmatprep.subr.mxu0 0.0
    %5293 = vmatpush1.msra.mxu0 0.0
    %5294 = vmatprep.subr.mxu0 0.0
    %5295 = vmatpush1.msra.mxu0 0.0
    %5296 = vmatprep.subr.mxu0 0.0
    %5297 = vmatpush1.msra.mxu0 0.0
    %5298 = vmatprep.subr.mxu0 0.0
    %5299 = vmatpush1.msra.mxu0 0.0
    %5300 = vmatprep.subr.mxu0 0.0
    %5301 = vmatpush1.msra.mxu0 0.0
    %5302 = vmatprep.subr.mxu0 0.0
    %5303 = vmatpush1.msra.mxu0 0.0
    %5304 = vmatprep.subr.mxu0 0.0
    %5305 = vmatpush1.msra.mxu0 0.0
    %5306 = vmatprep.subr.mxu0 0.0
    %5307 = vmatpush1.msra.mxu0 0.0
    %5308 = vmatprep.subr.mxu0 0.0
    %5309 = vmatpush1.msra.mxu0 0.0
    %5310 = vmatprep.subr.mxu0 0.0
    %5311 = vmatpush1.msra.mxu0 0.0
    %5312 = vmatprep.subr.mxu0 0.0
    %5313 = vmatpush1.msra.mxu0 0.0
    %5314 = vmatprep.subr.mxu0 0.0
    %5315 = vmatpush1.msra.mxu0 0.0
    %5316 = vmatprep.subr.mxu0 0.0
    %5317 = vmatpush1.msra.mxu0 0.0
    %5318 = vmatprep.subr.mxu0 0.0
    %5319 = vmatpush1.msra.mxu0 0.0
    %5320 = vmatprep.subr.mxu0 0.0
    %5321 = vmatpush1.msra.mxu0 0.0
    %5322 = vmatprep.subr.mxu0 0.0
    %5323 = vmatpush1.msra.mxu0 0.0
    %5324 = vmatprep.subr.mxu0 0.0
    %5325 = vmatpush1.msra.mxu0 0.0
    %5326 = vmatprep.subr.mxu0 0.0
    %5327 = vmatpush1.msra.mxu0 0.0
    %5328 = vmatprep.subr.mxu0 0.0
    %5329 = vmatpush1.msra.mxu0 0.0
    %5330 = vmatprep.subr.mxu0 0.0
    %5331 = vmatpush1.msra.mxu0 0.0
    %5332 = vmatprep.mubr.f32.mxu0 0.0
    %5333 = vmatmul.mubr.f32.gmra.mrb[0].mxu0 %v5266
    %v5334 = vpop.f32.mrb[0].mxu0
    %v5335 = vadd.f32 %v4136, %v5334
    %v5336 = vpop.f32.mrb[0].mxu0
    %5337 = vdwg.mxu0
    %v5338 = vsel %vm4711, %v5335, -inf
    %5339 = vmax.xlane.f32.xlu0 %v5338
    %v5340 = vpop.xlane.xlu0 %5339
    %vm5341 = vcmp.ge.f32.partialorder %v5335, %v5340
    %v5342 = vsel %vm5341, %v4710, 12
    %v5343 = vsel %vm4711, %v5342, 2147483647
    %v5344 = vand.u32 %v5343, 65535
    %v5345 = vshra.s32 %v5343, 16
    %v5346 = vcvt.s32.f32 %v5344
    %v5347 = vcvt.s32.f32 %v5345
    %5348 = vmin.xlane.f32.xlu0 %v5347
    %v5349 = vpop.xlane.xlu0 %5348
    %vm5350 = vcmp.eq.f32.partialorder %v5347, %v5349
    %v5351 = vsel %vm5350, %v5346, inf
    %5352 = vmin.xlane.f32.xlu0 %v5351
    %v5353 = vpop.xlane.xlu0 %5352
    %v5354 = vcvt.f32.s32 %v5353
    %v5355 = vcvt.f32.s32 %v5349
    %v5356 = vshll.u32 %v5355, 16
    %v5357 = vadd.s32 %v5356, %v5354
    %vm5358 = vcmp.eq.s32.totalorder %v4710, %v5357
    %v5359 = vsel %vm5358, 1, 0
    %v5360 = vcvt.s32.f32 %v5359
    %v5362 = vsel %vm4735, %v5360, 0
    %5364 = vmatprep.subr.mxu0 0.0
    %5365 = vmatpush1.msra.mxu0 %v4046
    %5366 = vmatprep.subr.mxu0 0.0
    %5367 = vmatpush1.msra.mxu0 %v4740
    %5368 = vmatprep.subr.mxu0 0.0
    %5369 = vmatpush1.msra.mxu0 0.0
    %5370 = vmatprep.subr.mxu0 0.0
    %5371 = vmatpush1.msra.mxu0 0.0
    %5372 = vmatprep.subr.mxu0 0.0
    %5373 = vmatpush1.msra.mxu0 0.0
    %5374 = vmatprep.subr.mxu0 0.0
    %5375 = vmatpush1.msra.mxu0 0.0
    %5376 = vmatprep.subr.mxu0 0.0
    %5377 = vmatpush1.msra.mxu0 0.0
    %5378 = vmatprep.subr.mxu0 0.0
    %5379 = vmatpush1.msra.mxu0 0.0
    %5380 = vmatprep.subr.mxu0 0.0
    %5381 = vmatpush1.msra.mxu0 0.0
    %5382 = vmatprep.subr.mxu0 0.0
    %5383 = vmatpush1.msra.mxu0 0.0
    %5384 = vmatprep.subr.mxu0 0.0
    %5385 = vmatpush1.msra.mxu0 0.0
    %5386 = vmatprep.subr.mxu0 0.0
    %5387 = vmatpush1.msra.mxu0 0.0
    %5388 = vmatprep.subr.mxu0 0.0
    %5389 = vmatpush1.msra.mxu0 0.0
    %5390 = vmatprep.subr.mxu0 0.0
    %5391 = vmatpush1.msra.mxu0 0.0
    %5392 = vmatprep.subr.mxu0 0.0
    %5393 = vmatpush1.msra.mxu0 0.0
    %5394 = vmatprep.subr.mxu0 0.0
    %5395 = vmatpush1.msra.mxu0 0.0
    %5396 = vmatprep.subr.mxu0 0.0
    %5397 = vmatpush1.msra.mxu0 0.0
    %5398 = vmatprep.subr.mxu0 0.0
    %5399 = vmatpush1.msra.mxu0 0.0
    %5400 = vmatprep.subr.mxu0 0.0
    %5401 = vmatpush1.msra.mxu0 0.0
    %5402 = vmatprep.subr.mxu0 0.0
    %5403 = vmatpush1.msra.mxu0 0.0
    %5404 = vmatprep.subr.mxu0 0.0
    %5405 = vmatpush1.msra.mxu0 0.0
    %5406 = vmatprep.subr.mxu0 0.0
    %5407 = vmatpush1.msra.mxu0 0.0
    %5408 = vmatprep.subr.mxu0 0.0
    %5409 = vmatpush1.msra.mxu0 0.0
    %5410 = vmatprep.subr.mxu0 0.0
    %5411 = vmatpush1.msra.mxu0 0.0
    %5412 = vmatprep.subr.mxu0 0.0
    %5413 = vmatpush1.msra.mxu0 0.0
    %5414 = vmatprep.subr.mxu0 0.0
    %5415 = vmatpush1.msra.mxu0 0.0
    %5416 = vmatprep.subr.mxu0 0.0
    %5417 = vmatpush1.msra.mxu0 0.0
    %5418 = vmatprep.subr.mxu0 0.0
    %5419 = vmatpush1.msra.mxu0 0.0
    %5420 = vmatprep.subr.mxu0 0.0
    %5421 = vmatpush1.msra.mxu0 0.0
    %5422 = vmatprep.subr.mxu0 0.0
    %5423 = vmatpush1.msra.mxu0 0.0
    %5424 = vmatprep.subr.mxu0 0.0
    %5425 = vmatpush1.msra.mxu0 0.0
    %5426 = vmatprep.subr.mxu0 0.0
    %5427 = vmatpush1.msra.mxu0 0.0
    %5428 = vmatprep.mubr.f32.mxu0 0.0
    %5429 = vmatmul.mubr.f32.gmra.mrb[0].mxu0 %v5362
    %v5430 = vpop.f32.mrb[0].mxu0
    %v5431 = vadd.f32 0.0, %v5430
    %v5432 = vpop.f32.mrb[0].mxu0
    %5433 = vdwg.mxu0
    %v5434 = vsel %vm302, %v5262, 0
    %5436 = vmatprep.subr.mxu0 0.0
    %5437 = vmatpush1.msra.mxu0 %v4137
    %5438 = vmatprep.subr.mxu0 0.0
    %5439 = vmatpush1.msra.mxu0 %v4138
    %5440 = vmatprep.subr.mxu0 0.0
    %5441 = vmatpush1.msra.mxu0 %v4139
    %5442 = vmatprep.subr.mxu0 0.0
    %5443 = vmatpush1.msra.mxu0 %v4140
    %5444 = vmatprep.subr.mxu0 0.0
    %5445 = vmatpush1.msra.mxu0 0.0
    %5446 = vmatprep.subr.mxu0 0.0
    %5447 = vmatpush1.msra.mxu0 0.0
    %5448 = vmatprep.subr.mxu0 0.0
    %5449 = vmatpush1.msra.mxu0 0.0
    %5450 = vmatprep.subr.mxu0 0.0
    %5451 = vmatpush1.msra.mxu0 0.0
    %5452 = vmatprep.subr.mxu0 0.0
    %5453 = vmatpush1.msra.mxu0 0.0
    %5454 = vmatprep.subr.mxu0 0.0
    %5455 = vmatpush1.msra.mxu0 0.0
    %5456 = vmatprep.subr.mxu0 0.0
    %5457 = vmatpush1.msra.mxu0 0.0
    %5458 = vmatprep.subr.mxu0 0.0
    %5459 = vmatpush1.msra.mxu0 0.0
    %5460 = vmatprep.subr.mxu0 0.0
    %5461 = vmatpush1.msra.mxu0 0.0
    %5462 = vmatprep.subr.mxu0 0.0
    %5463 = vmatpush1.msra.mxu0 0.0
    %5464 = vmatprep.subr.mxu0 0.0
    %5465 = vmatpush1.msra.mxu0 0.0
    %5466 = vmatprep.subr.mxu0 0.0
    %5467 = vmatpush1.msra.mxu0 0.0
    %5468 = vmatprep.subr.mxu0 0.0
    %5469 = vmatpush1.msra.mxu0 0.0
    %5470 = vmatprep.subr.mxu0 0.0
    %5471 = vmatpush1.msra.mxu0 0.0
    %5472 = vmatprep.subr.mxu0 0.0
    %5473 = vmatpush1.msra.mxu0 0.0
    %5474 = vmatprep.subr.mxu0 0.0
    %5475 = vmatpush1.msra.mxu0 0.0
    %5476 = vmatprep.subr.mxu0 0.0
    %5477 = vmatpush1.msra.mxu0 0.0
    %5478 = vmatprep.subr.mxu0 0.0
    %5479 = vmatpush1.msra.mxu0 0.0
    %5480 = vmatprep.subr.mxu0 0.0
    %5481 = vmatpush1.msra.mxu0 0.0
    %5482 = vmatprep.subr.mxu0 0.0
    %5483 = vmatpush1.msra.mxu0 0.0
    %5484 = vmatprep.subr.mxu0 0.0
    %5485 = vmatpush1.msra.mxu0 0.0
    %5486 = vmatprep.subr.mxu0 0.0
    %5487 = vmatpush1.msra.mxu0 0.0
    %5488 = vmatprep.subr.mxu0 0.0
    %5489 = vmatpush1.msra.mxu0 0.0
    %5490 = vmatprep.subr.mxu0 0.0
    %5491 = vmatpush1.msra.mxu0 0.0
    %5492 = vmatprep.subr.mxu0 0.0
    %5493 = vmatpush1.msra.mxu0 0.0
    %5494 = vmatprep.subr.mxu0 0.0
    %5495 = vmatpush1.msra.mxu0 0.0
    %5496 = vmatprep.subr.mxu0 0.0
    %5497 = vmatpush1.msra.mxu0 0.0
    %5498 = vmatprep.subr.mxu0 0.0
    %5499 = vmatpush1.msra.mxu0 0.0
    %5500 = vmatprep.mubr.f32.mxu0 0.0
    %5501 = vmatmul.mubr.f32.gmra.mrb[0].mxu0 %v5434
    %v5502 = vpop.f32.mrb[0].mxu0
    %v5503 = vadd.f32 0.0, %v5502
    %v5504 = vpop.f32.mrb[0].mxu0
    %5505 = vdwg.mxu0
    %v5506 = vlaneseq
    %v5507 = vshrl.u32 %v5506, 7
    %v5508 = vsub.s32 0, %v5507
    %v5509 = vrot.slane %v5503, %v5508
    %v5510 = vadd.f32 %v4124, %v5509
    %v5511 = vtanh.pop %v5510
    %v5512 = vmul.f32 %v5511, %v4226
    %v5513 = vsel %vm302, %v5512, 0.0
    %5514 = vadd.xlane.f32.xlu0 %v5513
    %v5515 = vpop.xlane.xlu0 %5514
    %v5516 = vrot.slane %v5515, 4
    %v5517 = vmax.f32 %v5515, %v5516
    %v5518 = vrot.slane %v5517, 2
    %v5519 = vmax.f32 %v5517, %v5518
    %v5520 = vrot.slane %v5519, 1
    %v5521 = vmax.f32 %v5519, %v5520
    %v5522 = vsub.f32 %v5515, %v5521
    %v5523 = vmul.f32 %v5522, 1.442695
    %v5524 = vpow.pop %v5523
    %v5525 = vrot.slane %v5524, 4
    %v5526 = vadd.f32 %v5524, %v5525
    %v5527 = vrot.slane %v5526, 2
    %v5528 = vadd.f32 %v5526, %v5527
    %v5529 = vrot.slane %v5528, 1
    %v5530 = vadd.f32 %v5528, %v5529
    %v5531 = vrcp.pop %v5530
    %v5532 = vmul.f32 %v5524, %v5531
    %v5533 = vmul.f32 %v5532, %v4045
    %v5534 = vsel %vm4250, %v5533, 0.0
    %v5535 = vrot.slane %v5534, 4
    %v5536 = vadd.f32 %v5534, %v5535
    %v5537 = vrot.slane %v5536, 2
    %v5538 = vadd.f32 %v5536, %v5537
    %v5539 = vrot.slane %v5538, 1
    %v5540 = vadd.f32 %v5538, %v5539
    %v5541 = vsel %vm302, %v5431, %v5540
    %v5543 = vsel %vm2189, %v5541, 0
    %5545 = vmatprep.subr.mxu0 0.0
    %5546 = vmatpush1.msra.mxu0 %v4259
    %5547 = vmatprep.subr.mxu0 0.0
    %5548 = vmatpush1.msra.mxu0 %v4260
    %5549 = vmatprep.subr.mxu0 0.0
    %5550 = vmatpush1.msra.mxu0 %v4261
    %5551 = vmatprep.subr.mxu0 0.0
    %5552 = vmatpush1.msra.mxu0 %v4262
    %5553 = vmatprep.subr.mxu0 0.0
    %5554 = vmatpush1.msra.mxu0 %v4263
    %5555 = vmatprep.subr.mxu0 0.0
    %5556 = vmatpush1.msra.mxu0 %v4264
    %5557 = vmatprep.subr.mxu0 0.0
    %5558 = vmatpush1.msra.mxu0 %v4265
    %5559 = vmatprep.subr.mxu0 0.0
    %5560 = vmatpush1.msra.mxu0 %v4266
    %5561 = vmatprep.subr.mxu0 0.0
    %5562 = vmatpush1.msra.mxu0 0.0
    %5563 = vmatprep.subr.mxu0 0.0
    %5564 = vmatpush1.msra.mxu0 0.0
    %5565 = vmatprep.subr.mxu0 0.0
    %5566 = vmatpush1.msra.mxu0 0.0
    %5567 = vmatprep.subr.mxu0 0.0
    %5568 = vmatpush1.msra.mxu0 0.0
    %5569 = vmatprep.subr.mxu0 0.0
    %5570 = vmatpush1.msra.mxu0 0.0
    %5571 = vmatprep.subr.mxu0 0.0
    %5572 = vmatpush1.msra.mxu0 0.0
    %5573 = vmatprep.subr.mxu0 0.0
    %5574 = vmatpush1.msra.mxu0 0.0
    %5575 = vmatprep.subr.mxu0 0.0
    %5576 = vmatpush1.msra.mxu0 0.0
    %5577 = vmatprep.subr.mxu0 0.0
    %5578 = vmatpush1.msra.mxu0 0.0
    %5579 = vmatprep.subr.mxu0 0.0
    %5580 = vmatpush1.msra.mxu0 0.0
    %5581 = vmatprep.subr.mxu0 0.0
    %5582 = vmatpush1.msra.mxu0 0.0
    %5583 = vmatprep.subr.mxu0 0.0
    %5584 = vmatpush1.msra.mxu0 0.0
    %5585 = vmatprep.subr.mxu0 0.0
    %5586 = vmatpush1.msra.mxu0 0.0
    %5587 = vmatprep.subr.mxu0 0.0
    %5588 = vmatpush1.msra.mxu0 0.0
    %5589 = vmatprep.subr.mxu0 0.0
    %5590 = vmatpush1.msra.mxu0 0.0
    %5591 = vmatprep.subr.mxu0 0.0
    %5592 = vmatpush1.msra.mxu0 0.0
    %5593 = vmatprep.subr.mxu0 0.0
    %5594 = vmatpush1.msra.mxu0 0.0
    %5595 = vmatprep.subr.mxu0 0.0
    %5596 = vmatpush1.msra.mxu0 0.0
    %5597 = vmatprep.subr.mxu0 0.0
    %5598 = vmatpush1.msra.mxu0 0.0
    %5599 = vmatprep.subr.mxu0 0.0
    %5600 = vmatpush1.msra.mxu0 0.0
    %5601 = vmatprep.subr.mxu0 0.0
    %5602 = vmatpush1.msra.mxu0 0.0
    %5603 = vmatprep.subr.mxu0 0.0
    %5604 = vmatpush1.msra.mxu0 0.0
    %5605 = vmatprep.subr.mxu0 0.0
    %5606 = vmatpush1.msra.mxu0 0.0
    %5607 = vmatprep.subr.mxu0 0.0
    %5608 = vmatpush1.msra.mxu0 0.0
    %5609 = vmatprep.mubr.f32.mxu0 0.0
    %5610 = vmatmul.mubr.f32.gmra.mrb[0].mxu0 %v5543
    %v5611 = vpop.f32.mrb[0].mxu0
    %v5612 = vadd.f32 %v4267, %v5611
    %v5613 = vpop.f32.mrb[0].mxu0
    %5614 = vdwg.mxu0
    %5615 = vmatprep.subr.mxu0 0.0
    %5616 = vmatpush1.msra.mxu0 %v4342
    %5617 = vmatprep.subr.mxu0 0.0
    %5618 = vmatpush1.msra.mxu0 %v4343
    %5619 = vmatprep.subr.mxu0 0.0
    %5620 = vmatpush1.msra.mxu0 %v4344
    %5621 = vmatprep.subr.mxu0 0.0
    %5622 = vmatpush1.msra.mxu0 %v4345
    %5623 = vmatprep.subr.mxu0 0.0
    %5624 = vmatpush1.msra.mxu0 0.0
    %5625 = vmatprep.subr.mxu0 0.0
    %5626 = vmatpush1.msra.mxu0 0.0
    %5627 = vmatprep.subr.mxu0 0.0
    %5628 = vmatpush1.msra.mxu0 0.0
    %5629 = vmatprep.subr.mxu0 0.0
    %5630 = vmatpush1.msra.mxu0 0.0
    %5631 = vmatprep.subr.mxu0 0.0
    %5632 = vmatpush1.msra.mxu0 0.0
    %5633 = vmatprep.subr.mxu0 0.0
    %5634 = vmatpush1.msra.mxu0 0.0
    %5635 = vmatprep.subr.mxu0 0.0
    %5636 = vmatpush1.msra.mxu0 0.0
    %5637 = vmatprep.subr.mxu0 0.0
    %5638 = vmatpush1.msra.mxu0 0.0
    %5639 = vmatprep.subr.mxu0 0.0
    %5640 = vmatpush1.msra.mxu0 0.0
    %5641 = vmatprep.subr.mxu0 0.0
    %5642 = vmatpush1.msra.mxu0 0.0
    %5643 = vmatprep.subr.mxu0 0.0
    %5644 = vmatpush1.msra.mxu0 0.0
    %5645 = vmatprep.subr.mxu0 0.0
    %5646 = vmatpush1.msra.mxu0 0.0
    %5647 = vmatprep.subr.mxu0 0.0
    %5648 = vmatpush1.msra.mxu0 0.0
    %5649 = vmatprep.subr.mxu0 0.0
    %5650 = vmatpush1.msra.mxu0 0.0
    %5651 = vmatprep.subr.mxu0 0.0
    %5652 = vmatpush1.msra.mxu0 0.0
    %5653 = vmatprep.subr.mxu0 0.0
    %5654 = vmatpush1.msra.mxu0 0.0
    %5655 = vmatprep.subr.mxu0 0.0
    %5656 = vmatpush1.msra.mxu0 0.0
    %5657 = vmatprep.subr.mxu0 0.0
    %5658 = vmatpush1.msra.mxu0 0.0
    %5659 = vmatprep.subr.mxu0 0.0
    %5660 = vmatpush1.msra.mxu0 0.0
    %5661 = vmatprep.subr.mxu0 0.0
    %5662 = vmatpush1.msra.mxu0 0.0
    %5663 = vmatprep.subr.mxu0 0.0
    %5664 = vmatpush1.msra.mxu0 0.0
    %5665 = vmatprep.subr.mxu0 0.0
    %5666 = vmatpush1.msra.mxu0 0.0
    %5667 = vmatprep.subr.mxu0 0.0
    %5668 = vmatpush1.msra.mxu0 0.0
    %5669 = vmatprep.subr.mxu0 0.0
    %5670 = vmatpush1.msra.mxu0 0.0
    %5671 = vmatprep.subr.mxu0 0.0
    %5672 = vmatpush1.msra.mxu0 0.0
    %5673 = vmatprep.subr.mxu0 0.0
    %5674 = vmatpush1.msra.mxu0 0.0
    %5675 = vmatprep.subr.mxu0 0.0
    %5676 = vmatpush1.msra.mxu0 0.0
    %5677 = vmatprep.subr.mxu0 0.0
    %5678 = vmatpush1.msra.mxu0 0.0
    %5679 = vmatprep.mubr.f32.mxu0 0.0
    %5680 = vmatmul.mubr.f32.gmra.mrb[0].mxu0 %v5092
    %v5681 = vpop.f32.mrb[0].mxu0
    %v5682 = vadd.f32 %v4346, %v5681
    %v5683 = vpop.f32.mrb[0].mxu0
    %5684 = vdwg.mxu0
    %v5685 = vadd.f32 %v5612, %v5682
    %v5686 = vxor.u32 %v5685, 2147483648
    %v5687 = vmul.f32 %v5686, 1.442695
    %v5688 = vpow.pop %v5687
    %v5689 = vadd.f32 %v5688, 1.0
    %v5690 = vrcp.pop %v5689
    %v5691 = vmul.f32 1.0, %v5690
    %5693 = vrot.lane.b32.xlu0 %v5682, 64
    %v5694 = vpop.permute.xlu0 %5693
    %v5696 = vmul.f32 %v5691, %v5694
    %5698 = vrot.lane.b32.xlu0 %v5696, 64
    %v5699 = vpop.permute.xlu0 %5698
    %v5701 = vadd.f32 %v5612, %v5699
    %v5702 = vtanh.pop %v5701
    %v5703 = vsub.f32 1.0, %v5691
    %5705 = vrot.lane.b32.xlu0 %v5702, 96
    %v5706 = vpop.permute.xlu0 %5705
    %v5708 = vmul.f32 %v5703, %v5706
    %v5709 = vmul.f32 %v5691, %v5088
    %v5710 = vadd.f32 %v5708, %v5709
    %5712 = vrot.lane.b32.xlu0 %v5710, 96
    %v5713 = vpop.permute.xlu0 %5712
    %v5714 = vsel %vm302, %v5713, 0
    %5716 = vmatprep.subr.mxu0 0.0
    %5717 = vmatpush1.msra.mxu0 %v4450
    %5718 = vmatprep.subr.mxu0 0.0
    %5719 = vmatpush1.msra.mxu0 %v4451
    %5720 = vmatprep.subr.mxu0 0.0
    %5721 = vmatpush1.msra.mxu0 %v4452
    %5722 = vmatprep.subr.mxu0 0.0
    %5723 = vmatpush1.msra.mxu0 %v4453
    %5724 = vmatprep.subr.mxu0 0.0
    %5725 = vmatpush1.msra.mxu0 0.0
    %5726 = vmatprep.subr.mxu0 0.0
    %5727 = vmatpush1.msra.mxu0 0.0
    %5728 = vmatprep.subr.mxu0 0.0
    %5729 = vmatpush1.msra.mxu0 0.0
    %5730 = vmatprep.subr.mxu0 0.0
    %5731 = vmatpush1.msra.mxu0 0.0
    %5732 = vmatprep.subr.mxu0 0.0
    %5733 = vmatpush1.msra.mxu0 0.0
    %5734 = vmatprep.subr.mxu0 0.0
    %5735 = vmatpush1.msra.mxu0 0.0
    %5736 = vmatprep.subr.mxu0 0.0
    %5737 = vmatpush1.msra.mxu0 0.0
    %5738 = vmatprep.subr.mxu0 0.0
    %5739 = vmatpush1.msra.mxu0 0.0
    %5740 = vmatprep.subr.mxu0 0.0
    %5741 = vmatpush1.msra.mxu0 0.0
    %5742 = vmatprep.subr.mxu0 0.0
    %5743 = vmatpush1.msra.mxu0 0.0
    %5744 = vmatprep.subr.mxu0 0.0
    %5745 = vmatpush1.msra.mxu0 0.0
    %5746 = vmatprep.subr.mxu0 0.0
    %5747 = vmatpush1.msra.mxu0 0.0
    %5748 = vmatprep.subr.mxu0 0.0
    %5749 = vmatpush1.msra.mxu0 0.0
    %5750 = vmatprep.subr.mxu0 0.0
    %5751 = vmatpush1.msra.mxu0 0.0
    %5752 = vmatprep.subr.mxu0 0.0
    %5753 = vmatpush1.msra.mxu0 0.0
    %5754 = vmatprep.subr.mxu0 0.0
    %5755 = vmatpush1.msra.mxu0 0.0
    %5756 = vmatprep.subr.mxu0 0.0
    %5757 = vmatpush1.msra.mxu0 0.0
    %5758 = vmatprep.subr.mxu0 0.0
    %5759 = vmatpush1.msra.mxu0 0.0
    %5760 = vmatprep.subr.mxu0 0.0
    %5761 = vmatpush1.msra.mxu0 0.0
    %5762 = vmatprep.subr.mxu0 0.0
    %5763 = vmatpush1.msra.mxu0 0.0
    %5764 = vmatprep.subr.mxu0 0.0
    %5765 = vmatpush1.msra.mxu0 0.0
    %5766 = vmatprep.subr.mxu0 0.0
    %5767 = vmatpush1.msra.mxu0 0.0
    %5768 = vmatprep.subr.mxu0 0.0
    %5769 = vmatpush1.msra.mxu0 0.0
    %5770 = vmatprep.subr.mxu0 0.0
    %5771 = vmatpush1.msra.mxu0 0.0
    %5772 = vmatprep.subr.mxu0 0.0
    %5773 = vmatpush1.msra.mxu0 0.0
    %5774 = vmatprep.subr.mxu0 0.0
    %5775 = vmatpush1.msra.mxu0 0.0
    %5776 = vmatprep.subr.mxu0 0.0
    %5777 = vmatpush1.msra.mxu0 0.0
    %5778 = vmatprep.subr.mxu0 0.0
    %5779 = vmatpush1.msra.mxu0 0.0
    %5780 = vmatprep.mubr.f32.mxu0 0.0
    %5781 = vmatmul.mubr.f32.gmra.mrb[0].mxu0 %v5714
    %v5782 = vpop.f32.mrb[0].mxu0
    %v5783 = vadd.f32 %v4454, %v5782
    %v5784 = vpop.f32.mrb[0].mxu0
    %5785 = vdwg.mxu0
    %5786 = vmatprep.subr.mxu0 0.0
    %5787 = vmatpush1.msra.mxu0 %v4530
    %5788 = vmatprep.subr.mxu0 0.0
    %5789 = vmatpush1.msra.mxu0 %v4531
    %5790 = vmatprep.subr.mxu0 0.0
    %5791 = vmatpush1.msra.mxu0 %v4532
    %5792 = vmatprep.subr.mxu0 0.0
    %5793 = vmatpush1.msra.mxu0 %v4533
    %5794 = vmatprep.subr.mxu0 0.0
    %5795 = vmatpush1.msra.mxu0 0.0
    %5796 = vmatprep.subr.mxu0 0.0
    %5797 = vmatpush1.msra.mxu0 0.0
    %5798 = vmatprep.subr.mxu0 0.0
    %5799 = vmatpush1.msra.mxu0 0.0
    %5800 = vmatprep.subr.mxu0 0.0
    %5801 = vmatpush1.msra.mxu0 0.0
    %5802 = vmatprep.subr.mxu0 0.0
    %5803 = vmatpush1.msra.mxu0 0.0
    %5804 = vmatprep.subr.mxu0 0.0
    %5805 = vmatpush1.msra.mxu0 0.0
    %5806 = vmatprep.subr.mxu0 0.0
    %5807 = vmatpush1.msra.mxu0 0.0
    %5808 = vmatprep.subr.mxu0 0.0
    %5809 = vmatpush1.msra.mxu0 0.0
    %5810 = vmatprep.subr.mxu0 0.0
    %5811 = vmatpush1.msra.mxu0 0.0
    %5812 = vmatprep.subr.mxu0 0.0
    %5813 = vmatpush1.msra.mxu0 0.0
    %5814 = vmatprep.subr.mxu0 0.0
    %5815 = vmatpush1.msra.mxu0 0.0
    %5816 = vmatprep.subr.mxu0 0.0
    %5817 = vmatpush1.msra.mxu0 0.0
    %5818 = vmatprep.subr.mxu0 0.0
    %5819 = vmatpush1.msra.mxu0 0.0
    %5820 = vmatprep.subr.mxu0 0.0
    %5821 = vmatpush1.msra.mxu0 0.0
    %5822 = vmatprep.subr.mxu0 0.0
    %5823 = vmatpush1.msra.mxu0 0.0
    %5824 = vmatprep.subr.mxu0 0.0
    %5825 = vmatpush1.msra.mxu0 0.0
    %5826 = vmatprep.subr.mxu0 0.0
    %5827 = vmatpush1.msra.mxu0 0.0
    %5828 = vmatprep.subr.mxu0 0.0
    %5829 = vmatpush1.msra.mxu0 0.0
    %5830 = vmatprep.subr.mxu0 0.0
    %5831 = vmatpush1.msra.mxu0 0.0
    %5832 = vmatprep.subr.mxu0 0.0
    %5833 = vmatpush1.msra.mxu0 0.0
    %5834 = vmatprep.subr.mxu0 0.0
    %5835 = vmatpush1.msra.mxu0 0.0
    %5836 = vmatprep.subr.mxu0 0.0
    %5837 = vmatpush1.msra.mxu0 0.0
    %5838 = vmatprep.subr.mxu0 0.0
    %5839 = vmatpush1.msra.mxu0 0.0
    %5840 = vmatprep.subr.mxu0 0.0
    %5841 = vmatpush1.msra.mxu0 0.0
    %5842 = vmatprep.subr.mxu0 0.0
    %5843 = vmatpush1.msra.mxu0 0.0
    %5844 = vmatprep.subr.mxu0 0.0
    %5845 = vmatpush1.msra.mxu0 0.0
    %5846 = vmatprep.subr.mxu0 0.0
    %5847 = vmatpush1.msra.mxu0 0.0
    %5848 = vmatprep.subr.mxu0 0.0
    %5849 = vmatpush1.msra.mxu0 0.0
    %5850 = vmatprep.mubr.f32.mxu0 0.0
    %5851 = vmatmul.mubr.f32.gmra.mrb[0].mxu0 %v5434
    %v5852 = vpop.f32.mrb[0].mxu0
    %v5853 = vadd.f32 %v4534, %v5852
    %v5854 = vpop.f32.mrb[0].mxu0
    %5855 = vdwg.mxu0
    %v5856 = vadd.f32 %v5783, %v5853
    %v5857 = vxor.u32 %v5856, 2147483648
    %v5858 = vmul.f32 %v5857, 1.442695
    %v5859 = vpow.pop %v5858
    %v5860 = vadd.f32 %v5859, 1.0
    %v5861 = vrcp.pop %v5860
    %v5862 = vmul.f32 1.0, %v5861
    %5864 = vrot.lane.b32.xlu0 %v5853, 64
    %v5865 = vpop.permute.xlu0 %5864
    %v5867 = vmul.f32 %v5862, %v5865
    %5869 = vrot.lane.b32.xlu0 %v5867, 64
    %v5870 = vpop.permute.xlu0 %5869
    %v5872 = vadd.f32 %v5783, %v5870
    %v5873 = vtanh.pop %v5872
    %v5874 = vsub.f32 1.0, %v5862
    %5876 = vrot.lane.b32.xlu0 %v5873, 96
    %v5877 = vpop.permute.xlu0 %5876
    %v5879 = vmul.f32 %v5874, %v5877
    %v5880 = vmul.f32 %v5862, %v5259
    %v5881 = vadd.f32 %v5879, %v5880
    %5883 = vrot.lane.b32.xlu0 %v5881, 96
    %v5884 = vpop.permute.xlu0 %5883
    %v5886 = vsel %vm302, %v5884, %v5540
    %v5888 = vsel %vm2189, %v5886, 0
    %5890 = vmatprep.subr.mxu0 0.0
    %5891 = vmatpush1.msra.mxu0 %v4128
    %5892 = vmatprep.subr.mxu0 0.0
    %5893 = vmatpush1.msra.mxu0 %v4129
    %5894 = vmatprep.subr.mxu0 0.0
    %5895 = vmatpush1.msra.mxu0 %v4130
    %5896 = vmatprep.subr.mxu0 0.0
    %5897 = vmatpush1.msra.mxu0 %v4131
    %5898 = vmatprep.subr.mxu0 0.0
    %5899 = vmatpush1.msra.mxu0 %v4132
    %5900 = vmatprep.subr.mxu0 0.0
    %5901 = vmatpush1.msra.mxu0 %v4133
    %5902 = vmatprep.subr.mxu0 0.0
    %5903 = vmatpush1.msra.mxu0 %v4134
    %5904 = vmatprep.subr.mxu0 0.0
    %5905 = vmatpush1.msra.mxu0 %v4135
    %5906 = vmatprep.subr.mxu0 0.0
    %5907 = vmatpush1.msra.mxu0 0.0
    %5908 = vmatprep.subr.mxu0 0.0
    %5909 = vmatpush1.msra.mxu0 0.0
    %5910 = vmatprep.subr.mxu0 0.0
    %5911 = vmatpush1.msra.mxu0 0.0
    %5912 = vmatprep.subr.mxu0 0.0
    %5913 = vmatpush1.msra.mxu0 0.0
    %5914 = vmatprep.subr.mxu0 0.0
    %5915 = vmatpush1.msra.mxu0 0.0
    %5916 = vmatprep.subr.mxu0 0.0
    %5917 = vmatpush1.msra.mxu0 0.0
    %5918 = vmatprep.subr.mxu0 0.0
    %5919 = vmatpush1.msra.mxu0 0.0
    %5920 = vmatprep.subr.mxu0 0.0
    %5921 = vmatpush1.msra.mxu0 0.0
    %5922 = vmatprep.subr.mxu0 0.0
    %5923 = vmatpush1.msra.mxu0 0.0
    %5924 = vmatprep.subr.mxu0 0.0
    %5925 = vmatpush1.msra.mxu0 0.0
    %5926 = vmatprep.subr.mxu0 0.0
    %5927 = vmatpush1.msra.mxu0 0.0
    %5928 = vmatprep.subr.mxu0 0.0
    %5929 = vmatpush1.msra.mxu0 0.0
    %5930 = vmatprep.subr.mxu0 0.0
    %5931 = vmatpush1.msra.mxu0 0.0
    %5932 = vmatprep.subr.mxu0 0.0
    %5933 = vmatpush1.msra.mxu0 0.0
    %5934 = vmatprep.subr.mxu0 0.0
    %5935 = vmatpush1.msra.mxu0 0.0
    %5936 = vmatprep.subr.mxu0 0.0
    %5937 = vmatpush1.msra.mxu0 0.0
    %5938 = vmatprep.subr.mxu0 0.0
    %5939 = vmatpush1.msra.mxu0 0.0
    %5940 = vmatprep.subr.mxu0 0.0
    %5941 = vmatpush1.msra.mxu0 0.0
    %5942 = vmatprep.subr.mxu0 0.0
    %5943 = vmatpush1.msra.mxu0 0.0
    %5944 = vmatprep.subr.mxu0 0.0
    %5945 = vmatpush1.msra.mxu0 0.0
    %5946 = vmatprep.subr.mxu0 0.0
    %5947 = vmatpush1.msra.mxu0 0.0
    %5948 = vmatprep.subr.mxu0 0.0
    %5949 = vmatpush1.msra.mxu0 0.0
    %5950 = vmatprep.subr.mxu0 0.0
    %5951 = vmatpush1.msra.mxu0 0.0
    %5952 = vmatprep.subr.mxu0 0.0
    %5953 = vmatpush1.msra.mxu0 0.0
    %5954 = vmatprep.mubr.f32.mxu0 0.0
    %5955 = vmatmul.mubr.f32.gmra.mrb[0].mxu0 %v5888
    %v5956 = vpop.f32.mrb[0].mxu0
    %v5957 = vadd.f32 %v4136, %v5956
    %v5958 = vpop.f32.mrb[0].mxu0
    %5959 = vdwg.mxu0
    %v5960 = vsel %vm4711, %v5957, -inf
    %5961 = vmax.xlane.f32.xlu0 %v5960
    %v5962 = vpop.xlane.xlu0 %5961
    %vm5963 = vcmp.ge.f32.partialorder %v5957, %v5962
    %v5964 = vsel %vm5963, %v4710, 12
    %v5965 = vsel %vm4711, %v5964, 2147483647
    %v5966 = vand.u32 %v5965, 65535
    %v5967 = vshra.s32 %v5965, 16
    %v5968 = vcvt.s32.f32 %v5966
    %v5969 = vcvt.s32.f32 %v5967
    %5970 = vmin.xlane.f32.xlu0 %v5969
    %v5971 = vpop.xlane.xlu0 %5970
    %vm5972 = vcmp.eq.f32.partialorder %v5969, %v5971
    %v5973 = vsel %vm5972, %v5968, inf
    %5974 = vmin.xlane.f32.xlu0 %v5973
    %v5975 = vpop.xlane.xlu0 %5974
    %v5976 = vcvt.f32.s32 %v5975
    %v5977 = vcvt.f32.s32 %v5971
    %v5978 = vshll.u32 %v5977, 16
    %v5979 = vadd.s32 %v5978, %v5976
    %vm5980 = vcmp.eq.s32.totalorder %v4710, %v5979
    %v5981 = vsel %vm5980, 1, 0
    %v5982 = vcvt.s32.f32 %v5981
    %v5984 = vsel %vm4735, %v5982, 0
    %5986 = vmatprep.subr.mxu0 0.0
    %5987 = vmatpush1.msra.mxu0 %v4046
    %5988 = vmatprep.subr.mxu0 0.0
    %5989 = vmatpush1.msra.mxu0 %v4740
    %5990 = vmatprep.subr.mxu0 0.0
    %5991 = vmatpush1.msra.mxu0 0.0
    %5992 = vmatprep.subr.mxu0 0.0
    %5993 = vmatpush1.msra.mxu0 0.0
    %5994 = vmatprep.subr.mxu0 0.0
    %5995 = vmatpush1.msra.mxu0 0.0
    %5996 = vmatprep.subr.mxu0 0.0
    %5997 = vmatpush1.msra.mxu0 0.0
    %5998 = vmatprep.subr.mxu0 0.0
    %5999 = vmatpush1.msra.mxu0 0.0
    %6000 = vmatprep.subr.mxu0 0.0
    %6001 = vmatpush1.msra.mxu0 0.0
    %6002 = vmatprep.subr.mxu0 0.0
    %6003 = vmatpush1.msra.mxu0 0.0
    %6004 = vmatprep.subr.mxu0 0.0
    %6005 = vmatpush1.msra.mxu0 0.0
    %6006 = vmatprep.subr.mxu0 0.0
    %6007 = vmatpush1.msra.mxu0 0.0
    %6008 = vmatprep.subr.mxu0 0.0
    %6009 = vmatpush1.msra.mxu0 0.0
    %6010 = vmatprep.subr.mxu0 0.0
    %6011 = vmatpush1.msra.mxu0 0.0
    %6012 = vmatprep.subr.mxu0 0.0
    %6013 = vmatpush1.msra.mxu0 0.0
    %6014 = vmatprep.subr.mxu0 0.0
    %6015 = vmatpush1.msra.mxu0 0.0
    %6016 = vmatprep.subr.mxu0 0.0
    %6017 = vmatpush1.msra.mxu0 0.0
    %6018 = vmatprep.subr.mxu0 0.0
    %6019 = vmatpush1.msra.mxu0 0.0
    %6020 = vmatprep.subr.mxu0 0.0
    %6021 = vmatpush1.msra.mxu0 0.0
    %6022 = vmatprep.subr.mxu0 0.0
    %6023 = vmatpush1.msra.mxu0 0.0
    %6024 = vmatprep.subr.mxu0 0.0
    %6025 = vmatpush1.msra.mxu0 0.0
    %6026 = vmatprep.subr.mxu0 0.0
    %6027 = vmatpush1.msra.mxu0 0.0
    %6028 = vmatprep.subr.mxu0 0.0
    %6029 = vmatpush1.msra.mxu0 0.0
    %6030 = vmatprep.subr.mxu0 0.0
    %6031 = vmatpush1.msra.mxu0 0.0
    %6032 = vmatprep.subr.mxu0 0.0
    %6033 = vmatpush1.msra.mxu0 0.0
    %6034 = vmatprep.subr.mxu0 0.0
    %6035 = vmatpush1.msra.mxu0 0.0
    %6036 = vmatprep.subr.mxu0 0.0
    %6037 = vmatpush1.msra.mxu0 0.0
    %6038 = vmatprep.subr.mxu0 0.0
    %6039 = vmatpush1.msra.mxu0 0.0
    %6040 = vmatprep.subr.mxu0 0.0
    %6041 = vmatpush1.msra.mxu0 0.0
    %6042 = vmatprep.subr.mxu0 0.0
    %6043 = vmatpush1.msra.mxu0 0.0
    %6044 = vmatprep.subr.mxu0 0.0
    %6045 = vmatpush1.msra.mxu0 0.0
    %6046 = vmatprep.subr.mxu0 0.0
    %6047 = vmatpush1.msra.mxu0 0.0
    %6048 = vmatprep.subr.mxu0 0.0
    %6049 = vmatpush1.msra.mxu0 0.0
    %6050 = vmatprep.mubr.f32.mxu0 0.0
    %6051 = vmatmul.mubr.f32.gmra.mrb[0].mxu0 %v5984
    %v6052 = vpop.f32.mrb[0].mxu0
    %v6053 = vadd.f32 0.0, %v6052
    %v6054 = vpop.f32.mrb[0].mxu0
    %6055 = vdwg.mxu0
    %v6056 = vsel %vm302, %v5884, 0
    %6058 = vmatprep.subr.mxu0 0.0
    %6059 = vmatpush1.msra.mxu0 %v4137
    %6060 = vmatprep.subr.mxu0 0.0
    %6061 = vmatpush1.msra.mxu0 %v4138
    %6062 = vmatprep.subr.mxu0 0.0
    %6063 = vmatpush1.msra.mxu0 %v4139
    %6064 = vmatprep.subr.mxu0 0.0
    %6065 = vmatpush1.msra.mxu0 %v4140
    %6066 = vmatprep.subr.mxu0 0.0
    %6067 = vmatpush1.msra.mxu0 0.0
    %6068 = vmatprep.subr.mxu0 0.0
    %6069 = vmatpush1.msra.mxu0 0.0
    %6070 = vmatprep.subr.mxu0 0.0
    %6071 = vmatpush1.msra.mxu0 0.0
    %6072 = vmatprep.subr.mxu0 0.0
    %6073 = vmatpush1.msra.mxu0 0.0
    %6074 = vmatprep.subr.mxu0 0.0
    %6075 = vmatpush1.msra.mxu0 0.0
    %6076 = vmatprep.subr.mxu0 0.0
    %6077 = vmatpush1.msra.mxu0 0.0
    %6078 = vmatprep.subr.mxu0 0.0
    %6079 = vmatpush1.msra.mxu0 0.0
    %6080 = vmatprep.subr.mxu0 0.0
    %6081 = vmatpush1.msra.mxu0 0.0
    %6082 = vmatprep.subr.mxu0 0.0
    %6083 = vmatpush1.msra.mxu0 0.0
    %6084 = vmatprep.subr.mxu0 0.0
    %6085 = vmatpush1.msra.mxu0 0.0
    %6086 = vmatprep.subr.mxu0 0.0
    %6087 = vmatpush1.msra.mxu0 0.0
    %6088 = vmatprep.subr.mxu0 0.0
    %6089 = vmatpush1.msra.mxu0 0.0
    %6090 = vmatprep.subr.mxu0 0.0
    %6091 = vmatpush1.msra.mxu0 0.0
    %6092 = vmatprep.subr.mxu0 0.0
    %6093 = vmatpush1.msra.mxu0 0.0
    %6094 = vmatprep.subr.mxu0 0.0
    %6095 = vmatpush1.msra.mxu0 0.0
    %6096 = vmatprep.subr.mxu0 0.0
    %6097 = vmatpush1.msra.mxu0 0.0
    %6098 = vmatprep.subr.mxu0 0.0
    %6099 = vmatpush1.msra.mxu0 0.0
    %6100 = vmatprep.subr.mxu0 0.0
    %6101 = vmatpush1.msra.mxu0 0.0
    %6102 = vmatprep.subr.mxu0 0.0
    %6103 = vmatpush1.msra.mxu0 0.0
    %6104 = vmatprep.subr.mxu0 0.0
    %6105 = vmatpush1.msra.mxu0 0.0
    %6106 = vmatprep.subr.mxu0 0.0
    %6107 = vmatpush1.msra.mxu0 0.0
    %6108 = vmatprep.subr.mxu0 0.0
    %6109 = vmatpush1.msra.mxu0 0.0
    %6110 = vmatprep.subr.mxu0 0.0
    %6111 = vmatpush1.msra.mxu0 0.0
    %6112 = vmatprep.subr.mxu0 0.0
    %6113 = vmatpush1.msra.mxu0 0.0
    %6114 = vmatprep.subr.mxu0 0.0
    %6115 = vmatpush1.msra.mxu0 0.0
    %6116 = vmatprep.subr.mxu0 0.0
    %6117 = vmatpush1.msra.mxu0 0.0
    %6118 = vmatprep.subr.mxu0 0.0
    %6119 = vmatpush1.msra.mxu0 0.0
    %6120 = vmatprep.subr.mxu0 0.0
    %6121 = vmatpush1.msra.mxu0 0.0
    %6122 = vmatprep.mubr.f32.mxu0 0.0
    %6123 = vmatmul.mubr.f32.gmra.mrb[0].mxu0 %v6056
    %v6124 = vpop.f32.mrb[0].mxu0
    %v6125 = vadd.f32 0.0, %v6124
    %v6126 = vpop.f32.mrb[0].mxu0
    %6127 = vdwg.mxu0
    %v6128 = vlaneseq
    %v6129 = vshrl.u32 %v6128, 7
    %v6130 = vsub.s32 0, %v6129
    %v6131 = vrot.slane %v6125, %v6130
    %v6132 = vadd.f32 %v4124, %v6131
    %v6133 = vtanh.pop %v6132
    %v6134 = vmul.f32 %v6133, %v4226
    %v6135 = vsel %vm302, %v6134, 0.0
    %6136 = vadd.xlane.f32.xlu0 %v6135
    %v6137 = vpop.xlane.xlu0 %6136
    %v6138 = vrot.slane %v6137, 4
    %v6139 = vmax.f32 %v6137, %v6138
    %v6140 = vrot.slane %v6139, 2
    %v6141 = vmax.f32 %v6139, %v6140
    %v6142 = vrot.slane %v6141, 1
    %v6143 = vmax.f32 %v6141, %v6142
    %v6144 = vsub.f32 %v6137, %v6143
    %v6145 = vmul.f32 %v6144, 1.442695
    %v6146 = vpow.pop %v6145
    %v6147 = vrot.slane %v6146, 4
    %v6148 = vadd.f32 %v6146, %v6147
    %v6149 = vrot.slane %v6148, 2
    %v6150 = vadd.f32 %v6148, %v6149
    %v6151 = vrot.slane %v6150, 1
    %v6152 = vadd.f32 %v6150, %v6151
    %v6153 = vrcp.pop %v6152
    %v6154 = vmul.f32 %v6146, %v6153
    %v6155 = vmul.f32 %v6154, %v4045
    %v6156 = vsel %vm4250, %v6155, 0.0
    %v6157 = vrot.slane %v6156, 4
    %v6158 = vadd.f32 %v6156, %v6157
    %v6159 = vrot.slane %v6158, 2
    %v6160 = vadd.f32 %v6158, %v6159
    %v6161 = vrot.slane %v6160, 1
    %v6162 = vadd.f32 %v6160, %v6161
    %v6163 = vsel %vm302, %v6053, %v6162
    %v6165 = vsel %vm2189, %v6163, 0
    %6167 = vmatprep.subr.mxu0 0.0
    %6168 = vmatpush1.msra.mxu0 %v4259
    %6169 = vmatprep.subr.mxu0 0.0
    %6170 = vmatpush1.msra.mxu0 %v4260
    %6171 = vmatprep.subr.mxu0 0.0
    %6172 = vmatpush1.msra.mxu0 %v4261
    %6173 = vmatprep.subr.mxu0 0.0
    %6174 = vmatpush1.msra.mxu0 %v4262
    %6175 = vmatprep.subr.mxu0 0.0
    %6176 = vmatpush1.msra.mxu0 %v4263
    %6177 = vmatprep.subr.mxu0 0.0
    %6178 = vmatpush1.msra.mxu0 %v4264
    %6179 = vmatprep.subr.mxu0 0.0
    %6180 = vmatpush1.msra.mxu0 %v4265
    %6181 = vmatprep.subr.mxu0 0.0
    %6182 = vmatpush1.msra.mxu0 %v4266
    %6183 = vmatprep.subr.mxu0 0.0
    %6184 = vmatpush1.msra.mxu0 0.0
    %6185 = vmatprep.subr.mxu0 0.0
    %6186 = vmatpush1.msra.mxu0 0.0
    %6187 = vmatprep.subr.mxu0 0.0
    %6188 = vmatpush1.msra.mxu0 0.0
    %6189 = vmatprep.subr.mxu0 0.0
    %6190 = vmatpush1.msra.mxu0 0.0
    %6191 = vmatprep.subr.mxu0 0.0
    %6192 = vmatpush1.msra.mxu0 0.0
    %6193 = vmatprep.subr.mxu0 0.0
    %6194 = vmatpush1.msra.mxu0 0.0
    %6195 = vmatprep.subr.mxu0 0.0
    %6196 = vmatpush1.msra.mxu0 0.0
    %6197 = vmatprep.subr.mxu0 0.0
    %6198 = vmatpush1.msra.mxu0 0.0
    %6199 = vmatprep.subr.mxu0 0.0
    %6200 = vmatpush1.msra.mxu0 0.0
    %6201 = vmatprep.subr.mxu0 0.0
    %6202 = vmatpush1.msra.mxu0 0.0
    %6203 = vmatprep.subr.mxu0 0.0
    %6204 = vmatpush1.msra.mxu0 0.0
    %6205 = vmatprep.subr.mxu0 0.0
    %6206 = vmatpush1.msra.mxu0 0.0
    %6207 = vmatprep.subr.mxu0 0.0
    %6208 = vmatpush1.msra.mxu0 0.0
    %6209 = vmatprep.subr.mxu0 0.0
    %6210 = vmatpush1.msra.mxu0 0.0
    %6211 = vmatprep.subr.mxu0 0.0
    %6212 = vmatpush1.msra.mxu0 0.0
    %6213 = vmatprep.subr.mxu0 0.0
    %6214 = vmatpush1.msra.mxu0 0.0
    %6215 = vmatprep.subr.mxu0 0.0
    %6216 = vmatpush1.msra.mxu0 0.0
    %6217 = vmatprep.subr.mxu0 0.0
    %6218 = vmatpush1.msra.mxu0 0.0
    %6219 = vmatprep.subr.mxu0 0.0
    %6220 = vmatpush1.msra.mxu0 0.0
    %6221 = vmatprep.subr.mxu0 0.0
    %6222 = vmatpush1.msra.mxu0 0.0
    %6223 = vmatprep.subr.mxu0 0.0
    %6224 = vmatpush1.msra.mxu0 0.0
    %6225 = vmatprep.subr.mxu0 0.0
    %6226 = vmatpush1.msra.mxu0 0.0
    %6227 = vmatprep.subr.mxu0 0.0
    %6228 = vmatpush1.msra.mxu0 0.0
    %6229 = vmatprep.subr.mxu0 0.0
    %6230 = vmatpush1.msra.mxu0 0.0
    %6231 = vmatprep.mubr.f32.mxu0 0.0
    %6232 = vmatmul.mubr.f32.gmra.mrb[0].mxu0 %v6165
    %v6233 = vpop.f32.mrb[0].mxu0
    %v6234 = vadd.f32 %v4267, %v6233
    %v6235 = vpop.f32.mrb[0].mxu0
    %6236 = vdwg.mxu0
    %6237 = vmatprep.subr.mxu0 0.0
    %6238 = vmatpush1.msra.mxu0 %v4342
    %6239 = vmatprep.subr.mxu0 0.0
    %6240 = vmatpush1.msra.mxu0 %v4343
    %6241 = vmatprep.subr.mxu0 0.0
    %6242 = vmatpush1.msra.mxu0 %v4344
    %6243 = vmatprep.subr.mxu0 0.0
    %6244 = vmatpush1.msra.mxu0 %v4345
    %6245 = vmatprep.subr.mxu0 0.0
    %6246 = vmatpush1.msra.mxu0 0.0
    %6247 = vmatprep.subr.mxu0 0.0
    %6248 = vmatpush1.msra.mxu0 0.0
    %6249 = vmatprep.subr.mxu0 0.0
    %6250 = vmatpush1.msra.mxu0 0.0
    %6251 = vmatprep.subr.mxu0 0.0
    %6252 = vmatpush1.msra.mxu0 0.0
    %6253 = vmatprep.subr.mxu0 0.0
    %6254 = vmatpush1.msra.mxu0 0.0
    %6255 = vmatprep.subr.mxu0 0.0
    %6256 = vmatpush1.msra.mxu0 0.0
    %6257 = vmatprep.subr.mxu0 0.0
    %6258 = vmatpush1.msra.mxu0 0.0
    %6259 = vmatprep.subr.mxu0 0.0
    %6260 = vmatpush1.msra.mxu0 0.0
    %6261 = vmatprep.subr.mxu0 0.0
    %6262 = vmatpush1.msra.mxu0 0.0
    %6263 = vmatprep.subr.mxu0 0.0
    %6264 = vmatpush1.msra.mxu0 0.0
    %6265 = vmatprep.subr.mxu0 0.0
    %6266 = vmatpush1.msra.mxu0 0.0
    %6267 = vmatprep.subr.mxu0 0.0
    %6268 = vmatpush1.msra.mxu0 0.0
    %6269 = vmatprep.subr.mxu0 0.0
    %6270 = vmatpush1.msra.mxu0 0.0
    %6271 = vmatprep.subr.mxu0 0.0
    %6272 = vmatpush1.msra.mxu0 0.0
    %6273 = vmatprep.subr.mxu0 0.0
    %6274 = vmatpush1.msra.mxu0 0.0
    %6275 = vmatprep.subr.mxu0 0.0
    %6276 = vmatpush1.msra.mxu0 0.0
    %6277 = vmatprep.subr.mxu0 0.0
    %6278 = vmatpush1.msra.mxu0 0.0
    %6279 = vmatprep.subr.mxu0 0.0
    %6280 = vmatpush1.msra.mxu0 0.0
    %6281 = vmatprep.subr.mxu0 0.0
    %6282 = vmatpush1.msra.mxu0 0.0
    %6283 = vmatprep.subr.mxu0 0.0
    %6284 = vmatpush1.msra.mxu0 0.0
    %6285 = vmatprep.subr.mxu0 0.0
    %6286 = vmatpush1.msra.mxu0 0.0
    %6287 = vmatprep.subr.mxu0 0.0
    %6288 = vmatpush1.msra.mxu0 0.0
    %6289 = vmatprep.subr.mxu0 0.0
    %6290 = vmatpush1.msra.mxu0 0.0
    %6291 = vmatprep.subr.mxu0 0.0
    %6292 = vmatpush1.msra.mxu0 0.0
    %6293 = vmatprep.subr.mxu0 0.0
    %6294 = vmatpush1.msra.mxu0 0.0
    %6295 = vmatprep.subr.mxu0 0.0
    %6296 = vmatpush1.msra.mxu0 0.0
    %6297 = vmatprep.subr.mxu0 0.0
    %6298 = vmatpush1.msra.mxu0 0.0
    %6299 = vmatprep.subr.mxu0 0.0
    %6300 = vmatpush1.msra.mxu0 0.0
    %6301 = vmatprep.mubr.f32.mxu0 0.0
    %6302 = vmatmul.mubr.f32.gmra.mrb[0].mxu0 %v5714
    %v6303 = vpop.f32.mrb[0].mxu0
    %v6304 = vadd.f32 %v4346, %v6303
    %v6305 = vpop.f32.mrb[0].mxu0
    %6306 = vdwg.mxu0
    %v6307 = vadd.f32 %v6234, %v6304
    %v6308 = vxor.u32 %v6307, 2147483648
    %v6309 = vmul.f32 %v6308, 1.442695
    %v6310 = vpow.pop %v6309
    %v6311 = vadd.f32 %v6310, 1.0
    %v6312 = vrcp.pop %v6311
    %v6313 = vmul.f32 1.0, %v6312
    %6315 = vrot.lane.b32.xlu0 %v6304, 64
    %v6316 = vpop.permute.xlu0 %6315
    %v6318 = vmul.f32 %v6313, %v6316
    %6320 = vrot.lane.b32.xlu0 %v6318, 64
    %v6321 = vpop.permute.xlu0 %6320
    %v6323 = vadd.f32 %v6234, %v6321
    %v6324 = vtanh.pop %v6323
    %v6325 = vsub.f32 1.0, %v6313
    %6327 = vrot.lane.b32.xlu0 %v6324, 96
    %v6328 = vpop.permute.xlu0 %6327
    %v6330 = vmul.f32 %v6325, %v6328
    %v6331 = vmul.f32 %v6313, %v5710
    %v6332 = vadd.f32 %v6330, %v6331
    %6334 = vrot.lane.b32.xlu0 %v6332, 96
    %v6335 = vpop.permute.xlu0 %6334
    %v6336 = vsel %vm302, %v6335, 0
    %6338 = vmatprep.subr.mxu0 0.0
    %6339 = vmatpush1.msra.mxu0 %v4450
    %6340 = vmatprep.subr.mxu0 0.0
    %6341 = vmatpush1.msra.mxu0 %v4451
    %6342 = vmatprep.subr.mxu0 0.0
    %6343 = vmatpush1.msra.mxu0 %v4452
    %6344 = vmatprep.subr.mxu0 0.0
    %6345 = vmatpush1.msra.mxu0 %v4453
    %6346 = vmatprep.subr.mxu0 0.0
    %6347 = vmatpush1.msra.mxu0 0.0
    %6348 = vmatprep.subr.mxu0 0.0
    %6349 = vmatpush1.msra.mxu0 0.0
    %6350 = vmatprep.subr.mxu0 0.0
    %6351 = vmatpush1.msra.mxu0 0.0
    %6352 = vmatprep.subr.mxu0 0.0
    %6353 = vmatpush1.msra.mxu0 0.0
    %6354 = vmatprep.subr.mxu0 0.0
    %6355 = vmatpush1.msra.mxu0 0.0
    %6356 = vmatprep.subr.mxu0 0.0
    %6357 = vmatpush1.msra.mxu0 0.0
    %6358 = vmatprep.subr.mxu0 0.0
    %6359 = vmatpush1.msra.mxu0 0.0
    %6360 = vmatprep.subr.mxu0 0.0
    %6361 = vmatpush1.msra.mxu0 0.0
    %6362 = vmatprep.subr.mxu0 0.0
    %6363 = vmatpush1.msra.mxu0 0.0
    %6364 = vmatprep.subr.mxu0 0.0
    %6365 = vmatpush1.msra.mxu0 0.0
    %6366 = vmatprep.subr.mxu0 0.0
    %6367 = vmatpush1.msra.mxu0 0.0
    %6368 = vmatprep.subr.mxu0 0.0
    %6369 = vmatpush1.msra.mxu0 0.0
    %6370 = vmatprep.subr.mxu0 0.0
    %6371 = vmatpush1.msra.mxu0 0.0
    %6372 = vmatprep.subr.mxu0 0.0
    %6373 = vmatpush1.msra.mxu0 0.0
    %6374 = vmatprep.subr.mxu0 0.0
    %6375 = vmatpush1.msra.mxu0 0.0
    %6376 = vmatprep.subr.mxu0 0.0
    %6377 = vmatpush1.msra.mxu0 0.0
    %6378 = vmatprep.subr.mxu0 0.0
    %6379 = vmatpush1.msra.mxu0 0.0
    %6380 = vmatprep.subr.mxu0 0.0
    %6381 = vmatpush1.msra.mxu0 0.0
    %6382 = vmatprep.subr.mxu0 0.0
    %6383 = vmatpush1.msra.mxu0 0.0
    %6384 = vmatprep.subr.mxu0 0.0
    %6385 = vmatpush1.msra.mxu0 0.0
    %6386 = vmatprep.subr.mxu0 0.0
    %6387 = vmatpush1.msra.mxu0 0.0
    %6388 = vmatprep.subr.mxu0 0.0
    %6389 = vmatpush1.msra.mxu0 0.0
    %6390 = vmatprep.subr.mxu0 0.0
    %6391 = vmatpush1.msra.mxu0 0.0
    %6392 = vmatprep.subr.mxu0 0.0
    %6393 = vmatpush1.msra.mxu0 0.0
    %6394 = vmatprep.subr.mxu0 0.0
    %6395 = vmatpush1.msra.mxu0 0.0
    %6396 = vmatprep.subr.mxu0 0.0
    %6397 = vmatpush1.msra.mxu0 0.0
    %6398 = vmatprep.subr.mxu0 0.0
    %6399 = vmatpush1.msra.mxu0 0.0
    %6400 = vmatprep.subr.mxu0 0.0
    %6401 = vmatpush1.msra.mxu0 0.0
    %6402 = vmatprep.mubr.f32.mxu0 0.0
    %6403 = vmatmul.mubr.f32.gmra.mrb[0].mxu0 %v6336
    %v6404 = vpop.f32.mrb[0].mxu0
    %v6405 = vadd.f32 %v4454, %v6404
    %v6406 = vpop.f32.mrb[0].mxu0
    %6407 = vdwg.mxu0
    %6408 = vmatprep.subr.mxu0 0.0
    %6409 = vmatpush1.msra.mxu0 %v4530
    %6410 = vmatprep.subr.mxu0 0.0
    %6411 = vmatpush1.msra.mxu0 %v4531
    %6412 = vmatprep.subr.mxu0 0.0
    %6413 = vmatpush1.msra.mxu0 %v4532
    %6414 = vmatprep.subr.mxu0 0.0
    %6415 = vmatpush1.msra.mxu0 %v4533
    %6416 = vmatprep.subr.mxu0 0.0
    %6417 = vmatpush1.msra.mxu0 0.0
    %6418 = vmatprep.subr.mxu0 0.0
    %6419 = vmatpush1.msra.mxu0 0.0
    %6420 = vmatprep.subr.mxu0 0.0
    %6421 = vmatpush1.msra.mxu0 0.0
    %6422 = vmatprep.subr.mxu0 0.0
    %6423 = vmatpush1.msra.mxu0 0.0
    %6424 = vmatprep.subr.mxu0 0.0
    %6425 = vmatpush1.msra.mxu0 0.0
    %6426 = vmatprep.subr.mxu0 0.0
    %6427 = vmatpush1.msra.mxu0 0.0
    %6428 = vmatprep.subr.mxu0 0.0
    %6429 = vmatpush1.msra.mxu0 0.0
    %6430 = vmatprep.subr.mxu0 0.0
    %6431 = vmatpush1.msra.mxu0 0.0
    %6432 = vmatprep.subr.mxu0 0.0
    %6433 = vmatpush1.msra.mxu0 0.0
    %6434 = vmatprep.subr.mxu0 0.0
    %6435 = vmatpush1.msra.mxu0 0.0
    %6436 = vmatprep.subr.mxu0 0.0
    %6437 = vmatpush1.msra.mxu0 0.0
    %6438 = vmatprep.subr.mxu0 0.0
    %6439 = vmatpush1.msra.mxu0 0.0
    %6440 = vmatprep.subr.mxu0 0.0
    %6441 = vmatpush1.msra.mxu0 0.0
    %6442 = vmatprep.subr.mxu0 0.0
    %6443 = vmatpush1.msra.mxu0 0.0
    %6444 = vmatprep.subr.mxu0 0.0
    %6445 = vmatpush1.msra.mxu0 0.0
    %6446 = vmatprep.subr.mxu0 0.0
    %6447 = vmatpush1.msra.mxu0 0.0
    %6448 = vmatprep.subr.mxu0 0.0
    %6449 = vmatpush1.msra.mxu0 0.0
    %6450 = vmatprep.subr.mxu0 0.0
    %6451 = vmatpush1.msra.mxu0 0.0
    %6452 = vmatprep.subr.mxu0 0.0
    %6453 = vmatpush1.msra.mxu0 0.0
    %6454 = vmatprep.subr.mxu0 0.0
    %6455 = vmatpush1.msra.mxu0 0.0
    %6456 = vmatprep.subr.mxu0 0.0
    %6457 = vmatpush1.msra.mxu0 0.0
    %6458 = vmatprep.subr.mxu0 0.0
    %6459 = vmatpush1.msra.mxu0 0.0
    %6460 = vmatprep.subr.mxu0 0.0
    %6461 = vmatpush1.msra.mxu0 0.0
    %6462 = vmatprep.subr.mxu0 0.0
    %6463 = vmatpush1.msra.mxu0 0.0
    %6464 = vmatprep.subr.mxu0 0.0
    %6465 = vmatpush1.msra.mxu0 0.0
    %6466 = vmatprep.subr.mxu0 0.0
    %6467 = vmatpush1.msra.mxu0 0.0
    %6468 = vmatprep.subr.mxu0 0.0
    %6469 = vmatpush1.msra.mxu0 0.0
    %6470 = vmatprep.subr.mxu0 0.0
    %6471 = vmatpush1.msra.mxu0 0.0
    %6472 = vmatprep.mubr.f32.mxu0 0.0
    %6473 = vmatmul.mubr.f32.gmra.mrb[0].mxu0 %v6056
    %v6474 = vpop.f32.mrb[0].mxu0
    %v6475 = vadd.f32 %v4534, %v6474
    %v6476 = vpop.f32.mrb[0].mxu0
    %6477 = vdwg.mxu0
    %v6478 = vadd.f32 %v6405, %v6475
    %v6479 = vxor.u32 %v6478, 2147483648
    %v6480 = vmul.f32 %v6479, 1.442695
    %v6481 = vpow.pop %v6480
    %v6482 = vadd.f32 %v6481, 1.0
    %v6483 = vrcp.pop %v6482
    %v6484 = vmul.f32 1.0, %v6483
    %6486 = vrot.lane.b32.xlu0 %v6475, 64
    %v6487 = vpop.permute.xlu0 %6486
    %v6489 = vmul.f32 %v6484, %v6487
    %6491 = vrot.lane.b32.xlu0 %v6489, 64
    %v6492 = vpop.permute.xlu0 %6491
    %v6494 = vadd.f32 %v6405, %v6492
    %v6495 = vtanh.pop %v6494
    %v6496 = vsub.f32 1.0, %v6484
    %6498 = vrot.lane.b32.xlu0 %v6495, 96
    %v6499 = vpop.permute.xlu0 %6498
    %v6501 = vmul.f32 %v6496, %v6499
    %v6502 = vmul.f32 %v6484, %v5881
    %v6503 = vadd.f32 %v6501, %v6502
    %6505 = vrot.lane.b32.xlu0 %v6503, 96
    %v6506 = vpop.permute.xlu0 %6505
    %v6508 = vsel %vm302, %v6506, %v6162
    %v6510 = vsel %vm2189, %v6508, 0
    %6512 = vmatprep.subr.mxu0 0.0
    %6513 = vmatpush1.msra.mxu0 %v4128
    %6514 = vmatprep.subr.mxu0 0.0
    %6515 = vmatpush1.msra.mxu0 %v4129
    %6516 = vmatprep.subr.mxu0 0.0
    %6517 = vmatpush1.msra.mxu0 %v4130
    %6518 = vmatprep.subr.mxu0 0.0
    %6519 = vmatpush1.msra.mxu0 %v4131
    %6520 = vmatprep.subr.mxu0 0.0
    %6521 = vmatpush1.msra.mxu0 %v4132
    %6522 = vmatprep.subr.mxu0 0.0
    %6523 = vmatpush1.msra.mxu0 %v4133
    %6524 = vmatprep.subr.mxu0 0.0
    %6525 = vmatpush1.msra.mxu0 %v4134
    %6526 = vmatprep.subr.mxu0 0.0
    %6527 = vmatpush1.msra.mxu0 %v4135
    %6528 = vmatprep.subr.mxu0 0.0
    %6529 = vmatpush1.msra.mxu0 0.0
    %6530 = vmatprep.subr.mxu0 0.0
    %6531 = vmatpush1.msra.mxu0 0.0
    %6532 = vmatprep.subr.mxu0 0.0
    %6533 = vmatpush1.msra.mxu0 0.0
    %6534 = vmatprep.subr.mxu0 0.0
    %6535 = vmatpush1.msra.mxu0 0.0
    %6536 = vmatprep.subr.mxu0 0.0
    %6537 = vmatpush1.msra.mxu0 0.0
    %6538 = vmatprep.subr.mxu0 0.0
    %6539 = vmatpush1.msra.mxu0 0.0
    %6540 = vmatprep.subr.mxu0 0.0
    %6541 = vmatpush1.msra.mxu0 0.0
    %6542 = vmatprep.subr.mxu0 0.0
    %6543 = vmatpush1.msra.mxu0 0.0
    %6544 = vmatprep.subr.mxu0 0.0
    %6545 = vmatpush1.msra.mxu0 0.0
    %6546 = vmatprep.subr.mxu0 0.0
    %6547 = vmatpush1.msra.mxu0 0.0
    %6548 = vmatprep.subr.mxu0 0.0
    %6549 = vmatpush1.msra.mxu0 0.0
    %6550 = vmatprep.subr.mxu0 0.0
    %6551 = vmatpush1.msra.mxu0 0.0
    %6552 = vmatprep.subr.mxu0 0.0
    %6553 = vmatpush1.msra.mxu0 0.0
    %6554 = vmatprep.subr.mxu0 0.0
    %6555 = vmatpush1.msra.mxu0 0.0
    %6556 = vmatprep.subr.mxu0 0.0
    %6557 = vmatpush1.msra.mxu0 0.0
    %6558 = vmatprep.subr.mxu0 0.0
    %6559 = vmatpush1.msra.mxu0 0.0
    %6560 = vmatprep.subr.mxu0 0.0
    %6561 = vmatpush1.msra.mxu0 0.0
    %6562 = vmatprep.subr.mxu0 0.0
    %6563 = vmatpush1.msra.mxu0 0.0
    %6564 = vmatprep.subr.mxu0 0.0
    %6565 = vmatpush1.msra.mxu0 0.0
    %6566 = vmatprep.subr.mxu0 0.0
    %6567 = vmatpush1.msra.mxu0 0.0
    %6568 = vmatprep.subr.mxu0 0.0
    %6569 = vmatpush1.msra.mxu0 0.0
    %6570 = vmatprep.subr.mxu0 0.0
    %6571 = vmatpush1.msra.mxu0 0.0
    %6572 = vmatprep.subr.mxu0 0.0
    %6573 = vmatpush1.msra.mxu0 0.0
    %6574 = vmatprep.subr.mxu0 0.0
    %6575 = vmatpush1.msra.mxu0 0.0
    %6576 = vmatprep.mubr.f32.mxu0 0.0
    %6577 = vmatmul.mubr.f32.gmra.mrb[0].mxu0 %v6510
    %v6578 = vpop.f32.mrb[0].mxu0
    %v6579 = vadd.f32 %v4136, %v6578
    %v6580 = vpop.f32.mrb[0].mxu0
    %6581 = vdwg.mxu0
    %v6582 = vsel %vm4711, %v6579, -inf
    %6583 = vmax.xlane.f32.xlu0 %v6582
    %v6584 = vpop.xlane.xlu0 %6583
    %vm6585 = vcmp.ge.f32.partialorder %v6579, %v6584
    %v6586 = vsel %vm6585, %v4710, 12
    %v6587 = vsel %vm4711, %v6586, 2147483647
    %v6588 = vand.u32 %v6587, 65535
    %v6589 = vshra.s32 %v6587, 16
    %v6590 = vcvt.s32.f32 %v6588
    %v6591 = vcvt.s32.f32 %v6589
    %6592 = vmin.xlane.f32.xlu0 %v6591
    %v6593 = vpop.xlane.xlu0 %6592
    %vm6594 = vcmp.eq.f32.partialorder %v6591, %v6593
    %v6595 = vsel %vm6594, %v6590, inf
    %6596 = vmin.xlane.f32.xlu0 %v6595
    %v6597 = vpop.xlane.xlu0 %6596
    %v6598 = vcvt.f32.s32 %v6597
    %v6599 = vcvt.f32.s32 %v6593
    %v6600 = vshll.u32 %v6599, 16
    %v6601 = vadd.s32 %v6600, %v6598
    %vm6602 = vcmp.eq.s32.totalorder %v4710, %v6601
    %v6603 = vsel %vm6602, 1, 0
    %v6604 = vcvt.s32.f32 %v6603
    %v6606 = vsel %vm4735, %v6604, 0
    %6608 = vmatprep.subr.mxu0 0.0
    %6609 = vmatpush1.msra.mxu0 %v4046
    %6610 = vmatprep.subr.mxu0 0.0
    %6611 = vmatpush1.msra.mxu0 %v4740
    %6612 = vmatprep.subr.mxu0 0.0
    %6613 = vmatpush1.msra.mxu0 0.0
    %6614 = vmatprep.subr.mxu0 0.0
    %6615 = vmatpush1.msra.mxu0 0.0
    %6616 = vmatprep.subr.mxu0 0.0
    %6617 = vmatpush1.msra.mxu0 0.0
    %6618 = vmatprep.subr.mxu0 0.0
    %6619 = vmatpush1.msra.mxu0 0.0
    %6620 = vmatprep.subr.mxu0 0.0
    %6621 = vmatpush1.msra.mxu0 0.0
    %6622 = vmatprep.subr.mxu0 0.0
    %6623 = vmatpush1.msra.mxu0 0.0
    %6624 = vmatprep.subr.mxu0 0.0
    %6625 = vmatpush1.msra.mxu0 0.0
    %6626 = vmatprep.subr.mxu0 0.0
    %6627 = vmatpush1.msra.mxu0 0.0
    %6628 = vmatprep.subr.mxu0 0.0
    %6629 = vmatpush1.msra.mxu0 0.0
    %6630 = vmatprep.subr.mxu0 0.0
    %6631 = vmatpush1.msra.mxu0 0.0
    %6632 = vmatprep.subr.mxu0 0.0
    %6633 = vmatpush1.msra.mxu0 0.0
    %6634 = vmatprep.subr.mxu0 0.0
    %6635 = vmatpush1.msra.mxu0 0.0
    %6636 = vmatprep.subr.mxu0 0.0
    %6637 = vmatpush1.msra.mxu0 0.0
    %6638 = vmatprep.subr.mxu0 0.0
    %6639 = vmatpush1.msra.mxu0 0.0
    %6640 = vmatprep.subr.mxu0 0.0
    %6641 = vmatpush1.msra.mxu0 0.0
    %6642 = vmatprep.subr.mxu0 0.0
    %6643 = vmatpush1.msra.mxu0 0.0
    %6644 = vmatprep.subr.mxu0 0.0
    %6645 = vmatpush1.msra.mxu0 0.0
    %6646 = vmatprep.subr.mxu0 0.0
    %6647 = vmatpush1.msra.mxu0 0.0
    %6648 = vmatprep.subr.mxu0 0.0
    %6649 = vmatpush1.msra.mxu0 0.0
    %6650 = vmatprep.subr.mxu0 0.0
    %6651 = vmatpush1.msra.mxu0 0.0
    %6652 = vmatprep.subr.mxu0 0.0
    %6653 = vmatpush1.msra.mxu0 0.0
    %6654 = vmatprep.subr.mxu0 0.0
    %6655 = vmatpush1.msra.mxu0 0.0
    %6656 = vmatprep.subr.mxu0 0.0
    %6657 = vmatpush1.msra.mxu0 0.0
    %6658 = vmatprep.subr.mxu0 0.0
    %6659 = vmatpush1.msra.mxu0 0.0
    %6660 = vmatprep.subr.mxu0 0.0
    %6661 = vmatpush1.msra.mxu0 0.0
    %6662 = vmatprep.subr.mxu0 0.0
    %6663 = vmatpush1.msra.mxu0 0.0
    %6664 = vmatprep.subr.mxu0 0.0
    %6665 = vmatpush1.msra.mxu0 0.0
    %6666 = vmatprep.subr.mxu0 0.0
    %6667 = vmatpush1.msra.mxu0 0.0
    %6668 = vmatprep.subr.mxu0 0.0
    %6669 = vmatpush1.msra.mxu0 0.0
    %6670 = vmatprep.subr.mxu0 0.0
    %6671 = vmatpush1.msra.mxu0 0.0
    %6672 = vmatprep.mubr.f32.mxu0 0.0
    %6673 = vmatmul.mubr.f32.gmra.mrb[0].mxu0 %v6606
    %v6674 = vpop.f32.mrb[0].mxu0
    %v6675 = vadd.f32 0.0, %v6674
    %v6676 = vpop.f32.mrb[0].mxu0
    %6677 = vdwg.mxu0
    %v6678 = vsel %vm302, %v6506, 0
    %6680 = vmatprep.subr.mxu0 0.0
    %6681 = vmatpush1.msra.mxu0 %v4137
    %6682 = vmatprep.subr.mxu0 0.0
    %6683 = vmatpush1.msra.mxu0 %v4138
    %6684 = vmatprep.subr.mxu0 0.0
    %6685 = vmatpush1.msra.mxu0 %v4139
    %6686 = vmatprep.subr.mxu0 0.0
    %6687 = vmatpush1.msra.mxu0 %v4140
    %6688 = vmatprep.subr.mxu0 0.0
    %6689 = vmatpush1.msra.mxu0 0.0
    %6690 = vmatprep.subr.mxu0 0.0
    %6691 = vmatpush1.msra.mxu0 0.0
    %6692 = vmatprep.subr.mxu0 0.0
    %6693 = vmatpush1.msra.mxu0 0.0
    %6694 = vmatprep.subr.mxu0 0.0
    %6695 = vmatpush1.msra.mxu0 0.0
    %6696 = vmatprep.subr.mxu0 0.0
    %6697 = vmatpush1.msra.mxu0 0.0
    %6698 = vmatprep.subr.mxu0 0.0
    %6699 = vmatpush1.msra.mxu0 0.0
    %6700 = vmatprep.subr.mxu0 0.0
    %6701 = vmatpush1.msra.mxu0 0.0
    %6702 = vmatprep.subr.mxu0 0.0
    %6703 = vmatpush1.msra.mxu0 0.0
    %6704 = vmatprep.subr.mxu0 0.0
    %6705 = vmatpush1.msra.mxu0 0.0
    %6706 = vmatprep.subr.mxu0 0.0
    %6707 = vmatpush1.msra.mxu0 0.0
    %6708 = vmatprep.subr.mxu0 0.0
    %6709 = vmatpush1.msra.mxu0 0.0
    %6710 = vmatprep.subr.mxu0 0.0
    %6711 = vmatpush1.msra.mxu0 0.0
    %6712 = vmatprep.subr.mxu0 0.0
    %6713 = vmatpush1.msra.mxu0 0.0
    %6714 = vmatprep.subr.mxu0 0.0
    %6715 = vmatpush1.msra.mxu0 0.0
    %6716 = vmatprep.subr.mxu0 0.0
    %6717 = vmatpush1.msra.mxu0 0.0
    %6718 = vmatprep.subr.mxu0 0.0
    %6719 = vmatpush1.msra.mxu0 0.0
    %6720 = vmatprep.subr.mxu0 0.0
    %6721 = vmatpush1.msra.mxu0 0.0
    %6722 = vmatprep.subr.mxu0 0.0
    %6723 = vmatpush1.msra.mxu0 0.0
    %6724 = vmatprep.subr.mxu0 0.0
    %6725 = vmatpush1.msra.mxu0 0.0
    %6726 = vmatprep.subr.mxu0 0.0
    %6727 = vmatpush1.msra.mxu0 0.0
    %6728 = vmatprep.subr.mxu0 0.0
    %6729 = vmatpush1.msra.mxu0 0.0
    %6730 = vmatprep.subr.mxu0 0.0
    %6731 = vmatpush1.msra.mxu0 0.0
    %6732 = vmatprep.subr.mxu0 0.0
    %6733 = vmatpush1.msra.mxu0 0.0
    %6734 = vmatprep.subr.mxu0 0.0
    %6735 = vmatpush1.msra.mxu0 0.0
    %6736 = vmatprep.subr.mxu0 0.0
    %6737 = vmatpush1.msra.mxu0 0.0
    %6738 = vmatprep.subr.mxu0 0.0
    %6739 = vmatpush1.msra.mxu0 0.0
    %6740 = vmatprep.subr.mxu0 0.0
    %6741 = vmatpush1.msra.mxu0 0.0
    %6742 = vmatprep.subr.mxu0 0.0
    %6743 = vmatpush1.msra.mxu0 0.0
    %6744 = vmatprep.mubr.f32.mxu0 0.0
    %6745 = vmatmul.mubr.f32.gmra.mrb[0].mxu0 %v6678
    %v6746 = vpop.f32.mrb[0].mxu0
    %v6747 = vadd.f32 0.0, %v6746
    %v6748 = vpop.f32.mrb[0].mxu0
    %6749 = vdwg.mxu0
    %v6750 = vlaneseq
    %v6751 = vshrl.u32 %v6750, 7
    %v6752 = vsub.s32 0, %v6751
    %v6753 = vrot.slane %v6747, %v6752
    %v6754 = vadd.f32 %v4124, %v6753
    %v6755 = vtanh.pop %v6754
    %v6756 = vmul.f32 %v6755, %v4226
    %v6757 = vsel %vm302, %v6756, 0.0
    %6758 = vadd.xlane.f32.xlu0 %v6757
    %v6759 = vpop.xlane.xlu0 %6758
    %v6760 = vrot.slane %v6759, 4
    %v6761 = vmax.f32 %v6759, %v6760
    %v6762 = vrot.slane %v6761, 2
    %v6763 = vmax.f32 %v6761, %v6762
    %v6764 = vrot.slane %v6763, 1
    %v6765 = vmax.f32 %v6763, %v6764
    %v6766 = vsub.f32 %v6759, %v6765
    %v6767 = vmul.f32 %v6766, 1.442695
    %v6768 = vpow.pop %v6767
    %v6769 = vrot.slane %v6768, 4
    %v6770 = vadd.f32 %v6768, %v6769
    %v6771 = vrot.slane %v6770, 2
    %v6772 = vadd.f32 %v6770, %v6771
    %v6773 = vrot.slane %v6772, 1
    %v6774 = vadd.f32 %v6772, %v6773
    %v6775 = vrcp.pop %v6774
    %v6776 = vmul.f32 %v6768, %v6775
    %v6777 = vmul.f32 %v6776, %v4045
    %v6778 = vsel %vm4250, %v6777, 0.0
    %v6779 = vrot.slane %v6778, 4
    %v6780 = vadd.f32 %v6778, %v6779
    %v6781 = vrot.slane %v6780, 2
    %v6782 = vadd.f32 %v6780, %v6781
    %v6783 = vrot.slane %v6782, 1
    %v6784 = vadd.f32 %v6782, %v6783
    %v6785 = vsel %vm302, %v6675, %v6784
    %v6787 = vsel %vm2189, %v6785, 0
    %6789 = vmatprep.subr.mxu0 0.0
    %6790 = vmatpush1.msra.mxu0 %v4259
    %6791 = vmatprep.subr.mxu0 0.0
    %6792 = vmatpush1.msra.mxu0 %v4260
    %6793 = vmatprep.subr.mxu0 0.0
    %6794 = vmatpush1.msra.mxu0 %v4261
    %6795 = vmatprep.subr.mxu0 0.0
    %6796 = vmatpush1.msra.mxu0 %v4262
    %6797 = vmatprep.subr.mxu0 0.0
    %6798 = vmatpush1.msra.mxu0 %v4263
    %6799 = vmatprep.subr.mxu0 0.0
    %6800 = vmatpush1.msra.mxu0 %v4264
    %6801 = vmatprep.subr.mxu0 0.0
    %6802 = vmatpush1.msra.mxu0 %v4265
    %6803 = vmatprep.subr.mxu0 0.0
    %6804 = vmatpush1.msra.mxu0 %v4266
    %6805 = vmatprep.subr.mxu0 0.0
    %6806 = vmatpush1.msra.mxu0 0.0
    %6807 = vmatprep.subr.mxu0 0.0
    %6808 = vmatpush1.msra.mxu0 0.0
    %6809 = vmatprep.subr.mxu0 0.0
    %6810 = vmatpush1.msra.mxu0 0.0
    %6811 = vmatprep.subr.mxu0 0.0
    %6812 = vmatpush1.msra.mxu0 0.0
    %6813 = vmatprep.subr.mxu0 0.0
    %6814 = vmatpush1.msra.mxu0 0.0
    %6815 = vmatprep.subr.mxu0 0.0
    %6816 = vmatpush1.msra.mxu0 0.0
    %6817 = vmatprep.subr.mxu0 0.0
    %6818 = vmatpush1.msra.mxu0 0.0
    %6819 = vmatprep.subr.mxu0 0.0
    %6820 = vmatpush1.msra.mxu0 0.0
    %6821 = vmatprep.subr.mxu0 0.0
    %6822 = vmatpush1.msra.mxu0 0.0
    %6823 = vmatprep.subr.mxu0 0.0
    %6824 = vmatpush1.msra.mxu0 0.0
    %6825 = vmatprep.subr.mxu0 0.0
    %6826 = vmatpush1.msra.mxu0 0.0
    %6827 = vmatprep.subr.mxu0 0.0
    %6828 = vmatpush1.msra.mxu0 0.0
    %6829 = vmatprep.subr.mxu0 0.0
    %6830 = vmatpush1.msra.mxu0 0.0
    %6831 = vmatprep.subr.mxu0 0.0
    %6832 = vmatpush1.msra.mxu0 0.0
    %6833 = vmatprep.subr.mxu0 0.0
    %6834 = vmatpush1.msra.mxu0 0.0
    %6835 = vmatprep.subr.mxu0 0.0
    %6836 = vmatpush1.msra.mxu0 0.0
    %6837 = vmatprep.subr.mxu0 0.0
    %6838 = vmatpush1.msra.mxu0 0.0
    %6839 = vmatprep.subr.mxu0 0.0
    %6840 = vmatpush1.msra.mxu0 0.0
    %6841 = vmatprep.subr.mxu0 0.0
    %6842 = vmatpush1.msra.mxu0 0.0
    %6843 = vmatprep.subr.mxu0 0.0
    %6844 = vmatpush1.msra.mxu0 0.0
    %6845 = vmatprep.subr.mxu0 0.0
    %6846 = vmatpush1.msra.mxu0 0.0
    %6847 = vmatprep.subr.mxu0 0.0
    %6848 = vmatpush1.msra.mxu0 0.0
    %6849 = vmatprep.subr.mxu0 0.0
    %6850 = vmatpush1.msra.mxu0 0.0
    %6851 = vmatprep.subr.mxu0 0.0
    %6852 = vmatpush1.msra.mxu0 0.0
    %6853 = vmatprep.mubr.f32.mxu0 0.0
    %6854 = vmatmul.mubr.f32.gmra.mrb[0].mxu0 %v6787
    %v6855 = vpop.f32.mrb[0].mxu0
    %v6856 = vadd.f32 %v4267, %v6855
    %v6857 = vpop.f32.mrb[0].mxu0
    %6858 = vdwg.mxu0
    %6859 = vmatprep.subr.mxu0 0.0
    %6860 = vmatpush1.msra.mxu0 %v4342
    %6861 = vmatprep.subr.mxu0 0.0
    %6862 = vmatpush1.msra.mxu0 %v4343
    %6863 = vmatprep.subr.mxu0 0.0
    %6864 = vmatpush1.msra.mxu0 %v4344
    %6865 = vmatprep.subr.mxu0 0.0
    %6866 = vmatpush1.msra.mxu0 %v4345
    %6867 = vmatprep.subr.mxu0 0.0
    %6868 = vmatpush1.msra.mxu0 0.0
    %6869 = vmatprep.subr.mxu0 0.0
    %6870 = vmatpush1.msra.mxu0 0.0
    %6871 = vmatprep.subr.mxu0 0.0
    %6872 = vmatpush1.msra.mxu0 0.0
    %6873 = vmatprep.subr.mxu0 0.0
    %6874 = vmatpush1.msra.mxu0 0.0
    %6875 = vmatprep.subr.mxu0 0.0
    %6876 = vmatpush1.msra.mxu0 0.0
    %6877 = vmatprep.subr.mxu0 0.0
    %6878 = vmatpush1.msra.mxu0 0.0
    %6879 = vmatprep.subr.mxu0 0.0
    %6880 = vmatpush1.msra.mxu0 0.0
    %6881 = vmatprep.subr.mxu0 0.0
    %6882 = vmatpush1.msra.mxu0 0.0
    %6883 = vmatprep.subr.mxu0 0.0
    %6884 = vmatpush1.msra.mxu0 0.0
    %6885 = vmatprep.subr.mxu0 0.0
    %6886 = vmatpush1.msra.mxu0 0.0
    %6887 = vmatprep.subr.mxu0 0.0
    %6888 = vmatpush1.msra.mxu0 0.0
    %6889 = vmatprep.subr.mxu0 0.0
    %6890 = vmatpush1.msra.mxu0 0.0
    %6891 = vmatprep.subr.mxu0 0.0
    %6892 = vmatpush1.msra.mxu0 0.0
    %6893 = vmatprep.subr.mxu0 0.0
    %6894 = vmatpush1.msra.mxu0 0.0
    %6895 = vmatprep.subr.mxu0 0.0
    %6896 = vmatpush1.msra.mxu0 0.0
    %6897 = vmatprep.subr.mxu0 0.0
    %6898 = vmatpush1.msra.mxu0 0.0
    %6899 = vmatprep.subr.mxu0 0.0
    %6900 = vmatpush1.msra.mxu0 0.0
    %6901 = vmatprep.subr.mxu0 0.0
    %6902 = vmatpush1.msra.mxu0 0.0
    %6903 = vmatprep.subr.mxu0 0.0
    %6904 = vmatpush1.msra.mxu0 0.0
    %6905 = vmatprep.subr.mxu0 0.0
    %6906 = vmatpush1.msra.mxu0 0.0
    %6907 = vmatprep.subr.mxu0 0.0
    %6908 = vmatpush1.msra.mxu0 0.0
    %6909 = vmatprep.subr.mxu0 0.0
    %6910 = vmatpush1.msra.mxu0 0.0
    %6911 = vmatprep.subr.mxu0 0.0
    %6912 = vmatpush1.msra.mxu0 0.0
    %6913 = vmatprep.subr.mxu0 0.0
    %6914 = vmatpush1.msra.mxu0 0.0
    %6915 = vmatprep.subr.mxu0 0.0
    %6916 = vmatpush1.msra.mxu0 0.0
    %6917 = vmatprep.subr.mxu0 0.0
    %6918 = vmatpush1.msra.mxu0 0.0
    %6919 = vmatprep.subr.mxu0 0.0
    %6920 = vmatpush1.msra.mxu0 0.0
    %6921 = vmatprep.subr.mxu0 0.0
    %6922 = vmatpush1.msra.mxu0 0.0
    %6923 = vmatprep.mubr.f32.mxu0 0.0
    %6924 = vmatmul.mubr.f32.gmra.mrb[0].mxu0 %v6336
    %v6925 = vpop.f32.mrb[0].mxu0
    %v6926 = vadd.f32 %v4346, %v6925
    %v6927 = vpop.f32.mrb[0].mxu0
    %6928 = vdwg.mxu0
    %v6929 = vadd.f32 %v6856, %v6926
    %v6930 = vxor.u32 %v6929, 2147483648
    %v6931 = vmul.f32 %v6930, 1.442695
    %v6932 = vpow.pop %v6931
    %v6933 = vadd.f32 %v6932, 1.0
    %v6934 = vrcp.pop %v6933
    %v6935 = vmul.f32 1.0, %v6934
    %6937 = vrot.lane.b32.xlu0 %v6926, 64
    %v6938 = vpop.permute.xlu0 %6937
    %v6940 = vmul.f32 %v6935, %v6938
    %6942 = vrot.lane.b32.xlu0 %v6940, 64
    %v6943 = vpop.permute.xlu0 %6942
    %v6945 = vadd.f32 %v6856, %v6943
    %v6946 = vtanh.pop %v6945
    %v6947 = vsub.f32 1.0, %v6935
    %6949 = vrot.lane.b32.xlu0 %v6946, 96
    %v6950 = vpop.permute.xlu0 %6949
    %v6952 = vmul.f32 %v6947, %v6950
    %v6953 = vmul.f32 %v6935, %v6332
    %v6954 = vadd.f32 %v6952, %v6953
    %6956 = vrot.lane.b32.xlu0 %v6954, 96
    %v6957 = vpop.permute.xlu0 %6956
    %v6958 = vsel %vm302, %v6957, 0
    %6960 = vmatprep.subr.mxu0 0.0
    %6961 = vmatpush1.msra.mxu0 %v4450
    %6962 = vmatprep.subr.mxu0 0.0
    %6963 = vmatpush1.msra.mxu0 %v4451
    %6964 = vmatprep.subr.mxu0 0.0
    %6965 = vmatpush1.msra.mxu0 %v4452
    %6966 = vmatprep.subr.mxu0 0.0
    %6967 = vmatpush1.msra.mxu0 %v4453
    %6968 = vmatprep.subr.mxu0 0.0
    %6969 = vmatpush1.msra.mxu0 0.0
    %6970 = vmatprep.subr.mxu0 0.0
    %6971 = vmatpush1.msra.mxu0 0.0
    %6972 = vmatprep.subr.mxu0 0.0
    %6973 = vmatpush1.msra.mxu0 0.0
    %6974 = vmatprep.subr.mxu0 0.0
    %6975 = vmatpush1.msra.mxu0 0.0
    %6976 = vmatprep.subr.mxu0 0.0
    %6977 = vmatpush1.msra.mxu0 0.0
    %6978 = vmatprep.subr.mxu0 0.0
    %6979 = vmatpush1.msra.mxu0 0.0
    %6980 = vmatprep.subr.mxu0 0.0
    %6981 = vmatpush1.msra.mxu0 0.0
    %6982 = vmatprep.subr.mxu0 0.0
    %6983 = vmatpush1.msra.mxu0 0.0
    %6984 = vmatprep.subr.mxu0 0.0
    %6985 = vmatpush1.msra.mxu0 0.0
    %6986 = vmatprep.subr.mxu0 0.0
    %6987 = vmatpush1.msra.mxu0 0.0
    %6988 = vmatprep.subr.mxu0 0.0
    %6989 = vmatpush1.msra.mxu0 0.0
    %6990 = vmatprep.subr.mxu0 0.0
    %6991 = vmatpush1.msra.mxu0 0.0
    %6992 = vmatprep.subr.mxu0 0.0
    %6993 = vmatpush1.msra.mxu0 0.0
    %6994 = vmatprep.subr.mxu0 0.0
    %6995 = vmatpush1.msra.mxu0 0.0
    %6996 = vmatprep.subr.mxu0 0.0
    %6997 = vmatpush1.msra.mxu0 0.0
    %6998 = vmatprep.subr.mxu0 0.0
    %6999 = vmatpush1.msra.mxu0 0.0
    %7000 = vmatprep.subr.mxu0 0.0
    %7001 = vmatpush1.msra.mxu0 0.0
    %7002 = vmatprep.subr.mxu0 0.0
    %7003 = vmatpush1.msra.mxu0 0.0
    %7004 = vmatprep.subr.mxu0 0.0
    %7005 = vmatpush1.msra.mxu0 0.0
    %7006 = vmatprep.subr.mxu0 0.0
    %7007 = vmatpush1.msra.mxu0 0.0
    %7008 = vmatprep.subr.mxu0 0.0
    %7009 = vmatpush1.msra.mxu0 0.0
    %7010 = vmatprep.subr.mxu0 0.0
    %7011 = vmatpush1.msra.mxu0 0.0
    %7012 = vmatprep.subr.mxu0 0.0
    %7013 = vmatpush1.msra.mxu0 0.0
    %7014 = vmatprep.subr.mxu0 0.0
    %7015 = vmatpush1.msra.mxu0 0.0
    %7016 = vmatprep.subr.mxu0 0.0
    %7017 = vmatpush1.msra.mxu0 0.0
    %7018 = vmatprep.subr.mxu0 0.0
    %7019 = vmatpush1.msra.mxu0 0.0
    %7020 = vmatprep.subr.mxu0 0.0
    %7021 = vmatpush1.msra.mxu0 0.0
    %7022 = vmatprep.subr.mxu0 0.0
    %7023 = vmatpush1.msra.mxu0 0.0
    %7024 = vmatprep.mubr.f32.mxu0 0.0
    %7025 = vmatmul.mubr.f32.gmra.mrb[0].mxu0 %v6958
    %v7026 = vpop.f32.mrb[0].mxu0
    %v7027 = vadd.f32 %v4454, %v7026
    %v7028 = vpop.f32.mrb[0].mxu0
    %7029 = vdwg.mxu0
    %7030 = vmatprep.subr.mxu0 0.0
    %7031 = vmatpush1.msra.mxu0 %v4530
    %7032 = vmatprep.subr.mxu0 0.0
    %7033 = vmatpush1.msra.mxu0 %v4531
    %7034 = vmatprep.subr.mxu0 0.0
    %7035 = vmatpush1.msra.mxu0 %v4532
    %7036 = vmatprep.subr.mxu0 0.0
    %7037 = vmatpush1.msra.mxu0 %v4533
    %7038 = vmatprep.subr.mxu0 0.0
    %7039 = vmatpush1.msra.mxu0 0.0
    %7040 = vmatprep.subr.mxu0 0.0
    %7041 = vmatpush1.msra.mxu0 0.0
    %7042 = vmatprep.subr.mxu0 0.0
    %7043 = vmatpush1.msra.mxu0 0.0
    %7044 = vmatprep.subr.mxu0 0.0
    %7045 = vmatpush1.msra.mxu0 0.0
    %7046 = vmatprep.subr.mxu0 0.0
    %7047 = vmatpush1.msra.mxu0 0.0
    %7048 = vmatprep.subr.mxu0 0.0
    %7049 = vmatpush1.msra.mxu0 0.0
    %7050 = vmatprep.subr.mxu0 0.0
    %7051 = vmatpush1.msra.mxu0 0.0
    %7052 = vmatprep.subr.mxu0 0.0
    %7053 = vmatpush1.msra.mxu0 0.0
    %7054 = vmatprep.subr.mxu0 0.0
    %7055 = vmatpush1.msra.mxu0 0.0
    %7056 = vmatprep.subr.mxu0 0.0
    %7057 = vmatpush1.msra.mxu0 0.0
    %7058 = vmatprep.subr.mxu0 0.0
    %7059 = vmatpush1.msra.mxu0 0.0
    %7060 = vmatprep.subr.mxu0 0.0
    %7061 = vmatpush1.msra.mxu0 0.0
    %7062 = vmatprep.subr.mxu0 0.0
    %7063 = vmatpush1.msra.mxu0 0.0
    %7064 = vmatprep.subr.mxu0 0.0
    %7065 = vmatpush1.msra.mxu0 0.0
    %7066 = vmatprep.subr.mxu0 0.0
    %7067 = vmatpush1.msra.mxu0 0.0
    %7068 = vmatprep.subr.mxu0 0.0
    %7069 = vmatpush1.msra.mxu0 0.0
    %7070 = vmatprep.subr.mxu0 0.0
    %7071 = vmatpush1.msra.mxu0 0.0
    %7072 = vmatprep.subr.mxu0 0.0
    %7073 = vmatpush1.msra.mxu0 0.0
    %7074 = vmatprep.subr.mxu0 0.0
    %7075 = vmatpush1.msra.mxu0 0.0
    %7076 = vmatprep.subr.mxu0 0.0
    %7077 = vmatpush1.msra.mxu0 0.0
    %7078 = vmatprep.subr.mxu0 0.0
    %7079 = vmatpush1.msra.mxu0 0.0
    %7080 = vmatprep.subr.mxu0 0.0
    %7081 = vmatpush1.msra.mxu0 0.0
    %7082 = vmatprep.subr.mxu0 0.0
    %7083 = vmatpush1.msra.mxu0 0.0
    %7084 = vmatprep.subr.mxu0 0.0
    %7085 = vmatpush1.msra.mxu0 0.0
    %7086 = vmatprep.subr.mxu0 0.0
    %7087 = vmatpush1.msra.mxu0 0.0
    %7088 = vmatprep.subr.mxu0 0.0
    %7089 = vmatpush1.msra.mxu0 0.0
    %7090 = vmatprep.subr.mxu0 0.0
    %7091 = vmatpush1.msra.mxu0 0.0
    %7092 = vmatprep.subr.mxu0 0.0
    %7093 = vmatpush1.msra.mxu0 0.0
    %7094 = vmatprep.mubr.f32.mxu0 0.0
    %7095 = vmatmul.mubr.f32.gmra.mrb[0].mxu0 %v6678
    %v7096 = vpop.f32.mrb[0].mxu0
    %v7097 = vadd.f32 %v4534, %v7096
    %v7098 = vpop.f32.mrb[0].mxu0
    %7099 = vdwg.mxu0
    %v7100 = vadd.f32 %v7027, %v7097
    %v7101 = vxor.u32 %v7100, 2147483648
    %v7102 = vmul.f32 %v7101, 1.442695
    %v7103 = vpow.pop %v7102
    %v7104 = vadd.f32 %v7103, 1.0
    %v7105 = vrcp.pop %v7104
    %v7106 = vmul.f32 1.0, %v7105
    %7108 = vrot.lane.b32.xlu0 %v7097, 64
    %v7109 = vpop.permute.xlu0 %7108
    %v7111 = vmul.f32 %v7106, %v7109
    %7113 = vrot.lane.b32.xlu0 %v7111, 64
    %v7114 = vpop.permute.xlu0 %7113
    %v7116 = vadd.f32 %v7027, %v7114
    %v7117 = vtanh.pop %v7116
    %v7118 = vsub.f32 1.0, %v7106
    %7120 = vrot.lane.b32.xlu0 %v7117, 96
    %v7121 = vpop.permute.xlu0 %7120
    %v7123 = vmul.f32 %v7118, %v7121
    %v7124 = vmul.f32 %v7106, %v6503
    %v7125 = vadd.f32 %v7123, %v7124
    %7127 = vrot.lane.b32.xlu0 %v7125, 96
    %v7128 = vpop.permute.xlu0 %7127
    %v7130 = vsel %vm302, %v7128, %v6784
    %v7132 = vsel %vm2189, %v7130, 0
    %7134 = vmatprep.subr.mxu0 0.0
    %7135 = vmatpush1.msra.mxu0 %v4128
    %7136 = vmatprep.subr.mxu0 0.0
    %7137 = vmatpush1.msra.mxu0 %v4129
    %7138 = vmatprep.subr.mxu0 0.0
    %7139 = vmatpush1.msra.mxu0 %v4130
    %7140 = vmatprep.subr.mxu0 0.0
    %7141 = vmatpush1.msra.mxu0 %v4131
    %7142 = vmatprep.subr.mxu0 0.0
    %7143 = vmatpush1.msra.mxu0 %v4132
    %7144 = vmatprep.subr.mxu0 0.0
    %7145 = vmatpush1.msra.mxu0 %v4133
    %7146 = vmatprep.subr.mxu0 0.0
    %7147 = vmatpush1.msra.mxu0 %v4134
    %7148 = vmatprep.subr.mxu0 0.0
    %7149 = vmatpush1.msra.mxu0 %v4135
    %7150 = vmatprep.subr.mxu0 0.0
    %7151 = vmatpush1.msra.mxu0 0.0
    %7152 = vmatprep.subr.mxu0 0.0
    %7153 = vmatpush1.msra.mxu0 0.0
    %7154 = vmatprep.subr.mxu0 0.0
    %7155 = vmatpush1.msra.mxu0 0.0
    %7156 = vmatprep.subr.mxu0 0.0
    %7157 = vmatpush1.msra.mxu0 0.0
    %7158 = vmatprep.subr.mxu0 0.0
    %7159 = vmatpush1.msra.mxu0 0.0
    %7160 = vmatprep.subr.mxu0 0.0
    %7161 = vmatpush1.msra.mxu0 0.0
    %7162 = vmatprep.subr.mxu0 0.0
    %7163 = vmatpush1.msra.mxu0 0.0
    %7164 = vmatprep.subr.mxu0 0.0
    %7165 = vmatpush1.msra.mxu0 0.0
    %7166 = vmatprep.subr.mxu0 0.0
    %7167 = vmatpush1.msra.mxu0 0.0
    %7168 = vmatprep.subr.mxu0 0.0
    %7169 = vmatpush1.msra.mxu0 0.0
    %7170 = vmatprep.subr.mxu0 0.0
    %7171 = vmatpush1.msra.mxu0 0.0
    %7172 = vmatprep.subr.mxu0 0.0
    %7173 = vmatpush1.msra.mxu0 0.0
    %7174 = vmatprep.subr.mxu0 0.0
    %7175 = vmatpush1.msra.mxu0 0.0
    %7176 = vmatprep.subr.mxu0 0.0
    %7177 = vmatpush1.msra.mxu0 0.0
    %7178 = vmatprep.subr.mxu0 0.0
    %7179 = vmatpush1.msra.mxu0 0.0
    %7180 = vmatprep.subr.mxu0 0.0
    %7181 = vmatpush1.msra.mxu0 0.0
    %7182 = vmatprep.subr.mxu0 0.0
    %7183 = vmatpush1.msra.mxu0 0.0
    %7184 = vmatprep.subr.mxu0 0.0
    %7185 = vmatpush1.msra.mxu0 0.0
    %7186 = vmatprep.subr.mxu0 0.0
    %7187 = vmatpush1.msra.mxu0 0.0
    %7188 = vmatprep.subr.mxu0 0.0
    %7189 = vmatpush1.msra.mxu0 0.0
    %7190 = vmatprep.subr.mxu0 0.0
    %7191 = vmatpush1.msra.mxu0 0.0
    %7192 = vmatprep.subr.mxu0 0.0
    %7193 = vmatpush1.msra.mxu0 0.0
    %7194 = vmatprep.subr.mxu0 0.0
    %7195 = vmatpush1.msra.mxu0 0.0
    %7196 = vmatprep.subr.mxu0 0.0
    %7197 = vmatpush1.msra.mxu0 0.0
    %7198 = vmatprep.mubr.f32.mxu0 0.0
    %7199 = vmatmul.mubr.f32.gmra.mrb[0].mxu0 %v7132
    %v7200 = vpop.f32.mrb[0].mxu0
    %v7201 = vadd.f32 %v4136, %v7200
    %v7202 = vpop.f32.mrb[0].mxu0
    %7203 = vdwg.mxu0
    %v7205 = vrot.slane %v5335, 7
    %v7208 = vrot.slane %v5957, 6
    %v7211 = vrot.slane %v6579, 5
    %v7214 = vrot.slane %v7201, 4
    %v7216 = vsel %vm1216, %v4706, %v7205
    %v7217 = vsel %vm1218, %v7216, %v7208
    %v7218 = vsel %vm1220, %v7217, %v7211
    %v7219 = vsel %vm1222, %v7218, %v7214
    %vm7220 = vcmask 94208
    %7221 = vst.msk [vmem:[%s23] sm:$0x1f] %vm7220, %v7219
    %vm7222 = vcmask 7168
    %v7223 = vsel %vm7222, %v4248, %v4910
    %vm7224 = vcmask 15360
    %v7225 = vsel %vm7224, %v7223, %v5532
    %vm7226 = vcmask 23552
    %v7227 = vsel %vm7226, %v7225, %v6154
    %vm7228 = vcmask 31744
    %v7229 = vsel %vm7228, %v7227, %v6776
    %vm7230 = vcmask 39936
    %7231 = vst.msk [vmem:[%s24] sm:$0xff] %vm7230, %v7229
    // Predicated region
    $region158: #{seq2seq_forward.1} parent=1 // pred_check
      _
    $region159: #{seq2seq_forward.1} parent=1 // pred_check_branch
      %7233 = sbr.rel (0) target = $region161
    $region160: #{seq2seq_forward.1} parent=1 // pred_region
      _
    $region161: #{seq2seq_forward.1} parent=1 // pred_fallthru
      _
    // Predicated region
    $region162: #{seq2seq_forward.1} parent=1 // pred_check
      _
    $region163: #{seq2seq_forward.1} parent=1 // pred_check_branch
      %7235 = sbr.rel (0) target = $region165
    $region164: #{seq2seq_forward.1} parent=1 // pred_region
      _
    $region165: #{seq2seq_forward.1} parent=1 // pred_fallthru
      _
    // Predicated region
    $region166: #{seq2seq_forward.1} parent=1 // pred_check
      _
    $region167: #{seq2seq_forward.1} parent=1 // pred_check_branch
      %7237 = sbr.rel (0) target = $region169
    $region168: #{seq2seq_forward.1} parent=1 // pred_region
      _
    $region169: #{seq2seq_forward.1} parent=1 // pred_fallthru
      _
    // Predicated region
    $region170: #{seq2seq_forward.1} parent=1 // pred_check
      _
    $region171: #{seq2seq_forward.1} parent=1 // pred_check_branch
      %7239 = sbr.rel (0) target = $region173
    $region172: #{seq2seq_forward.1} parent=1 // pred_region
      _
    $region173: #{seq2seq_forward.1} parent=1 // pred_fallthru
      _
    %7240 = vsyncpa [#allocation3], 1
    %7241 = vsyncpa [#allocation5], 1
    %7242 = vsyncpa [#allocation8], 1
    %7243 = vsyncpa [#allocation11], 1
    %7244 = vsyncpa [#allocation14], 1
    %7245 = vsyncpa [#allocation17], 1
    %7246 = vsyncpa [#allocation20], 1
    %7247 = vsyncpa [#allocation23], 1
    %7248 = vsyncpa [#allocation26], 1

</llo_original>
